<compile_context>
chip_gen: v5e
topology: v5e:2x2
jax: 0.10.0
libtpu: 0.0.40
codegen_flags: <defaults>
</compile_context>

<pallas_src>
import jax
import jax.numpy as jnp
from jax.experimental import pallas as pl
from jax.experimental.pallas import tpu as pltpu

_BN_EPS = 1e-5
_PAD = 4                       # conv1 'same' padding (k=9 -> pad 4)


# ------------------------------------------------------------------- kernel --
def _gesture_fused_kernel(x_ref, *refs):
    """Full forward pass for one tile of B batch elements (grid axis = tiles)."""
    (c1_w0_r, c1_b0_r, c1_w1_r, c1_b1_r, c1_ws_r, c1_bs_r,
     c2_w0_r, c2_b0_r, c2_wd_r, c2_bd_r, c2_w1_r, c2_b1_r, sel2_r,
     c3_w0_r, c3_b0_r, c3_wd_r, c3_bd_r, c3_w1_r, c3_b1_r, sel3_r,
     c4_wd_r, c4_wp_r, c4_bp_r,
     l1_w_r, l1_b_r, l2_w_r, l2_b_r, l3_w_r, l3_b_r) = refs[:-1]
    o_ref = refs[-1]

    f32, bf16 = jnp.float32, jnp.bfloat16
    b_tile = x_ref.shape[0]
    w_in = x_ref.shape[2] - 2 * _PAD           # original time length
    w2 = (w_in - 2) // 2 + 1                   # after conv2 (stride 2, pad 4, k 10)
    w3 = (w2 - 2) // 2 + 1                     # after conv3
    w4 = w3 - 9                                # after conv4 (k 10, no pad)
    n_pool = (w4 - 10) // 9 + 1                # MaxPool1d(10, 9)

    def mxu(w_bf16, a):
        # weights are pre-cast bf16; only the activation operand is cast here.
        return jnp.dot(w_bf16, a.astype(bf16), preferred_element_type=f32)

    def stride2(a, sel):
        # stride-2 subsample along time via a precomputed bf16 0/1 selection
        # matmul (avoids lane-strided slicing; exact 1.0*x copies).
        return jnp.dot(a.astype(bf16), sel, preferred_element_type=f32)

    # ---- load every weight once per grid step (resident for all B elements) --
    c1_w0, c1_b0 = c1_w0_r[...], c1_b0_r[...]
    c1_w1, c1_b1 = c1_w1_r[...], c1_b1_r[...]
    c1_ws, c1_bs = c1_ws_r[...], c1_bs_r[...]
    c2_w0, c2_b0 = c2_w0_r[...], c2_b0_r[...]
    c2_wd, c2_bd = c2_wd_r[...], c2_bd_r[...]
    c2_w1, c2_b1 = c2_w1_r[...], c2_b1_r[...]
    sel2 = sel2_r[...]
    c3_w0, c3_b0 = c3_w0_r[...], c3_b0_r[...]
    c3_wd, c3_bd = c3_wd_r[...], c3_bd_r[...]
    c3_w1, c3_b1 = c3_w1_r[...], c3_b1_r[...]
    sel3 = sel3_r[...]
    c4_wd, c4_wp, c4_bp = c4_wd_r[...], c4_wp_r[...], c4_bp_r[...]
    l1_w, l1_b = l1_w_r[...], l1_b_r[...]
    l2_w, l2_b = l2_w_r[...], l2_b_r[...]
    l3_w, l3_b = l3_w_r[...], l3_b_r[...]

    def depthwise(a, w, bias, pad, l_out, relu, chunk=72):
        # stride-1 depthwise conv along time (VPU, f32), processed in channel
        # chunks so the 144-channel conv3 tap loop stays under the vreg budget.
        c_tot, k_taps = w.shape
        outs = []
        for c0 in range(0, c_tot, chunk):
            c1 = min(c0 + chunk, c_tot)
            ac = a[c0:c1]
            if pad:
                z = jnp.zeros((c1 - c0, pad), f32)
                ac = jnp.concatenate([z, ac, z], axis=1)
            acc = jnp.zeros((c1 - c0, l_out), f32)
            for k in range(k_taps):
                acc = acc + ac[:, k:k + l_out] * w[c0:c1, k:k + 1]
            if bias is not None:
                acc = acc + bias[c0:c1]
            if relu:
                acc = jnp.maximum(acc, 0.0)
            outs.append(acc)
        return outs[0] if len(outs) == 1 else jnp.concatenate(outs, axis=0)

    pooled_cols = []
    for b in range(b_tile):                    # unrolled over the batch tile
        xp = x_ref[b]                          # (8, W+8) f32, pre-padded (2 zero chans)
        x0 = xp[:, _PAD:_PAD + w_in]           # (8, W)   un-padded view for shortcut

        # ---- conv1 = MBConv1(6->12, k=9, pad 4) + 1x1 shortcut (BN folded) --
        # im2col: 9 shifted 8-row slices stacked on sublanes -> one MXU matmul.
        xcol = jnp.concatenate([xp[:, k:k + w_in] for k in range(9)], axis=0)  # (72, W)
        a1 = jnp.maximum(mxu(c1_w0, xcol) + c1_b0, 0.0)
        a1 = mxu(c1_w1, a1) + c1_b1
        y = a1 + mxu(c1_ws, x0) + c1_bs                              # (12, W)

        # ---- conv2 = MBConv6(12->24, k=10, stride 2, pad 4), mid 72 ---------
        e = jnp.maximum(mxu(c2_w0, y) + c2_b0, 0.0)                  # (72, W)
        d = depthwise(e, c2_wd, c2_bd, _PAD, w_in - 1, True)         # (72, W-1)
        d = stride2(d, sel2)                                         # (72, w2)
        y = mxu(c2_w1, d) + c2_b1                                    # (24, w2)

        # ---- conv3 = MBConv6(24->24, k=10, stride 2, pad 4), mid 144 --------
        e = jnp.maximum(mxu(c3_w0, y) + c3_b0, 0.0)                  # (144, w2)
        d = depthwise(e, c3_wd, c3_bd, _PAD, w2 - 1, True)           # (144, w2-1)
        d = stride2(d, sel3)                                         # (144, w3)
        y = mxu(c3_w1, d) + c3_b1                                    # (24, w3)

        # ---- conv4 = SeparableConv(24->24, k=10, stride 1, no pad) ----------
        d = depthwise(y, c4_wd, None, 0, w4, False)                  # (24, w4)
        y = mxu(c4_wp, d) + c4_bp                                    # (24, w4)

        # ---- MaxPool1d(10, 9) -> one (24*n_pool, 1) column, time-major ------
        cols = [jnp.max(y[:, 9 * t:9 * t + 10], axis=1, keepdims=True)
                for t in range(n_pool)]
        pooled_cols.append(jnp.concatenate(cols, axis=0))            # (96, 1)

    # ---- linear head, batched over the whole tile (one matmul per layer) ----
    pooled = (pooled_cols[0] if b_tile == 1
              else jnp.concatenate(pooled_cols, axis=1))             # (96, B)
    h = jnp.maximum(mxu(l1_w, pooled) + l1_b, 0.0)                   # (80, B)
    h = jnp.maximum(mxu(l2_w, h) + l2_b, 0.0)                        # (40, B)
    o_ref[0] = mxu(l3_w, h) + l3_b                                   # (ncls, B)


# ------------------------------------------------------------------ wrapper --
def gesture_net_forward(x, p, *, batch_tile=8):
    """x: (N, 6, 1, W) float32 NCHW (H == 1), matching the PyTorch module."""
    n, c_in, h, w_in = x.shape
    assert c_in == 6 and h == 1, (c_in, h)
    ncls = p['l3_w'].shape[0]

    w2 = (w_in - 2) // 2 + 1
    w3 = (w2 - 2) // 2 + 1
    w4 = w3 - 9
    n_pool = (w4 - 10) // 9 + 1
    assert n_pool >= 1 and 24 * n_pool == p['l1_w'].shape[1], (
        "time length W is inconsistent with Linear(96, 80) flatten width")

    bt = max(1, min(batch_tile, n))
    n_pad = -(-n // bt) * bt
    bf16 = jnp.bfloat16

    # Pad once in the wrapper: batch -> multiple of tile, channels 6 -> 8
    # (sublane aligned for the in-kernel im2col concat), time by 4 for conv1.
    x3 = x[:, :, 0, :].astype(jnp.float32)
    x_p = jnp.pad(x3, ((0, n_pad - n), (0, 2), (_PAD, _PAD)))        # (n_pad, 8, W+8)

    # --- fold layouts + pre-cast all MXU weights to bf16 (once, outside kernel)
    # conv1 dense (12,6,9) -> im2col layout (12, 9*8), col = k*8 + cin.
    w0 = jnp.pad(p['c1_w0'], ((0, 0), (0, 2), (0, 0)))               # (12, 8, 9)
    c1_w0 = jnp.transpose(w0, (0, 2, 1)).reshape(12, 72).astype(bf16)
    c1_ws = jnp.pad(p['c1_ws'], ((0, 0), (0, 2))).astype(bf16)       # (12, 8)
    # linear1: torch flat index = c*n_pool + t; kernel stacks time-major.
    l1_w = p['l1_w'].reshape(80, 24, n_pool)
    l1_w = jnp.transpose(l1_w, (0, 2, 1)).reshape(80, 24 * n_pool).astype(bf16)
    # stride-2 selection matrices (0/1 constants, folded by jit).
    sel2 = (jnp.arange(w_in - 1)[:, None] == 2 * jnp.arange(w2)[None, :]).astype(bf16)
    sel3 = (jnp.arange(w2 - 1)[:, None] == 2 * jnp.arange(w3)[None, :]).astype(bf16)

    weights = [
        c1_w0, p['c1_b0'],
        p['c1_w1'].astype(bf16), p['c1_b1'],
        c1_ws, p['c1_bs'],
        p['c2_w0'].astype(bf16), p['c2_b0'],
        p['c2_wd'], p['c2_bd'],
        p['c2_w1'].astype(bf16), p['c2_b1'], sel2,
        p['c3_w0'].astype(bf16), p['c3_b0'],
        p['c3_wd'], p['c3_bd'],
        p['c3_w1'].astype(bf16), p['c3_b1'], sel3,
        p['c4_wd'], p['c4_wp'].astype(bf16), p['c4_bp'],
        l1_w, p['l1_b'],
        p['l2_w'].astype(bf16), p['l2_b'],
        p['l3_w'].astype(bf16), p['l3_b'],
    ]

    in_specs = [pl.BlockSpec((bt, 8, w_in + 2 * _PAD), lambda i: (i, 0, 0))]
    for a in weights:                                  # weights: full, resident
        in_specs.append(pl.BlockSpec(tuple(a.shape), lambda i: (0, 0)))

    out = pl.pallas_call(
        _gesture_fused_kernel,
        out_shape=jax.ShapeDtypeStruct((n_pad // bt, ncls, bt), jnp.float32),
        grid=(n_pad // bt,),
        in_specs=in_specs,
        out_specs=pl.BlockSpec((1, ncls, bt), lambda i: (i, 0, 0)),
        compiler_params=pltpu.CompilerParams(
            dimension_semantics=("parallel",)),        # v7x: tiles across both TCs
    )(x_p, *weights)

    out = jnp.transpose(out, (0, 2, 1)).reshape(n_pad, ncls)
    return out[:n]                                     # (N, num_classes)


# ------------------------------------------------ pure-JAX reference (check) --
def _reference_forward(x, p):
    """Mirrors the PyTorch forward (folded BN, bf16 MXU matmuls, f32 depthwise)."""
    bf16, f32 = jnp.bfloat16, jnp.float32

    def mm(w, a):
        return jnp.dot(w.astype(bf16), a.astype(bf16), preferred_element_type=f32)

    def one(x1):                                       # x1: (6, W)
        w_in = x1.shape[1]
        w2 = (w_in - 2) // 2 + 1
        w3 = (w2 - 2) // 2 + 1
        w4 = w3 - 9
        n_pool = (w4 - 10) // 9 + 1
        xp = jnp.pad(x1, ((0, 0), (_PAD, _PAD)))
        # conv1
        acc = sum(mm(p['c1_w0'][:, :, k], xp[:, k:k + w_in]) for k in range(9))
        a1 = jnp.maximum(acc + p['c1_b0'], 0.0)
        a1 = mm(p['c1_w1'], a1) + p['c1_b1']
        y = a1 + mm(p['c1_ws'], x1) + p['c1_bs']
        # conv2 (stride-2 depthwise done directly with strided slices)
        e = jnp.maximum(mm(p['c2_w0'], y) + p['c2_b0'], 0.0)
        ep = jnp.pad(e, ((0, 0), (_PAD, _PAD)))
        d = sum(ep[:, k:k + 2 * w2 - 1:2] * p['c2_wd'][:, k:k + 1] for k in range(10))
        d = jnp.maximum(d + p['c2_bd'], 0.0)
        y = mm(p['c2_w1'], d) + p['c2_b1']
        # conv3
        e = jnp.maximum(mm(p['c3_w0'], y) + p['c3_b0'], 0.0)
        ep = jnp.pad(e, ((0, 0), (_PAD, _PAD)))
        d = sum(ep[:, k:k + 2 * w3 - 1:2] * p['c3_wd'][:, k:k + 1] for k in range(10))
        d = jnp.maximum(d + p['c3_bd'], 0.0)
        y = mm(p['c3_w1'], d) + p['c3_b1']
        # conv4
        d = sum(y[:, k:k + w4] * p['c4_wd'][:, k:k + 1] for k in range(10))
        y = mm(p['c4_wp'], d) + p['c4_bp']
        # maxpool + flatten (channel-major) + linear head
        pooled = jnp.stack([jnp.max(y[:, 9 * t:9 * t + 10], axis=1)
                            for t in range(n_pool)], axis=1)          # (24, n_pool)
        flat = pooled.reshape(-1, 1)                                  # (96, 1)
        h = jnp.maximum(mm(p['l1_w'], flat) + p['l1_b'], 0.0)
        h = jnp.maximum(mm(p['l2_w'], h) + p['l2_b'], 0.0)
        return (mm(p['l3_w'], h) + p['l3_b'])[:, 0]

    return jax.vmap(one)(x)


# ----------------------------------------------------------- parameter init --
def _bn_fold(key, c):
    kg, kb, km, kv = jax.random.split(key, 4)
    gamma = 0.5 + jax.random.uniform(kg, (c,), jnp.float32)
    beta = 0.1 * jax.random.normal(kb, (c,), jnp.float32)
    mean = 0.1 * jax.random.normal(km, (c,), jnp.float32)
    var = 0.5 + jax.random.uniform(kv, (c,), jnp.float32)
    scale = gamma / jnp.sqrt(var + _BN_EPS)
    return scale, beta - mean * scale


def init_params(key, num_classes):
    ks = iter(jax.random.split(key, 40))

    def pw(c_out, c_in, bn=True):                      # 1x1 conv (bias=False) + opt. BN
        w = 0.1 * jax.random.normal(next(ks), (c_out, c_in), jnp.float32)
        if bn:
            s, b = _bn_fold(next(ks), c_out)
            return w * s[:, None], b.reshape(c_out, 1)
        return w, jnp.zeros((c_out, 1), jnp.float32)

    def dw(c, k, bn=True):                             # depthwise (1,k) conv + opt. BN
        w = 0.1 * jax.random.normal(next(ks), (c, k), jnp.float32)
        if bn:
            s, b = _bn_fold(next(ks), c)
            return w * s[:, None], b.reshape(c, 1)
        return w, jnp.zeros((c, 1), jnp.float32)

    p = {}
    # conv1 = MBConv1(6->12, (1,9), pad (0,4))
    w = 0.1 * jax.random.normal(next(ks), (12, 6, 9), jnp.float32)
    s, b = _bn_fold(next(ks), 12)
    p['c1_w0'], p['c1_b0'] = w * s[:, None, None], b.reshape(12, 1)
    p['c1_w1'], p['c1_b1'] = pw(12, 12)
    p['c1_ws'], p['c1_bs'] = pw(12, 6)
    # conv2 = MBConv6(12->24, (1,10), stride 2, pad (0,4)), mid = 72
    p['c2_w0'], p['c2_b0'] = pw(72, 12)
    p['c2_wd'], p['c2_bd'] = dw(72, 10)
    p['c2_w1'], p['c2_b1'] = pw(24, 72)
    # conv3 = MBConv6(24->24, (1,10), stride 2, pad (0,4)), mid = 144
    p['c3_w0'], p['c3_b0'] = pw(144, 24)
    p['c3_wd'], p['c3_bd'] = dw(144, 10)
    p['c3_w1'], p['c3_b1'] = pw(24, 144)
    # conv4 = SeparableConv(24->24, (1,10), stride 1); no BN, pointwise has bias
    p['c4_wd'], _ = dw(24, 10, bn=False)
    p['c4_wp'], _ = pw(24, 24, bn=False)
    p['c4_bp'] = 0.1 * jax.random.normal(next(ks), (24, 1), jnp.float32)
    # linear head (96 -> 80 -> 40 -> num_classes), torch layout W:(out, in)
    p['l1_w'] = 0.1 * jax.random.normal(next(ks), (80, 96), jnp.float32)
    p['l1_b'] = 0.1 * jax.random.normal(next(ks), (80, 1), jnp.float32)
    p['l2_w'] = 0.1 * jax.random.normal(next(ks), (40, 80), jnp.float32)
    p['l2_b'] = 0.1 * jax.random.normal(next(ks), (40, 1), jnp.float32)
    p['l3_w'] = 0.1 * jax.random.normal(next(ks), (num_classes, 40), jnp.float32)
    p['l3_b'] = 0.1 * jax.random.normal(next(ks), (num_classes, 1), jnp.float32)
    return p


if __name__ == "__main__":
    key = jax.random.PRNGKey(0)
    kx, kp = jax.random.split(key)
    # W = 200 is the canonical IMU window: after the conv stack and
    # MaxPool1d(10, 9) it yields exactly 4 pooled steps -> Linear(96, 80).
    x = jax.random.normal(kx, (2, 6, 1, 200), jnp.float32)
    params = init_params(kp, num_classes=10)

    out = jax.jit(gesture_net_forward)(x, params)
    jax.block_until_ready(out)
    assert out.shape == (2, 10), out.shape

    ref = jax.jit(_reference_forward)(x[:, :, 0, :], params)
    err = float(jnp.max(jnp.abs(out - ref)))
    assert err < 3e-2, f"max |kernel - reference| = {err}"

    print("KERNEL_OK")
</pallas_src>

<mosaic_0001>
module attributes {stable_mosaic.version = 11 : i64} {
  func.func @_gesture_fused_kernel(%arg0: i32, %arg1: memref<2x8x208xf32, #tpu.memory_space<vmem>>, %arg2: memref<12x72xbf16, #tpu.memory_space<vmem>>, %arg3: memref<12x1xf32, #tpu.memory_space<vmem>>, %arg4: memref<12x12xbf16, #tpu.memory_space<vmem>>, %arg5: memref<12x1xf32, #tpu.memory_space<vmem>>, %arg6: memref<12x8xbf16, #tpu.memory_space<vmem>>, %arg7: memref<12x1xf32, #tpu.memory_space<vmem>>, %arg8: memref<72x12xbf16, #tpu.memory_space<vmem>>, %arg9: memref<72x1xf32, #tpu.memory_space<vmem>>, %arg10: memref<72x10xf32, #tpu.memory_space<vmem>>, %arg11: memref<72x1xf32, #tpu.memory_space<vmem>>, %arg12: memref<24x72xbf16, #tpu.memory_space<vmem>>, %arg13: memref<24x1xf32, #tpu.memory_space<vmem>>, %arg14: memref<199x100xbf16, #tpu.memory_space<vmem>>, %arg15: memref<144x24xbf16, #tpu.memory_space<vmem>>, %arg16: memref<144x1xf32, #tpu.memory_space<vmem>>, %arg17: memref<144x10xf32, #tpu.memory_space<vmem>>, %arg18: memref<144x1xf32, #tpu.memory_space<vmem>>, %arg19: memref<24x144xbf16, #tpu.memory_space<vmem>>, %arg20: memref<24x1xf32, #tpu.memory_space<vmem>>, %arg21: memref<99x50xbf16, #tpu.memory_space<vmem>>, %arg22: memref<24x10xf32, #tpu.memory_space<vmem>>, %arg23: memref<24x24xbf16, #tpu.memory_space<vmem>>, %arg24: memref<24x1xf32, #tpu.memory_space<vmem>>, %arg25: memref<80x96xbf16, #tpu.memory_space<vmem>>, %arg26: memref<80x1xf32, #tpu.memory_space<vmem>>, %arg27: memref<40x80xbf16, #tpu.memory_space<vmem>>, %arg28: memref<40x1xf32, #tpu.memory_space<vmem>>, %arg29: memref<10x40xbf16, #tpu.memory_space<vmem>>, %arg30: memref<10x1xf32, #tpu.memory_space<vmem>>, %arg31: memref<1x10x2xf32, #tpu.memory_space<vmem>>) attributes {dimension_semantics = [#tpu.dimension_semantics<parallel>], iteration_bounds = array<i64: 1>, scalar_prefetch = 0 : i64, scratch_operands = 0 : i64, tpu.core_type = #tpu.core_type<tc>, window_params = [{transform_indices = @transform_0, window_bounds = array<i64: 2, 8, 208>}, {pipeline_mode = #tpu.pipeline_mode<synchronous>, transform_indices = @transform_1, window_bounds = array<i64: 12, 72>}, {pipeline_mode = #tpu.pipeline_mode<synchronous>, transform_indices = @transform_2, window_bounds = array<i64: 12, 1>}, {pipeline_mode = #tpu.pipeline_mode<synchronous>, transform_indices = @transform_3, window_bounds = array<i64: 12, 12>}, {pipeline_mode = #tpu.pipeline_mode<synchronous>, transform_indices = @transform_4, window_bounds = array<i64: 12, 1>}, {pipeline_mode = #tpu.pipeline_mode<synchronous>, transform_indices = @transform_5, window_bounds = array<i64: 12, 8>}, {pipeline_mode = #tpu.pipeline_mode<synchronous>, transform_indices = @transform_6, window_bounds = array<i64: 12, 1>}, {pipeline_mode = #tpu.pipeline_mode<synchronous>, transform_indices = @transform_7, window_bounds = array<i64: 72, 12>}, {pipeline_mode = #tpu.pipeline_mode<synchronous>, transform_indices = @transform_8, window_bounds = array<i64: 72, 1>}, {pipeline_mode = #tpu.pipeline_mode<synchronous>, transform_indices = @transform_9, window_bounds = array<i64: 72, 10>}, {pipeline_mode = #tpu.pipeline_mode<synchronous>, transform_indices = @transform_10, window_bounds = array<i64: 72, 1>}, {pipeline_mode = #tpu.pipeline_mode<synchronous>, transform_indices = @transform_11, window_bounds = array<i64: 24, 72>}, {pipeline_mode = #tpu.pipeline_mode<synchronous>, transform_indices = @transform_12, window_bounds = array<i64: 24, 1>}, {pipeline_mode = #tpu.pipeline_mode<synchronous>, transform_indices = @transform_13, window_bounds = array<i64: 199, 100>}, {pipeline_mode = #tpu.pipeline_mode<synchronous>, transform_indices = @transform_14, window_bounds = array<i64: 144, 24>}, {pipeline_mode = #tpu.pipeline_mode<synchronous>, transform_indices = @transform_15, window_bounds = array<i64: 144, 1>}, {pipeline_mode = #tpu.pipeline_mode<synchronous>, transform_indices = @transform_16, window_bounds = array<i64: 144, 10>}, {pipeline_mode = #tpu.pipeline_mode<synchronous>, transform_indices = @transform_17, window_bounds = array<i64: 144, 1>}, {pipeline_mode = #tpu.pipeline_mode<synchronous>, transform_indices = @transform_18, window_bounds = array<i64: 24, 144>}, {pipeline_mode = #tpu.pipeline_mode<synchronous>, transform_indices = @transform_19, window_bounds = array<i64: 24, 1>}, {pipeline_mode = #tpu.pipeline_mode<synchronous>, transform_indices = @transform_20, window_bounds = array<i64: 99, 50>}, {pipeline_mode = #tpu.pipeline_mode<synchronous>, transform_indices = @transform_21, window_bounds = array<i64: 24, 10>}, {pipeline_mode = #tpu.pipeline_mode<synchronous>, transform_indices = @transform_22, window_bounds = array<i64: 24, 24>}, {pipeline_mode = #tpu.pipeline_mode<synchronous>, transform_indices = @transform_23, window_bounds = array<i64: 24, 1>}, {pipeline_mode = #tpu.pipeline_mode<synchronous>, transform_indices = @transform_24, window_bounds = array<i64: 80, 96>}, {pipeline_mode = #tpu.pipeline_mode<synchronous>, transform_indices = @transform_25, window_bounds = array<i64: 80, 1>}, {pipeline_mode = #tpu.pipeline_mode<synchronous>, transform_indices = @transform_26, window_bounds = array<i64: 40, 80>}, {pipeline_mode = #tpu.pipeline_mode<synchronous>, transform_indices = @transform_27, window_bounds = array<i64: 40, 1>}, {pipeline_mode = #tpu.pipeline_mode<synchronous>, transform_indices = @transform_28, window_bounds = array<i64: 10, 40>}, {pipeline_mode = #tpu.pipeline_mode<synchronous>, transform_indices = @transform_29, window_bounds = array<i64: 10, 1>}, {transform_indices = @transform_30, window_bounds = array<i64: 1, 10, 2>}]} {
    %c0 = arith.constant 0 : index
    %c0_0 = arith.constant 0 : index
    %0 = vector.load %arg2[%c0, %c0_0] : memref<12x72xbf16, #tpu.memory_space<vmem>>, vector<12x72xbf16>
    %c0_1 = arith.constant 0 : index
    %c0_2 = arith.constant 0 : index
    %1 = vector.load %arg3[%c0_1, %c0_2] : memref<12x1xf32, #tpu.memory_space<vmem>>, vector<12x1xf32>
    %c0_3 = arith.constant 0 : index
    %c0_4 = arith.constant 0 : index
    %2 = vector.load %arg4[%c0_3, %c0_4] : memref<12x12xbf16, #tpu.memory_space<vmem>>, vector<12x12xbf16>
    %c0_5 = arith.constant 0 : index
    %c0_6 = arith.constant 0 : index
    %3 = vector.load %arg5[%c0_5, %c0_6] : memref<12x1xf32, #tpu.memory_space<vmem>>, vector<12x1xf32>
    %c0_7 = arith.constant 0 : index
    %c0_8 = arith.constant 0 : index
    %4 = vector.load %arg6[%c0_7, %c0_8] : memref<12x8xbf16, #tpu.memory_space<vmem>>, vector<12x8xbf16>
    %c0_9 = arith.constant 0 : index
    %c0_10 = arith.constant 0 : index
    %5 = vector.load %arg7[%c0_9, %c0_10] : memref<12x1xf32, #tpu.memory_space<vmem>>, vector<12x1xf32>
    %c0_11 = arith.constant 0 : index
    %c0_12 = arith.constant 0 : index
    %6 = vector.load %arg8[%c0_11, %c0_12] : memref<72x12xbf16, #tpu.memory_space<vmem>>, vector<72x12xbf16>
    %c0_13 = arith.constant 0 : index
    %c0_14 = arith.constant 0 : index
    %7 = vector.load %arg9[%c0_13, %c0_14] : memref<72x1xf32, #tpu.memory_space<vmem>>, vector<72x1xf32>
    %c0_15 = arith.constant 0 : index
    %c0_16 = arith.constant 0 : index
    %8 = vector.load %arg10[%c0_15, %c0_16] : memref<72x10xf32, #tpu.memory_space<vmem>>, vector<72x10xf32>
    %c0_17 = arith.constant 0 : index
    %c0_18 = arith.constant 0 : index
    %9 = vector.load %arg11[%c0_17, %c0_18] : memref<72x1xf32, #tpu.memory_space<vmem>>, vector<72x1xf32>
    %c0_19 = arith.constant 0 : index
    %c0_20 = arith.constant 0 : index
    %10 = vector.load %arg12[%c0_19, %c0_20] : memref<24x72xbf16, #tpu.memory_space<vmem>>, vector<24x72xbf16>
    %c0_21 = arith.constant 0 : index
    %c0_22 = arith.constant 0 : index
    %11 = vector.load %arg13[%c0_21, %c0_22] : memref<24x1xf32, #tpu.memory_space<vmem>>, vector<24x1xf32>
    %c0_23 = arith.constant 0 : index
    %c0_24 = arith.constant 0 : index
    %12 = vector.load %arg14[%c0_23, %c0_24] : memref<199x100xbf16, #tpu.memory_space<vmem>>, vector<199x100xbf16>
    %c0_25 = arith.constant 0 : index
    %c0_26 = arith.constant 0 : index
    %13 = vector.load %arg15[%c0_25, %c0_26] : memref<144x24xbf16, #tpu.memory_space<vmem>>, vector<144x24xbf16>
    %c0_27 = arith.constant 0 : index
    %c0_28 = arith.constant 0 : index
    %14 = vector.load %arg16[%c0_27, %c0_28] : memref<144x1xf32, #tpu.memory_space<vmem>>, vector<144x1xf32>
    %c0_29 = arith.constant 0 : index
    %c0_30 = arith.constant 0 : index
    %15 = vector.load %arg17[%c0_29, %c0_30] : memref<144x10xf32, #tpu.memory_space<vmem>>, vector<144x10xf32>
    %c0_31 = arith.constant 0 : index
    %c0_32 = arith.constant 0 : index
    %16 = vector.load %arg18[%c0_31, %c0_32] : memref<144x1xf32, #tpu.memory_space<vmem>>, vector<144x1xf32>
    %c0_33 = arith.constant 0 : index
    %c0_34 = arith.constant 0 : index
    %17 = vector.load %arg19[%c0_33, %c0_34] : memref<24x144xbf16, #tpu.memory_space<vmem>>, vector<24x144xbf16>
    %c0_35 = arith.constant 0 : index
    %c0_36 = arith.constant 0 : index
    %18 = vector.load %arg20[%c0_35, %c0_36] : memref<24x1xf32, #tpu.memory_space<vmem>>, vector<24x1xf32>
    %c0_37 = arith.constant 0 : index
    %c0_38 = arith.constant 0 : index
    %19 = vector.load %arg21[%c0_37, %c0_38] : memref<99x50xbf16, #tpu.memory_space<vmem>>, vector<99x50xbf16>
    %c0_39 = arith.constant 0 : index
    %c0_40 = arith.constant 0 : index
    %20 = vector.load %arg22[%c0_39, %c0_40] : memref<24x10xf32, #tpu.memory_space<vmem>>, vector<24x10xf32>
    %c0_41 = arith.constant 0 : index
    %c0_42 = arith.constant 0 : index
    %21 = vector.load %arg23[%c0_41, %c0_42] : memref<24x24xbf16, #tpu.memory_space<vmem>>, vector<24x24xbf16>
    %c0_43 = arith.constant 0 : index
    %c0_44 = arith.constant 0 : index
    %22 = vector.load %arg24[%c0_43, %c0_44] : memref<24x1xf32, #tpu.memory_space<vmem>>, vector<24x1xf32>
    %c0_45 = arith.constant 0 : index
    %c0_46 = arith.constant 0 : index
    %23 = vector.load %arg25[%c0_45, %c0_46] : memref<80x96xbf16, #tpu.memory_space<vmem>>, vector<80x96xbf16>
    %c0_47 = arith.constant 0 : index
    %c0_48 = arith.constant 0 : index
    %24 = vector.load %arg26[%c0_47, %c0_48] : memref<80x1xf32, #tpu.memory_space<vmem>>, vector<80x1xf32>
    %c0_49 = arith.constant 0 : index
    %c0_50 = arith.constant 0 : index
    %25 = vector.load %arg27[%c0_49, %c0_50] : memref<40x80xbf16, #tpu.memory_space<vmem>>, vector<40x80xbf16>
    %c0_51 = arith.constant 0 : index
    %c0_52 = arith.constant 0 : index
    %26 = vector.load %arg28[%c0_51, %c0_52] : memref<40x1xf32, #tpu.memory_space<vmem>>, vector<40x1xf32>
    %c0_53 = arith.constant 0 : index
    %c0_54 = arith.constant 0 : index
    %27 = vector.load %arg29[%c0_53, %c0_54] : memref<10x40xbf16, #tpu.memory_space<vmem>>, vector<10x40xbf16>
    %c0_55 = arith.constant 0 : index
    %c0_56 = arith.constant 0 : index
    %28 = vector.load %arg30[%c0_55, %c0_56] : memref<10x1xf32, #tpu.memory_space<vmem>>, vector<10x1xf32>
    %c0_57 = arith.constant 0 : index
    %c0_58 = arith.constant 0 : index
    %c0_59 = arith.constant 0 : index
    %29 = vector.load %arg1[%c0_57, %c0_58, %c0_59] : memref<2x8x208xf32, #tpu.memory_space<vmem>>, vector<1x8x208xf32>
    %30 = vector.shape_cast %29 : vector<1x8x208xf32> to vector<8x208xf32>
    %31 = vector.extract_strided_slice %30 {offsets = [0, 4], sizes = [8, 200], strides = [1, 1]} : vector<8x208xf32> to vector<8x200xf32>
    %32 = vector.extract_strided_slice %30 {offsets = [0, 0], sizes = [8, 200], strides = [1, 1]} : vector<8x208xf32> to vector<8x200xf32>
    %33 = vector.extract_strided_slice %30 {offsets = [0, 1], sizes = [8, 200], strides = [1, 1]} : vector<8x208xf32> to vector<8x200xf32>
    %34 = vector.extract_strided_slice %30 {offsets = [0, 2], sizes = [8, 200], strides = [1, 1]} : vector<8x208xf32> to vector<8x200xf32>
    %35 = vector.extract_strided_slice %30 {offsets = [0, 3], sizes = [8, 200], strides = [1, 1]} : vector<8x208xf32> to vector<8x200xf32>
    %36 = vector.extract_strided_slice %30 {offsets = [0, 4], sizes = [8, 200], strides = [1, 1]} : vector<8x208xf32> to vector<8x200xf32>
    %37 = vector.extract_strided_slice %30 {offsets = [0, 5], sizes = [8, 200], strides = [1, 1]} : vector<8x208xf32> to vector<8x200xf32>
    %38 = vector.extract_strided_slice %30 {offsets = [0, 6], sizes = [8, 200], strides = [1, 1]} : vector<8x208xf32> to vector<8x200xf32>
    %39 = vector.extract_strided_slice %30 {offsets = [0, 7], sizes = [8, 200], strides = [1, 1]} : vector<8x208xf32> to vector<8x200xf32>
    %40 = vector.extract_strided_slice %30 {offsets = [0, 8], sizes = [8, 200], strides = [1, 1]} : vector<8x208xf32> to vector<8x200xf32>
    %41 = tpu.concatenate %32, %33, %34, %35, %36, %37, %38, %39, %40 in 0 : vector<8x200xf32>, vector<8x200xf32>, vector<8x200xf32>, vector<8x200xf32>, vector<8x200xf32>, vector<8x200xf32>, vector<8x200xf32>, vector<8x200xf32>, vector<8x200xf32> -> vector<72x200xf32>
    %42 = arith.truncf %41 : vector<72x200xf32> to vector<72x200xbf16>
    %cst = arith.constant dense<0.000000e+00> : vector<12x200xf32>
    %43 = tpu.matmul %0, %42, %cst {dimension_numbers = #tpu.dot_dimension_numbers<[1], [0], [0], [1], [0, 0, 1, 1], [], []>} : vector<12x72xbf16>, vector<72x200xbf16>, vector<12x200xf32> -> vector<12x200xf32>
    %44 = vector.broadcast %1 : vector<12x1xf32> to vector<12x200xf32>
    %45 = arith.addf %43, %44 : vector<12x200xf32>
    %cst_60 = arith.constant 0.000000e+00 : f32
    %46 = vector.broadcast %cst_60 : f32 to vector<12x200xf32>
    %47 = arith.maximumf %45, %46 : vector<12x200xf32>
    %48 = arith.truncf %47 : vector<12x200xf32> to vector<12x200xbf16>
    %cst_61 = arith.constant dense<0.000000e+00> : vector<12x200xf32>
    %49 = tpu.matmul %2, %48, %cst_61 {dimension_numbers = #tpu.dot_dimension_numbers<[1], [0], [0], [1], [0, 0, 1, 1], [], []>} : vector<12x12xbf16>, vector<12x200xbf16>, vector<12x200xf32> -> vector<12x200xf32>
    %50 = vector.broadcast %3 : vector<12x1xf32> to vector<12x200xf32>
    %51 = arith.addf %49, %50 : vector<12x200xf32>
    %52 = arith.truncf %31 : vector<8x200xf32> to vector<8x200xbf16>
    %cst_62 = arith.constant dense<0.000000e+00> : vector<12x200xf32>
    %53 = tpu.matmul %4, %52, %cst_62 {dimension_numbers = #tpu.dot_dimension_numbers<[1], [0], [0], [1], [0, 0, 1, 1], [], []>} : vector<12x8xbf16>, vector<8x200xbf16>, vector<12x200xf32> -> vector<12x200xf32>
    %54 = arith.addf %51, %53 : vector<12x200xf32>
    %55 = vector.broadcast %5 : vector<12x1xf32> to vector<12x200xf32>
    %56 = arith.addf %54, %55 : vector<12x200xf32>
    %57 = arith.truncf %56 : vector<12x200xf32> to vector<12x200xbf16>
    %cst_63 = arith.constant dense<0.000000e+00> : vector<72x200xf32>
    %58 = tpu.matmul %6, %57, %cst_63 {dimension_numbers = #tpu.dot_dimension_numbers<[1], [0], [0], [1], [0, 0, 1, 1], [], []>} : vector<72x12xbf16>, vector<12x200xbf16>, vector<72x200xf32> -> vector<72x200xf32>
    %59 = vector.broadcast %7 : vector<72x1xf32> to vector<72x200xf32>
    %60 = arith.addf %58, %59 : vector<72x200xf32>
    %cst_64 = arith.constant 0.000000e+00 : f32
    %61 = vector.broadcast %cst_64 : f32 to vector<72x200xf32>
    %62 = arith.maximumf %60, %61 : vector<72x200xf32>
    %cst_65 = arith.constant 0.000000e+00 : f32
    %63 = vector.broadcast %cst_65 : f32 to vector<72x4xf32>
    %64 = tpu.concatenate %63, %62, %63 in 1 : vector<72x4xf32>, vector<72x200xf32>, vector<72x4xf32> -> vector<72x208xf32>
    %cst_66 = arith.constant 0.000000e+00 : f32
    %65 = vector.broadcast %cst_66 : f32 to vector<72x199xf32>
    %66 = vector.extract_strided_slice %64 {offsets = [0, 0], sizes = [72, 199], strides = [1, 1]} : vector<72x208xf32> to vector<72x199xf32>
    %67 = vector.extract_strided_slice %8 {offsets = [0, 0], sizes = [72, 1], strides = [1, 1]} : vector<72x10xf32> to vector<72x1xf32>
    %68 = vector.broadcast %67 : vector<72x1xf32> to vector<72x199xf32>
    %69 = arith.mulf %66, %68 : vector<72x199xf32>
    %70 = arith.addf %65, %69 : vector<72x199xf32>
    %71 = vector.extract_strided_slice %64 {offsets = [0, 1], sizes = [72, 199], strides = [1, 1]} : vector<72x208xf32> to vector<72x199xf32>
    %72 = vector.extract_strided_slice %8 {offsets = [0, 1], sizes = [72, 1], strides = [1, 1]} : vector<72x10xf32> to vector<72x1xf32>
    %73 = vector.broadcast %72 : vector<72x1xf32> to vector<72x199xf32>
    %74 = arith.mulf %71, %73 : vector<72x199xf32>
    %75 = arith.addf %70, %74 : vector<72x199xf32>
    %76 = vector.extract_strided_slice %64 {offsets = [0, 2], sizes = [72, 199], strides = [1, 1]} : vector<72x208xf32> to vector<72x199xf32>
    %77 = vector.extract_strided_slice %8 {offsets = [0, 2], sizes = [72, 1], strides = [1, 1]} : vector<72x10xf32> to vector<72x1xf32>
    %78 = vector.broadcast %77 : vector<72x1xf32> to vector<72x199xf32>
    %79 = arith.mulf %76, %78 : vector<72x199xf32>
    %80 = arith.addf %75, %79 : vector<72x199xf32>
    %81 = vector.extract_strided_slice %64 {offsets = [0, 3], sizes = [72, 199], strides = [1, 1]} : vector<72x208xf32> to vector<72x199xf32>
    %82 = vector.extract_strided_slice %8 {offsets = [0, 3], sizes = [72, 1], strides = [1, 1]} : vector<72x10xf32> to vector<72x1xf32>
    %83 = vector.broadcast %82 : vector<72x1xf32> to vector<72x199xf32>
    %84 = arith.mulf %81, %83 : vector<72x199xf32>
    %85 = arith.addf %80, %84 : vector<72x199xf32>
    %86 = vector.extract_strided_slice %64 {offsets = [0, 4], sizes = [72, 199], strides = [1, 1]} : vector<72x208xf32> to vector<72x199xf32>
    %87 = vector.extract_strided_slice %8 {offsets = [0, 4], sizes = [72, 1], strides = [1, 1]} : vector<72x10xf32> to vector<72x1xf32>
    %88 = vector.broadcast %87 : vector<72x1xf32> to vector<72x199xf32>
    %89 = arith.mulf %86, %88 : vector<72x199xf32>
    %90 = arith.addf %85, %89 : vector<72x199xf32>
    %91 = vector.extract_strided_slice %64 {offsets = [0, 5], sizes = [72, 199], strides = [1, 1]} : vector<72x208xf32> to vector<72x199xf32>
    %92 = vector.extract_strided_slice %8 {offsets = [0, 5], sizes = [72, 1], strides = [1, 1]} : vector<72x10xf32> to vector<72x1xf32>
    %93 = vector.broadcast %92 : vector<72x1xf32> to vector<72x199xf32>
    %94 = arith.mulf %91, %93 : vector<72x199xf32>
    %95 = arith.addf %90, %94 : vector<72x199xf32>
    %96 = vector.extract_strided_slice %64 {offsets = [0, 6], sizes = [72, 199], strides = [1, 1]} : vector<72x208xf32> to vector<72x199xf32>
    %97 = vector.extract_strided_slice %8 {offsets = [0, 6], sizes = [72, 1], strides = [1, 1]} : vector<72x10xf32> to vector<72x1xf32>
    %98 = vector.broadcast %97 : vector<72x1xf32> to vector<72x199xf32>
    %99 = arith.mulf %96, %98 : vector<72x199xf32>
    %100 = arith.addf %95, %99 : vector<72x199xf32>
    %101 = vector.extract_strided_slice %64 {offsets = [0, 7], sizes = [72, 199], strides = [1, 1]} : vector<72x208xf32> to vector<72x199xf32>
    %102 = vector.extract_strided_slice %8 {offsets = [0, 7], sizes = [72, 1], strides = [1, 1]} : vector<72x10xf32> to vector<72x1xf32>
    %103 = vector.broadcast %102 : vector<72x1xf32> to vector<72x199xf32>
    %104 = arith.mulf %101, %103 : vector<72x199xf32>
    %105 = arith.addf %100, %104 : vector<72x199xf32>
    %106 = vector.extract_strided_slice %64 {offsets = [0, 8], sizes = [72, 199], strides = [1, 1]} : vector<72x208xf32> to vector<72x199xf32>
    %107 = vector.extract_strided_slice %8 {offsets = [0, 8], sizes = [72, 1], strides = [1, 1]} : vector<72x10xf32> to vector<72x1xf32>
    %108 = vector.broadcast %107 : vector<72x1xf32> to vector<72x199xf32>
    %109 = arith.mulf %106, %108 : vector<72x199xf32>
    %110 = arith.addf %105, %109 : vector<72x199xf32>
    %111 = vector.extract_strided_slice %64 {offsets = [0, 9], sizes = [72, 199], strides = [1, 1]} : vector<72x208xf32> to vector<72x199xf32>
    %112 = vector.extract_strided_slice %8 {offsets = [0, 9], sizes = [72, 1], strides = [1, 1]} : vector<72x10xf32> to vector<72x1xf32>
    %113 = vector.broadcast %112 : vector<72x1xf32> to vector<72x199xf32>
    %114 = arith.mulf %111, %113 : vector<72x199xf32>
    %115 = arith.addf %110, %114 : vector<72x199xf32>
    %116 = vector.broadcast %9 : vector<72x1xf32> to vector<72x199xf32>
    %117 = arith.addf %115, %116 : vector<72x199xf32>
    %cst_67 = arith.constant 0.000000e+00 : f32
    %118 = vector.broadcast %cst_67 : f32 to vector<72x199xf32>
    %119 = arith.maximumf %117, %118 : vector<72x199xf32>
    %120 = arith.truncf %119 : vector<72x199xf32> to vector<72x199xbf16>
    %cst_68 = arith.constant dense<0.000000e+00> : vector<72x100xf32>
    %121 = tpu.matmul %120, %12, %cst_68 {dimension_numbers = #tpu.dot_dimension_numbers<[1], [0], [0], [1], [0, 0, 1, 1], [], []>} : vector<72x199xbf16>, vector<199x100xbf16>, vector<72x100xf32> -> vector<72x100xf32>
    %122 = arith.truncf %121 : vector<72x100xf32> to vector<72x100xbf16>
    %cst_69 = arith.constant dense<0.000000e+00> : vector<24x100xf32>
    %123 = tpu.matmul %10, %122, %cst_69 {dimension_numbers = #tpu.dot_dimension_numbers<[1], [0], [0], [1], [0, 0, 1, 1], [], []>} : vector<24x72xbf16>, vector<72x100xbf16>, vector<24x100xf32> -> vector<24x100xf32>
    %124 = vector.broadcast %11 : vector<24x1xf32> to vector<24x100xf32>
    %125 = arith.addf %123, %124 : vector<24x100xf32>
    %126 = arith.truncf %125 : vector<24x100xf32> to vector<24x100xbf16>
    %cst_70 = arith.constant dense<0.000000e+00> : vector<144x100xf32>
    %127 = tpu.matmul %13, %126, %cst_70 {dimension_numbers = #tpu.dot_dimension_numbers<[1], [0], [0], [1], [0, 0, 1, 1], [], []>} : vector<144x24xbf16>, vector<24x100xbf16>, vector<144x100xf32> -> vector<144x100xf32>
    %128 = vector.broadcast %14 : vector<144x1xf32> to vector<144x100xf32>
    %129 = arith.addf %127, %128 : vector<144x100xf32>
    %cst_71 = arith.constant 0.000000e+00 : f32
    %130 = vector.broadcast %cst_71 : f32 to vector<144x100xf32>
    %131 = arith.maximumf %129, %130 : vector<144x100xf32>
    %132 = vector.extract_strided_slice %131 {offsets = [0, 0], sizes = [72, 100], strides = [1, 1]} : vector<144x100xf32> to vector<72x100xf32>
    %cst_72 = arith.constant 0.000000e+00 : f32
    %133 = vector.broadcast %cst_72 : f32 to vector<72x4xf32>
    %134 = tpu.concatenate %133, %132, %133 in 1 : vector<72x4xf32>, vector<72x100xf32>, vector<72x4xf32> -> vector<72x108xf32>
    %cst_73 = arith.constant 0.000000e+00 : f32
    %135 = vector.broadcast %cst_73 : f32 to vector<72x99xf32>
    %136 = vector.extract_strided_slice %134 {offsets = [0, 0], sizes = [72, 99], strides = [1, 1]} : vector<72x108xf32> to vector<72x99xf32>
    %137 = vector.extract_strided_slice %15 {offsets = [0, 0], sizes = [72, 1], strides = [1, 1]} : vector<144x10xf32> to vector<72x1xf32>
    %138 = vector.broadcast %137 : vector<72x1xf32> to vector<72x99xf32>
    %139 = arith.mulf %136, %138 : vector<72x99xf32>
    %140 = arith.addf %135, %139 : vector<72x99xf32>
    %141 = vector.extract_strided_slice %134 {offsets = [0, 1], sizes = [72, 99], strides = [1, 1]} : vector<72x108xf32> to vector<72x99xf32>
    %142 = vector.extract_strided_slice %15 {offsets = [0, 1], sizes = [72, 1], strides = [1, 1]} : vector<144x10xf32> to vector<72x1xf32>
    %143 = vector.broadcast %142 : vector<72x1xf32> to vector<72x99xf32>
    %144 = arith.mulf %141, %143 : vector<72x99xf32>
    %145 = arith.addf %140, %144 : vector<72x99xf32>
    %146 = vector.extract_strided_slice %134 {offsets = [0, 2], sizes = [72, 99], strides = [1, 1]} : vector<72x108xf32> to vector<72x99xf32>
    %147 = vector.extract_strided_slice %15 {offsets = [0, 2], sizes = [72, 1], strides = [1, 1]} : vector<144x10xf32> to vector<72x1xf32>
    %148 = vector.broadcast %147 : vector<72x1xf32> to vector<72x99xf32>
    %149 = arith.mulf %146, %148 : vector<72x99xf32>
    %150 = arith.addf %145, %149 : vector<72x99xf32>
    %151 = vector.extract_strided_slice %134 {offsets = [0, 3], sizes = [72, 99], strides = [1, 1]} : vector<72x108xf32> to vector<72x99xf32>
    %152 = vector.extract_strided_slice %15 {offsets = [0, 3], sizes = [72, 1], strides = [1, 1]} : vector<144x10xf32> to vector<72x1xf32>
    %153 = vector.broadcast %152 : vector<72x1xf32> to vector<72x99xf32>
    %154 = arith.mulf %151, %153 : vector<72x99xf32>
    %155 = arith.addf %150, %154 : vector<72x99xf32>
    %156 = vector.extract_strided_slice %134 {offsets = [0, 4], sizes = [72, 99], strides = [1, 1]} : vector<72x108xf32> to vector<72x99xf32>
    %157 = vector.extract_strided_slice %15 {offsets = [0, 4], sizes = [72, 1], strides = [1, 1]} : vector<144x10xf32> to vector<72x1xf32>
    %158 = vector.broadcast %157 : vector<72x1xf32> to vector<72x99xf32>
    %159 = arith.mulf %156, %158 : vector<72x99xf32>
    %160 = arith.addf %155, %159 : vector<72x99xf32>
    %161 = vector.extract_strided_slice %134 {offsets = [0, 5], sizes = [72, 99], strides = [1, 1]} : vector<72x108xf32> to vector<72x99xf32>
    %162 = vector.extract_strided_slice %15 {offsets = [0, 5], sizes = [72, 1], strides = [1, 1]} : vector<144x10xf32> to vector<72x1xf32>
    %163 = vector.broadcast %162 : vector<72x1xf32> to vector<72x99xf32>
    %164 = arith.mulf %161, %163 : vector<72x99xf32>
    %165 = arith.addf %160, %164 : vector<72x99xf32>
    %166 = vector.extract_strided_slice %134 {offsets = [0, 6], sizes = [72, 99], strides = [1, 1]} : vector<72x108xf32> to vector<72x99xf32>
    %167 = vector.extract_strided_slice %15 {offsets = [0, 6], sizes = [72, 1], strides = [1, 1]} : vector<144x10xf32> to vector<72x1xf32>
    %168 = vector.broadcast %167 : vector<72x1xf32> to vector<72x99xf32>
    %169 = arith.mulf %166, %168 : vector<72x99xf32>
    %170 = arith.addf %165, %169 : vector<72x99xf32>
    %171 = vector.extract_strided_slice %134 {offsets = [0, 7], sizes = [72, 99], strides = [1, 1]} : vector<72x108xf32> to vector<72x99xf32>
    %172 = vector.extract_strided_slice %15 {offsets = [0, 7], sizes = [72, 1], strides = [1, 1]} : vector<144x10xf32> to vector<72x1xf32>
    %173 = vector.broadcast %172 : vector<72x1xf32> to vector<72x99xf32>
    %174 = arith.mulf %171, %173 : vector<72x99xf32>
    %175 = arith.addf %170, %174 : vector<72x99xf32>
    %176 = vector.extract_strided_slice %134 {offsets = [0, 8], sizes = [72, 99], strides = [1, 1]} : vector<72x108xf32> to vector<72x99xf32>
    %177 = vector.extract_strided_slice %15 {offsets = [0, 8], sizes = [72, 1], strides = [1, 1]} : vector<144x10xf32> to vector<72x1xf32>
    %178 = vector.broadcast %177 : vector<72x1xf32> to vector<72x99xf32>
    %179 = arith.mulf %176, %178 : vector<72x99xf32>
    %180 = arith.addf %175, %179 : vector<72x99xf32>
    %181 = vector.extract_strided_slice %134 {offsets = [0, 9], sizes = [72, 99], strides = [1, 1]} : vector<72x108xf32> to vector<72x99xf32>
    %182 = vector.extract_strided_slice %15 {offsets = [0, 9], sizes = [72, 1], strides = [1, 1]} : vector<144x10xf32> to vector<72x1xf32>
    %183 = vector.broadcast %182 : vector<72x1xf32> to vector<72x99xf32>
    %184 = arith.mulf %181, %183 : vector<72x99xf32>
    %185 = arith.addf %180, %184 : vector<72x99xf32>
    %186 = vector.extract_strided_slice %16 {offsets = [0, 0], sizes = [72, 1], strides = [1, 1]} : vector<144x1xf32> to vector<72x1xf32>
    %187 = vector.broadcast %186 : vector<72x1xf32> to vector<72x99xf32>
    %188 = arith.addf %185, %187 : vector<72x99xf32>
    %cst_74 = arith.constant 0.000000e+00 : f32
    %189 = vector.broadcast %cst_74 : f32 to vector<72x99xf32>
    %190 = arith.maximumf %188, %189 : vector<72x99xf32>
    %191 = vector.extract_strided_slice %131 {offsets = [72, 0], sizes = [72, 100], strides = [1, 1]} : vector<144x100xf32> to vector<72x100xf32>
    %cst_75 = arith.constant 0.000000e+00 : f32
    %192 = vector.broadcast %cst_75 : f32 to vector<72x4xf32>
    %193 = tpu.concatenate %192, %191, %192 in 1 : vector<72x4xf32>, vector<72x100xf32>, vector<72x4xf32> -> vector<72x108xf32>
    %cst_76 = arith.constant 0.000000e+00 : f32
    %194 = vector.broadcast %cst_76 : f32 to vector<72x99xf32>
    %195 = vector.extract_strided_slice %193 {offsets = [0, 0], sizes = [72, 99], strides = [1, 1]} : vector<72x108xf32> to vector<72x99xf32>
    %196 = vector.extract_strided_slice %15 {offsets = [72, 0], sizes = [72, 1], strides = [1, 1]} : vector<144x10xf32> to vector<72x1xf32>
    %197 = vector.broadcast %196 : vector<72x1xf32> to vector<72x99xf32>
    %198 = arith.mulf %195, %197 : vector<72x99xf32>
    %199 = arith.addf %194, %198 : vector<72x99xf32>
    %200 = vector.extract_strided_slice %193 {offsets = [0, 1], sizes = [72, 99], strides = [1, 1]} : vector<72x108xf32> to vector<72x99xf32>
    %201 = vector.extract_strided_slice %15 {offsets = [72, 1], sizes = [72, 1], strides = [1, 1]} : vector<144x10xf32> to vector<72x1xf32>
    %202 = vector.broadcast %201 : vector<72x1xf32> to vector<72x99xf32>
    %203 = arith.mulf %200, %202 : vector<72x99xf32>
    %204 = arith.addf %199, %203 : vector<72x99xf32>
    %205 = vector.extract_strided_slice %193 {offsets = [0, 2], sizes = [72, 99], strides = [1, 1]} : vector<72x108xf32> to vector<72x99xf32>
    %206 = vector.extract_strided_slice %15 {offsets = [72, 2], sizes = [72, 1], strides = [1, 1]} : vector<144x10xf32> to vector<72x1xf32>
    %207 = vector.broadcast %206 : vector<72x1xf32> to vector<72x99xf32>
    %208 = arith.mulf %205, %207 : vector<72x99xf32>
    %209 = arith.addf %204, %208 : vector<72x99xf32>
    %210 = vector.extract_strided_slice %193 {offsets = [0, 3], sizes = [72, 99], strides = [1, 1]} : vector<72x108xf32> to vector<72x99xf32>
    %211 = vector.extract_strided_slice %15 {offsets = [72, 3], sizes = [72, 1], strides = [1, 1]} : vector<144x10xf32> to vector<72x1xf32>
    %212 = vector.broadcast %211 : vector<72x1xf32> to vector<72x99xf32>
    %213 = arith.mulf %210, %212 : vector<72x99xf32>
    %214 = arith.addf %209, %213 : vector<72x99xf32>
    %215 = vector.extract_strided_slice %193 {offsets = [0, 4], sizes = [72, 99], strides = [1, 1]} : vector<72x108xf32> to vector<72x99xf32>
    %216 = vector.extract_strided_slice %15 {offsets = [72, 4], sizes = [72, 1], strides = [1, 1]} : vector<144x10xf32> to vector<72x1xf32>
    %217 = vector.broadcast %216 : vector<72x1xf32> to vector<72x99xf32>
    %218 = arith.mulf %215, %217 : vector<72x99xf32>
    %219 = arith.addf %214, %218 : vector<72x99xf32>
    %220 = vector.extract_strided_slice %193 {offsets = [0, 5], sizes = [72, 99], strides = [1, 1]} : vector<72x108xf32> to vector<72x99xf32>
    %221 = vector.extract_strided_slice %15 {offsets = [72, 5], sizes = [72, 1], strides = [1, 1]} : vector<144x10xf32> to vector<72x1xf32>
    %222 = vector.broadcast %221 : vector<72x1xf32> to vector<72x99xf32>
    %223 = arith.mulf %220, %222 : vector<72x99xf32>
    %224 = arith.addf %219, %223 : vector<72x99xf32>
    %225 = vector.extract_strided_slice %193 {offsets = [0, 6], sizes = [72, 99], strides = [1, 1]} : vector<72x108xf32> to vector<72x99xf32>
    %226 = vector.extract_strided_slice %15 {offsets = [72, 6], sizes = [72, 1], strides = [1, 1]} : vector<144x10xf32> to vector<72x1xf32>
    %227 = vector.broadcast %226 : vector<72x1xf32> to vector<72x99xf32>
    %228 = arith.mulf %225, %227 : vector<72x99xf32>
    %229 = arith.addf %224, %228 : vector<72x99xf32>
    %230 = vector.extract_strided_slice %193 {offsets = [0, 7], sizes = [72, 99], strides = [1, 1]} : vector<72x108xf32> to vector<72x99xf32>
    %231 = vector.extract_strided_slice %15 {offsets = [72, 7], sizes = [72, 1], strides = [1, 1]} : vector<144x10xf32> to vector<72x1xf32>
    %232 = vector.broadcast %231 : vector<72x1xf32> to vector<72x99xf32>
    %233 = arith.mulf %230, %232 : vector<72x99xf32>
    %234 = arith.addf %229, %233 : vector<72x99xf32>
    %235 = vector.extract_strided_slice %193 {offsets = [0, 8], sizes = [72, 99], strides = [1, 1]} : vector<72x108xf32> to vector<72x99xf32>
    %236 = vector.extract_strided_slice %15 {offsets = [72, 8], sizes = [72, 1], strides = [1, 1]} : vector<144x10xf32> to vector<72x1xf32>
    %237 = vector.broadcast %236 : vector<72x1xf32> to vector<72x99xf32>
    %238 = arith.mulf %235, %237 : vector<72x99xf32>
    %239 = arith.addf %234, %238 : vector<72x99xf32>
    %240 = vector.extract_strided_slice %193 {offsets = [0, 9], sizes = [72, 99], strides = [1, 1]} : vector<72x108xf32> to vector<72x99xf32>
    %241 = vector.extract_strided_slice %15 {offsets = [72, 9], sizes = [72, 1], strides = [1, 1]} : vector<144x10xf32> to vector<72x1xf32>
    %242 = vector.broadcast %241 : vector<72x1xf32> to vector<72x99xf32>
    %243 = arith.mulf %240, %242 : vector<72x99xf32>
    %244 = arith.addf %239, %243 : vector<72x99xf32>
    %245 = vector.extract_strided_slice %16 {offsets = [72, 0], sizes = [72, 1], strides = [1, 1]} : vector<144x1xf32> to vector<72x1xf32>
    %246 = vector.broadcast %245 : vector<72x1xf32> to vector<72x99xf32>
    %247 = arith.addf %244, %246 : vector<72x99xf32>
    %cst_77 = arith.constant 0.000000e+00 : f32
    %248 = vector.broadcast %cst_77 : f32 to vector<72x99xf32>
    %249 = arith.maximumf %247, %248 : vector<72x99xf32>
    %250 = tpu.concatenate %190, %249 in 0 : vector<72x99xf32>, vector<72x99xf32> -> vector<144x99xf32>
    %251 = arith.truncf %250 : vector<144x99xf32> to vector<144x99xbf16>
    %cst_78 = arith.constant dense<0.000000e+00> : vector<144x50xf32>
    %252 = tpu.matmul %251, %19, %cst_78 {dimension_numbers = #tpu.dot_dimension_numbers<[1], [0], [0], [1], [0, 0, 1, 1], [], []>} : vector<144x99xbf16>, vector<99x50xbf16>, vector<144x50xf32> -> vector<144x50xf32>
    %253 = arith.truncf %252 : vector<144x50xf32> to vector<144x50xbf16>
    %cst_79 = arith.constant dense<0.000000e+00> : vector<24x50xf32>
    %254 = tpu.matmul %17, %253, %cst_79 {dimension_numbers = #tpu.dot_dimension_numbers<[1], [0], [0], [1], [0, 0, 1, 1], [], []>} : vector<24x144xbf16>, vector<144x50xbf16>, vector<24x50xf32> -> vector<24x50xf32>
    %255 = vector.broadcast %18 : vector<24x1xf32> to vector<24x50xf32>
    %256 = arith.addf %254, %255 : vector<24x50xf32>
    %cst_80 = arith.constant 0.000000e+00 : f32
    %257 = vector.broadcast %cst_80 : f32 to vector<24x41xf32>
    %258 = vector.extract_strided_slice %256 {offsets = [0, 0], sizes = [24, 41], strides = [1, 1]} : vector<24x50xf32> to vector<24x41xf32>
    %259 = vector.extract_strided_slice %20 {offsets = [0, 0], sizes = [24, 1], strides = [1, 1]} : vector<24x10xf32> to vector<24x1xf32>
    %260 = vector.broadcast %259 : vector<24x1xf32> to vector<24x41xf32>
    %261 = arith.mulf %258, %260 : vector<24x41xf32>
    %262 = arith.addf %257, %261 : vector<24x41xf32>
    %263 = vector.extract_strided_slice %256 {offsets = [0, 1], sizes = [24, 41], strides = [1, 1]} : vector<24x50xf32> to vector<24x41xf32>
    %264 = vector.extract_strided_slice %20 {offsets = [0, 1], sizes = [24, 1], strides = [1, 1]} : vector<24x10xf32> to vector<24x1xf32>
    %265 = vector.broadcast %264 : vector<24x1xf32> to vector<24x41xf32>
    %266 = arith.mulf %263, %265 : vector<24x41xf32>
    %267 = arith.addf %262, %266 : vector<24x41xf32>
    %268 = vector.extract_strided_slice %256 {offsets = [0, 2], sizes = [24, 41], strides = [1, 1]} : vector<24x50xf32> to vector<24x41xf32>
    %269 = vector.extract_strided_slice %20 {offsets = [0, 2], sizes = [24, 1], strides = [1, 1]} : vector<24x10xf32> to vector<24x1xf32>
    %270 = vector.broadcast %269 : vector<24x1xf32> to vector<24x41xf32>
    %271 = arith.mulf %268, %270 : vector<24x41xf32>
    %272 = arith.addf %267, %271 : vector<24x41xf32>
    %273 = vector.extract_strided_slice %256 {offsets = [0, 3], sizes = [24, 41], strides = [1, 1]} : vector<24x50xf32> to vector<24x41xf32>
    %274 = vector.extract_strided_slice %20 {offsets = [0, 3], sizes = [24, 1], strides = [1, 1]} : vector<24x10xf32> to vector<24x1xf32>
    %275 = vector.broadcast %274 : vector<24x1xf32> to vector<24x41xf32>
    %276 = arith.mulf %273, %275 : vector<24x41xf32>
    %277 = arith.addf %272, %276 : vector<24x41xf32>
    %278 = vector.extract_strided_slice %256 {offsets = [0, 4], sizes = [24, 41], strides = [1, 1]} : vector<24x50xf32> to vector<24x41xf32>
    %279 = vector.extract_strided_slice %20 {offsets = [0, 4], sizes = [24, 1], strides = [1, 1]} : vector<24x10xf32> to vector<24x1xf32>
    %280 = vector.broadcast %279 : vector<24x1xf32> to vector<24x41xf32>
    %281 = arith.mulf %278, %280 : vector<24x41xf32>
    %282 = arith.addf %277, %281 : vector<24x41xf32>
    %283 = vector.extract_strided_slice %256 {offsets = [0, 5], sizes = [24, 41], strides = [1, 1]} : vector<24x50xf32> to vector<24x41xf32>
    %284 = vector.extract_strided_slice %20 {offsets = [0, 5], sizes = [24, 1], strides = [1, 1]} : vector<24x10xf32> to vector<24x1xf32>
    %285 = vector.broadcast %284 : vector<24x1xf32> to vector<24x41xf32>
    %286 = arith.mulf %283, %285 : vector<24x41xf32>
    %287 = arith.addf %282, %286 : vector<24x41xf32>
    %288 = vector.extract_strided_slice %256 {offsets = [0, 6], sizes = [24, 41], strides = [1, 1]} : vector<24x50xf32> to vector<24x41xf32>
    %289 = vector.extract_strided_slice %20 {offsets = [0, 6], sizes = [24, 1], strides = [1, 1]} : vector<24x10xf32> to vector<24x1xf32>
    %290 = vector.broadcast %289 : vector<24x1xf32> to vector<24x41xf32>
    %291 = arith.mulf %288, %290 : vector<24x41xf32>
    %292 = arith.addf %287, %291 : vector<24x41xf32>
    %293 = vector.extract_strided_slice %256 {offsets = [0, 7], sizes = [24, 41], strides = [1, 1]} : vector<24x50xf32> to vector<24x41xf32>
    %294 = vector.extract_strided_slice %20 {offsets = [0, 7], sizes = [24, 1], strides = [1, 1]} : vector<24x10xf32> to vector<24x1xf32>
    %295 = vector.broadcast %294 : vector<24x1xf32> to vector<24x41xf32>
    %296 = arith.mulf %293, %295 : vector<24x41xf32>
    %297 = arith.addf %292, %296 : vector<24x41xf32>
    %298 = vector.extract_strided_slice %256 {offsets = [0, 8], sizes = [24, 41], strides = [1, 1]} : vector<24x50xf32> to vector<24x41xf32>
    %299 = vector.extract_strided_slice %20 {offsets = [0, 8], sizes = [24, 1], strides = [1, 1]} : vector<24x10xf32> to vector<24x1xf32>
    %300 = vector.broadcast %299 : vector<24x1xf32> to vector<24x41xf32>
    %301 = arith.mulf %298, %300 : vector<24x41xf32>
    %302 = arith.addf %297, %301 : vector<24x41xf32>
    %303 = vector.extract_strided_slice %256 {offsets = [0, 9], sizes = [24, 41], strides = [1, 1]} : vector<24x50xf32> to vector<24x41xf32>
    %304 = vector.extract_strided_slice %20 {offsets = [0, 9], sizes = [24, 1], strides = [1, 1]} : vector<24x10xf32> to vector<24x1xf32>
    %305 = vector.broadcast %304 : vector<24x1xf32> to vector<24x41xf32>
    %306 = arith.mulf %303, %305 : vector<24x41xf32>
    %307 = arith.addf %302, %306 : vector<24x41xf32>
    %308 = arith.truncf %307 : vector<24x41xf32> to vector<24x41xbf16>
    %cst_81 = arith.constant dense<0.000000e+00> : vector<24x41xf32>
    %309 = tpu.matmul %21, %308, %cst_81 {dimension_numbers = #tpu.dot_dimension_numbers<[1], [0], [0], [1], [0, 0, 1, 1], [], []>} : vector<24x24xbf16>, vector<24x41xbf16>, vector<24x41xf32> -> vector<24x41xf32>
    %310 = vector.broadcast %22 : vector<24x1xf32> to vector<24x41xf32>
    %311 = arith.addf %309, %310 : vector<24x41xf32>
    %312 = vector.extract_strided_slice %311 {offsets = [0, 0], sizes = [24, 10], strides = [1, 1]} : vector<24x41xf32> to vector<24x10xf32>
    %cst_82 = arith.constant dense<0xFF800000> : vector<24xf32>
    %313 = vector.multi_reduction <maximumf>, %312, %cst_82 [1] : vector<24x10xf32> to vector<24xf32>
    %314 = vector.shape_cast %313 : vector<24xf32> to vector<24x1xf32>
    %315 = vector.extract_strided_slice %311 {offsets = [0, 9], sizes = [24, 10], strides = [1, 1]} : vector<24x41xf32> to vector<24x10xf32>
    %cst_83 = arith.constant dense<0xFF800000> : vector<24xf32>
    %316 = vector.multi_reduction <maximumf>, %315, %cst_83 [1] : vector<24x10xf32> to vector<24xf32>
    %317 = vector.shape_cast %316 : vector<24xf32> to vector<24x1xf32>
    %318 = vector.extract_strided_slice %311 {offsets = [0, 18], sizes = [24, 10], strides = [1, 1]} : vector<24x41xf32> to vector<24x10xf32>
    %cst_84 = arith.constant dense<0xFF800000> : vector<24xf32>
    %319 = vector.multi_reduction <maximumf>, %318, %cst_84 [1] : vector<24x10xf32> to vector<24xf32>
    %320 = vector.shape_cast %319 : vector<24xf32> to vector<24x1xf32>
    %321 = vector.extract_strided_slice %311 {offsets = [0, 27], sizes = [24, 10], strides = [1, 1]} : vector<24x41xf32> to vector<24x10xf32>
    %cst_85 = arith.constant dense<0xFF800000> : vector<24xf32>
    %322 = vector.multi_reduction <maximumf>, %321, %cst_85 [1] : vector<24x10xf32> to vector<24xf32>
    %323 = vector.shape_cast %322 : vector<24xf32> to vector<24x1xf32>
    %324 = tpu.concatenate %314, %317, %320, %323 in 0 : vector<24x1xf32>, vector<24x1xf32>, vector<24x1xf32>, vector<24x1xf32> -> vector<96x1xf32>
    %c1 = arith.constant 1 : index
    %c0_86 = arith.constant 0 : index
    %c0_87 = arith.constant 0 : index
    %325 = vector.load %arg1[%c1, %c0_86, %c0_87] : memref<2x8x208xf32, #tpu.memory_space<vmem>>, vector<1x8x208xf32>
    %326 = vector.shape_cast %325 : vector<1x8x208xf32> to vector<8x208xf32>
    %327 = vector.extract_strided_slice %326 {offsets = [0, 4], sizes = [8, 200], strides = [1, 1]} : vector<8x208xf32> to vector<8x200xf32>
    %328 = vector.extract_strided_slice %326 {offsets = [0, 0], sizes = [8, 200], strides = [1, 1]} : vector<8x208xf32> to vector<8x200xf32>
    %329 = vector.extract_strided_slice %326 {offsets = [0, 1], sizes = [8, 200], strides = [1, 1]} : vector<8x208xf32> to vector<8x200xf32>
    %330 = vector.extract_strided_slice %326 {offsets = [0, 2], sizes = [8, 200], strides = [1, 1]} : vector<8x208xf32> to vector<8x200xf32>
    %331 = vector.extract_strided_slice %326 {offsets = [0, 3], sizes = [8, 200], strides = [1, 1]} : vector<8x208xf32> to vector<8x200xf32>
    %332 = vector.extract_strided_slice %326 {offsets = [0, 4], sizes = [8, 200], strides = [1, 1]} : vector<8x208xf32> to vector<8x200xf32>
    %333 = vector.extract_strided_slice %326 {offsets = [0, 5], sizes = [8, 200], strides = [1, 1]} : vector<8x208xf32> to vector<8x200xf32>
    %334 = vector.extract_strided_slice %326 {offsets = [0, 6], sizes = [8, 200], strides = [1, 1]} : vector<8x208xf32> to vector<8x200xf32>
    %335 = vector.extract_strided_slice %326 {offsets = [0, 7], sizes = [8, 200], strides = [1, 1]} : vector<8x208xf32> to vector<8x200xf32>
    %336 = vector.extract_strided_slice %326 {offsets = [0, 8], sizes = [8, 200], strides = [1, 1]} : vector<8x208xf32> to vector<8x200xf32>
    %337 = tpu.concatenate %328, %329, %330, %331, %332, %333, %334, %335, %336 in 0 : vector<8x200xf32>, vector<8x200xf32>, vector<8x200xf32>, vector<8x200xf32>, vector<8x200xf32>, vector<8x200xf32>, vector<8x200xf32>, vector<8x200xf32>, vector<8x200xf32> -> vector<72x200xf32>
    %338 = arith.truncf %337 : vector<72x200xf32> to vector<72x200xbf16>
    %cst_88 = arith.constant dense<0.000000e+00> : vector<12x200xf32>
    %339 = tpu.matmul %0, %338, %cst_88 {dimension_numbers = #tpu.dot_dimension_numbers<[1], [0], [0], [1], [0, 0, 1, 1], [], []>} : vector<12x72xbf16>, vector<72x200xbf16>, vector<12x200xf32> -> vector<12x200xf32>
    %340 = vector.broadcast %1 : vector<12x1xf32> to vector<12x200xf32>
    %341 = arith.addf %339, %340 : vector<12x200xf32>
    %cst_89 = arith.constant 0.000000e+00 : f32
    %342 = vector.broadcast %cst_89 : f32 to vector<12x200xf32>
    %343 = arith.maximumf %341, %342 : vector<12x200xf32>
    %344 = arith.truncf %343 : vector<12x200xf32> to vector<12x200xbf16>
    %cst_90 = arith.constant dense<0.000000e+00> : vector<12x200xf32>
    %345 = tpu.matmul %2, %344, %cst_90 {dimension_numbers = #tpu.dot_dimension_numbers<[1], [0], [0], [1], [0, 0, 1, 1], [], []>} : vector<12x12xbf16>, vector<12x200xbf16>, vector<12x200xf32> -> vector<12x200xf32>
    %346 = vector.broadcast %3 : vector<12x1xf32> to vector<12x200xf32>
    %347 = arith.addf %345, %346 : vector<12x200xf32>
    %348 = arith.truncf %327 : vector<8x200xf32> to vector<8x200xbf16>
    %cst_91 = arith.constant dense<0.000000e+00> : vector<12x200xf32>
    %349 = tpu.matmul %4, %348, %cst_91 {dimension_numbers = #tpu.dot_dimension_numbers<[1], [0], [0], [1], [0, 0, 1, 1], [], []>} : vector<12x8xbf16>, vector<8x200xbf16>, vector<12x200xf32> -> vector<12x200xf32>
    %350 = arith.addf %347, %349 : vector<12x200xf32>
    %351 = vector.broadcast %5 : vector<12x1xf32> to vector<12x200xf32>
    %352 = arith.addf %350, %351 : vector<12x200xf32>
    %353 = arith.truncf %352 : vector<12x200xf32> to vector<12x200xbf16>
    %cst_92 = arith.constant dense<0.000000e+00> : vector<72x200xf32>
    %354 = tpu.matmul %6, %353, %cst_92 {dimension_numbers = #tpu.dot_dimension_numbers<[1], [0], [0], [1], [0, 0, 1, 1], [], []>} : vector<72x12xbf16>, vector<12x200xbf16>, vector<72x200xf32> -> vector<72x200xf32>
    %355 = vector.broadcast %7 : vector<72x1xf32> to vector<72x200xf32>
    %356 = arith.addf %354, %355 : vector<72x200xf32>
    %cst_93 = arith.constant 0.000000e+00 : f32
    %357 = vector.broadcast %cst_93 : f32 to vector<72x200xf32>
    %358 = arith.maximumf %356, %357 : vector<72x200xf32>
    %cst_94 = arith.constant 0.000000e+00 : f32
    %359 = vector.broadcast %cst_94 : f32 to vector<72x4xf32>
    %360 = tpu.concatenate %359, %358, %359 in 1 : vector<72x4xf32>, vector<72x200xf32>, vector<72x4xf32> -> vector<72x208xf32>
    %cst_95 = arith.constant 0.000000e+00 : f32
    %361 = vector.broadcast %cst_95 : f32 to vector<72x199xf32>
    %362 = vector.extract_strided_slice %360 {offsets = [0, 0], sizes = [72, 199], strides = [1, 1]} : vector<72x208xf32> to vector<72x199xf32>
    %363 = vector.extract_strided_slice %8 {offsets = [0, 0], sizes = [72, 1], strides = [1, 1]} : vector<72x10xf32> to vector<72x1xf32>
    %364 = vector.broadcast %363 : vector<72x1xf32> to vector<72x199xf32>
    %365 = arith.mulf %362, %364 : vector<72x199xf32>
    %366 = arith.addf %361, %365 : vector<72x199xf32>
    %367 = vector.extract_strided_slice %360 {offsets = [0, 1], sizes = [72, 199], strides = [1, 1]} : vector<72x208xf32> to vector<72x199xf32>
    %368 = vector.extract_strided_slice %8 {offsets = [0, 1], sizes = [72, 1], strides = [1, 1]} : vector<72x10xf32> to vector<72x1xf32>
    %369 = vector.broadcast %368 : vector<72x1xf32> to vector<72x199xf32>
    %370 = arith.mulf %367, %369 : vector<72x199xf32>
    %371 = arith.addf %366, %370 : vector<72x199xf32>
    %372 = vector.extract_strided_slice %360 {offsets = [0, 2], sizes = [72, 199], strides = [1, 1]} : vector<72x208xf32> to vector<72x199xf32>
    %373 = vector.extract_strided_slice %8 {offsets = [0, 2], sizes = [72, 1], strides = [1, 1]} : vector<72x10xf32> to vector<72x1xf32>
    %374 = vector.broadcast %373 : vector<72x1xf32> to vector<72x199xf32>
    %375 = arith.mulf %372, %374 : vector<72x199xf32>
    %376 = arith.addf %371, %375 : vector<72x199xf32>
    %377 = vector.extract_strided_slice %360 {offsets = [0, 3], sizes = [72, 199], strides = [1, 1]} : vector<72x208xf32> to vector<72x199xf32>
    %378 = vector.extract_strided_slice %8 {offsets = [0, 3], sizes = [72, 1], strides = [1, 1]} : vector<72x10xf32> to vector<72x1xf32>
    %379 = vector.broadcast %378 : vector<72x1xf32> to vector<72x199xf32>
    %380 = arith.mulf %377, %379 : vector<72x199xf32>
    %381 = arith.addf %376, %380 : vector<72x199xf32>
    %382 = vector.extract_strided_slice %360 {offsets = [0, 4], sizes = [72, 199], strides = [1, 1]} : vector<72x208xf32> to vector<72x199xf32>
    %383 = vector.extract_strided_slice %8 {offsets = [0, 4], sizes = [72, 1], strides = [1, 1]} : vector<72x10xf32> to vector<72x1xf32>
    %384 = vector.broadcast %383 : vector<72x1xf32> to vector<72x199xf32>
    %385 = arith.mulf %382, %384 : vector<72x199xf32>
    %386 = arith.addf %381, %385 : vector<72x199xf32>
    %387 = vector.extract_strided_slice %360 {offsets = [0, 5], sizes = [72, 199], strides = [1, 1]} : vector<72x208xf32> to vector<72x199xf32>
    %388 = vector.extract_strided_slice %8 {offsets = [0, 5], sizes = [72, 1], strides = [1, 1]} : vector<72x10xf32> to vector<72x1xf32>
    %389 = vector.broadcast %388 : vector<72x1xf32> to vector<72x199xf32>
    %390 = arith.mulf %387, %389 : vector<72x199xf32>
    %391 = arith.addf %386, %390 : vector<72x199xf32>
    %392 = vector.extract_strided_slice %360 {offsets = [0, 6], sizes = [72, 199], strides = [1, 1]} : vector<72x208xf32> to vector<72x199xf32>
    %393 = vector.extract_strided_slice %8 {offsets = [0, 6], sizes = [72, 1], strides = [1, 1]} : vector<72x10xf32> to vector<72x1xf32>
    %394 = vector.broadcast %393 : vector<72x1xf32> to vector<72x199xf32>
    %395 = arith.mulf %392, %394 : vector<72x199xf32>
    %396 = arith.addf %391, %395 : vector<72x199xf32>
    %397 = vector.extract_strided_slice %360 {offsets = [0, 7], sizes = [72, 199], strides = [1, 1]} : vector<72x208xf32> to vector<72x199xf32>
    %398 = vector.extract_strided_slice %8 {offsets = [0, 7], sizes = [72, 1], strides = [1, 1]} : vector<72x10xf32> to vector<72x1xf32>
    %399 = vector.broadcast %398 : vector<72x1xf32> to vector<72x199xf32>
    %400 = arith.mulf %397, %399 : vector<72x199xf32>
    %401 = arith.addf %396, %400 : vector<72x199xf32>
    %402 = vector.extract_strided_slice %360 {offsets = [0, 8], sizes = [72, 199], strides = [1, 1]} : vector<72x208xf32> to vector<72x199xf32>
    %403 = vector.extract_strided_slice %8 {offsets = [0, 8], sizes = [72, 1], strides = [1, 1]} : vector<72x10xf32> to vector<72x1xf32>
    %404 = vector.broadcast %403 : vector<72x1xf32> to vector<72x199xf32>
    %405 = arith.mulf %402, %404 : vector<72x199xf32>
    %406 = arith.addf %401, %405 : vector<72x199xf32>
    %407 = vector.extract_strided_slice %360 {offsets = [0, 9], sizes = [72, 199], strides = [1, 1]} : vector<72x208xf32> to vector<72x199xf32>
    %408 = vector.extract_strided_slice %8 {offsets = [0, 9], sizes = [72, 1], strides = [1, 1]} : vector<72x10xf32> to vector<72x1xf32>
    %409 = vector.broadcast %408 : vector<72x1xf32> to vector<72x199xf32>
    %410 = arith.mulf %407, %409 : vector<72x199xf32>
    %411 = arith.addf %406, %410 : vector<72x199xf32>
    %412 = vector.broadcast %9 : vector<72x1xf32> to vector<72x199xf32>
    %413 = arith.addf %411, %412 : vector<72x199xf32>
    %cst_96 = arith.constant 0.000000e+00 : f32
    %414 = vector.broadcast %cst_96 : f32 to vector<72x199xf32>
    %415 = arith.maximumf %413, %414 : vector<72x199xf32>
    %416 = arith.truncf %415 : vector<72x199xf32> to vector<72x199xbf16>
    %cst_97 = arith.constant dense<0.000000e+00> : vector<72x100xf32>
    %417 = tpu.matmul %416, %12, %cst_97 {dimension_numbers = #tpu.dot_dimension_numbers<[1], [0], [0], [1], [0, 0, 1, 1], [], []>} : vector<72x199xbf16>, vector<199x100xbf16>, vector<72x100xf32> -> vector<72x100xf32>
    %418 = arith.truncf %417 : vector<72x100xf32> to vector<72x100xbf16>
    %cst_98 = arith.constant dense<0.000000e+00> : vector<24x100xf32>
    %419 = tpu.matmul %10, %418, %cst_98 {dimension_numbers = #tpu.dot_dimension_numbers<[1], [0], [0], [1], [0, 0, 1, 1], [], []>} : vector<24x72xbf16>, vector<72x100xbf16>, vector<24x100xf32> -> vector<24x100xf32>
    %420 = vector.broadcast %11 : vector<24x1xf32> to vector<24x100xf32>
    %421 = arith.addf %419, %420 : vector<24x100xf32>
    %422 = arith.truncf %421 : vector<24x100xf32> to vector<24x100xbf16>
    %cst_99 = arith.constant dense<0.000000e+00> : vector<144x100xf32>
    %423 = tpu.matmul %13, %422, %cst_99 {dimension_numbers = #tpu.dot_dimension_numbers<[1], [0], [0], [1], [0, 0, 1, 1], [], []>} : vector<144x24xbf16>, vector<24x100xbf16>, vector<144x100xf32> -> vector<144x100xf32>
    %424 = vector.broadcast %14 : vector<144x1xf32> to vector<144x100xf32>
    %425 = arith.addf %423, %424 : vector<144x100xf32>
    %cst_100 = arith.constant 0.000000e+00 : f32
    %426 = vector.broadcast %cst_100 : f32 to vector<144x100xf32>
    %427 = arith.maximumf %425, %426 : vector<144x100xf32>
    %428 = vector.extract_strided_slice %427 {offsets = [0, 0], sizes = [72, 100], strides = [1, 1]} : vector<144x100xf32> to vector<72x100xf32>
    %cst_101 = arith.constant 0.000000e+00 : f32
    %429 = vector.broadcast %cst_101 : f32 to vector<72x4xf32>
    %430 = tpu.concatenate %429, %428, %429 in 1 : vector<72x4xf32>, vector<72x100xf32>, vector<72x4xf32> -> vector<72x108xf32>
    %cst_102 = arith.constant 0.000000e+00 : f32
    %431 = vector.broadcast %cst_102 : f32 to vector<72x99xf32>
    %432 = vector.extract_strided_slice %430 {offsets = [0, 0], sizes = [72, 99], strides = [1, 1]} : vector<72x108xf32> to vector<72x99xf32>
    %433 = vector.extract_strided_slice %15 {offsets = [0, 0], sizes = [72, 1], strides = [1, 1]} : vector<144x10xf32> to vector<72x1xf32>
    %434 = vector.broadcast %433 : vector<72x1xf32> to vector<72x99xf32>
    %435 = arith.mulf %432, %434 : vector<72x99xf32>
    %436 = arith.addf %431, %435 : vector<72x99xf32>
    %437 = vector.extract_strided_slice %430 {offsets = [0, 1], sizes = [72, 99], strides = [1, 1]} : vector<72x108xf32> to vector<72x99xf32>
    %438 = vector.extract_strided_slice %15 {offsets = [0, 1], sizes = [72, 1], strides = [1, 1]} : vector<144x10xf32> to vector<72x1xf32>
    %439 = vector.broadcast %438 : vector<72x1xf32> to vector<72x99xf32>
    %440 = arith.mulf %437, %439 : vector<72x99xf32>
    %441 = arith.addf %436, %440 : vector<72x99xf32>
    %442 = vector.extract_strided_slice %430 {offsets = [0, 2], sizes = [72, 99], strides = [1, 1]} : vector<72x108xf32> to vector<72x99xf32>
    %443 = vector.extract_strided_slice %15 {offsets = [0, 2], sizes = [72, 1], strides = [1, 1]} : vector<144x10xf32> to vector<72x1xf32>
    %444 = vector.broadcast %443 : vector<72x1xf32> to vector<72x99xf32>
    %445 = arith.mulf %442, %444 : vector<72x99xf32>
    %446 = arith.addf %441, %445 : vector<72x99xf32>
    %447 = vector.extract_strided_slice %430 {offsets = [0, 3], sizes = [72, 99], strides = [1, 1]} : vector<72x108xf32> to vector<72x99xf32>
    %448 = vector.extract_strided_slice %15 {offsets = [0, 3], sizes = [72, 1], strides = [1, 1]} : vector<144x10xf32> to vector<72x1xf32>
    %449 = vector.broadcast %448 : vector<72x1xf32> to vector<72x99xf32>
    %450 = arith.mulf %447, %449 : vector<72x99xf32>
    %451 = arith.addf %446, %450 : vector<72x99xf32>
    %452 = vector.extract_strided_slice %430 {offsets = [0, 4], sizes = [72, 99], strides = [1, 1]} : vector<72x108xf32> to vector<72x99xf32>
    %453 = vector.extract_strided_slice %15 {offsets = [0, 4], sizes = [72, 1], strides = [1, 1]} : vector<144x10xf32> to vector<72x1xf32>
    %454 = vector.broadcast %453 : vector<72x1xf32> to vector<72x99xf32>
    %455 = arith.mulf %452, %454 : vector<72x99xf32>
    %456 = arith.addf %451, %455 : vector<72x99xf32>
    %457 = vector.extract_strided_slice %430 {offsets = [0, 5], sizes = [72, 99], strides = [1, 1]} : vector<72x108xf32> to vector<72x99xf32>
    %458 = vector.extract_strided_slice %15 {offsets = [0, 5], sizes = [72, 1], strides = [1, 1]} : vector<144x10xf32> to vector<72x1xf32>
    %459 = vector.broadcast %458 : vector<72x1xf32> to vector<72x99xf32>
    %460 = arith.mulf %457, %459 : vector<72x99xf32>
    %461 = arith.addf %456, %460 : vector<72x99xf32>
    %462 = vector.extract_strided_slice %430 {offsets = [0, 6], sizes = [72, 99], strides = [1, 1]} : vector<72x108xf32> to vector<72x99xf32>
    %463 = vector.extract_strided_slice %15 {offsets = [0, 6], sizes = [72, 1], strides = [1, 1]} : vector<144x10xf32> to vector<72x1xf32>
    %464 = vector.broadcast %463 : vector<72x1xf32> to vector<72x99xf32>
    %465 = arith.mulf %462, %464 : vector<72x99xf32>
    %466 = arith.addf %461, %465 : vector<72x99xf32>
    %467 = vector.extract_strided_slice %430 {offsets = [0, 7], sizes = [72, 99], strides = [1, 1]} : vector<72x108xf32> to vector<72x99xf32>
    %468 = vector.extract_strided_slice %15 {offsets = [0, 7], sizes = [72, 1], strides = [1, 1]} : vector<144x10xf32> to vector<72x1xf32>
    %469 = vector.broadcast %468 : vector<72x1xf32> to vector<72x99xf32>
    %470 = arith.mulf %467, %469 : vector<72x99xf32>
    %471 = arith.addf %466, %470 : vector<72x99xf32>
    %472 = vector.extract_strided_slice %430 {offsets = [0, 8], sizes = [72, 99], strides = [1, 1]} : vector<72x108xf32> to vector<72x99xf32>
    %473 = vector.extract_strided_slice %15 {offsets = [0, 8], sizes = [72, 1], strides = [1, 1]} : vector<144x10xf32> to vector<72x1xf32>
    %474 = vector.broadcast %473 : vector<72x1xf32> to vector<72x99xf32>
    %475 = arith.mulf %472, %474 : vector<72x99xf32>
    %476 = arith.addf %471, %475 : vector<72x99xf32>
    %477 = vector.extract_strided_slice %430 {offsets = [0, 9], sizes = [72, 99], strides = [1, 1]} : vector<72x108xf32> to vector<72x99xf32>
    %478 = vector.extract_strided_slice %15 {offsets = [0, 9], sizes = [72, 1], strides = [1, 1]} : vector<144x10xf32> to vector<72x1xf32>
    %479 = vector.broadcast %478 : vector<72x1xf32> to vector<72x99xf32>
    %480 = arith.mulf %477, %479 : vector<72x99xf32>
    %481 = arith.addf %476, %480 : vector<72x99xf32>
    %482 = vector.extract_strided_slice %16 {offsets = [0, 0], sizes = [72, 1], strides = [1, 1]} : vector<144x1xf32> to vector<72x1xf32>
    %483 = vector.broadcast %482 : vector<72x1xf32> to vector<72x99xf32>
    %484 = arith.addf %481, %483 : vector<72x99xf32>
    %cst_103 = arith.constant 0.000000e+00 : f32
    %485 = vector.broadcast %cst_103 : f32 to vector<72x99xf32>
    %486 = arith.maximumf %484, %485 : vector<72x99xf32>
    %487 = vector.extract_strided_slice %427 {offsets = [72, 0], sizes = [72, 100], strides = [1, 1]} : vector<144x100xf32> to vector<72x100xf32>
    %cst_104 = arith.constant 0.000000e+00 : f32
    %488 = vector.broadcast %cst_104 : f32 to vector<72x4xf32>
    %489 = tpu.concatenate %488, %487, %488 in 1 : vector<72x4xf32>, vector<72x100xf32>, vector<72x4xf32> -> vector<72x108xf32>
    %cst_105 = arith.constant 0.000000e+00 : f32
    %490 = vector.broadcast %cst_105 : f32 to vector<72x99xf32>
    %491 = vector.extract_strided_slice %489 {offsets = [0, 0], sizes = [72, 99], strides = [1, 1]} : vector<72x108xf32> to vector<72x99xf32>
    %492 = vector.extract_strided_slice %15 {offsets = [72, 0], sizes = [72, 1], strides = [1, 1]} : vector<144x10xf32> to vector<72x1xf32>
    %493 = vector.broadcast %492 : vector<72x1xf32> to vector<72x99xf32>
    %494 = arith.mulf %491, %493 : vector<72x99xf32>
    %495 = arith.addf %490, %494 : vector<72x99xf32>
    %496 = vector.extract_strided_slice %489 {offsets = [0, 1], sizes = [72, 99], strides = [1, 1]} : vector<72x108xf32> to vector<72x99xf32>
    %497 = vector.extract_strided_slice %15 {offsets = [72, 1], sizes = [72, 1], strides = [1, 1]} : vector<144x10xf32> to vector<72x1xf32>
    %498 = vector.broadcast %497 : vector<72x1xf32> to vector<72x99xf32>
    %499 = arith.mulf %496, %498 : vector<72x99xf32>
    %500 = arith.addf %495, %499 : vector<72x99xf32>
    %501 = vector.extract_strided_slice %489 {offsets = [0, 2], sizes = [72, 99], strides = [1, 1]} : vector<72x108xf32> to vector<72x99xf32>
    %502 = vector.extract_strided_slice %15 {offsets = [72, 2], sizes = [72, 1], strides = [1, 1]} : vector<144x10xf32> to vector<72x1xf32>
    %503 = vector.broadcast %502 : vector<72x1xf32> to vector<72x99xf32>
    %504 = arith.mulf %501, %503 : vector<72x99xf32>
    %505 = arith.addf %500, %504 : vector<72x99xf32>
    %506 = vector.extract_strided_slice %489 {offsets = [0, 3], sizes = [72, 99], strides = [1, 1]} : vector<72x108xf32> to vector<72x99xf32>
    %507 = vector.extract_strided_slice %15 {offsets = [72, 3], sizes = [72, 1], strides = [1, 1]} : vector<144x10xf32> to vector<72x1xf32>
    %508 = vector.broadcast %507 : vector<72x1xf32> to vector<72x99xf32>
    %509 = arith.mulf %506, %508 : vector<72x99xf32>
    %510 = arith.addf %505, %509 : vector<72x99xf32>
    %511 = vector.extract_strided_slice %489 {offsets = [0, 4], sizes = [72, 99], strides = [1, 1]} : vector<72x108xf32> to vector<72x99xf32>
    %512 = vector.extract_strided_slice %15 {offsets = [72, 4], sizes = [72, 1], strides = [1, 1]} : vector<144x10xf32> to vector<72x1xf32>
    %513 = vector.broadcast %512 : vector<72x1xf32> to vector<72x99xf32>
    %514 = arith.mulf %511, %513 : vector<72x99xf32>
    %515 = arith.addf %510, %514 : vector<72x99xf32>
    %516 = vector.extract_strided_slice %489 {offsets = [0, 5], sizes = [72, 99], strides = [1, 1]} : vector<72x108xf32> to vector<72x99xf32>
    %517 = vector.extract_strided_slice %15 {offsets = [72, 5], sizes = [72, 1], strides = [1, 1]} : vector<144x10xf32> to vector<72x1xf32>
    %518 = vector.broadcast %517 : vector<72x1xf32> to vector<72x99xf32>
    %519 = arith.mulf %516, %518 : vector<72x99xf32>
    %520 = arith.addf %515, %519 : vector<72x99xf32>
    %521 = vector.extract_strided_slice %489 {offsets = [0, 6], sizes = [72, 99], strides = [1, 1]} : vector<72x108xf32> to vector<72x99xf32>
    %522 = vector.extract_strided_slice %15 {offsets = [72, 6], sizes = [72, 1], strides = [1, 1]} : vector<144x10xf32> to vector<72x1xf32>
    %523 = vector.broadcast %522 : vector<72x1xf32> to vector<72x99xf32>
    %524 = arith.mulf %521, %523 : vector<72x99xf32>
    %525 = arith.addf %520, %524 : vector<72x99xf32>
    %526 = vector.extract_strided_slice %489 {offsets = [0, 7], sizes = [72, 99], strides = [1, 1]} : vector<72x108xf32> to vector<72x99xf32>
    %527 = vector.extract_strided_slice %15 {offsets = [72, 7], sizes = [72, 1], strides = [1, 1]} : vector<144x10xf32> to vector<72x1xf32>
    %528 = vector.broadcast %527 : vector<72x1xf32> to vector<72x99xf32>
    %529 = arith.mulf %526, %528 : vector<72x99xf32>
    %530 = arith.addf %525, %529 : vector<72x99xf32>
    %531 = vector.extract_strided_slice %489 {offsets = [0, 8], sizes = [72, 99], strides = [1, 1]} : vector<72x108xf32> to vector<72x99xf32>
    %532 = vector.extract_strided_slice %15 {offsets = [72, 8], sizes = [72, 1], strides = [1, 1]} : vector<144x10xf32> to vector<72x1xf32>
    %533 = vector.broadcast %532 : vector<72x1xf32> to vector<72x99xf32>
    %534 = arith.mulf %531, %533 : vector<72x99xf32>
    %535 = arith.addf %530, %534 : vector<72x99xf32>
    %536 = vector.extract_strided_slice %489 {offsets = [0, 9], sizes = [72, 99], strides = [1, 1]} : vector<72x108xf32> to vector<72x99xf32>
    %537 = vector.extract_strided_slice %15 {offsets = [72, 9], sizes = [72, 1], strides = [1, 1]} : vector<144x10xf32> to vector<72x1xf32>
    %538 = vector.broadcast %537 : vector<72x1xf32> to vector<72x99xf32>
    %539 = arith.mulf %536, %538 : vector<72x99xf32>
    %540 = arith.addf %535, %539 : vector<72x99xf32>
    %541 = vector.extract_strided_slice %16 {offsets = [72, 0], sizes = [72, 1], strides = [1, 1]} : vector<144x1xf32> to vector<72x1xf32>
    %542 = vector.broadcast %541 : vector<72x1xf32> to vector<72x99xf32>
    %543 = arith.addf %540, %542 : vector<72x99xf32>
    %cst_106 = arith.constant 0.000000e+00 : f32
    %544 = vector.broadcast %cst_106 : f32 to vector<72x99xf32>
    %545 = arith.maximumf %543, %544 : vector<72x99xf32>
    %546 = tpu.concatenate %486, %545 in 0 : vector<72x99xf32>, vector<72x99xf32> -> vector<144x99xf32>
    %547 = arith.truncf %546 : vector<144x99xf32> to vector<144x99xbf16>
    %cst_107 = arith.constant dense<0.000000e+00> : vector<144x50xf32>
    %548 = tpu.matmul %547, %19, %cst_107 {dimension_numbers = #tpu.dot_dimension_numbers<[1], [0], [0], [1], [0, 0, 1, 1], [], []>} : vector<144x99xbf16>, vector<99x50xbf16>, vector<144x50xf32> -> vector<144x50xf32>
    %549 = arith.truncf %548 : vector<144x50xf32> to vector<144x50xbf16>
    %cst_108 = arith.constant dense<0.000000e+00> : vector<24x50xf32>
    %550 = tpu.matmul %17, %549, %cst_108 {dimension_numbers = #tpu.dot_dimension_numbers<[1], [0], [0], [1], [0, 0, 1, 1], [], []>} : vector<24x144xbf16>, vector<144x50xbf16>, vector<24x50xf32> -> vector<24x50xf32>
    %551 = vector.broadcast %18 : vector<24x1xf32> to vector<24x50xf32>
    %552 = arith.addf %550, %551 : vector<24x50xf32>
    %cst_109 = arith.constant 0.000000e+00 : f32
    %553 = vector.broadcast %cst_109 : f32 to vector<24x41xf32>
    %554 = vector.extract_strided_slice %552 {offsets = [0, 0], sizes = [24, 41], strides = [1, 1]} : vector<24x50xf32> to vector<24x41xf32>
    %555 = vector.extract_strided_slice %20 {offsets = [0, 0], sizes = [24, 1], strides = [1, 1]} : vector<24x10xf32> to vector<24x1xf32>
    %556 = vector.broadcast %555 : vector<24x1xf32> to vector<24x41xf32>
    %557 = arith.mulf %554, %556 : vector<24x41xf32>
    %558 = arith.addf %553, %557 : vector<24x41xf32>
    %559 = vector.extract_strided_slice %552 {offsets = [0, 1], sizes = [24, 41], strides = [1, 1]} : vector<24x50xf32> to vector<24x41xf32>
    %560 = vector.extract_strided_slice %20 {offsets = [0, 1], sizes = [24, 1], strides = [1, 1]} : vector<24x10xf32> to vector<24x1xf32>
    %561 = vector.broadcast %560 : vector<24x1xf32> to vector<24x41xf32>
    %562 = arith.mulf %559, %561 : vector<24x41xf32>
    %563 = arith.addf %558, %562 : vector<24x41xf32>
    %564 = vector.extract_strided_slice %552 {offsets = [0, 2], sizes = [24, 41], strides = [1, 1]} : vector<24x50xf32> to vector<24x41xf32>
    %565 = vector.extract_strided_slice %20 {offsets = [0, 2], sizes = [24, 1], strides = [1, 1]} : vector<24x10xf32> to vector<24x1xf32>
    %566 = vector.broadcast %565 : vector<24x1xf32> to vector<24x41xf32>
    %567 = arith.mulf %564, %566 : vector<24x41xf32>
    %568 = arith.addf %563, %567 : vector<24x41xf32>
    %569 = vector.extract_strided_slice %552 {offsets = [0, 3], sizes = [24, 41], strides = [1, 1]} : vector<24x50xf32> to vector<24x41xf32>
    %570 = vector.extract_strided_slice %20 {offsets = [0, 3], sizes = [24, 1], strides = [1, 1]} : vector<24x10xf32> to vector<24x1xf32>
    %571 = vector.broadcast %570 : vector<24x1xf32> to vector<24x41xf32>
    %572 = arith.mulf %569, %571 : vector<24x41xf32>
    %573 = arith.addf %568, %572 : vector<24x41xf32>
    %574 = vector.extract_strided_slice %552 {offsets = [0, 4], sizes = [24, 41], strides = [1, 1]} : vector<24x50xf32> to vector<24x41xf32>
    %575 = vector.extract_strided_slice %20 {offsets = [0, 4], sizes = [24, 1], strides = [1, 1]} : vector<24x10xf32> to vector<24x1xf32>
    %576 = vector.broadcast %575 : vector<24x1xf32> to vector<24x41xf32>
    %577 = arith.mulf %574, %576 : vector<24x41xf32>
    %578 = arith.addf %573, %577 : vector<24x41xf32>
    %579 = vector.extract_strided_slice %552 {offsets = [0, 5], sizes = [24, 41], strides = [1, 1]} : vector<24x50xf32> to vector<24x41xf32>
    %580 = vector.extract_strided_slice %20 {offsets = [0, 5], sizes = [24, 1], strides = [1, 1]} : vector<24x10xf32> to vector<24x1xf32>
    %581 = vector.broadcast %580 : vector<24x1xf32> to vector<24x41xf32>
    %582 = arith.mulf %579, %581 : vector<24x41xf32>
    %583 = arith.addf %578, %582 : vector<24x41xf32>
    %584 = vector.extract_strided_slice %552 {offsets = [0, 6], sizes = [24, 41], strides = [1, 1]} : vector<24x50xf32> to vector<24x41xf32>
    %585 = vector.extract_strided_slice %20 {offsets = [0, 6], sizes = [24, 1], strides = [1, 1]} : vector<24x10xf32> to vector<24x1xf32>
    %586 = vector.broadcast %585 : vector<24x1xf32> to vector<24x41xf32>
    %587 = arith.mulf %584, %586 : vector<24x41xf32>
    %588 = arith.addf %583, %587 : vector<24x41xf32>
    %589 = vector.extract_strided_slice %552 {offsets = [0, 7], sizes = [24, 41], strides = [1, 1]} : vector<24x50xf32> to vector<24x41xf32>
    %590 = vector.extract_strided_slice %20 {offsets = [0, 7], sizes = [24, 1], strides = [1, 1]} : vector<24x10xf32> to vector<24x1xf32>
    %591 = vector.broadcast %590 : vector<24x1xf32> to vector<24x41xf32>
    %592 = arith.mulf %589, %591 : vector<24x41xf32>
    %593 = arith.addf %588, %592 : vector<24x41xf32>
    %594 = vector.extract_strided_slice %552 {offsets = [0, 8], sizes = [24, 41], strides = [1, 1]} : vector<24x50xf32> to vector<24x41xf32>
    %595 = vector.extract_strided_slice %20 {offsets = [0, 8], sizes = [24, 1], strides = [1, 1]} : vector<24x10xf32> to vector<24x1xf32>
    %596 = vector.broadcast %595 : vector<24x1xf32> to vector<24x41xf32>
    %597 = arith.mulf %594, %596 : vector<24x41xf32>
    %598 = arith.addf %593, %597 : vector<24x41xf32>
    %599 = vector.extract_strided_slice %552 {offsets = [0, 9], sizes = [24, 41], strides = [1, 1]} : vector<24x50xf32> to vector<24x41xf32>
    %600 = vector.extract_strided_slice %20 {offsets = [0, 9], sizes = [24, 1], strides = [1, 1]} : vector<24x10xf32> to vector<24x1xf32>
    %601 = vector.broadcast %600 : vector<24x1xf32> to vector<24x41xf32>
    %602 = arith.mulf %599, %601 : vector<24x41xf32>
    %603 = arith.addf %598, %602 : vector<24x41xf32>
    %604 = arith.truncf %603 : vector<24x41xf32> to vector<24x41xbf16>
    %cst_110 = arith.constant dense<0.000000e+00> : vector<24x41xf32>
    %605 = tpu.matmul %21, %604, %cst_110 {dimension_numbers = #tpu.dot_dimension_numbers<[1], [0], [0], [1], [0, 0, 1, 1], [], []>} : vector<24x24xbf16>, vector<24x41xbf16>, vector<24x41xf32> -> vector<24x41xf32>
    %606 = vector.broadcast %22 : vector<24x1xf32> to vector<24x41xf32>
    %607 = arith.addf %605, %606 : vector<24x41xf32>
    %608 = vector.extract_strided_slice %607 {offsets = [0, 0], sizes = [24, 10], strides = [1, 1]} : vector<24x41xf32> to vector<24x10xf32>
    %cst_111 = arith.constant dense<0xFF800000> : vector<24xf32>
    %609 = vector.multi_reduction <maximumf>, %608, %cst_111 [1] : vector<24x10xf32> to vector<24xf32>
    %610 = vector.shape_cast %609 : vector<24xf32> to vector<24x1xf32>
    %611 = vector.extract_strided_slice %607 {offsets = [0, 9], sizes = [24, 10], strides = [1, 1]} : vector<24x41xf32> to vector<24x10xf32>
    %cst_112 = arith.constant dense<0xFF800000> : vector<24xf32>
    %612 = vector.multi_reduction <maximumf>, %611, %cst_112 [1] : vector<24x10xf32> to vector<24xf32>
    %613 = vector.shape_cast %612 : vector<24xf32> to vector<24x1xf32>
    %614 = vector.extract_strided_slice %607 {offsets = [0, 18], sizes = [24, 10], strides = [1, 1]} : vector<24x41xf32> to vector<24x10xf32>
    %cst_113 = arith.constant dense<0xFF800000> : vector<24xf32>
    %615 = vector.multi_reduction <maximumf>, %614, %cst_113 [1] : vector<24x10xf32> to vector<24xf32>
    %616 = vector.shape_cast %615 : vector<24xf32> to vector<24x1xf32>
    %617 = vector.extract_strided_slice %607 {offsets = [0, 27], sizes = [24, 10], strides = [1, 1]} : vector<24x41xf32> to vector<24x10xf32>
    %cst_114 = arith.constant dense<0xFF800000> : vector<24xf32>
    %618 = vector.multi_reduction <maximumf>, %617, %cst_114 [1] : vector<24x10xf32> to vector<24xf32>
    %619 = vector.shape_cast %618 : vector<24xf32> to vector<24x1xf32>
    %620 = tpu.concatenate %610, %613, %616, %619 in 0 : vector<24x1xf32>, vector<24x1xf32>, vector<24x1xf32>, vector<24x1xf32> -> vector<96x1xf32>
    %621 = tpu.concatenate %324, %620 in 1 : vector<96x1xf32>, vector<96x1xf32> -> vector<96x2xf32>
    %622 = arith.truncf %621 : vector<96x2xf32> to vector<96x2xbf16>
    %cst_115 = arith.constant dense<0.000000e+00> : vector<80x2xf32>
    %623 = tpu.matmul %23, %622, %cst_115 {dimension_numbers = #tpu.dot_dimension_numbers<[1], [0], [0], [1], [0, 0, 1, 1], [], []>} : vector<80x96xbf16>, vector<96x2xbf16>, vector<80x2xf32> -> vector<80x2xf32>
    %624 = vector.broadcast %24 : vector<80x1xf32> to vector<80x2xf32>
    %625 = arith.addf %623, %624 : vector<80x2xf32>
    %cst_116 = arith.constant 0.000000e+00 : f32
    %626 = vector.broadcast %cst_116 : f32 to vector<80x2xf32>
    %627 = arith.maximumf %625, %626 : vector<80x2xf32>
    %628 = arith.truncf %627 : vector<80x2xf32> to vector<80x2xbf16>
    %cst_117 = arith.constant dense<0.000000e+00> : vector<40x2xf32>
    %629 = tpu.matmul %25, %628, %cst_117 {dimension_numbers = #tpu.dot_dimension_numbers<[1], [0], [0], [1], [0, 0, 1, 1], [], []>} : vector<40x80xbf16>, vector<80x2xbf16>, vector<40x2xf32> -> vector<40x2xf32>
    %630 = vector.broadcast %26 : vector<40x1xf32> to vector<40x2xf32>
    %631 = arith.addf %629, %630 : vector<40x2xf32>
    %cst_118 = arith.constant 0.000000e+00 : f32
    %632 = vector.broadcast %cst_118 : f32 to vector<40x2xf32>
    %633 = arith.maximumf %631, %632 : vector<40x2xf32>
    %634 = arith.truncf %633 : vector<40x2xf32> to vector<40x2xbf16>
    %cst_119 = arith.constant dense<0.000000e+00> : vector<10x2xf32>
    %635 = tpu.matmul %27, %634, %cst_119 {dimension_numbers = #tpu.dot_dimension_numbers<[1], [0], [0], [1], [0, 0, 1, 1], [], []>} : vector<10x40xbf16>, vector<40x2xbf16>, vector<10x2xf32> -> vector<10x2xf32>
    %636 = vector.broadcast %28 : vector<10x1xf32> to vector<10x2xf32>
    %637 = arith.addf %635, %636 : vector<10x2xf32>
    %c0_120 = arith.constant 0 : index
    %c0_121 = arith.constant 0 : index
    %c0_122 = arith.constant 0 : index
    %638 = vector.load %arg31[%c0_120, %c0_121, %c0_122] : memref<1x10x2xf32, #tpu.memory_space<vmem>>, vector<1x10x2xf32>
    %639 = vector.shape_cast %638 : vector<1x10x2xf32> to vector<10x2xf32>
    %640 = vector.shape_cast %637 : vector<10x2xf32> to vector<1x10x2xf32>
    tpu.vector_store %arg31[%c0_120, %c0_121, %c0_122], %640 {strides = array<i32>} : memref<1x10x2xf32, #tpu.memory_space<vmem>>, vector<1x10x2xf32>,
    return
  }
  func.func @transform_0(%arg0: i32) -> (i32, i32, i32) {
    %c0_i32 = arith.constant 0 : i32
    %c0_i32_0 = arith.constant 0 : i32
    %c0_i32_1 = arith.constant 0 : i32
    return %arg0, %c0_i32, %c0_i32_0 : i32, i32, i32
  }
  func.func @transform_1(%arg0: i32) -> (i32, i32) {
    %c0_i32 = arith.constant 0 : i32
    %c0_i32_0 = arith.constant 0 : i32
    %c0_i32_1 = arith.constant 0 : i32
    return %c0_i32, %c0_i32_0 : i32, i32
  }
  func.func @transform_2(%arg0: i32) -> (i32, i32) {
    %c0_i32 = arith.constant 0 : i32
    %c0_i32_0 = arith.constant 0 : i32
    %c0_i32_1 = arith.constant 0 : i32
    return %c0_i32, %c0_i32_0 : i32, i32
  }
  func.func @transform_3(%arg0: i32) -> (i32, i32) {
    %c0_i32 = arith.constant 0 : i32
    %c0_i32_0 = arith.constant 0 : i32
    %c0_i32_1 = arith.constant 0 : i32
    return %c0_i32, %c0_i32_0 : i32, i32
  }
  func.func @transform_4(%arg0: i32) -> (i32, i32) {
    %c0_i32 = arith.constant 0 : i32
    %c0_i32_0 = arith.constant 0 : i32
    %c0_i32_1 = arith.constant 0 : i32
    return %c0_i32, %c0_i32_0 : i32, i32
  }
  func.func @transform_5(%arg0: i32) -> (i32, i32) {
    %c0_i32 = arith.constant 0 : i32
    %c0_i32_0 = arith.constant 0 : i32
    %c0_i32_1 = arith.constant 0 : i32
    return %c0_i32, %c0_i32_0 : i32, i32
  }
  func.func @transform_6(%arg0: i32) -> (i32, i32) {
    %c0_i32 = arith.constant 0 : i32
    %c0_i32_0 = arith.constant 0 : i32
    %c0_i32_1 = arith.constant 0 : i32
    return %c0_i32, %c0_i32_0 : i32, i32
  }
  func.func @transform_7(%arg0: i32) -> (i32, i32) {
    %c0_i32 = arith.constant 0 : i32
    %c0_i32_0 = arith.constant 0 : i32
    %c0_i32_1 = arith.constant 0 : i32
    return %c0_i32, %c0_i32_0 : i32, i32
  }
  func.func @transform_8(%arg0: i32) -> (i32, i32) {
    %c0_i32 = arith.constant 0 : i32
    %c0_i32_0 = arith.constant 0 : i32
    %c0_i32_1 = arith.constant 0 : i32
    return %c0_i32, %c0_i32_0 : i32, i32
  }
  func.func @transform_9(%arg0: i32) -> (i32, i32) {
    %c0_i32 = arith.constant 0 : i32
    %c0_i32_0 = arith.constant 0 : i32
    %c0_i32_1 = arith.constant 0 : i32
    return %c0_i32, %c0_i32_0 : i32, i32
  }
  func.func @transform_10(%arg0: i32) -> (i32, i32) {
    %c0_i32 = arith.constant 0 : i32
    %c0_i32_0 = arith.constant 0 : i32
    %c0_i32_1 = arith.constant 0 : i32
    return %c0_i32, %c0_i32_0 : i32, i32
  }
  func.func @transform_11(%arg0: i32) -> (i32, i32) {
    %c0_i32 = arith.constant 0 : i32
    %c0_i32_0 = arith.constant 0 : i32
    %c0_i32_1 = arith.constant 0 : i32
    return %c0_i32, %c0_i32_0 : i32, i32
  }
  func.func @transform_12(%arg0: i32) -> (i32, i32) {
    %c0_i32 = arith.constant 0 : i32
    %c0_i32_0 = arith.constant 0 : i32
    %c0_i32_1 = arith.constant 0 : i32
    return %c0_i32, %c0_i32_0 : i32, i32
  }
  func.func @transform_13(%arg0: i32) -> (i32, i32) {
    %c0_i32 = arith.constant 0 : i32
    %c0_i32_0 = arith.constant 0 : i32
    %c0_i32_1 = arith.constant 0 : i32
    return %c0_i32, %c0_i32_0 : i32, i32
  }
  func.func @transform_14(%arg0: i32) -> (i32, i32) {
    %c0_i32 = arith.constant 0 : i32
    %c0_i32_0 = arith.constant 0 : i32
    %c0_i32_1 = arith.constant 0 : i32
    return %c0_i32, %c0_i32_0 : i32, i32
  }
  func.func @transform_15(%arg0: i32) -> (i32, i32) {
    %c0_i32 = arith.constant 0 : i32
    %c0_i32_0 = arith.constant 0 : i32
    %c0_i32_1 = arith.constant 0 : i32
    return %c0_i32, %c0_i32_0 : i32, i32
  }
  func.func @transform_16(%arg0: i32) -> (i32, i32) {
    %c0_i32 = arith.constant 0 : i32
    %c0_i32_0 = arith.constant 0 : i32
    %c0_i32_1 = arith.constant 0 : i32
    return %c0_i32, %c0_i32_0 : i32, i32
  }
  func.func @transform_17(%arg0: i32) -> (i32, i32) {
    %c0_i32 = arith.constant 0 : i32
    %c0_i32_0 = arith.constant 0 : i32
    %c0_i32_1 = arith.constant 0 : i32
    return %c0_i32, %c0_i32_0 : i32, i32
  }
  func.func @transform_18(%arg0: i32) -> (i32, i32) {
    %c0_i32 = arith.constant 0 : i32
    %c0_i32_0 = arith.constant 0 : i32
    %c0_i32_1 = arith.constant 0 : i32
    return %c0_i32, %c0_i32_0 : i32, i32
  }
  func.func @transform_19(%arg0: i32) -> (i32, i32) {
    %c0_i32 = arith.constant 0 : i32
    %c0_i32_0 = arith.constant 0 : i32
    %c0_i32_1 = arith.constant 0 : i32
    return %c0_i32, %c0_i32_0 : i32, i32
  }
  func.func @transform_20(%arg0: i32) -> (i32, i32) {
    %c0_i32 = arith.constant 0 : i32
    %c0_i32_0 = arith.constant 0 : i32
    %c0_i32_1 = arith.constant 0 : i32
    return %c0_i32, %c0_i32_0 : i32, i32
  }
  func.func @transform_21(%arg0: i32) -> (i32, i32) {
    %c0_i32 = arith.constant 0 : i32
    %c0_i32_0 = arith.constant 0 : i32
    %c0_i32_1 = arith.constant 0 : i32
    return %c0_i32, %c0_i32_0 : i32, i32
  }
  func.func @transform_22(%arg0: i32) -> (i32, i32) {
    %c0_i32 = arith.constant 0 : i32
    %c0_i32_0 = arith.constant 0 : i32
    %c0_i32_1 = arith.constant 0 : i32
    return %c0_i32, %c0_i32_0 : i32, i32
  }
  func.func @transform_23(%arg0: i32) -> (i32, i32) {
    %c0_i32 = arith.constant 0 : i32
    %c0_i32_0 = arith.constant 0 : i32
    %c0_i32_1 = arith.constant 0 : i32
    return %c0_i32, %c0_i32_0 : i32, i32
  }
  func.func @transform_24(%arg0: i32) -> (i32, i32) {
    %c0_i32 = arith.constant 0 : i32
    %c0_i32_0 = arith.constant 0 : i32
    %c0_i32_1 = arith.constant 0 : i32
    return %c0_i32, %c0_i32_0 : i32, i32
  }
  func.func @transform_25(%arg0: i32) -> (i32, i32) {
    %c0_i32 = arith.constant 0 : i32
    %c0_i32_0 = arith.constant 0 : i32
    %c0_i32_1 = arith.constant 0 : i32
    return %c0_i32, %c0_i32_0 : i32, i32
  }
  func.func @transform_26(%arg0: i32) -> (i32, i32) {
    %c0_i32 = arith.constant 0 : i32
    %c0_i32_0 = arith.constant 0 : i32
    %c0_i32_1 = arith.constant 0 : i32
    return %c0_i32, %c0_i32_0 : i32, i32
  }
  func.func @transform_27(%arg0: i32) -> (i32, i32) {
    %c0_i32 = arith.constant 0 : i32
    %c0_i32_0 = arith.constant 0 : i32
    %c0_i32_1 = arith.constant 0 : i32
    return %c0_i32, %c0_i32_0 : i32, i32
  }
  func.func @transform_28(%arg0: i32) -> (i32, i32) {
    %c0_i32 = arith.constant 0 : i32
    %c0_i32_0 = arith.constant 0 : i32
    %c0_i32_1 = arith.constant 0 : i32
    return %c0_i32, %c0_i32_0 : i32, i32
  }
  func.func @transform_29(%arg0: i32) -> (i32, i32) {
    %c0_i32 = arith.constant 0 : i32
    %c0_i32_0 = arith.constant 0 : i32
    %c0_i32_1 = arith.constant 0 : i32
    return %c0_i32, %c0_i32_0 : i32, i32
  }
  func.func @transform_30(%arg0: i32) -> (i32, i32, i32) {
    %c0_i32 = arith.constant 0 : i32
    %c0_i32_0 = arith.constant 0 : i32
    %c0_i32_1 = arith.constant 0 : i32
    return %arg0, %c0_i32, %c0_i32_0 : i32, i32, i32
  }
}

</mosaic_0001>

<llo_original>
// kernel: gesture_net_forward.1
$region0: #{gesture_net_forward.1}
  #allocation0 [shape = 'u32[]', space=smem, size = 0x4, offset = 0x4, fixed_abs, tag = 'smem constant byte address 0x4 - core index']
  #allocation1 [shape = 'u32[72,128]{1,0:T(1,128)}', space=vmem, size = 0x9000, scoped, tag = 'internal scratch']
  %s0 = inlined_call_operand.smem [shape: u32[31], index: -1, kind: input, shape index: {}]
  %s1 = sld [smem:[%s0]]
  %s2 = scalar_lea.smem %s0, 1
  %s3 = sld [smem:[%s2]]
  %s4 = scalar_lea.smem %s0, 2
  %s5 = sld [smem:[%s4]]
  %s6 = scalar_lea.smem %s0, 3
  %s7 = sld [smem:[%s6]]
  %s8 = scalar_lea.smem %s0, 4
  %s9 = sld [smem:[%s8]]
  %s10 = scalar_lea.smem %s0, 5
  %s11 = sld [smem:[%s10]]
  %s12 = scalar_lea.smem %s0, 6
  %s13 = sld [smem:[%s12]]
  %s14 = scalar_lea.smem %s0, 7
  %s15 = sld [smem:[%s14]]
  %s16 = scalar_lea.smem %s0, 8
  %s17 = sld [smem:[%s16]]
  %s18 = scalar_lea.smem %s0, 9
  %s19 = sld [smem:[%s18]]
  %s20 = scalar_lea.smem %s0, 10
  %s21 = sld [smem:[%s20]]
  %s22 = scalar_lea.smem %s0, 11
  %s23 = sld [smem:[%s22]]
  %s24 = scalar_lea.smem %s0, 12
  %s25 = sld [smem:[%s24]]
  %s26 = scalar_lea.smem %s0, 13
  %s27 = sld [smem:[%s26]]
  %s28 = scalar_lea.smem %s0, 14
  %s29 = sld [smem:[%s28]]
  %s30 = scalar_lea.smem %s0, 15
  %s31 = sld [smem:[%s30]]
  %s32 = scalar_lea.smem %s0, 16
  %s33 = sld [smem:[%s32]]
  %s34 = scalar_lea.smem %s0, 17
  %s35 = sld [smem:[%s34]]
  %s36 = scalar_lea.smem %s0, 18
  %s37 = sld [smem:[%s36]]
  %s38 = scalar_lea.smem %s0, 19
  %s39 = sld [smem:[%s38]]
  %s40 = scalar_lea.smem %s0, 20
  %s41 = sld [smem:[%s40]]
  %s42 = scalar_lea.smem %s0, 21
  %s43 = sld [smem:[%s42]]
  %s44 = scalar_lea.smem %s0, 22
  %s45 = sld [smem:[%s44]]
  %s46 = scalar_lea.smem %s0, 23
  %s47 = sld [smem:[%s46]]
  %s48 = scalar_lea.smem %s0, 24
  %s49 = sld [smem:[%s48]]
  %s50 = scalar_lea.smem %s0, 25
  %s51 = sld [smem:[%s50]]
  %s52 = scalar_lea.smem %s0, 26
  %s53 = sld [smem:[%s52]]
  %s54 = scalar_lea.smem %s0, 27
  %s55 = sld [smem:[%s54]]
  %s56 = scalar_lea.smem %s0, 28
  %s57 = sld [smem:[%s56]]
  %s58 = scalar_lea.smem %s0, 29
  %s59 = sld [smem:[%s58]]
  %s60 = scalar_lea.smem %s0, 30
  %s61 = sld [smem:[%s60]]
  %s62 = sld [smem:[#allocation0]]
  $region130: #{gesture_net_forward.1} parent=0
    _
  %s64 = ssub.s32 1, %s62
  %s65 = scalar_select 0, %s64, %s62
  // Predicated region
  $region2: #{gesture_net_forward.1} parent=0 // pred_check
    _
  $region3: #{gesture_net_forward.1} parent=0 // pred_check_branch
    %67 = sbr.rel (0) target = $region5
  $region4: #{gesture_net_forward.1} parent=0 // pred_region
    _
  $region5: #{gesture_net_forward.1} parent=0 // pred_fallthru
    _
  // Predicated region
  $region6: #{gesture_net_forward.1} parent=0 // pred_check
    _
  $region7: #{gesture_net_forward.1} parent=0 // pred_check_branch
    %69 = sbr.rel (0) target = $region9
  $region8: #{gesture_net_forward.1} parent=0 // pred_region
    _
  $region9: #{gesture_net_forward.1} parent=0 // pred_fallthru
    _
  // Predicated region
  $region10: #{gesture_net_forward.1} parent=0 // pred_check
    _
  $region11: #{gesture_net_forward.1} parent=0 // pred_check_branch
    %71 = sbr.rel (0) target = $region13
  $region12: #{gesture_net_forward.1} parent=0 // pred_region
    _
  $region13: #{gesture_net_forward.1} parent=0 // pred_fallthru
    _
  // Predicated region
  $region14: #{gesture_net_forward.1} parent=0 // pred_check
    _
  $region15: #{gesture_net_forward.1} parent=0 // pred_check_branch
    %73 = sbr.rel (0) target = $region17
  $region16: #{gesture_net_forward.1} parent=0 // pred_region
    _
  $region17: #{gesture_net_forward.1} parent=0 // pred_fallthru
    _
  // Predicated region
  $region18: #{gesture_net_forward.1} parent=0 // pred_check
    _
  $region19: #{gesture_net_forward.1} parent=0 // pred_check_branch
    %75 = sbr.rel (0) target = $region21
  $region20: #{gesture_net_forward.1} parent=0 // pred_region
    _
  $region21: #{gesture_net_forward.1} parent=0 // pred_fallthru
    _
  // Predicated region
  $region22: #{gesture_net_forward.1} parent=0 // pred_check
    _
  $region23: #{gesture_net_forward.1} parent=0 // pred_check_branch
    %77 = sbr.rel (0) target = $region25
  $region24: #{gesture_net_forward.1} parent=0 // pred_region
    _
  $region25: #{gesture_net_forward.1} parent=0 // pred_fallthru
    _
  // Predicated region
  $region26: #{gesture_net_forward.1} parent=0 // pred_check
    _
  $region27: #{gesture_net_forward.1} parent=0 // pred_check_branch
    %79 = sbr.rel (0) target = $region29
  $region28: #{gesture_net_forward.1} parent=0 // pred_region
    _
  $region29: #{gesture_net_forward.1} parent=0 // pred_fallthru
    _
  // Predicated region
  $region30: #{gesture_net_forward.1} parent=0 // pred_check
    _
  $region31: #{gesture_net_forward.1} parent=0 // pred_check_branch
    %81 = sbr.rel (0) target = $region33
  $region32: #{gesture_net_forward.1} parent=0 // pred_region
    _
  $region33: #{gesture_net_forward.1} parent=0 // pred_fallthru
    _
  // Predicated region
  $region34: #{gesture_net_forward.1} parent=0 // pred_check
    _
  $region35: #{gesture_net_forward.1} parent=0 // pred_check_branch
    %83 = sbr.rel (0) target = $region37
  $region36: #{gesture_net_forward.1} parent=0 // pred_region
    _
  $region37: #{gesture_net_forward.1} parent=0 // pred_fallthru
    _
  // Predicated region
  $region38: #{gesture_net_forward.1} parent=0 // pred_check
    _
  $region39: #{gesture_net_forward.1} parent=0 // pred_check_branch
    %85 = sbr.rel (0) target = $region41
  $region40: #{gesture_net_forward.1} parent=0 // pred_region
    _
  $region41: #{gesture_net_forward.1} parent=0 // pred_fallthru
    _
  // Predicated region
  $region42: #{gesture_net_forward.1} parent=0 // pred_check
    _
  $region43: #{gesture_net_forward.1} parent=0 // pred_check_branch
    %87 = sbr.rel (0) target = $region45
  $region44: #{gesture_net_forward.1} parent=0 // pred_region
    _
  $region45: #{gesture_net_forward.1} parent=0 // pred_fallthru
    _
  // Predicated region
  $region46: #{gesture_net_forward.1} parent=0 // pred_check
    _
  $region47: #{gesture_net_forward.1} parent=0 // pred_check_branch
    %89 = sbr.rel (0) target = $region49
  $region48: #{gesture_net_forward.1} parent=0 // pred_region
    _
  $region49: #{gesture_net_forward.1} parent=0 // pred_fallthru
    _
  // Predicated region
  $region50: #{gesture_net_forward.1} parent=0 // pred_check
    _
  $region51: #{gesture_net_forward.1} parent=0 // pred_check_branch
    %91 = sbr.rel (0) target = $region53
  $region52: #{gesture_net_forward.1} parent=0 // pred_region
    _
  $region53: #{gesture_net_forward.1} parent=0 // pred_fallthru
    _
  // Predicated region
  $region54: #{gesture_net_forward.1} parent=0 // pred_check
    _
  $region55: #{gesture_net_forward.1} parent=0 // pred_check_branch
    %93 = sbr.rel (0) target = $region57
  $region56: #{gesture_net_forward.1} parent=0 // pred_region
    _
  $region57: #{gesture_net_forward.1} parent=0 // pred_fallthru
    _
  // Predicated region
  $region58: #{gesture_net_forward.1} parent=0 // pred_check
    _
  $region59: #{gesture_net_forward.1} parent=0 // pred_check_branch
    %95 = sbr.rel (0) target = $region61
  $region60: #{gesture_net_forward.1} parent=0 // pred_region
    _
  $region61: #{gesture_net_forward.1} parent=0 // pred_fallthru
    _
  // Predicated region
  $region62: #{gesture_net_forward.1} parent=0 // pred_check
    _
  $region63: #{gesture_net_forward.1} parent=0 // pred_check_branch
    %97 = sbr.rel (0) target = $region65
  $region64: #{gesture_net_forward.1} parent=0 // pred_region
    _
  $region65: #{gesture_net_forward.1} parent=0 // pred_fallthru
    _
  // Predicated region
  $region66: #{gesture_net_forward.1} parent=0 // pred_check
    _
  $region67: #{gesture_net_forward.1} parent=0 // pred_check_branch
    %99 = sbr.rel (0) target = $region69
  $region68: #{gesture_net_forward.1} parent=0 // pred_region
    _
  $region69: #{gesture_net_forward.1} parent=0 // pred_fallthru
    _
  // Predicated region
  $region70: #{gesture_net_forward.1} parent=0 // pred_check
    _
  $region71: #{gesture_net_forward.1} parent=0 // pred_check_branch
    %101 = sbr.rel (0) target = $region73
  $region72: #{gesture_net_forward.1} parent=0 // pred_region
    _
  $region73: #{gesture_net_forward.1} parent=0 // pred_fallthru
    _
  // Predicated region
  $region74: #{gesture_net_forward.1} parent=0 // pred_check
    _
  $region75: #{gesture_net_forward.1} parent=0 // pred_check_branch
    %103 = sbr.rel (0) target = $region77
  $region76: #{gesture_net_forward.1} parent=0 // pred_region
    _
  $region77: #{gesture_net_forward.1} parent=0 // pred_fallthru
    _
  // Predicated region
  $region78: #{gesture_net_forward.1} parent=0 // pred_check
    _
  $region79: #{gesture_net_forward.1} parent=0 // pred_check_branch
    %105 = sbr.rel (0) target = $region81
  $region80: #{gesture_net_forward.1} parent=0 // pred_region
    _
  $region81: #{gesture_net_forward.1} parent=0 // pred_fallthru
    _
  // Predicated region
  $region82: #{gesture_net_forward.1} parent=0 // pred_check
    _
  $region83: #{gesture_net_forward.1} parent=0 // pred_check_branch
    %107 = sbr.rel (0) target = $region85
  $region84: #{gesture_net_forward.1} parent=0 // pred_region
    _
  $region85: #{gesture_net_forward.1} parent=0 // pred_fallthru
    _
  // Predicated region
  $region86: #{gesture_net_forward.1} parent=0 // pred_check
    _
  $region87: #{gesture_net_forward.1} parent=0 // pred_check_branch
    %109 = sbr.rel (0) target = $region89
  $region88: #{gesture_net_forward.1} parent=0 // pred_region
    _
  $region89: #{gesture_net_forward.1} parent=0 // pred_fallthru
    _
  // Predicated region
  $region90: #{gesture_net_forward.1} parent=0 // pred_check
    _
  $region91: #{gesture_net_forward.1} parent=0 // pred_check_branch
    %111 = sbr.rel (0) target = $region93
  $region92: #{gesture_net_forward.1} parent=0 // pred_region
    _
  $region93: #{gesture_net_forward.1} parent=0 // pred_fallthru
    _
  // Predicated region
  $region94: #{gesture_net_forward.1} parent=0 // pred_check
    _
  $region95: #{gesture_net_forward.1} parent=0 // pred_check_branch
    %113 = sbr.rel (0) target = $region97
  $region96: #{gesture_net_forward.1} parent=0 // pred_region
    _
  $region97: #{gesture_net_forward.1} parent=0 // pred_fallthru
    _
  // Predicated region
  $region98: #{gesture_net_forward.1} parent=0 // pred_check
    _
  $region99: #{gesture_net_forward.1} parent=0 // pred_check_branch
    %115 = sbr.rel (0) target = $region101
  $region100: #{gesture_net_forward.1} parent=0 // pred_region
    _
  $region101: #{gesture_net_forward.1} parent=0 // pred_fallthru
    _
  // Predicated region
  $region102: #{gesture_net_forward.1} parent=0 // pred_check
    _
  $region103: #{gesture_net_forward.1} parent=0 // pred_check_branch
    %117 = sbr.rel (0) target = $region105
  $region104: #{gesture_net_forward.1} parent=0 // pred_region
    _
  $region105: #{gesture_net_forward.1} parent=0 // pred_fallthru
    _
  // Predicated region
  $region106: #{gesture_net_forward.1} parent=0 // pred_check
    _
  $region107: #{gesture_net_forward.1} parent=0 // pred_check_branch
    %119 = sbr.rel (0) target = $region109
  $region108: #{gesture_net_forward.1} parent=0 // pred_region
    _
  $region109: #{gesture_net_forward.1} parent=0 // pred_fallthru
    _
  // Predicated region
  $region110: #{gesture_net_forward.1} parent=0 // pred_check
    _
  $region111: #{gesture_net_forward.1} parent=0 // pred_check_branch
    %121 = sbr.rel (0) target = $region113
  $region112: #{gesture_net_forward.1} parent=0 // pred_region
    _
  $region113: #{gesture_net_forward.1} parent=0 // pred_fallthru
    _
  // Predicated region
  $region114: #{gesture_net_forward.1} parent=0 // pred_check
    _
  $region115: #{gesture_net_forward.1} parent=0 // pred_check_branch
    %123 = sbr.rel (0) target = $region117
  $region116: #{gesture_net_forward.1} parent=0 // pred_region
    _
  $region117: #{gesture_net_forward.1} parent=0 // pred_fallthru
    _
  // Predicated region
  $region118: #{gesture_net_forward.1} parent=0 // pred_check
    _
  $region119: #{gesture_net_forward.1} parent=0 // pred_check_branch
    %125 = sbr.rel (0) target = $region121
  $region120: #{gesture_net_forward.1} parent=0 // pred_region
    _
  $region121: #{gesture_net_forward.1} parent=0 // pred_fallthru
    _
  %v127 = vld [vmem:[%s3] sm:$0xf]
  %v128 = vld [vmem:[%s3 + $0x4] sm:$0x3]
  %v129 = vld [vmem:[%s5] sm:$0xff]
  %v130 = vld [vmem:[%s5 + $0x8] sm:$0xf]
  %v131 = vld [vmem:[%s7] sm:$0xf]
  %v132 = vld [vmem:[%s7 + $0x4] sm:$0x3]
  %v133 = vld [vmem:[%s9] sm:$0xff]
  %v134 = vld [vmem:[%s9 + $0x8] sm:$0xf]
  %v135 = vld [vmem:[%s11] sm:$0xf]
  %v136 = vld [vmem:[%s11 + $0x4] sm:$0x3]
  %v137 = vld [vmem:[%s13] sm:$0xff]
  %v138 = vld [vmem:[%s13 + $0x8] sm:$0xf]
  %v139 = vld [vmem:[%s15] sm:$0xf]
  %v140 = vld [vmem:[%s15 + $0x4] sm:$0xf]
  %v141 = vld [vmem:[%s15 + $0x8] sm:$0xf]
  %v142 = vld [vmem:[%s15 + $0xc] sm:$0xf]
  %v143 = vld [vmem:[%s15 + $0x10] sm:$0xf]
  %v144 = vld [vmem:[%s15 + $0x14] sm:$0xf]
  %v145 = vld [vmem:[%s15 + $0x18] sm:$0xf]
  %v146 = vld [vmem:[%s15 + $0x1c] sm:$0xf]
  %v147 = vld [vmem:[%s15 + $0x20] sm:$0xf]
  %v148 = vld [vmem:[%s17] sm:$0xff]
  %v149 = vld [vmem:[%s17 + $0x8] sm:$0xff]
  %v150 = vld [vmem:[%s17 + $0x10] sm:$0xff]
  %v151 = vld [vmem:[%s17 + $0x18] sm:$0xff]
  %v152 = vld [vmem:[%s17 + $0x20] sm:$0xff]
  %v153 = vld [vmem:[%s17 + $0x28] sm:$0xff]
  %v154 = vld [vmem:[%s17 + $0x30] sm:$0xff]
  %v155 = vld [vmem:[%s17 + $0x38] sm:$0xff]
  %v156 = vld [vmem:[%s17 + $0x40] sm:$0xff]
  %v157 = vld [vmem:[%s19] sm:$0xff]
  %v158 = vld [vmem:[%s19 + $0x8] sm:$0xff]
  %v159 = vld [vmem:[%s19 + $0x10] sm:$0xff]
  %v160 = vld [vmem:[%s19 + $0x18] sm:$0xff]
  %v161 = vld [vmem:[%s19 + $0x20] sm:$0xff]
  %v162 = vld [vmem:[%s19 + $0x28] sm:$0xff]
  %v163 = vld [vmem:[%s19 + $0x30] sm:$0xff]
  %v164 = vld [vmem:[%s19 + $0x38] sm:$0xff]
  %v165 = vld [vmem:[%s19 + $0x40] sm:$0xff]
  %v166 = vld [vmem:[%s21] sm:$0xff]
  %v167 = vld [vmem:[%s21 + $0x8] sm:$0xff]
  %v168 = vld [vmem:[%s21 + $0x10] sm:$0xff]
  %v169 = vld [vmem:[%s21 + $0x18] sm:$0xff]
  %v170 = vld [vmem:[%s21 + $0x20] sm:$0xff]
  %v171 = vld [vmem:[%s21 + $0x28] sm:$0xff]
  %v172 = vld [vmem:[%s21 + $0x30] sm:$0xff]
  %v173 = vld [vmem:[%s21 + $0x38] sm:$0xff]
  %v174 = vld [vmem:[%s21 + $0x40] sm:$0xff]
  %v175 = vld [vmem:[%s23] sm:$0xf]
  %v176 = vld [vmem:[%s23 + $0x4] sm:$0xf]
  %v177 = vld [vmem:[%s23 + $0x8] sm:$0xf]
  %v178 = vld [vmem:[%s25] sm:$0xff]
  %v179 = vld [vmem:[%s25 + $0x8] sm:$0xff]
  %v180 = vld [vmem:[%s25 + $0x10] sm:$0xff]
  %v181 = vld [vmem:[%s27] sm:$0xf]
  %v182 = vld [vmem:[%s27 + $0x4] sm:$0xf]
  %v183 = vld [vmem:[%s27 + $0x8] sm:$0xf]
  %v184 = vld [vmem:[%s27 + $0xc] sm:$0xf]
  %v185 = vld [vmem:[%s27 + $0x10] sm:$0xf]
  %v186 = vld [vmem:[%s27 + $0x14] sm:$0xf]
  %v187 = vld [vmem:[%s27 + $0x18] sm:$0xf]
  %v188 = vld [vmem:[%s27 + $0x1c] sm:$0xf]
  %v189 = vld [vmem:[%s27 + $0x20] sm:$0xf]
  %v190 = vld [vmem:[%s27 + $0x24] sm:$0xf]
  %v191 = vld [vmem:[%s27 + $0x28] sm:$0xf]
  %v192 = vld [vmem:[%s27 + $0x2c] sm:$0xf]
  %v193 = vld [vmem:[%s27 + $0x30] sm:$0xf]
  %v194 = vld [vmem:[%s27 + $0x34] sm:$0xf]
  %v195 = vld [vmem:[%s27 + $0x38] sm:$0xf]
  %v196 = vld [vmem:[%s27 + $0x3c] sm:$0xf]
  %v197 = vld [vmem:[%s27 + $0x40] sm:$0xf]
  %v198 = vld [vmem:[%s27 + $0x44] sm:$0xf]
  %v199 = vld [vmem:[%s27 + $0x48] sm:$0xf]
  %v200 = vld [vmem:[%s27 + $0x4c] sm:$0xf]
  %v201 = vld [vmem:[%s27 + $0x50] sm:$0xf]
  %v202 = vld [vmem:[%s27 + $0x54] sm:$0xf]
  %v203 = vld [vmem:[%s27 + $0x58] sm:$0xf]
  %v204 = vld [vmem:[%s27 + $0x5c] sm:$0xf]
  %v205 = vld [vmem:[%s27 + $0x60] sm:$0xf]
  %v206 = vld [vmem:[%s29] sm:$0xf]
  %v207 = vld [vmem:[%s29 + $0x4] sm:$0xf]
  %v208 = vld [vmem:[%s29 + $0x8] sm:$0xf]
  %v209 = vld [vmem:[%s29 + $0xc] sm:$0xf]
  %v210 = vld [vmem:[%s29 + $0x10] sm:$0xf]
  %v211 = vld [vmem:[%s29 + $0x14] sm:$0xf]
  %v212 = vld [vmem:[%s29 + $0x18] sm:$0xf]
  %v213 = vld [vmem:[%s29 + $0x1c] sm:$0xf]
  %v214 = vld [vmem:[%s29 + $0x20] sm:$0xf]
  %v215 = vld [vmem:[%s29 + $0x24] sm:$0xf]
  %v216 = vld [vmem:[%s29 + $0x28] sm:$0xf]
  %v217 = vld [vmem:[%s29 + $0x2c] sm:$0xf]
  %v218 = vld [vmem:[%s29 + $0x30] sm:$0xf]
  %v219 = vld [vmem:[%s29 + $0x34] sm:$0xf]
  %v220 = vld [vmem:[%s29 + $0x38] sm:$0xf]
  %v221 = vld [vmem:[%s29 + $0x3c] sm:$0xf]
  %v222 = vld [vmem:[%s29 + $0x40] sm:$0xf]
  %v223 = vld [vmem:[%s29 + $0x44] sm:$0xf]
  %v224 = vld [vmem:[%s31] sm:$0xff]
  %v225 = vld [vmem:[%s31 + $0x8] sm:$0xff]
  %v226 = vld [vmem:[%s31 + $0x10] sm:$0xff]
  %v227 = vld [vmem:[%s31 + $0x18] sm:$0xff]
  %v228 = vld [vmem:[%s31 + $0x20] sm:$0xff]
  %v229 = vld [vmem:[%s31 + $0x28] sm:$0xff]
  %v230 = vld [vmem:[%s31 + $0x30] sm:$0xff]
  %v231 = vld [vmem:[%s31 + $0x38] sm:$0xff]
  %v232 = vld [vmem:[%s31 + $0x40] sm:$0xff]
  %v233 = vld [vmem:[%s31 + $0x48] sm:$0xff]
  %v234 = vld [vmem:[%s31 + $0x50] sm:$0xff]
  %v235 = vld [vmem:[%s31 + $0x58] sm:$0xff]
  %v236 = vld [vmem:[%s31 + $0x60] sm:$0xff]
  %v237 = vld [vmem:[%s31 + $0x68] sm:$0xff]
  %v238 = vld [vmem:[%s31 + $0x70] sm:$0xff]
  %v239 = vld [vmem:[%s31 + $0x78] sm:$0xff]
  %v240 = vld [vmem:[%s31 + $0x80] sm:$0xff]
  %v241 = vld [vmem:[%s31 + $0x88] sm:$0xff]
  %v242 = vld [vmem:[%s33] sm:$0xff]
  %v243 = vld [vmem:[%s33 + $0x8] sm:$0xff]
  %v244 = vld [vmem:[%s33 + $0x10] sm:$0xff]
  %v245 = vld [vmem:[%s33 + $0x18] sm:$0xff]
  %v246 = vld [vmem:[%s33 + $0x20] sm:$0xff]
  %v247 = vld [vmem:[%s33 + $0x28] sm:$0xff]
  %v248 = vld [vmem:[%s33 + $0x30] sm:$0xff]
  %v249 = vld [vmem:[%s33 + $0x38] sm:$0xff]
  %v250 = vld [vmem:[%s33 + $0x40] sm:$0xff]
  %v251 = vld [vmem:[%s33 + $0x48] sm:$0xff]
  %v252 = vld [vmem:[%s33 + $0x50] sm:$0xff]
  %v253 = vld [vmem:[%s33 + $0x58] sm:$0xff]
  %v254 = vld [vmem:[%s33 + $0x60] sm:$0xff]
  %v255 = vld [vmem:[%s33 + $0x68] sm:$0xff]
  %v256 = vld [vmem:[%s33 + $0x70] sm:$0xff]
  %v257 = vld [vmem:[%s33 + $0x78] sm:$0xff]
  %v258 = vld [vmem:[%s33 + $0x80] sm:$0xff]
  %v259 = vld [vmem:[%s33 + $0x88] sm:$0xff]
  %v260 = vld [vmem:[%s35] sm:$0xff]
  %v261 = vld [vmem:[%s35 + $0x8] sm:$0xff]
  %v262 = vld [vmem:[%s35 + $0x10] sm:$0xff]
  %v263 = vld [vmem:[%s35 + $0x18] sm:$0xff]
  %v264 = vld [vmem:[%s35 + $0x20] sm:$0xff]
  %v265 = vld [vmem:[%s35 + $0x28] sm:$0xff]
  %v266 = vld [vmem:[%s35 + $0x30] sm:$0xff]
  %v267 = vld [vmem:[%s35 + $0x38] sm:$0xff]
  %v268 = vld [vmem:[%s35 + $0x40] sm:$0xff]
  %v269 = vld [vmem:[%s35 + $0x48] sm:$0xff]
  %v270 = vld [vmem:[%s35 + $0x50] sm:$0xff]
  %v271 = vld [vmem:[%s35 + $0x58] sm:$0xff]
  %v272 = vld [vmem:[%s35 + $0x60] sm:$0xff]
  %v273 = vld [vmem:[%s35 + $0x68] sm:$0xff]
  %v274 = vld [vmem:[%s35 + $0x70] sm:$0xff]
  %v275 = vld [vmem:[%s35 + $0x78] sm:$0xff]
  %v276 = vld [vmem:[%s35 + $0x80] sm:$0xff]
  %v277 = vld [vmem:[%s35 + $0x88] sm:$0xff]
  %v278 = vld [vmem:[%s37] sm:$0xff]
  %v279 = vld [vmem:[%s37 + $0x8] sm:$0xff]
  %v280 = vld [vmem:[%s37 + $0x10] sm:$0xff]
  %v281 = vld [vmem:[%s39] sm:$0xff]
  %v282 = vld [vmem:[%s39 + $0x8] sm:$0xff]
  %v283 = vld [vmem:[%s39 + $0x10] sm:$0xff]
  %v284 = vld [vmem:[%s41] sm:$0xf]
  %v285 = vld [vmem:[%s41 + $0x4] sm:$0xf]
  %v286 = vld [vmem:[%s41 + $0x8] sm:$0xf]
  %v287 = vld [vmem:[%s41 + $0xc] sm:$0xf]
  %v288 = vld [vmem:[%s41 + $0x10] sm:$0xf]
  %v289 = vld [vmem:[%s41 + $0x14] sm:$0xf]
  %v290 = vld [vmem:[%s41 + $0x18] sm:$0xf]
  %v291 = vld [vmem:[%s41 + $0x1c] sm:$0xf]
  %v292 = vld [vmem:[%s41 + $0x20] sm:$0xf]
  %v293 = vld [vmem:[%s41 + $0x24] sm:$0xf]
  %v294 = vld [vmem:[%s41 + $0x28] sm:$0xf]
  %v295 = vld [vmem:[%s41 + $0x2c] sm:$0xf]
  %v296 = vld [vmem:[%s41 + $0x30] sm:$0x3]
  %v297 = vld [vmem:[%s43] sm:$0xff]
  %v298 = vld [vmem:[%s43 + $0x8] sm:$0xff]
  %v299 = vld [vmem:[%s43 + $0x10] sm:$0xff]
  %v300 = vld [vmem:[%s45] sm:$0xf]
  %v301 = vld [vmem:[%s45 + $0x4] sm:$0xf]
  %v302 = vld [vmem:[%s45 + $0x8] sm:$0xf]
  %v303 = vld [vmem:[%s47] sm:$0xff]
  %v304 = vld [vmem:[%s47 + $0x8] sm:$0xff]
  %v305 = vld [vmem:[%s47 + $0x10] sm:$0xff]
  %v306 = vld [vmem:[%s49] sm:$0xf]
  %v307 = vld [vmem:[%s49 + $0x4] sm:$0xf]
  %v308 = vld [vmem:[%s49 + $0x8] sm:$0xf]
  %v309 = vld [vmem:[%s49 + $0xc] sm:$0xf]
  %v310 = vld [vmem:[%s49 + $0x10] sm:$0xf]
  %v311 = vld [vmem:[%s49 + $0x14] sm:$0xf]
  %v312 = vld [vmem:[%s49 + $0x18] sm:$0xf]
  %v313 = vld [vmem:[%s49 + $0x1c] sm:$0xf]
  %v314 = vld [vmem:[%s49 + $0x20] sm:$0xf]
  %v315 = vld [vmem:[%s49 + $0x24] sm:$0xf]
  %v316 = vld [vmem:[%s51] sm:$0xff]
  %v317 = vld [vmem:[%s51 + $0x8] sm:$0xff]
  %v318 = vld [vmem:[%s51 + $0x10] sm:$0xff]
  %v319 = vld [vmem:[%s51 + $0x18] sm:$0xff]
  %v320 = vld [vmem:[%s51 + $0x20] sm:$0xff]
  %v321 = vld [vmem:[%s51 + $0x28] sm:$0xff]
  %v322 = vld [vmem:[%s51 + $0x30] sm:$0xff]
  %v323 = vld [vmem:[%s51 + $0x38] sm:$0xff]
  %v324 = vld [vmem:[%s51 + $0x40] sm:$0xff]
  %v325 = vld [vmem:[%s51 + $0x48] sm:$0xff]
  %v326 = vld [vmem:[%s53] sm:$0xf]
  %v327 = vld [vmem:[%s53 + $0x4] sm:$0xf]
  %v328 = vld [vmem:[%s53 + $0x8] sm:$0xf]
  %v329 = vld [vmem:[%s53 + $0xc] sm:$0xf]
  %v330 = vld [vmem:[%s53 + $0x10] sm:$0xf]
  %v331 = vld [vmem:[%s55] sm:$0xff]
  %v332 = vld [vmem:[%s55 + $0x8] sm:$0xff]
  %v333 = vld [vmem:[%s55 + $0x10] sm:$0xff]
  %v334 = vld [vmem:[%s55 + $0x18] sm:$0xff]
  %v335 = vld [vmem:[%s55 + $0x20] sm:$0xff]
  %v336 = vld [vmem:[%s57] sm:$0xf]
  %v337 = vld [vmem:[%s57 + $0x4] sm:$0x1]
  %v338 = vld [vmem:[%s59] sm:$0xff]
  %v339 = vld [vmem:[%s59 + $0x8] sm:$0x3]
  %v340 = vld [vmem:[%s1] sm:$0xff]
  %v341 = vld [vmem:[%s1 + $0x8] sm:$0xff]
  %344 = vrot.lane.b32.xlu0 %v340, 127
  %v345 = vpop.permute.xlu0 %344
  %346 = vrot.lane.b32.xlu0 %v341, 127
  %v347 = vpop.permute.xlu0 %346
  %vm348 = vcmask 1039360
  %v349 = vsel %vm348, %v345, %v347
  %352 = vrot.lane.b32.xlu0 %v340, 126
  %v353 = vpop.permute.xlu0 %352
  %354 = vrot.lane.b32.xlu0 %v341, 126
  %v355 = vpop.permute.xlu0 %354
  %vm356 = vcmask 1031168
  %v357 = vsel %vm356, %v353, %v355
  %360 = vrot.lane.b32.xlu0 %v340, 125
  %v361 = vpop.permute.xlu0 %360
  %362 = vrot.lane.b32.xlu0 %v341, 125
  %v363 = vpop.permute.xlu0 %362
  %vm364 = vcmask 1022976
  %v365 = vsel %vm364, %v361, %v363
  %368 = vrot.lane.b32.xlu0 %v340, 124
  %v369 = vpop.permute.xlu0 %368
  %370 = vrot.lane.b32.xlu0 %v341, 124
  %v371 = vpop.permute.xlu0 %370
  %vm372 = vcmask 1014784
  %v373 = vsel %vm372, %v369, %v371
  %376 = vrot.lane.b32.xlu0 %v340, 123
  %v377 = vpop.permute.xlu0 %376
  %378 = vrot.lane.b32.xlu0 %v341, 123
  %v379 = vpop.permute.xlu0 %378
  %vm380 = vcmask 1006592
  %v381 = vsel %vm380, %v377, %v379
  %384 = vrot.lane.b32.xlu0 %v340, 122
  %v385 = vpop.permute.xlu0 %384
  %386 = vrot.lane.b32.xlu0 %v341, 122
  %v387 = vpop.permute.xlu0 %386
  %vm388 = vcmask 998400
  %v389 = vsel %vm388, %v385, %v387
  %392 = vrot.lane.b32.xlu0 %v340, 121
  %v393 = vpop.permute.xlu0 %392
  %394 = vrot.lane.b32.xlu0 %v341, 121
  %v395 = vpop.permute.xlu0 %394
  %vm396 = vcmask 990208
  %v397 = vsel %vm396, %v393, %v395
  %400 = vrot.lane.b32.xlu0 %v340, 120
  %v401 = vpop.permute.xlu0 %400
  %402 = vrot.lane.b32.xlu0 %v341, 120
  %v403 = vpop.permute.xlu0 %402
  %vm404 = vcmask 982016
  %v405 = vsel %vm404, %v401, %v403
  %v408 = vpack.c.bf16 %v349, %v340
  %v409 = vpack.c.bf16 %v347, %v341
  %v410 = vpack.c.bf16 %v365, %v357
  %v411 = vpack.c.bf16 %v363, %v355
  %v412 = vpack.c.bf16 %v381, %v373
  %v413 = vpack.c.bf16 %v379, %v371
  %v414 = vpack.c.bf16 %v397, %v389
  %v415 = vpack.c.bf16 %v395, %v387
  %v416 = vpack.c.bf16 %v405, %v405
  %v417 = vpack.c.bf16 %v403, %v403
  %419 = vset.pattern.permute.xlu0 0
  %420 = vperm.xlu0 %419, %v129
  %v421 = vpop.permute.xlu0 %420
  %424 = vset.pattern.permute.xlu0 0
  %425 = vperm.xlu0 %424, %v130
  %v426 = vpop.permute.xlu0 %425
  %v430 = vunpack.c.l.b16 %v127
  %v431 = vunpack.c.l.b16 %v128
  %v432 = vpack.c.b16 %v431, %v430
  %vm433 = vcmask 588800
  %v435 = vsel %vm433, %v432, 0
  %vm437 = vcmask 1043456
  %v439 = vsel %vm437, %v416, 0
  %v442 = vsel %vm437, %v417, 0
  %444 = vmatpush.bf16.msra.mxu0 0
  %445 = vmatpush.bf16.msra.mxu0 0
  %446 = vmatpush.bf16.msra.mxu0 0
  %447 = vmatpush.bf16.msra.mxu0 %v439
  %448 = vmatpush.bf16.msra.mxu0 %v414
  %449 = vmatpush.bf16.msra.mxu0 %v412
  %450 = vmatpush.bf16.msra.mxu0 %v410
  %451 = vmatpush.bf16.msra.mxu0 %v408
  %452 = vmatmul.bf16.gmra.mxu0 %v435
  %v453 = vpop.f32.mrf.mxu0
  %v454 = vadd.f32 %v421, %v453
  %v455 = vpop.f32.mrf.mxu0
  %v456 = vadd.f32 %v426, %v455
  %457 = vdwg.mxu0
  %458 = vmatpush.bf16.msra.mxu0 0
  %459 = vmatpush.bf16.msra.mxu0 0
  %460 = vmatpush.bf16.msra.mxu0 0
  %461 = vmatpush.bf16.msra.mxu0 %v442
  %462 = vmatpush.bf16.msra.mxu0 %v415
  %463 = vmatpush.bf16.msra.mxu0 %v413
  %464 = vmatpush.bf16.msra.mxu0 %v411
  %465 = vmatpush.bf16.msra.mxu0 %v409
  %466 = vmatmul.bf16.gmra.mxu0 %v435
  %v467 = vpop.f32.mrf.mxu0
  %v468 = vadd.f32 %v421, %v467
  %v469 = vpop.f32.mrf.mxu0
  %v470 = vadd.f32 %v426, %v469
  %471 = vdwg.mxu0
  %v472 = vmax.f32 %v454, 0.0
  %v473 = vmax.f32 %v468, 0.0
  %v474 = vmax.f32 %v456, 0.0
  %v475 = vmax.f32 %v470, 0.0
  %v476 = vpack.c.bf16 %v474, %v472
  %v477 = vpack.c.bf16 %v475, %v473
  %479 = vset.pattern.permute.xlu0 0
  %480 = vperm.xlu0 %479, %v133
  %v481 = vpop.permute.xlu0 %480
  %484 = vset.pattern.permute.xlu0 0
  %485 = vperm.xlu0 %484, %v134
  %v486 = vpop.permute.xlu0 %485
  %v490 = vunpack.c.l.b16 %v131
  %v491 = vunpack.c.l.b16 %v132
  %v492 = vpack.c.b16 %v491, %v490
  %vm493 = vcmask 97280
  %v495 = vsel %vm493, %v492, 0
  %vm497 = vcmask 1045504
  %v499 = vsel %vm497, %v476, 0
  %v502 = vsel %vm497, %v477, 0
  %504 = vmatpush.bf16.msra.mxu0 0
  %505 = vmatpush.bf16.msra.mxu0 0
  %506 = vmatpush.bf16.msra.mxu0 0
  %507 = vmatpush.bf16.msra.mxu0 0
  %508 = vmatpush.bf16.msra.mxu0 0
  %509 = vmatpush.bf16.msra.mxu0 0
  %510 = vmatpush.bf16.msra.mxu0 0
  %511 = vmatpush.bf16.msra.mxu0 %v499
  %512 = vmatmul.bf16.gmra.mxu0 %v495
  %v513 = vpop.f32.mrf.mxu0
  %v514 = vadd.f32 %v481, %v513
  %v515 = vpop.f32.mrf.mxu0
  %v516 = vadd.f32 %v486, %v515
  %517 = vdwg.mxu0
  %518 = vmatpush.bf16.msra.mxu0 0
  %519 = vmatpush.bf16.msra.mxu0 0
  %520 = vmatpush.bf16.msra.mxu0 0
  %521 = vmatpush.bf16.msra.mxu0 0
  %522 = vmatpush.bf16.msra.mxu0 0
  %523 = vmatpush.bf16.msra.mxu0 0
  %524 = vmatpush.bf16.msra.mxu0 0
  %525 = vmatpush.bf16.msra.mxu0 %v502
  %526 = vmatmul.bf16.gmra.mxu0 %v495
  %v527 = vpop.f32.mrf.mxu0
  %v528 = vadd.f32 %v481, %v527
  %v529 = vpop.f32.mrf.mxu0
  %v530 = vadd.f32 %v486, %v529
  %531 = vdwg.mxu0
  %v532 = vpack.c.bf16 %v340, %v340
  %v533 = vpack.c.bf16 %v341, %v341
  %v536 = vunpack.c.l.b16 %v135
  %v537 = vunpack.c.l.b16 %v136
  %v538 = vpack.c.b16 %v537, %v536
  %541 = vrot.lane.b32.xlu0 %v532, 124
  %v542 = vpop.permute.xlu0 %541
  %543 = vrot.lane.b32.xlu0 %v533, 124
  %v544 = vpop.permute.xlu0 %543
  %vm545 = vcmask 1014784
  %v546 = vsel %vm545, %v542, %v544
  %vm547 = vcmask 64512
  %v549 = vsel %vm547, %v538, 0
  %v552 = vsel %vm437, %v546, 0
  %v555 = vsel %vm437, %v544, 0
  %557 = vmatpush.bf16.msra.mxu0 0
  %558 = vmatpush.bf16.msra.mxu0 0
  %559 = vmatpush.bf16.msra.mxu0 0
  %560 = vmatpush.bf16.msra.mxu0 0
  %561 = vmatpush.bf16.msra.mxu0 0
  %562 = vmatpush.bf16.msra.mxu0 0
  %563 = vmatpush.bf16.msra.mxu0 0
  %564 = vmatpush.bf16.msra.mxu0 %v552
  %565 = vmatmul.bf16.gmra.mxu0 %v549
  %v566 = vpop.f32.mrf.mxu0
  %v567 = vadd.f32 0.0, %v566
  %v568 = vpop.f32.mrf.mxu0
  %v569 = vadd.f32 0.0, %v568
  %570 = vdwg.mxu0
  %571 = vmatpush.bf16.msra.mxu0 0
  %572 = vmatpush.bf16.msra.mxu0 0
  %573 = vmatpush.bf16.msra.mxu0 0
  %574 = vmatpush.bf16.msra.mxu0 0
  %575 = vmatpush.bf16.msra.mxu0 0
  %576 = vmatpush.bf16.msra.mxu0 0
  %577 = vmatpush.bf16.msra.mxu0 0
  %578 = vmatpush.bf16.msra.mxu0 %v555
  %579 = vmatmul.bf16.gmra.mxu0 %v549
  %v580 = vpop.f32.mrf.mxu0
  %v581 = vadd.f32 0.0, %v580
  %v582 = vpop.f32.mrf.mxu0
  %v583 = vadd.f32 0.0, %v582
  %584 = vdwg.mxu0
  %v585 = vadd.f32 %v514, %v567
  %v586 = vadd.f32 %v528, %v581
  %v587 = vadd.f32 %v516, %v569
  %v588 = vadd.f32 %v530, %v583
  %590 = vset.pattern.permute.xlu0 0
  %591 = vperm.xlu0 %590, %v137
  %v592 = vpop.permute.xlu0 %591
  %595 = vset.pattern.permute.xlu0 0
  %596 = vperm.xlu0 %595, %v138
  %v597 = vpop.permute.xlu0 %596
  %v599 = vadd.f32 %v585, %v592
  %v600 = vadd.f32 %v586, %v592
  %v601 = vadd.f32 %v587, %v597
  %v602 = vadd.f32 %v588, %v597
  %v603 = vpack.c.bf16 %v601, %v599
  %v604 = vpack.c.bf16 %v602, %v600
  %606 = vset.pattern.permute.xlu0 0
  %607 = vperm.xlu0 %606, %v148
  %v608 = vpop.permute.xlu0 %607
  %611 = vset.pattern.permute.xlu0 0
  %612 = vperm.xlu0 %611, %v149
  %v613 = vpop.permute.xlu0 %612
  %616 = vset.pattern.permute.xlu0 0
  %617 = vperm.xlu0 %616, %v150
  %v618 = vpop.permute.xlu0 %617
  %621 = vset.pattern.permute.xlu0 0
  %622 = vperm.xlu0 %621, %v151
  %v623 = vpop.permute.xlu0 %622
  %626 = vset.pattern.permute.xlu0 0
  %627 = vperm.xlu0 %626, %v152
  %v628 = vpop.permute.xlu0 %627
  %631 = vset.pattern.permute.xlu0 0
  %632 = vperm.xlu0 %631, %v153
  %v633 = vpop.permute.xlu0 %632
  %636 = vset.pattern.permute.xlu0 0
  %637 = vperm.xlu0 %636, %v154
  %v638 = vpop.permute.xlu0 %637
  %641 = vset.pattern.permute.xlu0 0
  %642 = vperm.xlu0 %641, %v155
  %v643 = vpop.permute.xlu0 %642
  %646 = vset.pattern.permute.xlu0 0
  %647 = vperm.xlu0 %646, %v156
  %v648 = vpop.permute.xlu0 %647
  %v659 = vunpack.c.l.b16 %v139
  %v660 = vunpack.c.l.b16 %v140
  %v661 = vunpack.c.l.b16 %v141
  %v662 = vunpack.c.l.b16 %v142
  %v663 = vunpack.c.l.b16 %v143
  %v664 = vunpack.c.l.b16 %v144
  %v665 = vunpack.c.l.b16 %v145
  %v666 = vunpack.c.l.b16 %v146
  %v667 = vunpack.c.l.b16 %v147
  %v668 = vpack.c.b16 %v660, %v659
  %v669 = vpack.c.b16 %v662, %v661
  %v670 = vpack.c.b16 %v664, %v663
  %v671 = vpack.c.b16 %v666, %v665
  %v672 = vpack.c.b16 %v667, %v667
  %v674 = vsel %vm493, %v668, 0
  %v677 = vsel %vm493, %v669, 0
  %v680 = vsel %vm493, %v670, 0
  %v683 = vsel %vm493, %v671, 0
  %v686 = vsel %vm493, %v672, 0
  %v689 = vsel %vm497, %v603, 0
  %v692 = vsel %vm497, %v604, 0
  %694 = vmatpush.bf16.msra.mxu0 0
  %695 = vmatpush.bf16.msra.mxu0 0
  %696 = vmatpush.bf16.msra.mxu0 0
  %697 = vmatpush.bf16.msra.mxu0 0
  %698 = vmatpush.bf16.msra.mxu0 0
  %699 = vmatpush.bf16.msra.mxu0 0
  %700 = vmatpush.bf16.msra.mxu0 0
  %701 = vmatpush.bf16.msra.mxu0 %v689
  %702 = vmatmul.bf16.gmra.mxu0 %v674
  %v703 = vpop.f32.mrf.mxu0
  %v704 = vadd.f32 %v608, %v703
  %v705 = vpop.f32.mrf.mxu0
  %v706 = vadd.f32 %v613, %v705
  %707 = vmatmul.bf16.gmra.mxu0 %v677
  %v708 = vpop.f32.mrf.mxu0
  %v709 = vadd.f32 %v618, %v708
  %v710 = vpop.f32.mrf.mxu0
  %v711 = vadd.f32 %v623, %v710
  %712 = vmatmul.bf16.gmra.mxu0 %v680
  %v713 = vpop.f32.mrf.mxu0
  %v714 = vadd.f32 %v628, %v713
  %v715 = vpop.f32.mrf.mxu0
  %v716 = vadd.f32 %v633, %v715
  %717 = vmatmul.bf16.gmra.mxu0 %v683
  %v718 = vpop.f32.mrf.mxu0
  %v719 = vadd.f32 %v638, %v718
  %v720 = vpop.f32.mrf.mxu0
  %v721 = vadd.f32 %v643, %v720
  %722 = vmatmul.bf16.gmra.mxu0 %v686
  %v723 = vpop.f32.mrf.mxu0
  %v724 = vadd.f32 %v648, %v723
  %v725 = vpop.f32.mrf.mxu0
  %726 = vdwg.mxu0
  %727 = vmatpush.bf16.msra.mxu0 0
  %728 = vmatpush.bf16.msra.mxu0 0
  %729 = vmatpush.bf16.msra.mxu0 0
  %730 = vmatpush.bf16.msra.mxu0 0
  %731 = vmatpush.bf16.msra.mxu0 0
  %732 = vmatpush.bf16.msra.mxu0 0
  %733 = vmatpush.bf16.msra.mxu0 0
  %734 = vmatpush.bf16.msra.mxu0 %v692
  %735 = vmatmul.bf16.gmra.mxu0 %v674
  %v736 = vpop.f32.mrf.mxu0
  %v737 = vadd.f32 %v608, %v736
  %v738 = vpop.f32.mrf.mxu0
  %v739 = vadd.f32 %v613, %v738
  %740 = vmatmul.bf16.gmra.mxu0 %v677
  %v741 = vpop.f32.mrf.mxu0
  %v742 = vadd.f32 %v618, %v741
  %v743 = vpop.f32.mrf.mxu0
  %v744 = vadd.f32 %v623, %v743
  %745 = vmatmul.bf16.gmra.mxu0 %v680
  %v746 = vpop.f32.mrf.mxu0
  %v747 = vadd.f32 %v628, %v746
  %v748 = vpop.f32.mrf.mxu0
  %v749 = vadd.f32 %v633, %v748
  %750 = vmatmul.bf16.gmra.mxu0 %v683
  %v751 = vpop.f32.mrf.mxu0
  %v752 = vadd.f32 %v638, %v751
  %v753 = vpop.f32.mrf.mxu0
  %v754 = vadd.f32 %v643, %v753
  %755 = vmatmul.bf16.gmra.mxu0 %v686
  %v756 = vpop.f32.mrf.mxu0
  %v757 = vadd.f32 %v648, %v756
  %v758 = vpop.f32.mrf.mxu0
  %759 = vdwg.mxu0
  %v760 = vmax.f32 %v704, 0.0
  %v761 = vmax.f32 %v737, 0.0
  %v762 = vmax.f32 %v706, 0.0
  %v763 = vmax.f32 %v739, 0.0
  %v764 = vmax.f32 %v709, 0.0
  %v765 = vmax.f32 %v742, 0.0
  %v766 = vmax.f32 %v711, 0.0
  %v767 = vmax.f32 %v744, 0.0
  %v768 = vmax.f32 %v714, 0.0
  %v769 = vmax.f32 %v747, 0.0
  %v770 = vmax.f32 %v716, 0.0
  %v771 = vmax.f32 %v749, 0.0
  %v772 = vmax.f32 %v719, 0.0
  %v773 = vmax.f32 %v752, 0.0
  %v774 = vmax.f32 %v721, 0.0
  %v775 = vmax.f32 %v754, 0.0
  %v776 = vmax.f32 %v724, 0.0
  %v777 = vmax.f32 %v757, 0.0
  %796 = vrot.lane.b32.xlu0 %v760, 4
  %v797 = vpop.permute.xlu0 %796
  %798 = vrot.lane.b32.xlu0 %v761, 4
  %v799 = vpop.permute.xlu0 %798
  %800 = vrot.lane.b32.xlu0 %v762, 4
  %v801 = vpop.permute.xlu0 %800
  %802 = vrot.lane.b32.xlu0 %v763, 4
  %v803 = vpop.permute.xlu0 %802
  %804 = vrot.lane.b32.xlu0 %v764, 4
  %v805 = vpop.permute.xlu0 %804
  %806 = vrot.lane.b32.xlu0 %v765, 4
  %v807 = vpop.permute.xlu0 %806
  %808 = vrot.lane.b32.xlu0 %v766, 4
  %v809 = vpop.permute.xlu0 %808
  %810 = vrot.lane.b32.xlu0 %v767, 4
  %v811 = vpop.permute.xlu0 %810
  %812 = vrot.lane.b32.xlu0 %v768, 4
  %v813 = vpop.permute.xlu0 %812
  %814 = vrot.lane.b32.xlu0 %v769, 4
  %v815 = vpop.permute.xlu0 %814
  %816 = vrot.lane.b32.xlu0 %v770, 4
  %v817 = vpop.permute.xlu0 %816
  %818 = vrot.lane.b32.xlu0 %v771, 4
  %v819 = vpop.permute.xlu0 %818
  %820 = vrot.lane.b32.xlu0 %v772, 4
  %v821 = vpop.permute.xlu0 %820
  %822 = vrot.lane.b32.xlu0 %v773, 4
  %v823 = vpop.permute.xlu0 %822
  %824 = vrot.lane.b32.xlu0 %v774, 4
  %v825 = vpop.permute.xlu0 %824
  %826 = vrot.lane.b32.xlu0 %v775, 4
  %v827 = vpop.permute.xlu0 %826
  %828 = vrot.lane.b32.xlu0 %v776, 4
  %v829 = vpop.permute.xlu0 %828
  %830 = vrot.lane.b32.xlu0 %v777, 4
  %v831 = vpop.permute.xlu0 %830
  %vm832 = vcmask 31744
  %v833 = vsel %vm832, %v797, %v799
  %v834 = vsel %vm832, %v801, %v803
  %v835 = vsel %vm832, %v805, %v807
  %v836 = vsel %vm832, %v809, %v811
  %v837 = vsel %vm832, %v813, %v815
  %v838 = vsel %vm832, %v817, %v819
  %v839 = vsel %vm832, %v821, %v823
  %v840 = vsel %vm832, %v825, %v827
  %v841 = vsel %vm832, %v829, %v831
  %v860 = vsel %vm832, 0.0, %v797
  %v861 = vsel %vm832, 0.0, %v801
  %v862 = vsel %vm832, 0.0, %v805
  %v863 = vsel %vm832, 0.0, %v809
  %v864 = vsel %vm832, 0.0, %v813
  %v865 = vsel %vm832, 0.0, %v817
  %v866 = vsel %vm832, 0.0, %v821
  %v867 = vsel %vm832, 0.0, %v825
  %v868 = vsel %vm832, 0.0, %v829
  %vm869 = vcmask 621568
  %v870 = vsel %vm869, %v833, 0.0
  %v871 = vsel %vm869, %v834, 0.0
  %v872 = vsel %vm869, %v835, 0.0
  %v873 = vsel %vm869, %v836, 0.0
  %v874 = vsel %vm869, %v837, 0.0
  %v875 = vsel %vm869, %v838, 0.0
  %v876 = vsel %vm869, %v839, 0.0
  %v877 = vsel %vm869, %v840, 0.0
  %v878 = vsel %vm869, %v841, 0.0
  %880 = vset.pattern.permute.xlu0 0
  %881 = vperm.xlu0 %880, %v157
  %v882 = vpop.permute.xlu0 %881
  %885 = vset.pattern.permute.xlu0 0
  %886 = vperm.xlu0 %885, %v158
  %v887 = vpop.permute.xlu0 %886
  %890 = vset.pattern.permute.xlu0 0
  %891 = vperm.xlu0 %890, %v159
  %v892 = vpop.permute.xlu0 %891
  %895 = vset.pattern.permute.xlu0 0
  %896 = vperm.xlu0 %895, %v160
  %v897 = vpop.permute.xlu0 %896
  %900 = vset.pattern.permute.xlu0 0
  %901 = vperm.xlu0 %900, %v161
  %v902 = vpop.permute.xlu0 %901
  %905 = vset.pattern.permute.xlu0 0
  %906 = vperm.xlu0 %905, %v162
  %v907 = vpop.permute.xlu0 %906
  %910 = vset.pattern.permute.xlu0 0
  %911 = vperm.xlu0 %910, %v163
  %v912 = vpop.permute.xlu0 %911
  %915 = vset.pattern.permute.xlu0 0
  %916 = vperm.xlu0 %915, %v164
  %v917 = vpop.permute.xlu0 %916
  %920 = vset.pattern.permute.xlu0 0
  %921 = vperm.xlu0 %920, %v165
  %v922 = vpop.permute.xlu0 %921
  %v924 = vmul.f32 %v860, %v882
  %v925 = vmul.f32 %v870, %v882
  %v926 = vmul.f32 %v861, %v887
  %v927 = vmul.f32 %v871, %v887
  %v928 = vmul.f32 %v862, %v892
  %v929 = vmul.f32 %v872, %v892
  %v930 = vmul.f32 %v863, %v897
  %v931 = vmul.f32 %v873, %v897
  %v932 = vmul.f32 %v864, %v902
  %v933 = vmul.f32 %v874, %v902
  %v934 = vmul.f32 %v865, %v907
  %v935 = vmul.f32 %v875, %v907
  %v936 = vmul.f32 %v866, %v912
  %v937 = vmul.f32 %v876, %v912
  %v938 = vmul.f32 %v867, %v917
  %v939 = vmul.f32 %v877, %v917
  %v940 = vmul.f32 %v868, %v922
  %v941 = vmul.f32 %v878, %v922
  %v942 = vadd.f32 %v924, 0.0
  %v943 = vadd.f32 %v925, 0.0
  %v944 = vadd.f32 %v926, 0.0
  %v945 = vadd.f32 %v927, 0.0
  %v946 = vadd.f32 %v928, 0.0
  %v947 = vadd.f32 %v929, 0.0
  %v948 = vadd.f32 %v930, 0.0
  %v949 = vadd.f32 %v931, 0.0
  %v950 = vadd.f32 %v932, 0.0
  %v951 = vadd.f32 %v933, 0.0
  %v952 = vadd.f32 %v934, 0.0
  %v953 = vadd.f32 %v935, 0.0
  %v954 = vadd.f32 %v936, 0.0
  %v955 = vadd.f32 %v937, 0.0
  %v956 = vadd.f32 %v938, 0.0
  %v957 = vadd.f32 %v939, 0.0
  %v958 = vadd.f32 %v940, 0.0
  %v959 = vadd.f32 %v941, 0.0
  %960 = vset.pattern.permute.xlu0 1
  %961 = vperm.xlu0 %960, %v157
  %v962 = vpop.permute.xlu0 %961
  %964 = vset.pattern.permute.xlu0 1
  %965 = vperm.xlu0 %964, %v158
  %v966 = vpop.permute.xlu0 %965
  %968 = vset.pattern.permute.xlu0 1
  %969 = vperm.xlu0 %968, %v159
  %v970 = vpop.permute.xlu0 %969
  %972 = vset.pattern.permute.xlu0 1
  %973 = vperm.xlu0 %972, %v160
  %v974 = vpop.permute.xlu0 %973
  %976 = vset.pattern.permute.xlu0 1
  %977 = vperm.xlu0 %976, %v161
  %v978 = vpop.permute.xlu0 %977
  %980 = vset.pattern.permute.xlu0 1
  %981 = vperm.xlu0 %980, %v162
  %v982 = vpop.permute.xlu0 %981
  %984 = vset.pattern.permute.xlu0 1
  %985 = vperm.xlu0 %984, %v163
  %v986 = vpop.permute.xlu0 %985
  %988 = vset.pattern.permute.xlu0 1
  %989 = vperm.xlu0 %988, %v164
  %v990 = vpop.permute.xlu0 %989
  %992 = vset.pattern.permute.xlu0 1
  %993 = vperm.xlu0 %992, %v165
  %v994 = vpop.permute.xlu0 %993
  %v996 = vmul.f32 %v860, %v962
  %v997 = vmul.f32 %v870, %v962
  %v998 = vmul.f32 %v861, %v966
  %v999 = vmul.f32 %v871, %v966
  %v1000 = vmul.f32 %v862, %v970
  %v1001 = vmul.f32 %v872, %v970
  %v1002 = vmul.f32 %v863, %v974
  %v1003 = vmul.f32 %v873, %v974
  %v1004 = vmul.f32 %v864, %v978
  %v1005 = vmul.f32 %v874, %v978
  %v1006 = vmul.f32 %v865, %v982
  %v1007 = vmul.f32 %v875, %v982
  %v1008 = vmul.f32 %v866, %v986
  %v1009 = vmul.f32 %v876, %v986
  %v1010 = vmul.f32 %v867, %v990
  %v1011 = vmul.f32 %v877, %v990
  %v1012 = vmul.f32 %v868, %v994
  %v1013 = vmul.f32 %v878, %v994
  %1032 = vrot.lane.b32.xlu0 %v996, 127
  %v1033 = vpop.permute.xlu0 %1032
  %1034 = vrot.lane.b32.xlu0 %v997, 127
  %v1035 = vpop.permute.xlu0 %1034
  %1036 = vrot.lane.b32.xlu0 %v998, 127
  %v1037 = vpop.permute.xlu0 %1036
  %1038 = vrot.lane.b32.xlu0 %v999, 127
  %v1039 = vpop.permute.xlu0 %1038
  %1040 = vrot.lane.b32.xlu0 %v1000, 127
  %v1041 = vpop.permute.xlu0 %1040
  %1042 = vrot.lane.b32.xlu0 %v1001, 127
  %v1043 = vpop.permute.xlu0 %1042
  %1044 = vrot.lane.b32.xlu0 %v1002, 127
  %v1045 = vpop.permute.xlu0 %1044
  %1046 = vrot.lane.b32.xlu0 %v1003, 127
  %v1047 = vpop.permute.xlu0 %1046
  %1048 = vrot.lane.b32.xlu0 %v1004, 127
  %v1049 = vpop.permute.xlu0 %1048
  %1050 = vrot.lane.b32.xlu0 %v1005, 127
  %v1051 = vpop.permute.xlu0 %1050
  %1052 = vrot.lane.b32.xlu0 %v1006, 127
  %v1053 = vpop.permute.xlu0 %1052
  %1054 = vrot.lane.b32.xlu0 %v1007, 127
  %v1055 = vpop.permute.xlu0 %1054
  %1056 = vrot.lane.b32.xlu0 %v1008, 127
  %v1057 = vpop.permute.xlu0 %1056
  %1058 = vrot.lane.b32.xlu0 %v1009, 127
  %v1059 = vpop.permute.xlu0 %1058
  %1060 = vrot.lane.b32.xlu0 %v1010, 127
  %v1061 = vpop.permute.xlu0 %1060
  %1062 = vrot.lane.b32.xlu0 %v1011, 127
  %v1063 = vpop.permute.xlu0 %1062
  %1064 = vrot.lane.b32.xlu0 %v1012, 127
  %v1065 = vpop.permute.xlu0 %1064
  %1066 = vrot.lane.b32.xlu0 %v1013, 127
  %v1067 = vpop.permute.xlu0 %1066
  %v1068 = vsel %vm348, %v1033, %v1035
  %v1069 = vsel %vm348, %v1037, %v1039
  %v1070 = vsel %vm348, %v1041, %v1043
  %v1071 = vsel %vm348, %v1045, %v1047
  %v1072 = vsel %vm348, %v1049, %v1051
  %v1073 = vsel %vm348, %v1053, %v1055
  %v1074 = vsel %vm348, %v1057, %v1059
  %v1075 = vsel %vm348, %v1061, %v1063
  %v1076 = vsel %vm348, %v1065, %v1067
  %v1095 = vadd.f32 %v942, %v1068
  %v1096 = vadd.f32 %v943, %v1035
  %v1097 = vadd.f32 %v944, %v1069
  %v1098 = vadd.f32 %v945, %v1039
  %v1099 = vadd.f32 %v946, %v1070
  %v1100 = vadd.f32 %v947, %v1043
  %v1101 = vadd.f32 %v948, %v1071
  %v1102 = vadd.f32 %v949, %v1047
  %v1103 = vadd.f32 %v950, %v1072
  %v1104 = vadd.f32 %v951, %v1051
  %v1105 = vadd.f32 %v952, %v1073
  %v1106 = vadd.f32 %v953, %v1055
  %v1107 = vadd.f32 %v954, %v1074
  %v1108 = vadd.f32 %v955, %v1059
  %v1109 = vadd.f32 %v956, %v1075
  %v1110 = vadd.f32 %v957, %v1063
  %v1111 = vadd.f32 %v958, %v1076
  %v1112 = vadd.f32 %v959, %v1067
  %1113 = vset.pattern.permute.xlu0 2
  %1114 = vperm.xlu0 %1113, %v157
  %v1115 = vpop.permute.xlu0 %1114
  %1117 = vset.pattern.permute.xlu0 2
  %1118 = vperm.xlu0 %1117, %v158
  %v1119 = vpop.permute.xlu0 %1118
  %1121 = vset.pattern.permute.xlu0 2
  %1122 = vperm.xlu0 %1121, %v159
  %v1123 = vpop.permute.xlu0 %1122
  %1125 = vset.pattern.permute.xlu0 2
  %1126 = vperm.xlu0 %1125, %v160
  %v1127 = vpop.permute.xlu0 %1126
  %1129 = vset.pattern.permute.xlu0 2
  %1130 = vperm.xlu0 %1129, %v161
  %v1131 = vpop.permute.xlu0 %1130
  %1133 = vset.pattern.permute.xlu0 2
  %1134 = vperm.xlu0 %1133, %v162
  %v1135 = vpop.permute.xlu0 %1134
  %1137 = vset.pattern.permute.xlu0 2
  %1138 = vperm.xlu0 %1137, %v163
  %v1139 = vpop.permute.xlu0 %1138
  %1141 = vset.pattern.permute.xlu0 2
  %1142 = vperm.xlu0 %1141, %v164
  %v1143 = vpop.permute.xlu0 %1142
  %1145 = vset.pattern.permute.xlu0 2
  %1146 = vperm.xlu0 %1145, %v165
  %v1147 = vpop.permute.xlu0 %1146
  %v1149 = vmul.f32 %v860, %v1115
  %v1150 = vmul.f32 %v870, %v1115
  %v1151 = vmul.f32 %v861, %v1119
  %v1152 = vmul.f32 %v871, %v1119
  %v1153 = vmul.f32 %v862, %v1123
  %v1154 = vmul.f32 %v872, %v1123
  %v1155 = vmul.f32 %v863, %v1127
  %v1156 = vmul.f32 %v873, %v1127
  %v1157 = vmul.f32 %v864, %v1131
  %v1158 = vmul.f32 %v874, %v1131
  %v1159 = vmul.f32 %v865, %v1135
  %v1160 = vmul.f32 %v875, %v1135
  %v1161 = vmul.f32 %v866, %v1139
  %v1162 = vmul.f32 %v876, %v1139
  %v1163 = vmul.f32 %v867, %v1143
  %v1164 = vmul.f32 %v877, %v1143
  %v1165 = vmul.f32 %v868, %v1147
  %v1166 = vmul.f32 %v878, %v1147
  %1185 = vrot.lane.b32.xlu0 %v1149, 126
  %v1186 = vpop.permute.xlu0 %1185
  %1187 = vrot.lane.b32.xlu0 %v1150, 126
  %v1188 = vpop.permute.xlu0 %1187
  %1189 = vrot.lane.b32.xlu0 %v1151, 126
  %v1190 = vpop.permute.xlu0 %1189
  %1191 = vrot.lane.b32.xlu0 %v1152, 126
  %v1192 = vpop.permute.xlu0 %1191
  %1193 = vrot.lane.b32.xlu0 %v1153, 126
  %v1194 = vpop.permute.xlu0 %1193
  %1195 = vrot.lane.b32.xlu0 %v1154, 126
  %v1196 = vpop.permute.xlu0 %1195
  %1197 = vrot.lane.b32.xlu0 %v1155, 126
  %v1198 = vpop.permute.xlu0 %1197
  %1199 = vrot.lane.b32.xlu0 %v1156, 126
  %v1200 = vpop.permute.xlu0 %1199
  %1201 = vrot.lane.b32.xlu0 %v1157, 126
  %v1202 = vpop.permute.xlu0 %1201
  %1203 = vrot.lane.b32.xlu0 %v1158, 126
  %v1204 = vpop.permute.xlu0 %1203
  %1205 = vrot.lane.b32.xlu0 %v1159, 126
  %v1206 = vpop.permute.xlu0 %1205
  %1207 = vrot.lane.b32.xlu0 %v1160, 126
  %v1208 = vpop.permute.xlu0 %1207
  %1209 = vrot.lane.b32.xlu0 %v1161, 126
  %v1210 = vpop.permute.xlu0 %1209
  %1211 = vrot.lane.b32.xlu0 %v1162, 126
  %v1212 = vpop.permute.xlu0 %1211
  %1213 = vrot.lane.b32.xlu0 %v1163, 126
  %v1214 = vpop.permute.xlu0 %1213
  %1215 = vrot.lane.b32.xlu0 %v1164, 126
  %v1216 = vpop.permute.xlu0 %1215
  %1217 = vrot.lane.b32.xlu0 %v1165, 126
  %v1218 = vpop.permute.xlu0 %1217
  %1219 = vrot.lane.b32.xlu0 %v1166, 126
  %v1220 = vpop.permute.xlu0 %1219
  %v1221 = vsel %vm356, %v1186, %v1188
  %v1222 = vsel %vm356, %v1190, %v1192
  %v1223 = vsel %vm356, %v1194, %v1196
  %v1224 = vsel %vm356, %v1198, %v1200
  %v1225 = vsel %vm356, %v1202, %v1204
  %v1226 = vsel %vm356, %v1206, %v1208
  %v1227 = vsel %vm356, %v1210, %v1212
  %v1228 = vsel %vm356, %v1214, %v1216
  %v1229 = vsel %vm356, %v1218, %v1220
  %v1248 = vadd.f32 %v1095, %v1221
  %v1249 = vadd.f32 %v1096, %v1188
  %v1250 = vadd.f32 %v1097, %v1222
  %v1251 = vadd.f32 %v1098, %v1192
  %v1252 = vadd.f32 %v1099, %v1223
  %v1253 = vadd.f32 %v1100, %v1196
  %v1254 = vadd.f32 %v1101, %v1224
  %v1255 = vadd.f32 %v1102, %v1200
  %v1256 = vadd.f32 %v1103, %v1225
  %v1257 = vadd.f32 %v1104, %v1204
  %v1258 = vadd.f32 %v1105, %v1226
  %v1259 = vadd.f32 %v1106, %v1208
  %v1260 = vadd.f32 %v1107, %v1227
  %v1261 = vadd.f32 %v1108, %v1212
  %v1262 = vadd.f32 %v1109, %v1228
  %v1263 = vadd.f32 %v1110, %v1216
  %v1264 = vadd.f32 %v1111, %v1229
  %v1265 = vadd.f32 %v1112, %v1220
  %1266 = vset.pattern.permute.xlu0 3
  %1267 = vperm.xlu0 %1266, %v157
  %v1268 = vpop.permute.xlu0 %1267
  %1270 = vset.pattern.permute.xlu0 3
  %1271 = vperm.xlu0 %1270, %v158
  %v1272 = vpop.permute.xlu0 %1271
  %1274 = vset.pattern.permute.xlu0 3
  %1275 = vperm.xlu0 %1274, %v159
  %v1276 = vpop.permute.xlu0 %1275
  %1278 = vset.pattern.permute.xlu0 3
  %1279 = vperm.xlu0 %1278, %v160
  %v1280 = vpop.permute.xlu0 %1279
  %1282 = vset.pattern.permute.xlu0 3
  %1283 = vperm.xlu0 %1282, %v161
  %v1284 = vpop.permute.xlu0 %1283
  %1286 = vset.pattern.permute.xlu0 3
  %1287 = vperm.xlu0 %1286, %v162
  %v1288 = vpop.permute.xlu0 %1287
  %1290 = vset.pattern.permute.xlu0 3
  %1291 = vperm.xlu0 %1290, %v163
  %v1292 = vpop.permute.xlu0 %1291
  %1294 = vset.pattern.permute.xlu0 3
  %1295 = vperm.xlu0 %1294, %v164
  %v1296 = vpop.permute.xlu0 %1295
  %1298 = vset.pattern.permute.xlu0 3
  %1299 = vperm.xlu0 %1298, %v165
  %v1300 = vpop.permute.xlu0 %1299
  %v1302 = vmul.f32 %v860, %v1268
  %v1303 = vmul.f32 %v870, %v1268
  %v1304 = vmul.f32 %v861, %v1272
  %v1305 = vmul.f32 %v871, %v1272
  %v1306 = vmul.f32 %v862, %v1276
  %v1307 = vmul.f32 %v872, %v1276
  %v1308 = vmul.f32 %v863, %v1280
  %v1309 = vmul.f32 %v873, %v1280
  %v1310 = vmul.f32 %v864, %v1284
  %v1311 = vmul.f32 %v874, %v1284
  %v1312 = vmul.f32 %v865, %v1288
  %v1313 = vmul.f32 %v875, %v1288
  %v1314 = vmul.f32 %v866, %v1292
  %v1315 = vmul.f32 %v876, %v1292
  %v1316 = vmul.f32 %v867, %v1296
  %v1317 = vmul.f32 %v877, %v1296
  %v1318 = vmul.f32 %v868, %v1300
  %v1319 = vmul.f32 %v878, %v1300
  %1338 = vrot.lane.b32.xlu0 %v1302, 125
  %v1339 = vpop.permute.xlu0 %1338
  %1340 = vrot.lane.b32.xlu0 %v1303, 125
  %v1341 = vpop.permute.xlu0 %1340
  %1342 = vrot.lane.b32.xlu0 %v1304, 125
  %v1343 = vpop.permute.xlu0 %1342
  %1344 = vrot.lane.b32.xlu0 %v1305, 125
  %v1345 = vpop.permute.xlu0 %1344
  %1346 = vrot.lane.b32.xlu0 %v1306, 125
  %v1347 = vpop.permute.xlu0 %1346
  %1348 = vrot.lane.b32.xlu0 %v1307, 125
  %v1349 = vpop.permute.xlu0 %1348
  %1350 = vrot.lane.b32.xlu0 %v1308, 125
  %v1351 = vpop.permute.xlu0 %1350
  %1352 = vrot.lane.b32.xlu0 %v1309, 125
  %v1353 = vpop.permute.xlu0 %1352
  %1354 = vrot.lane.b32.xlu0 %v1310, 125
  %v1355 = vpop.permute.xlu0 %1354
  %1356 = vrot.lane.b32.xlu0 %v1311, 125
  %v1357 = vpop.permute.xlu0 %1356
  %1358 = vrot.lane.b32.xlu0 %v1312, 125
  %v1359 = vpop.permute.xlu0 %1358
  %1360 = vrot.lane.b32.xlu0 %v1313, 125
  %v1361 = vpop.permute.xlu0 %1360
  %1362 = vrot.lane.b32.xlu0 %v1314, 125
  %v1363 = vpop.permute.xlu0 %1362
  %1364 = vrot.lane.b32.xlu0 %v1315, 125
  %v1365 = vpop.permute.xlu0 %1364
  %1366 = vrot.lane.b32.xlu0 %v1316, 125
  %v1367 = vpop.permute.xlu0 %1366
  %1368 = vrot.lane.b32.xlu0 %v1317, 125
  %v1369 = vpop.permute.xlu0 %1368
  %1370 = vrot.lane.b32.xlu0 %v1318, 125
  %v1371 = vpop.permute.xlu0 %1370
  %1372 = vrot.lane.b32.xlu0 %v1319, 125
  %v1373 = vpop.permute.xlu0 %1372
  %v1374 = vsel %vm364, %v1339, %v1341
  %v1375 = vsel %vm364, %v1343, %v1345
  %v1376 = vsel %vm364, %v1347, %v1349
  %v1377 = vsel %vm364, %v1351, %v1353
  %v1378 = vsel %vm364, %v1355, %v1357
  %v1379 = vsel %vm364, %v1359, %v1361
  %v1380 = vsel %vm364, %v1363, %v1365
  %v1381 = vsel %vm364, %v1367, %v1369
  %v1382 = vsel %vm364, %v1371, %v1373
  %v1401 = vadd.f32 %v1248, %v1374
  %v1402 = vadd.f32 %v1249, %v1341
  %v1403 = vadd.f32 %v1250, %v1375
  %v1404 = vadd.f32 %v1251, %v1345
  %v1405 = vadd.f32 %v1252, %v1376
  %v1406 = vadd.f32 %v1253, %v1349
  %v1407 = vadd.f32 %v1254, %v1377
  %v1408 = vadd.f32 %v1255, %v1353
  %v1409 = vadd.f32 %v1256, %v1378
  %v1410 = vadd.f32 %v1257, %v1357
  %v1411 = vadd.f32 %v1258, %v1379
  %v1412 = vadd.f32 %v1259, %v1361
  %v1413 = vadd.f32 %v1260, %v1380
  %v1414 = vadd.f32 %v1261, %v1365
  %v1415 = vadd.f32 %v1262, %v1381
  %v1416 = vadd.f32 %v1263, %v1369
  %v1417 = vadd.f32 %v1264, %v1382
  %v1418 = vadd.f32 %v1265, %v1373
  %1419 = vset.pattern.permute.xlu0 4
  %1420 = vperm.xlu0 %1419, %v157
  %v1421 = vpop.permute.xlu0 %1420
  %1423 = vset.pattern.permute.xlu0 4
  %1424 = vperm.xlu0 %1423, %v158
  %v1425 = vpop.permute.xlu0 %1424
  %1427 = vset.pattern.permute.xlu0 4
  %1428 = vperm.xlu0 %1427, %v159
  %v1429 = vpop.permute.xlu0 %1428
  %1431 = vset.pattern.permute.xlu0 4
  %1432 = vperm.xlu0 %1431, %v160
  %v1433 = vpop.permute.xlu0 %1432
  %1435 = vset.pattern.permute.xlu0 4
  %1436 = vperm.xlu0 %1435, %v161
  %v1437 = vpop.permute.xlu0 %1436
  %1439 = vset.pattern.permute.xlu0 4
  %1440 = vperm.xlu0 %1439, %v162
  %v1441 = vpop.permute.xlu0 %1440
  %1443 = vset.pattern.permute.xlu0 4
  %1444 = vperm.xlu0 %1443, %v163
  %v1445 = vpop.permute.xlu0 %1444
  %1447 = vset.pattern.permute.xlu0 4
  %1448 = vperm.xlu0 %1447, %v164
  %v1449 = vpop.permute.xlu0 %1448
  %1451 = vset.pattern.permute.xlu0 4
  %1452 = vperm.xlu0 %1451, %v165
  %v1453 = vpop.permute.xlu0 %1452
  %v1455 = vmul.f32 %v860, %v1421
  %v1456 = vmul.f32 %v870, %v1421
  %v1457 = vmul.f32 %v861, %v1425
  %v1458 = vmul.f32 %v871, %v1425
  %v1459 = vmul.f32 %v862, %v1429
  %v1460 = vmul.f32 %v872, %v1429
  %v1461 = vmul.f32 %v863, %v1433
  %v1462 = vmul.f32 %v873, %v1433
  %v1463 = vmul.f32 %v864, %v1437
  %v1464 = vmul.f32 %v874, %v1437
  %v1465 = vmul.f32 %v865, %v1441
  %v1466 = vmul.f32 %v875, %v1441
  %v1467 = vmul.f32 %v866, %v1445
  %v1468 = vmul.f32 %v876, %v1445
  %v1469 = vmul.f32 %v867, %v1449
  %v1470 = vmul.f32 %v877, %v1449
  %v1471 = vmul.f32 %v868, %v1453
  %v1472 = vmul.f32 %v878, %v1453
  %1491 = vrot.lane.b32.xlu0 %v1455, 124
  %v1492 = vpop.permute.xlu0 %1491
  %1493 = vrot.lane.b32.xlu0 %v1456, 124
  %v1494 = vpop.permute.xlu0 %1493
  %1495 = vrot.lane.b32.xlu0 %v1457, 124
  %v1496 = vpop.permute.xlu0 %1495
  %1497 = vrot.lane.b32.xlu0 %v1458, 124
  %v1498 = vpop.permute.xlu0 %1497
  %1499 = vrot.lane.b32.xlu0 %v1459, 124
  %v1500 = vpop.permute.xlu0 %1499
  %1501 = vrot.lane.b32.xlu0 %v1460, 124
  %v1502 = vpop.permute.xlu0 %1501
  %1503 = vrot.lane.b32.xlu0 %v1461, 124
  %v1504 = vpop.permute.xlu0 %1503
  %1505 = vrot.lane.b32.xlu0 %v1462, 124
  %v1506 = vpop.permute.xlu0 %1505
  %1507 = vrot.lane.b32.xlu0 %v1463, 124
  %v1508 = vpop.permute.xlu0 %1507
  %1509 = vrot.lane.b32.xlu0 %v1464, 124
  %v1510 = vpop.permute.xlu0 %1509
  %1511 = vrot.lane.b32.xlu0 %v1465, 124
  %v1512 = vpop.permute.xlu0 %1511
  %1513 = vrot.lane.b32.xlu0 %v1466, 124
  %v1514 = vpop.permute.xlu0 %1513
  %1515 = vrot.lane.b32.xlu0 %v1467, 124
  %v1516 = vpop.permute.xlu0 %1515
  %1517 = vrot.lane.b32.xlu0 %v1468, 124
  %v1518 = vpop.permute.xlu0 %1517
  %1519 = vrot.lane.b32.xlu0 %v1469, 124
  %v1520 = vpop.permute.xlu0 %1519
  %1521 = vrot.lane.b32.xlu0 %v1470, 124
  %v1522 = vpop.permute.xlu0 %1521
  %1523 = vrot.lane.b32.xlu0 %v1471, 124
  %v1524 = vpop.permute.xlu0 %1523
  %1525 = vrot.lane.b32.xlu0 %v1472, 124
  %v1526 = vpop.permute.xlu0 %1525
  %v1527 = vsel %vm372, %v1492, %v1494
  %v1528 = vsel %vm372, %v1496, %v1498
  %v1529 = vsel %vm372, %v1500, %v1502
  %v1530 = vsel %vm372, %v1504, %v1506
  %v1531 = vsel %vm372, %v1508, %v1510
  %v1532 = vsel %vm372, %v1512, %v1514
  %v1533 = vsel %vm372, %v1516, %v1518
  %v1534 = vsel %vm372, %v1520, %v1522
  %v1535 = vsel %vm372, %v1524, %v1526
  %v1554 = vadd.f32 %v1401, %v1527
  %v1555 = vadd.f32 %v1402, %v1494
  %v1556 = vadd.f32 %v1403, %v1528
  %v1557 = vadd.f32 %v1404, %v1498
  %v1558 = vadd.f32 %v1405, %v1529
  %v1559 = vadd.f32 %v1406, %v1502
  %v1560 = vadd.f32 %v1407, %v1530
  %v1561 = vadd.f32 %v1408, %v1506
  %v1562 = vadd.f32 %v1409, %v1531
  %v1563 = vadd.f32 %v1410, %v1510
  %v1564 = vadd.f32 %v1411, %v1532
  %v1565 = vadd.f32 %v1412, %v1514
  %v1566 = vadd.f32 %v1413, %v1533
  %v1567 = vadd.f32 %v1414, %v1518
  %v1568 = vadd.f32 %v1415, %v1534
  %v1569 = vadd.f32 %v1416, %v1522
  %v1570 = vadd.f32 %v1417, %v1535
  %v1571 = vadd.f32 %v1418, %v1526
  %1572 = vset.pattern.permute.xlu0 5
  %1573 = vperm.xlu0 %1572, %v157
  %v1574 = vpop.permute.xlu0 %1573
  %1576 = vset.pattern.permute.xlu0 5
  %1577 = vperm.xlu0 %1576, %v158
  %v1578 = vpop.permute.xlu0 %1577
  %1580 = vset.pattern.permute.xlu0 5
  %1581 = vperm.xlu0 %1580, %v159
  %v1582 = vpop.permute.xlu0 %1581
  %1584 = vset.pattern.permute.xlu0 5
  %1585 = vperm.xlu0 %1584, %v160
  %v1586 = vpop.permute.xlu0 %1585
  %1588 = vset.pattern.permute.xlu0 5
  %1589 = vperm.xlu0 %1588, %v161
  %v1590 = vpop.permute.xlu0 %1589
  %1592 = vset.pattern.permute.xlu0 5
  %1593 = vperm.xlu0 %1592, %v162
  %v1594 = vpop.permute.xlu0 %1593
  %1596 = vset.pattern.permute.xlu0 5
  %1597 = vperm.xlu0 %1596, %v163
  %v1598 = vpop.permute.xlu0 %1597
  %1600 = vset.pattern.permute.xlu0 5
  %1601 = vperm.xlu0 %1600, %v164
  %v1602 = vpop.permute.xlu0 %1601
  %1604 = vset.pattern.permute.xlu0 5
  %1605 = vperm.xlu0 %1604, %v165
  %v1606 = vpop.permute.xlu0 %1605
  %v1608 = vmul.f32 %v860, %v1574
  %v1609 = vmul.f32 %v870, %v1574
  %v1610 = vmul.f32 %v861, %v1578
  %v1611 = vmul.f32 %v871, %v1578
  %v1612 = vmul.f32 %v862, %v1582
  %v1613 = vmul.f32 %v872, %v1582
  %v1614 = vmul.f32 %v863, %v1586
  %v1615 = vmul.f32 %v873, %v1586
  %v1616 = vmul.f32 %v864, %v1590
  %v1617 = vmul.f32 %v874, %v1590
  %v1618 = vmul.f32 %v865, %v1594
  %v1619 = vmul.f32 %v875, %v1594
  %v1620 = vmul.f32 %v866, %v1598
  %v1621 = vmul.f32 %v876, %v1598
  %v1622 = vmul.f32 %v867, %v1602
  %v1623 = vmul.f32 %v877, %v1602
  %v1624 = vmul.f32 %v868, %v1606
  %v1625 = vmul.f32 %v878, %v1606
  %1644 = vrot.lane.b32.xlu0 %v1608, 123
  %v1645 = vpop.permute.xlu0 %1644
  %1646 = vrot.lane.b32.xlu0 %v1609, 123
  %v1647 = vpop.permute.xlu0 %1646
  %1648 = vrot.lane.b32.xlu0 %v1610, 123
  %v1649 = vpop.permute.xlu0 %1648
  %1650 = vrot.lane.b32.xlu0 %v1611, 123
  %v1651 = vpop.permute.xlu0 %1650
  %1652 = vrot.lane.b32.xlu0 %v1612, 123
  %v1653 = vpop.permute.xlu0 %1652
  %1654 = vrot.lane.b32.xlu0 %v1613, 123
  %v1655 = vpop.permute.xlu0 %1654
  %1656 = vrot.lane.b32.xlu0 %v1614, 123
  %v1657 = vpop.permute.xlu0 %1656
  %1658 = vrot.lane.b32.xlu0 %v1615, 123
  %v1659 = vpop.permute.xlu0 %1658
  %1660 = vrot.lane.b32.xlu0 %v1616, 123
  %v1661 = vpop.permute.xlu0 %1660
  %1662 = vrot.lane.b32.xlu0 %v1617, 123
  %v1663 = vpop.permute.xlu0 %1662
  %1664 = vrot.lane.b32.xlu0 %v1618, 123
  %v1665 = vpop.permute.xlu0 %1664
  %1666 = vrot.lane.b32.xlu0 %v1619, 123
  %v1667 = vpop.permute.xlu0 %1666
  %1668 = vrot.lane.b32.xlu0 %v1620, 123
  %v1669 = vpop.permute.xlu0 %1668
  %1670 = vrot.lane.b32.xlu0 %v1621, 123
  %v1671 = vpop.permute.xlu0 %1670
  %1672 = vrot.lane.b32.xlu0 %v1622, 123
  %v1673 = vpop.permute.xlu0 %1672
  %1674 = vrot.lane.b32.xlu0 %v1623, 123
  %v1675 = vpop.permute.xlu0 %1674
  %1676 = vrot.lane.b32.xlu0 %v1624, 123
  %v1677 = vpop.permute.xlu0 %1676
  %1678 = vrot.lane.b32.xlu0 %v1625, 123
  %v1679 = vpop.permute.xlu0 %1678
  %v1680 = vsel %vm380, %v1645, %v1647
  %v1681 = vsel %vm380, %v1649, %v1651
  %v1682 = vsel %vm380, %v1653, %v1655
  %v1683 = vsel %vm380, %v1657, %v1659
  %v1684 = vsel %vm380, %v1661, %v1663
  %v1685 = vsel %vm380, %v1665, %v1667
  %v1686 = vsel %vm380, %v1669, %v1671
  %v1687 = vsel %vm380, %v1673, %v1675
  %v1688 = vsel %vm380, %v1677, %v1679
  %v1707 = vadd.f32 %v1554, %v1680
  %v1708 = vadd.f32 %v1555, %v1647
  %v1709 = vadd.f32 %v1556, %v1681
  %v1710 = vadd.f32 %v1557, %v1651
  %v1711 = vadd.f32 %v1558, %v1682
  %v1712 = vadd.f32 %v1559, %v1655
  %v1713 = vadd.f32 %v1560, %v1683
  %v1714 = vadd.f32 %v1561, %v1659
  %v1715 = vadd.f32 %v1562, %v1684
  %v1716 = vadd.f32 %v1563, %v1663
  %v1717 = vadd.f32 %v1564, %v1685
  %v1718 = vadd.f32 %v1565, %v1667
  %v1719 = vadd.f32 %v1566, %v1686
  %v1720 = vadd.f32 %v1567, %v1671
  %v1721 = vadd.f32 %v1568, %v1687
  %v1722 = vadd.f32 %v1569, %v1675
  %v1723 = vadd.f32 %v1570, %v1688
  %v1724 = vadd.f32 %v1571, %v1679
  %1725 = vset.pattern.permute.xlu0 6
  %1726 = vperm.xlu0 %1725, %v157
  %v1727 = vpop.permute.xlu0 %1726
  %1729 = vset.pattern.permute.xlu0 6
  %1730 = vperm.xlu0 %1729, %v158
  %v1731 = vpop.permute.xlu0 %1730
  %1733 = vset.pattern.permute.xlu0 6
  %1734 = vperm.xlu0 %1733, %v159
  %v1735 = vpop.permute.xlu0 %1734
  %1737 = vset.pattern.permute.xlu0 6
  %1738 = vperm.xlu0 %1737, %v160
  %v1739 = vpop.permute.xlu0 %1738
  %1741 = vset.pattern.permute.xlu0 6
  %1742 = vperm.xlu0 %1741, %v161
  %v1743 = vpop.permute.xlu0 %1742
  %1745 = vset.pattern.permute.xlu0 6
  %1746 = vperm.xlu0 %1745, %v162
  %v1747 = vpop.permute.xlu0 %1746
  %1749 = vset.pattern.permute.xlu0 6
  %1750 = vperm.xlu0 %1749, %v163
  %v1751 = vpop.permute.xlu0 %1750
  %1753 = vset.pattern.permute.xlu0 6
  %1754 = vperm.xlu0 %1753, %v164
  %v1755 = vpop.permute.xlu0 %1754
  %1757 = vset.pattern.permute.xlu0 6
  %1758 = vperm.xlu0 %1757, %v165
  %v1759 = vpop.permute.xlu0 %1758
  %v1761 = vmul.f32 %v860, %v1727
  %v1762 = vmul.f32 %v870, %v1727
  %v1763 = vmul.f32 %v861, %v1731
  %v1764 = vmul.f32 %v871, %v1731
  %v1765 = vmul.f32 %v862, %v1735
  %v1766 = vmul.f32 %v872, %v1735
  %v1767 = vmul.f32 %v863, %v1739
  %v1768 = vmul.f32 %v873, %v1739
  %v1769 = vmul.f32 %v864, %v1743
  %v1770 = vmul.f32 %v874, %v1743
  %v1771 = vmul.f32 %v865, %v1747
  %v1772 = vmul.f32 %v875, %v1747
  %v1773 = vmul.f32 %v866, %v1751
  %v1774 = vmul.f32 %v876, %v1751
  %v1775 = vmul.f32 %v867, %v1755
  %v1776 = vmul.f32 %v877, %v1755
  %v1777 = vmul.f32 %v868, %v1759
  %v1778 = vmul.f32 %v878, %v1759
  %1797 = vrot.lane.b32.xlu0 %v1761, 122
  %v1798 = vpop.permute.xlu0 %1797
  %1799 = vrot.lane.b32.xlu0 %v1762, 122
  %v1800 = vpop.permute.xlu0 %1799
  %1801 = vrot.lane.b32.xlu0 %v1763, 122
  %v1802 = vpop.permute.xlu0 %1801
  %1803 = vrot.lane.b32.xlu0 %v1764, 122
  %v1804 = vpop.permute.xlu0 %1803
  %1805 = vrot.lane.b32.xlu0 %v1765, 122
  %v1806 = vpop.permute.xlu0 %1805
  %1807 = vrot.lane.b32.xlu0 %v1766, 122
  %v1808 = vpop.permute.xlu0 %1807
  %1809 = vrot.lane.b32.xlu0 %v1767, 122
  %v1810 = vpop.permute.xlu0 %1809
  %1811 = vrot.lane.b32.xlu0 %v1768, 122
  %v1812 = vpop.permute.xlu0 %1811
  %1813 = vrot.lane.b32.xlu0 %v1769, 122
  %v1814 = vpop.permute.xlu0 %1813
  %1815 = vrot.lane.b32.xlu0 %v1770, 122
  %v1816 = vpop.permute.xlu0 %1815
  %1817 = vrot.lane.b32.xlu0 %v1771, 122
  %v1818 = vpop.permute.xlu0 %1817
  %1819 = vrot.lane.b32.xlu0 %v1772, 122
  %v1820 = vpop.permute.xlu0 %1819
  %1821 = vrot.lane.b32.xlu0 %v1773, 122
  %v1822 = vpop.permute.xlu0 %1821
  %1823 = vrot.lane.b32.xlu0 %v1774, 122
  %v1824 = vpop.permute.xlu0 %1823
  %1825 = vrot.lane.b32.xlu0 %v1775, 122
  %v1826 = vpop.permute.xlu0 %1825
  %1827 = vrot.lane.b32.xlu0 %v1776, 122
  %v1828 = vpop.permute.xlu0 %1827
  %1829 = vrot.lane.b32.xlu0 %v1777, 122
  %v1830 = vpop.permute.xlu0 %1829
  %1831 = vrot.lane.b32.xlu0 %v1778, 122
  %v1832 = vpop.permute.xlu0 %1831
  %v1833 = vsel %vm388, %v1798, %v1800
  %v1834 = vsel %vm388, %v1802, %v1804
  %v1835 = vsel %vm388, %v1806, %v1808
  %v1836 = vsel %vm388, %v1810, %v1812
  %v1837 = vsel %vm388, %v1814, %v1816
  %v1838 = vsel %vm388, %v1818, %v1820
  %v1839 = vsel %vm388, %v1822, %v1824
  %v1840 = vsel %vm388, %v1826, %v1828
  %v1841 = vsel %vm388, %v1830, %v1832
  %v1860 = vadd.f32 %v1707, %v1833
  %v1861 = vadd.f32 %v1708, %v1800
  %v1862 = vadd.f32 %v1709, %v1834
  %v1863 = vadd.f32 %v1710, %v1804
  %v1864 = vadd.f32 %v1711, %v1835
  %v1865 = vadd.f32 %v1712, %v1808
  %v1866 = vadd.f32 %v1713, %v1836
  %v1867 = vadd.f32 %v1714, %v1812
  %v1868 = vadd.f32 %v1715, %v1837
  %v1869 = vadd.f32 %v1716, %v1816
  %v1870 = vadd.f32 %v1717, %v1838
  %v1871 = vadd.f32 %v1718, %v1820
  %v1872 = vadd.f32 %v1719, %v1839
  %v1873 = vadd.f32 %v1720, %v1824
  %v1874 = vadd.f32 %v1721, %v1840
  %v1875 = vadd.f32 %v1722, %v1828
  %v1876 = vadd.f32 %v1723, %v1841
  %v1877 = vadd.f32 %v1724, %v1832
  %1878 = vset.pattern.permute.xlu0 7
  %1879 = vperm.xlu0 %1878, %v157
  %v1880 = vpop.permute.xlu0 %1879
  %1882 = vset.pattern.permute.xlu0 7
  %1883 = vperm.xlu0 %1882, %v158
  %v1884 = vpop.permute.xlu0 %1883
  %1886 = vset.pattern.permute.xlu0 7
  %1887 = vperm.xlu0 %1886, %v159
  %v1888 = vpop.permute.xlu0 %1887
  %1890 = vset.pattern.permute.xlu0 7
  %1891 = vperm.xlu0 %1890, %v160
  %v1892 = vpop.permute.xlu0 %1891
  %1894 = vset.pattern.permute.xlu0 7
  %1895 = vperm.xlu0 %1894, %v161
  %v1896 = vpop.permute.xlu0 %1895
  %1898 = vset.pattern.permute.xlu0 7
  %1899 = vperm.xlu0 %1898, %v162
  %v1900 = vpop.permute.xlu0 %1899
  %1902 = vset.pattern.permute.xlu0 7
  %1903 = vperm.xlu0 %1902, %v163
  %v1904 = vpop.permute.xlu0 %1903
  %1906 = vset.pattern.permute.xlu0 7
  %1907 = vperm.xlu0 %1906, %v164
  %v1908 = vpop.permute.xlu0 %1907
  %1910 = vset.pattern.permute.xlu0 7
  %1911 = vperm.xlu0 %1910, %v165
  %v1912 = vpop.permute.xlu0 %1911
  %v1914 = vmul.f32 %v860, %v1880
  %v1915 = vmul.f32 %v870, %v1880
  %v1916 = vmul.f32 %v861, %v1884
  %v1917 = vmul.f32 %v871, %v1884
  %v1918 = vmul.f32 %v862, %v1888
  %v1919 = vmul.f32 %v872, %v1888
  %v1920 = vmul.f32 %v863, %v1892
  %v1921 = vmul.f32 %v873, %v1892
  %v1922 = vmul.f32 %v864, %v1896
  %v1923 = vmul.f32 %v874, %v1896
  %v1924 = vmul.f32 %v865, %v1900
  %v1925 = vmul.f32 %v875, %v1900
  %v1926 = vmul.f32 %v866, %v1904
  %v1927 = vmul.f32 %v876, %v1904
  %v1928 = vmul.f32 %v867, %v1908
  %v1929 = vmul.f32 %v877, %v1908
  %v1930 = vmul.f32 %v868, %v1912
  %v1931 = vmul.f32 %v878, %v1912
  %1950 = vrot.lane.b32.xlu0 %v1914, 121
  %v1951 = vpop.permute.xlu0 %1950
  %1952 = vrot.lane.b32.xlu0 %v1915, 121
  %v1953 = vpop.permute.xlu0 %1952
  %1954 = vrot.lane.b32.xlu0 %v1916, 121
  %v1955 = vpop.permute.xlu0 %1954
  %1956 = vrot.lane.b32.xlu0 %v1917, 121
  %v1957 = vpop.permute.xlu0 %1956
  %1958 = vrot.lane.b32.xlu0 %v1918, 121
  %v1959 = vpop.permute.xlu0 %1958
  %1960 = vrot.lane.b32.xlu0 %v1919, 121
  %v1961 = vpop.permute.xlu0 %1960
  %1962 = vrot.lane.b32.xlu0 %v1920, 121
  %v1963 = vpop.permute.xlu0 %1962
  %1964 = vrot.lane.b32.xlu0 %v1921, 121
  %v1965 = vpop.permute.xlu0 %1964
  %1966 = vrot.lane.b32.xlu0 %v1922, 121
  %v1967 = vpop.permute.xlu0 %1966
  %1968 = vrot.lane.b32.xlu0 %v1923, 121
  %v1969 = vpop.permute.xlu0 %1968
  %1970 = vrot.lane.b32.xlu0 %v1924, 121
  %v1971 = vpop.permute.xlu0 %1970
  %1972 = vrot.lane.b32.xlu0 %v1925, 121
  %v1973 = vpop.permute.xlu0 %1972
  %1974 = vrot.lane.b32.xlu0 %v1926, 121
  %v1975 = vpop.permute.xlu0 %1974
  %1976 = vrot.lane.b32.xlu0 %v1927, 121
  %v1977 = vpop.permute.xlu0 %1976
  %1978 = vrot.lane.b32.xlu0 %v1928, 121
  %v1979 = vpop.permute.xlu0 %1978
  %1980 = vrot.lane.b32.xlu0 %v1929, 121
  %v1981 = vpop.permute.xlu0 %1980
  %1982 = vrot.lane.b32.xlu0 %v1930, 121
  %v1983 = vpop.permute.xlu0 %1982
  %1984 = vrot.lane.b32.xlu0 %v1931, 121
  %v1985 = vpop.permute.xlu0 %1984
  %v1986 = vsel %vm396, %v1951, %v1953
  %v1987 = vsel %vm396, %v1955, %v1957
  %v1988 = vsel %vm396, %v1959, %v1961
  %v1989 = vsel %vm396, %v1963, %v1965
  %v1990 = vsel %vm396, %v1967, %v1969
  %v1991 = vsel %vm396, %v1971, %v1973
  %v1992 = vsel %vm396, %v1975, %v1977
  %v1993 = vsel %vm396, %v1979, %v1981
  %v1994 = vsel %vm396, %v1983, %v1985
  %v2013 = vadd.f32 %v1860, %v1986
  %v2014 = vadd.f32 %v1861, %v1953
  %v2015 = vadd.f32 %v1862, %v1987
  %v2016 = vadd.f32 %v1863, %v1957
  %v2017 = vadd.f32 %v1864, %v1988
  %v2018 = vadd.f32 %v1865, %v1961
  %v2019 = vadd.f32 %v1866, %v1989
  %v2020 = vadd.f32 %v1867, %v1965
  %v2021 = vadd.f32 %v1868, %v1990
  %v2022 = vadd.f32 %v1869, %v1969
  %v2023 = vadd.f32 %v1870, %v1991
  %v2024 = vadd.f32 %v1871, %v1973
  %v2025 = vadd.f32 %v1872, %v1992
  %v2026 = vadd.f32 %v1873, %v1977
  %v2027 = vadd.f32 %v1874, %v1993
  %v2028 = vadd.f32 %v1875, %v1981
  %v2029 = vadd.f32 %v1876, %v1994
  %v2030 = vadd.f32 %v1877, %v1985
  %2031 = vset.pattern.permute.xlu0 8
  %2032 = vperm.xlu0 %2031, %v157
  %v2033 = vpop.permute.xlu0 %2032
  %2035 = vset.pattern.permute.xlu0 8
  %2036 = vperm.xlu0 %2035, %v158
  %v2037 = vpop.permute.xlu0 %2036
  %2039 = vset.pattern.permute.xlu0 8
  %2040 = vperm.xlu0 %2039, %v159
  %v2041 = vpop.permute.xlu0 %2040
  %2043 = vset.pattern.permute.xlu0 8
  %2044 = vperm.xlu0 %2043, %v160
  %v2045 = vpop.permute.xlu0 %2044
  %2047 = vset.pattern.permute.xlu0 8
  %2048 = vperm.xlu0 %2047, %v161
  %v2049 = vpop.permute.xlu0 %2048
  %2051 = vset.pattern.permute.xlu0 8
  %2052 = vperm.xlu0 %2051, %v162
  %v2053 = vpop.permute.xlu0 %2052
  %2055 = vset.pattern.permute.xlu0 8
  %2056 = vperm.xlu0 %2055, %v163
  %v2057 = vpop.permute.xlu0 %2056
  %2059 = vset.pattern.permute.xlu0 8
  %2060 = vperm.xlu0 %2059, %v164
  %v2061 = vpop.permute.xlu0 %2060
  %2063 = vset.pattern.permute.xlu0 8
  %2064 = vperm.xlu0 %2063, %v165
  %v2065 = vpop.permute.xlu0 %2064
  %v2067 = vmul.f32 %v860, %v2033
  %v2068 = vmul.f32 %v870, %v2033
  %v2069 = vmul.f32 %v861, %v2037
  %v2070 = vmul.f32 %v871, %v2037
  %v2071 = vmul.f32 %v862, %v2041
  %v2072 = vmul.f32 %v872, %v2041
  %v2073 = vmul.f32 %v863, %v2045
  %v2074 = vmul.f32 %v873, %v2045
  %v2075 = vmul.f32 %v864, %v2049
  %v2076 = vmul.f32 %v874, %v2049
  %v2077 = vmul.f32 %v865, %v2053
  %v2078 = vmul.f32 %v875, %v2053
  %v2079 = vmul.f32 %v866, %v2057
  %v2080 = vmul.f32 %v876, %v2057
  %v2081 = vmul.f32 %v867, %v2061
  %v2082 = vmul.f32 %v877, %v2061
  %v2083 = vmul.f32 %v868, %v2065
  %v2084 = vmul.f32 %v878, %v2065
  %2103 = vrot.lane.b32.xlu0 %v2067, 120
  %v2104 = vpop.permute.xlu0 %2103
  %2105 = vrot.lane.b32.xlu0 %v2068, 120
  %v2106 = vpop.permute.xlu0 %2105
  %2107 = vrot.lane.b32.xlu0 %v2069, 120
  %v2108 = vpop.permute.xlu0 %2107
  %2109 = vrot.lane.b32.xlu0 %v2070, 120
  %v2110 = vpop.permute.xlu0 %2109
  %2111 = vrot.lane.b32.xlu0 %v2071, 120
  %v2112 = vpop.permute.xlu0 %2111
  %2113 = vrot.lane.b32.xlu0 %v2072, 120
  %v2114 = vpop.permute.xlu0 %2113
  %2115 = vrot.lane.b32.xlu0 %v2073, 120
  %v2116 = vpop.permute.xlu0 %2115
  %2117 = vrot.lane.b32.xlu0 %v2074, 120
  %v2118 = vpop.permute.xlu0 %2117
  %2119 = vrot.lane.b32.xlu0 %v2075, 120
  %v2120 = vpop.permute.xlu0 %2119
  %2121 = vrot.lane.b32.xlu0 %v2076, 120
  %v2122 = vpop.permute.xlu0 %2121
  %2123 = vrot.lane.b32.xlu0 %v2077, 120
  %v2124 = vpop.permute.xlu0 %2123
  %2125 = vrot.lane.b32.xlu0 %v2078, 120
  %v2126 = vpop.permute.xlu0 %2125
  %2127 = vrot.lane.b32.xlu0 %v2079, 120
  %v2128 = vpop.permute.xlu0 %2127
  %2129 = vrot.lane.b32.xlu0 %v2080, 120
  %v2130 = vpop.permute.xlu0 %2129
  %2131 = vrot.lane.b32.xlu0 %v2081, 120
  %v2132 = vpop.permute.xlu0 %2131
  %2133 = vrot.lane.b32.xlu0 %v2082, 120
  %v2134 = vpop.permute.xlu0 %2133
  %2135 = vrot.lane.b32.xlu0 %v2083, 120
  %v2136 = vpop.permute.xlu0 %2135
  %2137 = vrot.lane.b32.xlu0 %v2084, 120
  %v2138 = vpop.permute.xlu0 %2137
  %v2139 = vsel %vm404, %v2104, %v2106
  %v2140 = vsel %vm404, %v2108, %v2110
  %v2141 = vsel %vm404, %v2112, %v2114
  %v2142 = vsel %vm404, %v2116, %v2118
  %v2143 = vsel %vm404, %v2120, %v2122
  %v2144 = vsel %vm404, %v2124, %v2126
  %v2145 = vsel %vm404, %v2128, %v2130
  %v2146 = vsel %vm404, %v2132, %v2134
  %v2147 = vsel %vm404, %v2136, %v2138
  %v2166 = vadd.f32 %v2013, %v2139
  %v2167 = vadd.f32 %v2014, %v2106
  %v2168 = vadd.f32 %v2015, %v2140
  %v2169 = vadd.f32 %v2016, %v2110
  %v2170 = vadd.f32 %v2017, %v2141
  %v2171 = vadd.f32 %v2018, %v2114
  %v2172 = vadd.f32 %v2019, %v2142
  %v2173 = vadd.f32 %v2020, %v2118
  %v2174 = vadd.f32 %v2021, %v2143
  %v2175 = vadd.f32 %v2022, %v2122
  %v2176 = vadd.f32 %v2023, %v2144
  %v2177 = vadd.f32 %v2024, %v2126
  %v2178 = vadd.f32 %v2025, %v2145
  %v2179 = vadd.f32 %v2026, %v2130
  %v2180 = vadd.f32 %v2027, %v2146
  %v2181 = vadd.f32 %v2028, %v2134
  %v2182 = vadd.f32 %v2029, %v2147
  %v2183 = vadd.f32 %v2030, %v2138
  %2184 = vset.pattern.permute.xlu0 9
  %2185 = vperm.xlu0 %2184, %v157
  %v2186 = vpop.permute.xlu0 %2185
  %2188 = vset.pattern.permute.xlu0 9
  %2189 = vperm.xlu0 %2188, %v158
  %v2190 = vpop.permute.xlu0 %2189
  %2192 = vset.pattern.permute.xlu0 9
  %2193 = vperm.xlu0 %2192, %v159
  %v2194 = vpop.permute.xlu0 %2193
  %2196 = vset.pattern.permute.xlu0 9
  %2197 = vperm.xlu0 %2196, %v160
  %v2198 = vpop.permute.xlu0 %2197
  %2200 = vset.pattern.permute.xlu0 9
  %2201 = vperm.xlu0 %2200, %v161
  %v2202 = vpop.permute.xlu0 %2201
  %2204 = vset.pattern.permute.xlu0 9
  %2205 = vperm.xlu0 %2204, %v162
  %v2206 = vpop.permute.xlu0 %2205
  %2208 = vset.pattern.permute.xlu0 9
  %2209 = vperm.xlu0 %2208, %v163
  %v2210 = vpop.permute.xlu0 %2209
  %2212 = vset.pattern.permute.xlu0 9
  %2213 = vperm.xlu0 %2212, %v164
  %v2214 = vpop.permute.xlu0 %2213
  %2216 = vset.pattern.permute.xlu0 9
  %2217 = vperm.xlu0 %2216, %v165
  %v2218 = vpop.permute.xlu0 %2217
  %v2220 = vmul.f32 %v860, %v2186
  %v2221 = vmul.f32 %v870, %v2186
  %v2222 = vmul.f32 %v861, %v2190
  %v2223 = vmul.f32 %v871, %v2190
  %v2224 = vmul.f32 %v862, %v2194
  %v2225 = vmul.f32 %v872, %v2194
  %v2226 = vmul.f32 %v863, %v2198
  %v2227 = vmul.f32 %v873, %v2198
  %v2228 = vmul.f32 %v864, %v2202
  %v2229 = vmul.f32 %v874, %v2202
  %v2230 = vmul.f32 %v865, %v2206
  %v2231 = vmul.f32 %v875, %v2206
  %v2232 = vmul.f32 %v866, %v2210
  %v2233 = vmul.f32 %v876, %v2210
  %v2234 = vmul.f32 %v867, %v2214
  %v2235 = vmul.f32 %v877, %v2214
  %v2236 = vmul.f32 %v868, %v2218
  %v2237 = vmul.f32 %v878, %v2218
  %2256 = vrot.lane.b32.xlu0 %v2220, 119
  %v2257 = vpop.permute.xlu0 %2256
  %2258 = vrot.lane.b32.xlu0 %v2221, 119
  %v2259 = vpop.permute.xlu0 %2258
  %2260 = vrot.lane.b32.xlu0 %v2222, 119
  %v2261 = vpop.permute.xlu0 %2260
  %2262 = vrot.lane.b32.xlu0 %v2223, 119
  %v2263 = vpop.permute.xlu0 %2262
  %2264 = vrot.lane.b32.xlu0 %v2224, 119
  %v2265 = vpop.permute.xlu0 %2264
  %2266 = vrot.lane.b32.xlu0 %v2225, 119
  %v2267 = vpop.permute.xlu0 %2266
  %2268 = vrot.lane.b32.xlu0 %v2226, 119
  %v2269 = vpop.permute.xlu0 %2268
  %2270 = vrot.lane.b32.xlu0 %v2227, 119
  %v2271 = vpop.permute.xlu0 %2270
  %2272 = vrot.lane.b32.xlu0 %v2228, 119
  %v2273 = vpop.permute.xlu0 %2272
  %2274 = vrot.lane.b32.xlu0 %v2229, 119
  %v2275 = vpop.permute.xlu0 %2274
  %2276 = vrot.lane.b32.xlu0 %v2230, 119
  %v2277 = vpop.permute.xlu0 %2276
  %2278 = vrot.lane.b32.xlu0 %v2231, 119
  %v2279 = vpop.permute.xlu0 %2278
  %2280 = vrot.lane.b32.xlu0 %v2232, 119
  %v2281 = vpop.permute.xlu0 %2280
  %2282 = vrot.lane.b32.xlu0 %v2233, 119
  %v2283 = vpop.permute.xlu0 %2282
  %2284 = vrot.lane.b32.xlu0 %v2234, 119
  %v2285 = vpop.permute.xlu0 %2284
  %2286 = vrot.lane.b32.xlu0 %v2235, 119
  %v2287 = vpop.permute.xlu0 %2286
  %2288 = vrot.lane.b32.xlu0 %v2236, 119
  %v2289 = vpop.permute.xlu0 %2288
  %2290 = vrot.lane.b32.xlu0 %v2237, 119
  %v2291 = vpop.permute.xlu0 %2290
  %vm2292 = vcmask 973824
  %v2293 = vsel %vm2292, %v2257, %v2259
  %v2294 = vsel %vm2292, %v2261, %v2263
  %v2295 = vsel %vm2292, %v2265, %v2267
  %v2296 = vsel %vm2292, %v2269, %v2271
  %v2297 = vsel %vm2292, %v2273, %v2275
  %v2298 = vsel %vm2292, %v2277, %v2279
  %v2299 = vsel %vm2292, %v2281, %v2283
  %v2300 = vsel %vm2292, %v2285, %v2287
  %v2301 = vsel %vm2292, %v2289, %v2291
  %v2320 = vadd.f32 %v2166, %v2293
  %v2321 = vadd.f32 %v2167, %v2259
  %v2322 = vadd.f32 %v2168, %v2294
  %v2323 = vadd.f32 %v2169, %v2263
  %v2324 = vadd.f32 %v2170, %v2295
  %v2325 = vadd.f32 %v2171, %v2267
  %v2326 = vadd.f32 %v2172, %v2296
  %v2327 = vadd.f32 %v2173, %v2271
  %v2328 = vadd.f32 %v2174, %v2297
  %v2329 = vadd.f32 %v2175, %v2275
  %v2330 = vadd.f32 %v2176, %v2298
  %v2331 = vadd.f32 %v2177, %v2279
  %v2332 = vadd.f32 %v2178, %v2299
  %v2333 = vadd.f32 %v2179, %v2283
  %v2334 = vadd.f32 %v2180, %v2300
  %v2335 = vadd.f32 %v2181, %v2287
  %v2336 = vadd.f32 %v2182, %v2301
  %v2337 = vadd.f32 %v2183, %v2291
  %2339 = vset.pattern.permute.xlu0 0
  %2340 = vperm.xlu0 %2339, %v166
  %v2341 = vpop.permute.xlu0 %2340
  %2344 = vset.pattern.permute.xlu0 0
  %2345 = vperm.xlu0 %2344, %v167
  %v2346 = vpop.permute.xlu0 %2345
  %2349 = vset.pattern.permute.xlu0 0
  %2350 = vperm.xlu0 %2349, %v168
  %v2351 = vpop.permute.xlu0 %2350
  %2354 = vset.pattern.permute.xlu0 0
  %2355 = vperm.xlu0 %2354, %v169
  %v2356 = vpop.permute.xlu0 %2355
  %2359 = vset.pattern.permute.xlu0 0
  %2360 = vperm.xlu0 %2359, %v170
  %v2361 = vpop.permute.xlu0 %2360
  %2364 = vset.pattern.permute.xlu0 0
  %2365 = vperm.xlu0 %2364, %v171
  %v2366 = vpop.permute.xlu0 %2365
  %2369 = vset.pattern.permute.xlu0 0
  %2370 = vperm.xlu0 %2369, %v172
  %v2371 = vpop.permute.xlu0 %2370
  %2374 = vset.pattern.permute.xlu0 0
  %2375 = vperm.xlu0 %2374, %v173
  %v2376 = vpop.permute.xlu0 %2375
  %2379 = vset.pattern.permute.xlu0 0
  %2380 = vperm.xlu0 %2379, %v174
  %v2381 = vpop.permute.xlu0 %2380
  %v2383 = vadd.f32 %v2320, %v2341
  %v2384 = vadd.f32 %v2321, %v2341
  %v2385 = vadd.f32 %v2322, %v2346
  %v2386 = vadd.f32 %v2323, %v2346
  %v2387 = vadd.f32 %v2324, %v2351
  %v2388 = vadd.f32 %v2325, %v2351
  %v2389 = vadd.f32 %v2326, %v2356
  %v2390 = vadd.f32 %v2327, %v2356
  %v2391 = vadd.f32 %v2328, %v2361
  %v2392 = vadd.f32 %v2329, %v2361
  %v2393 = vadd.f32 %v2330, %v2366
  %v2394 = vadd.f32 %v2331, %v2366
  %v2395 = vadd.f32 %v2332, %v2371
  %v2396 = vadd.f32 %v2333, %v2371
  %v2397 = vadd.f32 %v2334, %v2376
  %v2398 = vadd.f32 %v2335, %v2376
  %v2399 = vadd.f32 %v2336, %v2381
  %v2400 = vadd.f32 %v2337, %v2381
  %v2401 = vmax.f32 %v2383, 0.0
  %v2402 = vmax.f32 %v2384, 0.0
  %v2403 = vmax.f32 %v2385, 0.0
  %v2404 = vmax.f32 %v2386, 0.0
  %v2405 = vmax.f32 %v2387, 0.0
  %v2406 = vmax.f32 %v2388, 0.0
  %v2407 = vmax.f32 %v2389, 0.0
  %v2408 = vmax.f32 %v2390, 0.0
  %v2409 = vmax.f32 %v2391, 0.0
  %v2410 = vmax.f32 %v2392, 0.0
  %v2411 = vmax.f32 %v2393, 0.0
  %v2412 = vmax.f32 %v2394, 0.0
  %v2413 = vmax.f32 %v2395, 0.0
  %v2414 = vmax.f32 %v2396, 0.0
  %v2415 = vmax.f32 %v2397, 0.0
  %v2416 = vmax.f32 %v2398, 0.0
  %v2417 = vmax.f32 %v2399, 0.0
  %v2418 = vmax.f32 %v2400, 0.0
  %v2419 = vpack.c.bf16 %v2403, %v2401
  %v2420 = vpack.c.bf16 %v2404, %v2402
  %v2421 = vpack.c.bf16 %v2407, %v2405
  %v2422 = vpack.c.bf16 %v2408, %v2406
  %v2423 = vpack.c.bf16 %v2411, %v2409
  %v2424 = vpack.c.bf16 %v2412, %v2410
  %v2425 = vpack.c.bf16 %v2415, %v2413
  %v2426 = vpack.c.bf16 %v2416, %v2414
  %v2427 = vpack.c.bf16 %v2417, %v2417
  %v2428 = vpack.c.bf16 %v2418, %v2418
  %v2454 = vunpack.c.l.b16 %v181
  %v2455 = vunpack.c.l.b16 %v182
  %v2456 = vunpack.c.l.b16 %v183
  %v2457 = vunpack.c.l.b16 %v184
  %v2458 = vunpack.c.l.b16 %v185
  %v2459 = vunpack.c.l.b16 %v186
  %v2460 = vunpack.c.l.b16 %v187
  %v2461 = vunpack.c.l.b16 %v188
  %v2462 = vunpack.c.l.b16 %v189
  %v2463 = vunpack.c.l.b16 %v190
  %v2464 = vunpack.c.l.b16 %v191
  %v2465 = vunpack.c.l.b16 %v192
  %v2466 = vunpack.c.l.b16 %v193
  %v2467 = vunpack.c.l.b16 %v194
  %v2468 = vunpack.c.l.b16 %v195
  %v2469 = vunpack.c.l.b16 %v196
  %v2470 = vunpack.c.l.b16 %v197
  %v2471 = vunpack.c.l.b16 %v198
  %v2472 = vunpack.c.l.b16 %v199
  %v2473 = vunpack.c.l.b16 %v200
  %v2474 = vunpack.c.l.b16 %v201
  %v2475 = vunpack.c.l.b16 %v202
  %v2476 = vunpack.c.l.b16 %v203
  %v2477 = vunpack.c.l.b16 %v204
  %v2478 = vunpack.c.l.b16 %v205
  %v2479 = vpack.c.b16 %v2455, %v2454
  %v2480 = vpack.c.b16 %v2457, %v2456
  %v2481 = vpack.c.b16 %v2459, %v2458
  %v2482 = vpack.c.b16 %v2461, %v2460
  %v2483 = vpack.c.b16 %v2463, %v2462
  %v2484 = vpack.c.b16 %v2465, %v2464
  %v2485 = vpack.c.b16 %v2467, %v2466
  %v2486 = vpack.c.b16 %v2469, %v2468
  %v2487 = vpack.c.b16 %v2471, %v2470
  %v2488 = vpack.c.b16 %v2473, %v2472
  %v2489 = vpack.c.b16 %v2475, %v2474
  %v2490 = vpack.c.b16 %v2477, %v2476
  %v2491 = vpack.c.b16 %v2478, %v2478
  %vm2504 = vcmask 580608
  %v2506 = vsel %vm2504, %v2420, 0
  %v2509 = vsel %vm2504, %v2422, 0
  %v2512 = vsel %vm2504, %v2424, 0
  %v2515 = vsel %vm2504, %v2426, 0
  %v2518 = vsel %vm2504, %v2428, 0
  %vm2520 = vcmask 1042432
  %v2521 = vsel %vm2520, 4294967295, 65535
  %v2522 = vsel %vm437, %v2521, 0
  %v2524 = vand.u32 %v2491, %v2522
  %2526 = vmatpush.bf16.msra.mxu0 %v2486
  %2527 = vmatpush.bf16.msra.mxu0 %v2485
  %2528 = vmatpush.bf16.msra.mxu0 %v2484
  %2529 = vmatpush.bf16.msra.mxu0 %v2483
  %2530 = vmatpush.bf16.msra.mxu0 %v2482
  %2531 = vmatpush.bf16.msra.mxu0 %v2481
  %2532 = vmatpush.bf16.msra.mxu0 %v2480
  %2533 = vmatpush.bf16.msra.mxu0 %v2479
  %2534 = vmatmul.bf16.gmra.mxu0 %v2419
  %v2535 = vpop.f32.mrf.mxu0
  %v2536 = vadd.f32 0.0, %v2535
  %v2537 = vpop.f32.mrf.mxu0
  %v2538 = vadd.f32 0.0, %v2537
  %2539 = vmatmul.bf16.gmra.mxu0 %v2421
  %v2540 = vpop.f32.mrf.mxu0
  %v2541 = vadd.f32 0.0, %v2540
  %v2542 = vpop.f32.mrf.mxu0
  %v2543 = vadd.f32 0.0, %v2542
  %2544 = vmatmul.bf16.gmra.mxu0 %v2423
  %v2545 = vpop.f32.mrf.mxu0
  %v2546 = vadd.f32 0.0, %v2545
  %v2547 = vpop.f32.mrf.mxu0
  %v2548 = vadd.f32 0.0, %v2547
  %2549 = vmatmul.bf16.gmra.mxu0 %v2425
  %v2550 = vpop.f32.mrf.mxu0
  %v2551 = vadd.f32 0.0, %v2550
  %v2552 = vpop.f32.mrf.mxu0
  %v2553 = vadd.f32 0.0, %v2552
  %2554 = vmatmul.bf16.gmra.mxu0 %v2427
  %v2555 = vpop.f32.mrf.mxu0
  %v2556 = vadd.f32 0.0, %v2555
  %v2557 = vpop.f32.mrf.mxu0
  %2558 = vdwg.mxu0
  %2559 = vmatpush.bf16.msra.mxu0 0
  %2560 = vmatpush.bf16.msra.mxu0 0
  %2561 = vmatpush.bf16.msra.mxu0 0
  %2562 = vmatpush.bf16.msra.mxu0 %v2524
  %2563 = vmatpush.bf16.msra.mxu0 %v2490
  %2564 = vmatpush.bf16.msra.mxu0 %v2489
  %2565 = vmatpush.bf16.msra.mxu0 %v2488
  %2566 = vmatpush.bf16.msra.mxu0 %v2487
  %2567 = vmatmul.bf16.gmra.mxu0 %v2506
  %v2568 = vpop.f32.mrf.mxu0
  %v2569 = vadd.f32 %v2536, %v2568
  %v2570 = vpop.f32.mrf.mxu0
  %v2571 = vadd.f32 %v2538, %v2570
  %2572 = vmatmul.bf16.gmra.mxu0 %v2509
  %v2573 = vpop.f32.mrf.mxu0
  %v2574 = vadd.f32 %v2541, %v2573
  %v2575 = vpop.f32.mrf.mxu0
  %v2576 = vadd.f32 %v2543, %v2575
  %2577 = vmatmul.bf16.gmra.mxu0 %v2512
  %v2578 = vpop.f32.mrf.mxu0
  %v2579 = vadd.f32 %v2546, %v2578
  %v2580 = vpop.f32.mrf.mxu0
  %v2581 = vadd.f32 %v2548, %v2580
  %2582 = vmatmul.bf16.gmra.mxu0 %v2515
  %v2583 = vpop.f32.mrf.mxu0
  %v2584 = vadd.f32 %v2551, %v2583
  %v2585 = vpop.f32.mrf.mxu0
  %v2586 = vadd.f32 %v2553, %v2585
  %2587 = vmatmul.bf16.gmra.mxu0 %v2518
  %v2588 = vpop.f32.mrf.mxu0
  %v2589 = vadd.f32 %v2556, %v2588
  %v2590 = vpop.f32.mrf.mxu0
  %2591 = vdwg.mxu0
  %v2592 = vpack.c.bf16 %v2571, %v2569
  %v2593 = vpack.c.bf16 %v2576, %v2574
  %v2594 = vpack.c.bf16 %v2581, %v2579
  %v2595 = vpack.c.bf16 %v2586, %v2584
  %v2596 = vpack.c.bf16 %v2589, %v2589
  %2598 = vset.pattern.permute.xlu0 0
  %2599 = vperm.xlu0 %2598, %v178
  %v2600 = vpop.permute.xlu0 %2599
  %2603 = vset.pattern.permute.xlu0 0
  %2604 = vperm.xlu0 %2603, %v179
  %v2605 = vpop.permute.xlu0 %2604
  %2608 = vset.pattern.permute.xlu0 0
  %2609 = vperm.xlu0 %2608, %v180
  %v2610 = vpop.permute.xlu0 %2609
  %v2615 = vunpack.c.l.b16 %v175
  %v2616 = vunpack.c.l.b16 %v176
  %v2617 = vunpack.c.l.b16 %v177
  %v2618 = vpack.c.b16 %v2616, %v2615
  %v2619 = vpack.c.b16 %v2617, %v2617
  %v2621 = vsel %vm433, %v2618, 0
  %v2624 = vsel %vm433, %v2619, 0
  %v2627 = vsel %vm437, %v2596, 0
  %2629 = vmatpush.bf16.msra.mxu0 0
  %2630 = vmatpush.bf16.msra.mxu0 0
  %2631 = vmatpush.bf16.msra.mxu0 0
  %2632 = vmatpush.bf16.msra.mxu0 %v2627
  %2633 = vmatpush.bf16.msra.mxu0 %v2595
  %2634 = vmatpush.bf16.msra.mxu0 %v2594
  %2635 = vmatpush.bf16.msra.mxu0 %v2593
  %2636 = vmatpush.bf16.msra.mxu0 %v2592
  %2637 = vmatmul.bf16.gmra.mxu0 %v2621
  %v2638 = vpop.f32.mrf.mxu0
  %v2639 = vadd.f32 %v2600, %v2638
  %v2640 = vpop.f32.mrf.mxu0
  %v2641 = vadd.f32 %v2605, %v2640
  %2642 = vmatmul.bf16.gmra.mxu0 %v2624
  %v2643 = vpop.f32.mrf.mxu0
  %v2644 = vadd.f32 %v2610, %v2643
  %v2645 = vpop.f32.mrf.mxu0
  %2646 = vdwg.mxu0
  %v2647 = vpack.c.bf16 %v2641, %v2639
  %v2648 = vpack.c.bf16 %v2644, %v2644
  %2650 = vset.pattern.permute.xlu0 0
  %2651 = vperm.xlu0 %2650, %v224
  %v2652 = vpop.permute.xlu0 %2651
  %2655 = vset.pattern.permute.xlu0 0
  %2656 = vperm.xlu0 %2655, %v225
  %v2657 = vpop.permute.xlu0 %2656
  %2660 = vset.pattern.permute.xlu0 0
  %2661 = vperm.xlu0 %2660, %v226
  %v2662 = vpop.permute.xlu0 %2661
  %2665 = vset.pattern.permute.xlu0 0
  %2666 = vperm.xlu0 %2665, %v227
  %v2667 = vpop.permute.xlu0 %2666
  %2670 = vset.pattern.permute.xlu0 0
  %2671 = vperm.xlu0 %2670, %v228
  %v2672 = vpop.permute.xlu0 %2671
  %2675 = vset.pattern.permute.xlu0 0
  %2676 = vperm.xlu0 %2675, %v229
  %v2677 = vpop.permute.xlu0 %2676
  %2680 = vset.pattern.permute.xlu0 0
  %2681 = vperm.xlu0 %2680, %v230
  %v2682 = vpop.permute.xlu0 %2681
  %2685 = vset.pattern.permute.xlu0 0
  %2686 = vperm.xlu0 %2685, %v231
  %v2687 = vpop.permute.xlu0 %2686
  %2690 = vset.pattern.permute.xlu0 0
  %2691 = vperm.xlu0 %2690, %v232
  %v2692 = vpop.permute.xlu0 %2691
  %2695 = vset.pattern.permute.xlu0 0
  %2696 = vperm.xlu0 %2695, %v233
  %v2697 = vpop.permute.xlu0 %2696
  %2700 = vset.pattern.permute.xlu0 0
  %2701 = vperm.xlu0 %2700, %v234
  %v2702 = vpop.permute.xlu0 %2701
  %2705 = vset.pattern.permute.xlu0 0
  %2706 = vperm.xlu0 %2705, %v235
  %v2707 = vpop.permute.xlu0 %2706
  %2710 = vset.pattern.permute.xlu0 0
  %2711 = vperm.xlu0 %2710, %v236
  %v2712 = vpop.permute.xlu0 %2711
  %2715 = vset.pattern.permute.xlu0 0
  %2716 = vperm.xlu0 %2715, %v237
  %v2717 = vpop.permute.xlu0 %2716
  %2720 = vset.pattern.permute.xlu0 0
  %2721 = vperm.xlu0 %2720, %v238
  %v2722 = vpop.permute.xlu0 %2721
  %2725 = vset.pattern.permute.xlu0 0
  %2726 = vperm.xlu0 %2725, %v239
  %v2727 = vpop.permute.xlu0 %2726
  %2730 = vset.pattern.permute.xlu0 0
  %2731 = vperm.xlu0 %2730, %v240
  %v2732 = vpop.permute.xlu0 %2731
  %2735 = vset.pattern.permute.xlu0 0
  %2736 = vperm.xlu0 %2735, %v241
  %v2737 = vpop.permute.xlu0 %2736
  %v2757 = vunpack.c.l.b16 %v206
  %v2758 = vunpack.c.l.b16 %v207
  %v2759 = vunpack.c.l.b16 %v208
  %v2760 = vunpack.c.l.b16 %v209
  %v2761 = vunpack.c.l.b16 %v210
  %v2762 = vunpack.c.l.b16 %v211
  %v2763 = vunpack.c.l.b16 %v212
  %v2764 = vunpack.c.l.b16 %v213
  %v2765 = vunpack.c.l.b16 %v214
  %v2766 = vunpack.c.l.b16 %v215
  %v2767 = vunpack.c.l.b16 %v216
  %v2768 = vunpack.c.l.b16 %v217
  %v2769 = vunpack.c.l.b16 %v218
  %v2770 = vunpack.c.l.b16 %v219
  %v2771 = vunpack.c.l.b16 %v220
  %v2772 = vunpack.c.l.b16 %v221
  %v2773 = vunpack.c.l.b16 %v222
  %v2774 = vunpack.c.l.b16 %v223
  %v2775 = vpack.c.b16 %v2758, %v2757
  %v2776 = vpack.c.b16 %v2760, %v2759
  %v2777 = vpack.c.b16 %v2762, %v2761
  %v2778 = vpack.c.b16 %v2764, %v2763
  %v2779 = vpack.c.b16 %v2766, %v2765
  %v2780 = vpack.c.b16 %v2768, %v2767
  %v2781 = vpack.c.b16 %v2770, %v2769
  %v2782 = vpack.c.b16 %v2772, %v2771
  %v2783 = vpack.c.b16 %v2774, %v2773
  %vm2784 = vcmask 195584
  %v2786 = vsel %vm2784, %v2775, 0
  %v2789 = vsel %vm2784, %v2776, 0
  %v2792 = vsel %vm2784, %v2777, 0
  %v2795 = vsel %vm2784, %v2778, 0
  %v2798 = vsel %vm2784, %v2779, 0
  %v2801 = vsel %vm2784, %v2780, 0
  %v2804 = vsel %vm2784, %v2781, 0
  %v2807 = vsel %vm2784, %v2782, 0
  %v2810 = vsel %vm2784, %v2783, 0
  %v2813 = vsel %vm437, %v2648, 0
  %2815 = vmatpush.bf16.msra.mxu0 0
  %2816 = vmatpush.bf16.msra.mxu0 0
  %2817 = vmatpush.bf16.msra.mxu0 0
  %2818 = vmatpush.bf16.msra.mxu0 0
  %2819 = vmatpush.bf16.msra.mxu0 0
  %2820 = vmatpush.bf16.msra.mxu0 0
  %2821 = vmatpush.bf16.msra.mxu0 %v2813
  %2822 = vmatpush.bf16.msra.mxu0 %v2647
  %2823 = vmatmul.bf16.gmra.mxu0 %v2786
  %v2824 = vpop.f32.mrf.mxu0
  %v2825 = vadd.f32 %v2652, %v2824
  %v2826 = vpop.f32.mrf.mxu0
  %v2827 = vadd.f32 %v2657, %v2826
  %2828 = vmatmul.bf16.gmra.mxu0 %v2789
  %v2829 = vpop.f32.mrf.mxu0
  %v2830 = vadd.f32 %v2662, %v2829
  %v2831 = vpop.f32.mrf.mxu0
  %v2832 = vadd.f32 %v2667, %v2831
  %2833 = vmatmul.bf16.gmra.mxu0 %v2792
  %v2834 = vpop.f32.mrf.mxu0
  %v2835 = vadd.f32 %v2672, %v2834
  %v2836 = vpop.f32.mrf.mxu0
  %v2837 = vadd.f32 %v2677, %v2836
  %2838 = vmatmul.bf16.gmra.mxu0 %v2795
  %v2839 = vpop.f32.mrf.mxu0
  %v2840 = vadd.f32 %v2682, %v2839
  %v2841 = vpop.f32.mrf.mxu0
  %v2842 = vadd.f32 %v2687, %v2841
  %2843 = vmatmul.bf16.gmra.mxu0 %v2798
  %v2844 = vpop.f32.mrf.mxu0
  %v2845 = vadd.f32 %v2692, %v2844
  %v2846 = vpop.f32.mrf.mxu0
  %v2847 = vadd.f32 %v2697, %v2846
  %2848 = vmatmul.bf16.gmra.mxu0 %v2801
  %v2849 = vpop.f32.mrf.mxu0
  %v2850 = vadd.f32 %v2702, %v2849
  %v2851 = vpop.f32.mrf.mxu0
  %v2852 = vadd.f32 %v2707, %v2851
  %2853 = vmatmul.bf16.gmra.mxu0 %v2804
  %v2854 = vpop.f32.mrf.mxu0
  %v2855 = vadd.f32 %v2712, %v2854
  %v2856 = vpop.f32.mrf.mxu0
  %v2857 = vadd.f32 %v2717, %v2856
  %2858 = vmatmul.bf16.gmra.mxu0 %v2807
  %v2859 = vpop.f32.mrf.mxu0
  %v2860 = vadd.f32 %v2722, %v2859
  %v2861 = vpop.f32.mrf.mxu0
  %v2862 = vadd.f32 %v2727, %v2861
  %2863 = vmatmul.bf16.gmra.mxu0 %v2810
  %v2864 = vpop.f32.mrf.mxu0
  %v2865 = vadd.f32 %v2732, %v2864
  %v2866 = vpop.f32.mrf.mxu0
  %v2867 = vadd.f32 %v2737, %v2866
  %2868 = vdwg.mxu0
  %v2869 = vmax.f32 %v2825, 0.0
  %v2870 = vmax.f32 %v2827, 0.0
  %v2871 = vmax.f32 %v2830, 0.0
  %v2872 = vmax.f32 %v2832, 0.0
  %v2873 = vmax.f32 %v2835, 0.0
  %v2874 = vmax.f32 %v2837, 0.0
  %v2875 = vmax.f32 %v2840, 0.0
  %v2876 = vmax.f32 %v2842, 0.0
  %v2877 = vmax.f32 %v2845, 0.0
  %v2878 = vmax.f32 %v2847, 0.0
  %v2879 = vmax.f32 %v2850, 0.0
  %v2880 = vmax.f32 %v2852, 0.0
  %v2881 = vmax.f32 %v2855, 0.0
  %v2882 = vmax.f32 %v2857, 0.0
  %v2883 = vmax.f32 %v2860, 0.0
  %v2884 = vmax.f32 %v2862, 0.0
  %v2885 = vmax.f32 %v2865, 0.0
  %v2886 = vmax.f32 %v2867, 0.0
  %2896 = vrot.lane.b32.xlu0 %v2869, 4
  %v2897 = vpop.permute.xlu0 %2896
  %2898 = vrot.lane.b32.xlu0 %v2870, 4
  %v2899 = vpop.permute.xlu0 %2898
  %2900 = vrot.lane.b32.xlu0 %v2871, 4
  %v2901 = vpop.permute.xlu0 %2900
  %2902 = vrot.lane.b32.xlu0 %v2872, 4
  %v2903 = vpop.permute.xlu0 %2902
  %2904 = vrot.lane.b32.xlu0 %v2873, 4
  %v2905 = vpop.permute.xlu0 %2904
  %2906 = vrot.lane.b32.xlu0 %v2874, 4
  %v2907 = vpop.permute.xlu0 %2906
  %2908 = vrot.lane.b32.xlu0 %v2875, 4
  %v2909 = vpop.permute.xlu0 %2908
  %2910 = vrot.lane.b32.xlu0 %v2876, 4
  %v2911 = vpop.permute.xlu0 %2910
  %2912 = vrot.lane.b32.xlu0 %v2877, 4
  %v2913 = vpop.permute.xlu0 %2912
  %v2923 = vsel %vm832, 0.0, %v2897
  %v2924 = vsel %vm832, 0.0, %v2899
  %v2925 = vsel %vm832, 0.0, %v2901
  %v2926 = vsel %vm832, 0.0, %v2903
  %v2927 = vsel %vm832, 0.0, %v2905
  %v2928 = vsel %vm832, 0.0, %v2907
  %v2929 = vsel %vm832, 0.0, %v2909
  %v2930 = vsel %vm832, 0.0, %v2911
  %v2931 = vsel %vm832, 0.0, %v2913
  %vm2932 = vcmask 850944
  %v2933 = vsel %vm2932, %v2923, 0.0
  %v2934 = vsel %vm2932, %v2924, 0.0
  %v2935 = vsel %vm2932, %v2925, 0.0
  %v2936 = vsel %vm2932, %v2926, 0.0
  %v2937 = vsel %vm2932, %v2927, 0.0
  %v2938 = vsel %vm2932, %v2928, 0.0
  %v2939 = vsel %vm2932, %v2929, 0.0
  %v2940 = vsel %vm2932, %v2930, 0.0
  %v2941 = vsel %vm2932, %v2931, 0.0
  %2943 = vset.pattern.permute.xlu0 0
  %2944 = vperm.xlu0 %2943, %v242
  %v2945 = vpop.permute.xlu0 %2944
  %2948 = vset.pattern.permute.xlu0 0
  %2949 = vperm.xlu0 %2948, %v243
  %v2950 = vpop.permute.xlu0 %2949
  %2953 = vset.pattern.permute.xlu0 0
  %2954 = vperm.xlu0 %2953, %v244
  %v2955 = vpop.permute.xlu0 %2954
  %2958 = vset.pattern.permute.xlu0 0
  %2959 = vperm.xlu0 %2958, %v245
  %v2960 = vpop.permute.xlu0 %2959
  %2963 = vset.pattern.permute.xlu0 0
  %2964 = vperm.xlu0 %2963, %v246
  %v2965 = vpop.permute.xlu0 %2964
  %2968 = vset.pattern.permute.xlu0 0
  %2969 = vperm.xlu0 %2968, %v247
  %v2970 = vpop.permute.xlu0 %2969
  %2973 = vset.pattern.permute.xlu0 0
  %2974 = vperm.xlu0 %2973, %v248
  %v2975 = vpop.permute.xlu0 %2974
  %2978 = vset.pattern.permute.xlu0 0
  %2979 = vperm.xlu0 %2978, %v249
  %v2980 = vpop.permute.xlu0 %2979
  %2983 = vset.pattern.permute.xlu0 0
  %2984 = vperm.xlu0 %2983, %v250
  %v2985 = vpop.permute.xlu0 %2984
  %v2987 = vmul.f32 %v2933, %v2945
  %v2988 = vmul.f32 %v2934, %v2950
  %v2989 = vmul.f32 %v2935, %v2955
  %v2990 = vmul.f32 %v2936, %v2960
  %v2991 = vmul.f32 %v2937, %v2965
  %v2992 = vmul.f32 %v2938, %v2970
  %v2993 = vmul.f32 %v2939, %v2975
  %v2994 = vmul.f32 %v2940, %v2980
  %v2995 = vmul.f32 %v2941, %v2985
  %v2996 = vadd.f32 %v2987, 0.0
  %v2997 = vadd.f32 %v2988, 0.0
  %v2998 = vadd.f32 %v2989, 0.0
  %v2999 = vadd.f32 %v2990, 0.0
  %v3000 = vadd.f32 %v2991, 0.0
  %v3001 = vadd.f32 %v2992, 0.0
  %v3002 = vadd.f32 %v2993, 0.0
  %v3003 = vadd.f32 %v2994, 0.0
  %v3004 = vadd.f32 %v2995, 0.0
  %3005 = vset.pattern.permute.xlu0 1
  %3006 = vperm.xlu0 %3005, %v242
  %v3007 = vpop.permute.xlu0 %3006
  %3009 = vset.pattern.permute.xlu0 1
  %3010 = vperm.xlu0 %3009, %v243
  %v3011 = vpop.permute.xlu0 %3010
  %3013 = vset.pattern.permute.xlu0 1
  %3014 = vperm.xlu0 %3013, %v244
  %v3015 = vpop.permute.xlu0 %3014
  %3017 = vset.pattern.permute.xlu0 1
  %3018 = vperm.xlu0 %3017, %v245
  %v3019 = vpop.permute.xlu0 %3018
  %3021 = vset.pattern.permute.xlu0 1
  %3022 = vperm.xlu0 %3021, %v246
  %v3023 = vpop.permute.xlu0 %3022
  %3025 = vset.pattern.permute.xlu0 1
  %3026 = vperm.xlu0 %3025, %v247
  %v3027 = vpop.permute.xlu0 %3026
  %3029 = vset.pattern.permute.xlu0 1
  %3030 = vperm.xlu0 %3029, %v248
  %v3031 = vpop.permute.xlu0 %3030
  %3033 = vset.pattern.permute.xlu0 1
  %3034 = vperm.xlu0 %3033, %v249
  %v3035 = vpop.permute.xlu0 %3034
  %3037 = vset.pattern.permute.xlu0 1
  %3038 = vperm.xlu0 %3037, %v250
  %v3039 = vpop.permute.xlu0 %3038
  %v3041 = vmul.f32 %v2933, %v3007
  %v3042 = vmul.f32 %v2934, %v3011
  %v3043 = vmul.f32 %v2935, %v3015
  %v3044 = vmul.f32 %v2936, %v3019
  %v3045 = vmul.f32 %v2937, %v3023
  %v3046 = vmul.f32 %v2938, %v3027
  %v3047 = vmul.f32 %v2939, %v3031
  %v3048 = vmul.f32 %v2940, %v3035
  %v3049 = vmul.f32 %v2941, %v3039
  %3059 = vrot.lane.b32.xlu0 %v3041, 127
  %v3060 = vpop.permute.xlu0 %3059
  %3061 = vrot.lane.b32.xlu0 %v3042, 127
  %v3062 = vpop.permute.xlu0 %3061
  %3063 = vrot.lane.b32.xlu0 %v3043, 127
  %v3064 = vpop.permute.xlu0 %3063
  %3065 = vrot.lane.b32.xlu0 %v3044, 127
  %v3066 = vpop.permute.xlu0 %3065
  %3067 = vrot.lane.b32.xlu0 %v3045, 127
  %v3068 = vpop.permute.xlu0 %3067
  %3069 = vrot.lane.b32.xlu0 %v3046, 127
  %v3070 = vpop.permute.xlu0 %3069
  %3071 = vrot.lane.b32.xlu0 %v3047, 127
  %v3072 = vpop.permute.xlu0 %3071
  %3073 = vrot.lane.b32.xlu0 %v3048, 127
  %v3074 = vpop.permute.xlu0 %3073
  %3075 = vrot.lane.b32.xlu0 %v3049, 127
  %v3076 = vpop.permute.xlu0 %3075
  %v3086 = vadd.f32 %v2996, %v3060
  %v3087 = vadd.f32 %v2997, %v3062
  %v3088 = vadd.f32 %v2998, %v3064
  %v3089 = vadd.f32 %v2999, %v3066
  %v3090 = vadd.f32 %v3000, %v3068
  %v3091 = vadd.f32 %v3001, %v3070
  %v3092 = vadd.f32 %v3002, %v3072
  %v3093 = vadd.f32 %v3003, %v3074
  %v3094 = vadd.f32 %v3004, %v3076
  %3095 = vset.pattern.permute.xlu0 2
  %3096 = vperm.xlu0 %3095, %v242
  %v3097 = vpop.permute.xlu0 %3096
  %3099 = vset.pattern.permute.xlu0 2
  %3100 = vperm.xlu0 %3099, %v243
  %v3101 = vpop.permute.xlu0 %3100
  %3103 = vset.pattern.permute.xlu0 2
  %3104 = vperm.xlu0 %3103, %v244
  %v3105 = vpop.permute.xlu0 %3104
  %3107 = vset.pattern.permute.xlu0 2
  %3108 = vperm.xlu0 %3107, %v245
  %v3109 = vpop.permute.xlu0 %3108
  %3111 = vset.pattern.permute.xlu0 2
  %3112 = vperm.xlu0 %3111, %v246
  %v3113 = vpop.permute.xlu0 %3112
  %3115 = vset.pattern.permute.xlu0 2
  %3116 = vperm.xlu0 %3115, %v247
  %v3117 = vpop.permute.xlu0 %3116
  %3119 = vset.pattern.permute.xlu0 2
  %3120 = vperm.xlu0 %3119, %v248
  %v3121 = vpop.permute.xlu0 %3120
  %3123 = vset.pattern.permute.xlu0 2
  %3124 = vperm.xlu0 %3123, %v249
  %v3125 = vpop.permute.xlu0 %3124
  %3127 = vset.pattern.permute.xlu0 2
  %3128 = vperm.xlu0 %3127, %v250
  %v3129 = vpop.permute.xlu0 %3128
  %v3131 = vmul.f32 %v2933, %v3097
  %v3132 = vmul.f32 %v2934, %v3101
  %v3133 = vmul.f32 %v2935, %v3105
  %v3134 = vmul.f32 %v2936, %v3109
  %v3135 = vmul.f32 %v2937, %v3113
  %v3136 = vmul.f32 %v2938, %v3117
  %v3137 = vmul.f32 %v2939, %v3121
  %v3138 = vmul.f32 %v2940, %v3125
  %v3139 = vmul.f32 %v2941, %v3129
  %3149 = vrot.lane.b32.xlu0 %v3131, 126
  %v3150 = vpop.permute.xlu0 %3149
  %3151 = vrot.lane.b32.xlu0 %v3132, 126
  %v3152 = vpop.permute.xlu0 %3151
  %3153 = vrot.lane.b32.xlu0 %v3133, 126
  %v3154 = vpop.permute.xlu0 %3153
  %3155 = vrot.lane.b32.xlu0 %v3134, 126
  %v3156 = vpop.permute.xlu0 %3155
  %3157 = vrot.lane.b32.xlu0 %v3135, 126
  %v3158 = vpop.permute.xlu0 %3157
  %3159 = vrot.lane.b32.xlu0 %v3136, 126
  %v3160 = vpop.permute.xlu0 %3159
  %3161 = vrot.lane.b32.xlu0 %v3137, 126
  %v3162 = vpop.permute.xlu0 %3161
  %3163 = vrot.lane.b32.xlu0 %v3138, 126
  %v3164 = vpop.permute.xlu0 %3163
  %3165 = vrot.lane.b32.xlu0 %v3139, 126
  %v3166 = vpop.permute.xlu0 %3165
  %v3176 = vadd.f32 %v3086, %v3150
  %v3177 = vadd.f32 %v3087, %v3152
  %v3178 = vadd.f32 %v3088, %v3154
  %v3179 = vadd.f32 %v3089, %v3156
  %v3180 = vadd.f32 %v3090, %v3158
  %v3181 = vadd.f32 %v3091, %v3160
  %v3182 = vadd.f32 %v3092, %v3162
  %v3183 = vadd.f32 %v3093, %v3164
  %v3184 = vadd.f32 %v3094, %v3166
  %3185 = vset.pattern.permute.xlu0 3
  %3186 = vperm.xlu0 %3185, %v242
  %v3187 = vpop.permute.xlu0 %3186
  %3189 = vset.pattern.permute.xlu0 3
  %3190 = vperm.xlu0 %3189, %v243
  %v3191 = vpop.permute.xlu0 %3190
  %3193 = vset.pattern.permute.xlu0 3
  %3194 = vperm.xlu0 %3193, %v244
  %v3195 = vpop.permute.xlu0 %3194
  %3197 = vset.pattern.permute.xlu0 3
  %3198 = vperm.xlu0 %3197, %v245
  %v3199 = vpop.permute.xlu0 %3198
  %3201 = vset.pattern.permute.xlu0 3
  %3202 = vperm.xlu0 %3201, %v246
  %v3203 = vpop.permute.xlu0 %3202
  %3205 = vset.pattern.permute.xlu0 3
  %3206 = vperm.xlu0 %3205, %v247
  %v3207 = vpop.permute.xlu0 %3206
  %3209 = vset.pattern.permute.xlu0 3
  %3210 = vperm.xlu0 %3209, %v248
  %v3211 = vpop.permute.xlu0 %3210
  %3213 = vset.pattern.permute.xlu0 3
  %3214 = vperm.xlu0 %3213, %v249
  %v3215 = vpop.permute.xlu0 %3214
  %3217 = vset.pattern.permute.xlu0 3
  %3218 = vperm.xlu0 %3217, %v250
  %v3219 = vpop.permute.xlu0 %3218
  %v3221 = vmul.f32 %v2933, %v3187
  %v3222 = vmul.f32 %v2934, %v3191
  %v3223 = vmul.f32 %v2935, %v3195
  %v3224 = vmul.f32 %v2936, %v3199
  %v3225 = vmul.f32 %v2937, %v3203
  %v3226 = vmul.f32 %v2938, %v3207
  %v3227 = vmul.f32 %v2939, %v3211
  %v3228 = vmul.f32 %v2940, %v3215
  %v3229 = vmul.f32 %v2941, %v3219
  %3239 = vrot.lane.b32.xlu0 %v3221, 125
  %v3240 = vpop.permute.xlu0 %3239
  %3241 = vrot.lane.b32.xlu0 %v3222, 125
  %v3242 = vpop.permute.xlu0 %3241
  %3243 = vrot.lane.b32.xlu0 %v3223, 125
  %v3244 = vpop.permute.xlu0 %3243
  %3245 = vrot.lane.b32.xlu0 %v3224, 125
  %v3246 = vpop.permute.xlu0 %3245
  %3247 = vrot.lane.b32.xlu0 %v3225, 125
  %v3248 = vpop.permute.xlu0 %3247
  %3249 = vrot.lane.b32.xlu0 %v3226, 125
  %v3250 = vpop.permute.xlu0 %3249
  %3251 = vrot.lane.b32.xlu0 %v3227, 125
  %v3252 = vpop.permute.xlu0 %3251
  %3253 = vrot.lane.b32.xlu0 %v3228, 125
  %v3254 = vpop.permute.xlu0 %3253
  %3255 = vrot.lane.b32.xlu0 %v3229, 125
  %v3256 = vpop.permute.xlu0 %3255
  %v3266 = vadd.f32 %v3176, %v3240
  %v3267 = vadd.f32 %v3177, %v3242
  %v3268 = vadd.f32 %v3178, %v3244
  %v3269 = vadd.f32 %v3179, %v3246
  %v3270 = vadd.f32 %v3180, %v3248
  %v3271 = vadd.f32 %v3181, %v3250
  %v3272 = vadd.f32 %v3182, %v3252
  %v3273 = vadd.f32 %v3183, %v3254
  %v3274 = vadd.f32 %v3184, %v3256
  %3275 = vset.pattern.permute.xlu0 4
  %3276 = vperm.xlu0 %3275, %v242
  %v3277 = vpop.permute.xlu0 %3276
  %3279 = vset.pattern.permute.xlu0 4
  %3280 = vperm.xlu0 %3279, %v243
  %v3281 = vpop.permute.xlu0 %3280
  %3283 = vset.pattern.permute.xlu0 4
  %3284 = vperm.xlu0 %3283, %v244
  %v3285 = vpop.permute.xlu0 %3284
  %3287 = vset.pattern.permute.xlu0 4
  %3288 = vperm.xlu0 %3287, %v245
  %v3289 = vpop.permute.xlu0 %3288
  %3291 = vset.pattern.permute.xlu0 4
  %3292 = vperm.xlu0 %3291, %v246
  %v3293 = vpop.permute.xlu0 %3292
  %3295 = vset.pattern.permute.xlu0 4
  %3296 = vperm.xlu0 %3295, %v247
  %v3297 = vpop.permute.xlu0 %3296
  %3299 = vset.pattern.permute.xlu0 4
  %3300 = vperm.xlu0 %3299, %v248
  %v3301 = vpop.permute.xlu0 %3300
  %3303 = vset.pattern.permute.xlu0 4
  %3304 = vperm.xlu0 %3303, %v249
  %v3305 = vpop.permute.xlu0 %3304
  %3307 = vset.pattern.permute.xlu0 4
  %3308 = vperm.xlu0 %3307, %v250
  %v3309 = vpop.permute.xlu0 %3308
  %v3311 = vmul.f32 %v2933, %v3277
  %v3312 = vmul.f32 %v2934, %v3281
  %v3313 = vmul.f32 %v2935, %v3285
  %v3314 = vmul.f32 %v2936, %v3289
  %v3315 = vmul.f32 %v2937, %v3293
  %v3316 = vmul.f32 %v2938, %v3297
  %v3317 = vmul.f32 %v2939, %v3301
  %v3318 = vmul.f32 %v2940, %v3305
  %v3319 = vmul.f32 %v2941, %v3309
  %3329 = vrot.lane.b32.xlu0 %v3311, 124
  %v3330 = vpop.permute.xlu0 %3329
  %3331 = vrot.lane.b32.xlu0 %v3312, 124
  %v3332 = vpop.permute.xlu0 %3331
  %3333 = vrot.lane.b32.xlu0 %v3313, 124
  %v3334 = vpop.permute.xlu0 %3333
  %3335 = vrot.lane.b32.xlu0 %v3314, 124
  %v3336 = vpop.permute.xlu0 %3335
  %3337 = vrot.lane.b32.xlu0 %v3315, 124
  %v3338 = vpop.permute.xlu0 %3337
  %3339 = vrot.lane.b32.xlu0 %v3316, 124
  %v3340 = vpop.permute.xlu0 %3339
  %3341 = vrot.lane.b32.xlu0 %v3317, 124
  %v3342 = vpop.permute.xlu0 %3341
  %3343 = vrot.lane.b32.xlu0 %v3318, 124
  %v3344 = vpop.permute.xlu0 %3343
  %3345 = vrot.lane.b32.xlu0 %v3319, 124
  %v3346 = vpop.permute.xlu0 %3345
  %v3356 = vadd.f32 %v3266, %v3330
  %v3357 = vadd.f32 %v3267, %v3332
  %v3358 = vadd.f32 %v3268, %v3334
  %v3359 = vadd.f32 %v3269, %v3336
  %v3360 = vadd.f32 %v3270, %v3338
  %v3361 = vadd.f32 %v3271, %v3340
  %v3362 = vadd.f32 %v3272, %v3342
  %v3363 = vadd.f32 %v3273, %v3344
  %v3364 = vadd.f32 %v3274, %v3346
  %3365 = vset.pattern.permute.xlu0 5
  %3366 = vperm.xlu0 %3365, %v242
  %v3367 = vpop.permute.xlu0 %3366
  %3369 = vset.pattern.permute.xlu0 5
  %3370 = vperm.xlu0 %3369, %v243
  %v3371 = vpop.permute.xlu0 %3370
  %3373 = vset.pattern.permute.xlu0 5
  %3374 = vperm.xlu0 %3373, %v244
  %v3375 = vpop.permute.xlu0 %3374
  %3377 = vset.pattern.permute.xlu0 5
  %3378 = vperm.xlu0 %3377, %v245
  %v3379 = vpop.permute.xlu0 %3378
  %3381 = vset.pattern.permute.xlu0 5
  %3382 = vperm.xlu0 %3381, %v246
  %v3383 = vpop.permute.xlu0 %3382
  %3385 = vset.pattern.permute.xlu0 5
  %3386 = vperm.xlu0 %3385, %v247
  %v3387 = vpop.permute.xlu0 %3386
  %3389 = vset.pattern.permute.xlu0 5
  %3390 = vperm.xlu0 %3389, %v248
  %v3391 = vpop.permute.xlu0 %3390
  %3393 = vset.pattern.permute.xlu0 5
  %3394 = vperm.xlu0 %3393, %v249
  %v3395 = vpop.permute.xlu0 %3394
  %3397 = vset.pattern.permute.xlu0 5
  %3398 = vperm.xlu0 %3397, %v250
  %v3399 = vpop.permute.xlu0 %3398
  %v3401 = vmul.f32 %v2933, %v3367
  %v3402 = vmul.f32 %v2934, %v3371
  %v3403 = vmul.f32 %v2935, %v3375
  %v3404 = vmul.f32 %v2936, %v3379
  %v3405 = vmul.f32 %v2937, %v3383
  %v3406 = vmul.f32 %v2938, %v3387
  %v3407 = vmul.f32 %v2939, %v3391
  %v3408 = vmul.f32 %v2940, %v3395
  %v3409 = vmul.f32 %v2941, %v3399
  %3419 = vrot.lane.b32.xlu0 %v3401, 123
  %v3420 = vpop.permute.xlu0 %3419
  %3421 = vrot.lane.b32.xlu0 %v3402, 123
  %v3422 = vpop.permute.xlu0 %3421
  %3423 = vrot.lane.b32.xlu0 %v3403, 123
  %v3424 = vpop.permute.xlu0 %3423
  %3425 = vrot.lane.b32.xlu0 %v3404, 123
  %v3426 = vpop.permute.xlu0 %3425
  %3427 = vrot.lane.b32.xlu0 %v3405, 123
  %v3428 = vpop.permute.xlu0 %3427
  %3429 = vrot.lane.b32.xlu0 %v3406, 123
  %v3430 = vpop.permute.xlu0 %3429
  %3431 = vrot.lane.b32.xlu0 %v3407, 123
  %v3432 = vpop.permute.xlu0 %3431
  %3433 = vrot.lane.b32.xlu0 %v3408, 123
  %v3434 = vpop.permute.xlu0 %3433
  %3435 = vrot.lane.b32.xlu0 %v3409, 123
  %v3436 = vpop.permute.xlu0 %3435
  %v3446 = vadd.f32 %v3356, %v3420
  %v3447 = vadd.f32 %v3357, %v3422
  %v3448 = vadd.f32 %v3358, %v3424
  %v3449 = vadd.f32 %v3359, %v3426
  %v3450 = vadd.f32 %v3360, %v3428
  %v3451 = vadd.f32 %v3361, %v3430
  %v3452 = vadd.f32 %v3362, %v3432
  %v3453 = vadd.f32 %v3363, %v3434
  %v3454 = vadd.f32 %v3364, %v3436
  %3455 = vset.pattern.permute.xlu0 6
  %3456 = vperm.xlu0 %3455, %v242
  %v3457 = vpop.permute.xlu0 %3456
  %3459 = vset.pattern.permute.xlu0 6
  %3460 = vperm.xlu0 %3459, %v243
  %v3461 = vpop.permute.xlu0 %3460
  %3463 = vset.pattern.permute.xlu0 6
  %3464 = vperm.xlu0 %3463, %v244
  %v3465 = vpop.permute.xlu0 %3464
  %3467 = vset.pattern.permute.xlu0 6
  %3468 = vperm.xlu0 %3467, %v245
  %v3469 = vpop.permute.xlu0 %3468
  %3471 = vset.pattern.permute.xlu0 6
  %3472 = vperm.xlu0 %3471, %v246
  %v3473 = vpop.permute.xlu0 %3472
  %3475 = vset.pattern.permute.xlu0 6
  %3476 = vperm.xlu0 %3475, %v247
  %v3477 = vpop.permute.xlu0 %3476
  %3479 = vset.pattern.permute.xlu0 6
  %3480 = vperm.xlu0 %3479, %v248
  %v3481 = vpop.permute.xlu0 %3480
  %3483 = vset.pattern.permute.xlu0 6
  %3484 = vperm.xlu0 %3483, %v249
  %v3485 = vpop.permute.xlu0 %3484
  %3487 = vset.pattern.permute.xlu0 6
  %3488 = vperm.xlu0 %3487, %v250
  %v3489 = vpop.permute.xlu0 %3488
  %v3491 = vmul.f32 %v2933, %v3457
  %v3492 = vmul.f32 %v2934, %v3461
  %v3493 = vmul.f32 %v2935, %v3465
  %v3494 = vmul.f32 %v2936, %v3469
  %v3495 = vmul.f32 %v2937, %v3473
  %v3496 = vmul.f32 %v2938, %v3477
  %v3497 = vmul.f32 %v2939, %v3481
  %v3498 = vmul.f32 %v2940, %v3485
  %v3499 = vmul.f32 %v2941, %v3489
  %3509 = vrot.lane.b32.xlu0 %v3491, 122
  %v3510 = vpop.permute.xlu0 %3509
  %3511 = vrot.lane.b32.xlu0 %v3492, 122
  %v3512 = vpop.permute.xlu0 %3511
  %3513 = vrot.lane.b32.xlu0 %v3493, 122
  %v3514 = vpop.permute.xlu0 %3513
  %3515 = vrot.lane.b32.xlu0 %v3494, 122
  %v3516 = vpop.permute.xlu0 %3515
  %3517 = vrot.lane.b32.xlu0 %v3495, 122
  %v3518 = vpop.permute.xlu0 %3517
  %3519 = vrot.lane.b32.xlu0 %v3496, 122
  %v3520 = vpop.permute.xlu0 %3519
  %3521 = vrot.lane.b32.xlu0 %v3497, 122
  %v3522 = vpop.permute.xlu0 %3521
  %3523 = vrot.lane.b32.xlu0 %v3498, 122
  %v3524 = vpop.permute.xlu0 %3523
  %3525 = vrot.lane.b32.xlu0 %v3499, 122
  %v3526 = vpop.permute.xlu0 %3525
  %v3536 = vadd.f32 %v3446, %v3510
  %v3537 = vadd.f32 %v3447, %v3512
  %v3538 = vadd.f32 %v3448, %v3514
  %v3539 = vadd.f32 %v3449, %v3516
  %v3540 = vadd.f32 %v3450, %v3518
  %v3541 = vadd.f32 %v3451, %v3520
  %v3542 = vadd.f32 %v3452, %v3522
  %v3543 = vadd.f32 %v3453, %v3524
  %v3544 = vadd.f32 %v3454, %v3526
  %3545 = vset.pattern.permute.xlu0 7
  %3546 = vperm.xlu0 %3545, %v242
  %v3547 = vpop.permute.xlu0 %3546
  %3549 = vset.pattern.permute.xlu0 7
  %3550 = vperm.xlu0 %3549, %v243
  %v3551 = vpop.permute.xlu0 %3550
  %3553 = vset.pattern.permute.xlu0 7
  %3554 = vperm.xlu0 %3553, %v244
  %v3555 = vpop.permute.xlu0 %3554
  %3557 = vset.pattern.permute.xlu0 7
  %3558 = vperm.xlu0 %3557, %v245
  %v3559 = vpop.permute.xlu0 %3558
  %3561 = vset.pattern.permute.xlu0 7
  %3562 = vperm.xlu0 %3561, %v246
  %v3563 = vpop.permute.xlu0 %3562
  %3565 = vset.pattern.permute.xlu0 7
  %3566 = vperm.xlu0 %3565, %v247
  %v3567 = vpop.permute.xlu0 %3566
  %3569 = vset.pattern.permute.xlu0 7
  %3570 = vperm.xlu0 %3569, %v248
  %v3571 = vpop.permute.xlu0 %3570
  %3573 = vset.pattern.permute.xlu0 7
  %3574 = vperm.xlu0 %3573, %v249
  %v3575 = vpop.permute.xlu0 %3574
  %3577 = vset.pattern.permute.xlu0 7
  %3578 = vperm.xlu0 %3577, %v250
  %v3579 = vpop.permute.xlu0 %3578
  %v3581 = vmul.f32 %v2933, %v3547
  %v3582 = vmul.f32 %v2934, %v3551
  %v3583 = vmul.f32 %v2935, %v3555
  %v3584 = vmul.f32 %v2936, %v3559
  %v3585 = vmul.f32 %v2937, %v3563
  %v3586 = vmul.f32 %v2938, %v3567
  %v3587 = vmul.f32 %v2939, %v3571
  %v3588 = vmul.f32 %v2940, %v3575
  %v3589 = vmul.f32 %v2941, %v3579
  %3599 = vrot.lane.b32.xlu0 %v3581, 121
  %v3600 = vpop.permute.xlu0 %3599
  %3601 = vrot.lane.b32.xlu0 %v3582, 121
  %v3602 = vpop.permute.xlu0 %3601
  %3603 = vrot.lane.b32.xlu0 %v3583, 121
  %v3604 = vpop.permute.xlu0 %3603
  %3605 = vrot.lane.b32.xlu0 %v3584, 121
  %v3606 = vpop.permute.xlu0 %3605
  %3607 = vrot.lane.b32.xlu0 %v3585, 121
  %v3608 = vpop.permute.xlu0 %3607
  %3609 = vrot.lane.b32.xlu0 %v3586, 121
  %v3610 = vpop.permute.xlu0 %3609
  %3611 = vrot.lane.b32.xlu0 %v3587, 121
  %v3612 = vpop.permute.xlu0 %3611
  %3613 = vrot.lane.b32.xlu0 %v3588, 121
  %v3614 = vpop.permute.xlu0 %3613
  %3615 = vrot.lane.b32.xlu0 %v3589, 121
  %v3616 = vpop.permute.xlu0 %3615
  %v3626 = vadd.f32 %v3536, %v3600
  %v3627 = vadd.f32 %v3537, %v3602
  %v3628 = vadd.f32 %v3538, %v3604
  %v3629 = vadd.f32 %v3539, %v3606
  %v3630 = vadd.f32 %v3540, %v3608
  %v3631 = vadd.f32 %v3541, %v3610
  %v3632 = vadd.f32 %v3542, %v3612
  %v3633 = vadd.f32 %v3543, %v3614
  %v3634 = vadd.f32 %v3544, %v3616
  %3635 = vset.pattern.permute.xlu0 8
  %3636 = vperm.xlu0 %3635, %v242
  %v3637 = vpop.permute.xlu0 %3636
  %3639 = vset.pattern.permute.xlu0 8
  %3640 = vperm.xlu0 %3639, %v243
  %v3641 = vpop.permute.xlu0 %3640
  %3643 = vset.pattern.permute.xlu0 8
  %3644 = vperm.xlu0 %3643, %v244
  %v3645 = vpop.permute.xlu0 %3644
  %3647 = vset.pattern.permute.xlu0 8
  %3648 = vperm.xlu0 %3647, %v245
  %v3649 = vpop.permute.xlu0 %3648
  %3651 = vset.pattern.permute.xlu0 8
  %3652 = vperm.xlu0 %3651, %v246
  %v3653 = vpop.permute.xlu0 %3652
  %3655 = vset.pattern.permute.xlu0 8
  %3656 = vperm.xlu0 %3655, %v247
  %v3657 = vpop.permute.xlu0 %3656
  %3659 = vset.pattern.permute.xlu0 8
  %3660 = vperm.xlu0 %3659, %v248
  %v3661 = vpop.permute.xlu0 %3660
  %3663 = vset.pattern.permute.xlu0 8
  %3664 = vperm.xlu0 %3663, %v249
  %v3665 = vpop.permute.xlu0 %3664
  %3667 = vset.pattern.permute.xlu0 8
  %3668 = vperm.xlu0 %3667, %v250
  %v3669 = vpop.permute.xlu0 %3668
  %v3671 = vmul.f32 %v2933, %v3637
  %v3672 = vmul.f32 %v2934, %v3641
  %v3673 = vmul.f32 %v2935, %v3645
  %v3674 = vmul.f32 %v2936, %v3649
  %v3675 = vmul.f32 %v2937, %v3653
  %v3676 = vmul.f32 %v2938, %v3657
  %v3677 = vmul.f32 %v2939, %v3661
  %v3678 = vmul.f32 %v2940, %v3665
  %v3679 = vmul.f32 %v2941, %v3669
  %3689 = vrot.lane.b32.xlu0 %v3671, 120
  %v3690 = vpop.permute.xlu0 %3689
  %3691 = vrot.lane.b32.xlu0 %v3672, 120
  %v3692 = vpop.permute.xlu0 %3691
  %3693 = vrot.lane.b32.xlu0 %v3673, 120
  %v3694 = vpop.permute.xlu0 %3693
  %3695 = vrot.lane.b32.xlu0 %v3674, 120
  %v3696 = vpop.permute.xlu0 %3695
  %3697 = vrot.lane.b32.xlu0 %v3675, 120
  %v3698 = vpop.permute.xlu0 %3697
  %3699 = vrot.lane.b32.xlu0 %v3676, 120
  %v3700 = vpop.permute.xlu0 %3699
  %3701 = vrot.lane.b32.xlu0 %v3677, 120
  %v3702 = vpop.permute.xlu0 %3701
  %3703 = vrot.lane.b32.xlu0 %v3678, 120
  %v3704 = vpop.permute.xlu0 %3703
  %3705 = vrot.lane.b32.xlu0 %v3679, 120
  %v3706 = vpop.permute.xlu0 %3705
  %v3716 = vadd.f32 %v3626, %v3690
  %v3717 = vadd.f32 %v3627, %v3692
  %v3718 = vadd.f32 %v3628, %v3694
  %v3719 = vadd.f32 %v3629, %v3696
  %v3720 = vadd.f32 %v3630, %v3698
  %v3721 = vadd.f32 %v3631, %v3700
  %v3722 = vadd.f32 %v3632, %v3702
  %v3723 = vadd.f32 %v3633, %v3704
  %v3724 = vadd.f32 %v3634, %v3706
  %3725 = vset.pattern.permute.xlu0 9
  %3726 = vperm.xlu0 %3725, %v242
  %v3727 = vpop.permute.xlu0 %3726
  %3729 = vset.pattern.permute.xlu0 9
  %3730 = vperm.xlu0 %3729, %v243
  %v3731 = vpop.permute.xlu0 %3730
  %3733 = vset.pattern.permute.xlu0 9
  %3734 = vperm.xlu0 %3733, %v244
  %v3735 = vpop.permute.xlu0 %3734
  %3737 = vset.pattern.permute.xlu0 9
  %3738 = vperm.xlu0 %3737, %v245
  %v3739 = vpop.permute.xlu0 %3738
  %3741 = vset.pattern.permute.xlu0 9
  %3742 = vperm.xlu0 %3741, %v246
  %v3743 = vpop.permute.xlu0 %3742
  %3745 = vset.pattern.permute.xlu0 9
  %3746 = vperm.xlu0 %3745, %v247
  %v3747 = vpop.permute.xlu0 %3746
  %3749 = vset.pattern.permute.xlu0 9
  %3750 = vperm.xlu0 %3749, %v248
  %v3751 = vpop.permute.xlu0 %3750
  %3753 = vset.pattern.permute.xlu0 9
  %3754 = vperm.xlu0 %3753, %v249
  %v3755 = vpop.permute.xlu0 %3754
  %3757 = vset.pattern.permute.xlu0 9
  %3758 = vperm.xlu0 %3757, %v250
  %v3759 = vpop.permute.xlu0 %3758
  %v3761 = vmul.f32 %v2933, %v3727
  %v3762 = vmul.f32 %v2934, %v3731
  %v3763 = vmul.f32 %v2935, %v3735
  %v3764 = vmul.f32 %v2936, %v3739
  %v3765 = vmul.f32 %v2937, %v3743
  %v3766 = vmul.f32 %v2938, %v3747
  %v3767 = vmul.f32 %v2939, %v3751
  %v3768 = vmul.f32 %v2940, %v3755
  %v3769 = vmul.f32 %v2941, %v3759
  %3779 = vrot.lane.b32.xlu0 %v3761, 119
  %v3780 = vpop.permute.xlu0 %3779
  %3781 = vrot.lane.b32.xlu0 %v3762, 119
  %v3782 = vpop.permute.xlu0 %3781
  %3783 = vrot.lane.b32.xlu0 %v3763, 119
  %v3784 = vpop.permute.xlu0 %3783
  %3785 = vrot.lane.b32.xlu0 %v3764, 119
  %v3786 = vpop.permute.xlu0 %3785
  %3787 = vrot.lane.b32.xlu0 %v3765, 119
  %v3788 = vpop.permute.xlu0 %3787
  %3789 = vrot.lane.b32.xlu0 %v3766, 119
  %v3790 = vpop.permute.xlu0 %3789
  %3791 = vrot.lane.b32.xlu0 %v3767, 119
  %v3792 = vpop.permute.xlu0 %3791
  %3793 = vrot.lane.b32.xlu0 %v3768, 119
  %v3794 = vpop.permute.xlu0 %3793
  %3795 = vrot.lane.b32.xlu0 %v3769, 119
  %v3796 = vpop.permute.xlu0 %3795
  %v3806 = vadd.f32 %v3716, %v3780
  %v3807 = vadd.f32 %v3717, %v3782
  %v3808 = vadd.f32 %v3718, %v3784
  %v3809 = vadd.f32 %v3719, %v3786
  %v3810 = vadd.f32 %v3720, %v3788
  %v3811 = vadd.f32 %v3721, %v3790
  %v3812 = vadd.f32 %v3722, %v3792
  %v3813 = vadd.f32 %v3723, %v3794
  %v3814 = vadd.f32 %v3724, %v3796
  %3816 = vset.pattern.permute.xlu0 0
  %3817 = vperm.xlu0 %3816, %v260
  %v3818 = vpop.permute.xlu0 %3817
  %3821 = vset.pattern.permute.xlu0 0
  %3822 = vperm.xlu0 %3821, %v261
  %v3823 = vpop.permute.xlu0 %3822
  %3826 = vset.pattern.permute.xlu0 0
  %3827 = vperm.xlu0 %3826, %v262
  %v3828 = vpop.permute.xlu0 %3827
  %3831 = vset.pattern.permute.xlu0 0
  %3832 = vperm.xlu0 %3831, %v263
  %v3833 = vpop.permute.xlu0 %3832
  %3836 = vset.pattern.permute.xlu0 0
  %3837 = vperm.xlu0 %3836, %v264
  %v3838 = vpop.permute.xlu0 %3837
  %3841 = vset.pattern.permute.xlu0 0
  %3842 = vperm.xlu0 %3841, %v265
  %v3843 = vpop.permute.xlu0 %3842
  %3846 = vset.pattern.permute.xlu0 0
  %3847 = vperm.xlu0 %3846, %v266
  %v3848 = vpop.permute.xlu0 %3847
  %3851 = vset.pattern.permute.xlu0 0
  %3852 = vperm.xlu0 %3851, %v267
  %v3853 = vpop.permute.xlu0 %3852
  %3856 = vset.pattern.permute.xlu0 0
  %3857 = vperm.xlu0 %3856, %v268
  %v3858 = vpop.permute.xlu0 %3857
  %v3860 = vadd.f32 %v3806, %v3818
  %v3861 = vadd.f32 %v3807, %v3823
  %v3862 = vadd.f32 %v3808, %v3828
  %v3863 = vadd.f32 %v3809, %v3833
  %v3864 = vadd.f32 %v3810, %v3838
  %v3865 = vadd.f32 %v3811, %v3843
  %v3866 = vadd.f32 %v3812, %v3848
  %v3867 = vadd.f32 %v3813, %v3853
  %v3868 = vadd.f32 %v3814, %v3858
  %v3869 = vmax.f32 %v3860, 0.0
  %v3870 = vmax.f32 %v3861, 0.0
  %v3871 = vmax.f32 %v3862, 0.0
  %v3872 = vmax.f32 %v3863, 0.0
  %v3873 = vmax.f32 %v3864, 0.0
  %v3874 = vmax.f32 %v3865, 0.0
  %v3875 = vmax.f32 %v3866, 0.0
  %v3876 = vmax.f32 %v3867, 0.0
  %v3877 = vmax.f32 %v3868, 0.0
  %3887 = vrot.lane.b32.xlu0 %v2878, 4
  %v3888 = vpop.permute.xlu0 %3887
  %3889 = vrot.lane.b32.xlu0 %v2879, 4
  %v3890 = vpop.permute.xlu0 %3889
  %3891 = vrot.lane.b32.xlu0 %v2880, 4
  %v3892 = vpop.permute.xlu0 %3891
  %3893 = vrot.lane.b32.xlu0 %v2881, 4
  %v3894 = vpop.permute.xlu0 %3893
  %3895 = vrot.lane.b32.xlu0 %v2882, 4
  %v3896 = vpop.permute.xlu0 %3895
  %3897 = vrot.lane.b32.xlu0 %v2883, 4
  %v3898 = vpop.permute.xlu0 %3897
  %3899 = vrot.lane.b32.xlu0 %v2884, 4
  %v3900 = vpop.permute.xlu0 %3899
  %3901 = vrot.lane.b32.xlu0 %v2885, 4
  %v3902 = vpop.permute.xlu0 %3901
  %3903 = vrot.lane.b32.xlu0 %v2886, 4
  %v3904 = vpop.permute.xlu0 %3903
  %v3914 = vsel %vm832, 0.0, %v3888
  %v3915 = vsel %vm832, 0.0, %v3890
  %v3916 = vsel %vm832, 0.0, %v3892
  %v3917 = vsel %vm832, 0.0, %v3894
  %v3918 = vsel %vm832, 0.0, %v3896
  %v3919 = vsel %vm832, 0.0, %v3898
  %v3920 = vsel %vm832, 0.0, %v3900
  %v3921 = vsel %vm832, 0.0, %v3902
  %v3922 = vsel %vm832, 0.0, %v3904
  %v3923 = vsel %vm2932, %v3914, 0.0
  %v3924 = vsel %vm2932, %v3915, 0.0
  %v3925 = vsel %vm2932, %v3916, 0.0
  %v3926 = vsel %vm2932, %v3917, 0.0
  %v3927 = vsel %vm2932, %v3918, 0.0
  %v3928 = vsel %vm2932, %v3919, 0.0
  %v3929 = vsel %vm2932, %v3920, 0.0
  %v3930 = vsel %vm2932, %v3921, 0.0
  %v3931 = vsel %vm2932, %v3922, 0.0
  %3933 = vset.pattern.permute.xlu0 0
  %3934 = vperm.xlu0 %3933, %v251
  %v3935 = vpop.permute.xlu0 %3934
  %3938 = vset.pattern.permute.xlu0 0
  %3939 = vperm.xlu0 %3938, %v252
  %v3940 = vpop.permute.xlu0 %3939
  %3943 = vset.pattern.permute.xlu0 0
  %3944 = vperm.xlu0 %3943, %v253
  %v3945 = vpop.permute.xlu0 %3944
  %3948 = vset.pattern.permute.xlu0 0
  %3949 = vperm.xlu0 %3948, %v254
  %v3950 = vpop.permute.xlu0 %3949
  %3953 = vset.pattern.permute.xlu0 0
  %3954 = vperm.xlu0 %3953, %v255
  %v3955 = vpop.permute.xlu0 %3954
  %3958 = vset.pattern.permute.xlu0 0
  %3959 = vperm.xlu0 %3958, %v256
  %v3960 = vpop.permute.xlu0 %3959
  %3963 = vset.pattern.permute.xlu0 0
  %3964 = vperm.xlu0 %3963, %v257
  %v3965 = vpop.permute.xlu0 %3964
  %3968 = vset.pattern.permute.xlu0 0
  %3969 = vperm.xlu0 %3968, %v258
  %v3970 = vpop.permute.xlu0 %3969
  %3973 = vset.pattern.permute.xlu0 0
  %3974 = vperm.xlu0 %3973, %v259
  %v3975 = vpop.permute.xlu0 %3974
  %v3977 = vmul.f32 %v3923, %v3935
  %v3978 = vmul.f32 %v3924, %v3940
  %v3979 = vmul.f32 %v3925, %v3945
  %v3980 = vmul.f32 %v3926, %v3950
  %v3981 = vmul.f32 %v3927, %v3955
  %v3982 = vmul.f32 %v3928, %v3960
  %v3983 = vmul.f32 %v3929, %v3965
  %v3984 = vmul.f32 %v3930, %v3970
  %v3985 = vmul.f32 %v3931, %v3975
  %v3986 = vadd.f32 %v3977, 0.0
  %v3987 = vadd.f32 %v3978, 0.0
  %v3988 = vadd.f32 %v3979, 0.0
  %v3989 = vadd.f32 %v3980, 0.0
  %v3990 = vadd.f32 %v3981, 0.0
  %v3991 = vadd.f32 %v3982, 0.0
  %v3992 = vadd.f32 %v3983, 0.0
  %v3993 = vadd.f32 %v3984, 0.0
  %v3994 = vadd.f32 %v3985, 0.0
  %3995 = vset.pattern.permute.xlu0 1
  %3996 = vperm.xlu0 %3995, %v251
  %v3997 = vpop.permute.xlu0 %3996
  %3999 = vset.pattern.permute.xlu0 1
  %4000 = vperm.xlu0 %3999, %v252
  %v4001 = vpop.permute.xlu0 %4000
  %4003 = vset.pattern.permute.xlu0 1
  %4004 = vperm.xlu0 %4003, %v253
  %v4005 = vpop.permute.xlu0 %4004
  %4007 = vset.pattern.permute.xlu0 1
  %4008 = vperm.xlu0 %4007, %v254
  %v4009 = vpop.permute.xlu0 %4008
  %4011 = vset.pattern.permute.xlu0 1
  %4012 = vperm.xlu0 %4011, %v255
  %v4013 = vpop.permute.xlu0 %4012
  %4015 = vset.pattern.permute.xlu0 1
  %4016 = vperm.xlu0 %4015, %v256
  %v4017 = vpop.permute.xlu0 %4016
  %4019 = vset.pattern.permute.xlu0 1
  %4020 = vperm.xlu0 %4019, %v257
  %v4021 = vpop.permute.xlu0 %4020
  %4023 = vset.pattern.permute.xlu0 1
  %4024 = vperm.xlu0 %4023, %v258
  %v4025 = vpop.permute.xlu0 %4024
  %4027 = vset.pattern.permute.xlu0 1
  %4028 = vperm.xlu0 %4027, %v259
  %v4029 = vpop.permute.xlu0 %4028
  %v4031 = vmul.f32 %v3923, %v3997
  %v4032 = vmul.f32 %v3924, %v4001
  %v4033 = vmul.f32 %v3925, %v4005
  %v4034 = vmul.f32 %v3926, %v4009
  %v4035 = vmul.f32 %v3927, %v4013
  %v4036 = vmul.f32 %v3928, %v4017
  %v4037 = vmul.f32 %v3929, %v4021
  %v4038 = vmul.f32 %v3930, %v4025
  %v4039 = vmul.f32 %v3931, %v4029
  %4049 = vrot.lane.b32.xlu0 %v4031, 127
  %v4050 = vpop.permute.xlu0 %4049
  %4051 = vrot.lane.b32.xlu0 %v4032, 127
  %v4052 = vpop.permute.xlu0 %4051
  %4053 = vrot.lane.b32.xlu0 %v4033, 127
  %v4054 = vpop.permute.xlu0 %4053
  %4055 = vrot.lane.b32.xlu0 %v4034, 127
  %v4056 = vpop.permute.xlu0 %4055
  %4057 = vrot.lane.b32.xlu0 %v4035, 127
  %v4058 = vpop.permute.xlu0 %4057
  %4059 = vrot.lane.b32.xlu0 %v4036, 127
  %v4060 = vpop.permute.xlu0 %4059
  %4061 = vrot.lane.b32.xlu0 %v4037, 127
  %v4062 = vpop.permute.xlu0 %4061
  %4063 = vrot.lane.b32.xlu0 %v4038, 127
  %v4064 = vpop.permute.xlu0 %4063
  %4065 = vrot.lane.b32.xlu0 %v4039, 127
  %v4066 = vpop.permute.xlu0 %4065
  %v4076 = vadd.f32 %v3986, %v4050
  %v4077 = vadd.f32 %v3987, %v4052
  %v4078 = vadd.f32 %v3988, %v4054
  %v4079 = vadd.f32 %v3989, %v4056
  %v4080 = vadd.f32 %v3990, %v4058
  %v4081 = vadd.f32 %v3991, %v4060
  %v4082 = vadd.f32 %v3992, %v4062
  %v4083 = vadd.f32 %v3993, %v4064
  %v4084 = vadd.f32 %v3994, %v4066
  %4085 = vset.pattern.permute.xlu0 2
  %4086 = vperm.xlu0 %4085, %v251
  %v4087 = vpop.permute.xlu0 %4086
  %4089 = vset.pattern.permute.xlu0 2
  %4090 = vperm.xlu0 %4089, %v252
  %v4091 = vpop.permute.xlu0 %4090
  %4093 = vset.pattern.permute.xlu0 2
  %4094 = vperm.xlu0 %4093, %v253
  %v4095 = vpop.permute.xlu0 %4094
  %4097 = vset.pattern.permute.xlu0 2
  %4098 = vperm.xlu0 %4097, %v254
  %v4099 = vpop.permute.xlu0 %4098
  %4101 = vset.pattern.permute.xlu0 2
  %4102 = vperm.xlu0 %4101, %v255
  %v4103 = vpop.permute.xlu0 %4102
  %4105 = vset.pattern.permute.xlu0 2
  %4106 = vperm.xlu0 %4105, %v256
  %v4107 = vpop.permute.xlu0 %4106
  %4109 = vset.pattern.permute.xlu0 2
  %4110 = vperm.xlu0 %4109, %v257
  %v4111 = vpop.permute.xlu0 %4110
  %4113 = vset.pattern.permute.xlu0 2
  %4114 = vperm.xlu0 %4113, %v258
  %v4115 = vpop.permute.xlu0 %4114
  %4117 = vset.pattern.permute.xlu0 2
  %4118 = vperm.xlu0 %4117, %v259
  %v4119 = vpop.permute.xlu0 %4118
  %v4121 = vmul.f32 %v3923, %v4087
  %v4122 = vmul.f32 %v3924, %v4091
  %v4123 = vmul.f32 %v3925, %v4095
  %v4124 = vmul.f32 %v3926, %v4099
  %v4125 = vmul.f32 %v3927, %v4103
  %v4126 = vmul.f32 %v3928, %v4107
  %v4127 = vmul.f32 %v3929, %v4111
  %v4128 = vmul.f32 %v3930, %v4115
  %v4129 = vmul.f32 %v3931, %v4119
  %4139 = vrot.lane.b32.xlu0 %v4121, 126
  %v4140 = vpop.permute.xlu0 %4139
  %4141 = vrot.lane.b32.xlu0 %v4122, 126
  %v4142 = vpop.permute.xlu0 %4141
  %4143 = vrot.lane.b32.xlu0 %v4123, 126
  %v4144 = vpop.permute.xlu0 %4143
  %4145 = vrot.lane.b32.xlu0 %v4124, 126
  %v4146 = vpop.permute.xlu0 %4145
  %4147 = vrot.lane.b32.xlu0 %v4125, 126
  %v4148 = vpop.permute.xlu0 %4147
  %4149 = vrot.lane.b32.xlu0 %v4126, 126
  %v4150 = vpop.permute.xlu0 %4149
  %4151 = vrot.lane.b32.xlu0 %v4127, 126
  %v4152 = vpop.permute.xlu0 %4151
  %4153 = vrot.lane.b32.xlu0 %v4128, 126
  %v4154 = vpop.permute.xlu0 %4153
  %4155 = vrot.lane.b32.xlu0 %v4129, 126
  %v4156 = vpop.permute.xlu0 %4155
  %v4166 = vadd.f32 %v4076, %v4140
  %v4167 = vadd.f32 %v4077, %v4142
  %v4168 = vadd.f32 %v4078, %v4144
  %v4169 = vadd.f32 %v4079, %v4146
  %v4170 = vadd.f32 %v4080, %v4148
  %v4171 = vadd.f32 %v4081, %v4150
  %v4172 = vadd.f32 %v4082, %v4152
  %v4173 = vadd.f32 %v4083, %v4154
  %v4174 = vadd.f32 %v4084, %v4156
  %4175 = vset.pattern.permute.xlu0 3
  %4176 = vperm.xlu0 %4175, %v251
  %v4177 = vpop.permute.xlu0 %4176
  %4179 = vset.pattern.permute.xlu0 3
  %4180 = vperm.xlu0 %4179, %v252
  %v4181 = vpop.permute.xlu0 %4180
  %4183 = vset.pattern.permute.xlu0 3
  %4184 = vperm.xlu0 %4183, %v253
  %v4185 = vpop.permute.xlu0 %4184
  %4187 = vset.pattern.permute.xlu0 3
  %4188 = vperm.xlu0 %4187, %v254
  %v4189 = vpop.permute.xlu0 %4188
  %4191 = vset.pattern.permute.xlu0 3
  %4192 = vperm.xlu0 %4191, %v255
  %v4193 = vpop.permute.xlu0 %4192
  %4195 = vset.pattern.permute.xlu0 3
  %4196 = vperm.xlu0 %4195, %v256
  %v4197 = vpop.permute.xlu0 %4196
  %4199 = vset.pattern.permute.xlu0 3
  %4200 = vperm.xlu0 %4199, %v257
  %v4201 = vpop.permute.xlu0 %4200
  %4203 = vset.pattern.permute.xlu0 3
  %4204 = vperm.xlu0 %4203, %v258
  %v4205 = vpop.permute.xlu0 %4204
  %4207 = vset.pattern.permute.xlu0 3
  %4208 = vperm.xlu0 %4207, %v259
  %v4209 = vpop.permute.xlu0 %4208
  %v4211 = vmul.f32 %v3923, %v4177
  %v4212 = vmul.f32 %v3924, %v4181
  %v4213 = vmul.f32 %v3925, %v4185
  %v4214 = vmul.f32 %v3926, %v4189
  %v4215 = vmul.f32 %v3927, %v4193
  %v4216 = vmul.f32 %v3928, %v4197
  %v4217 = vmul.f32 %v3929, %v4201
  %v4218 = vmul.f32 %v3930, %v4205
  %v4219 = vmul.f32 %v3931, %v4209
  %4229 = vrot.lane.b32.xlu0 %v4211, 125
  %v4230 = vpop.permute.xlu0 %4229
  %4231 = vrot.lane.b32.xlu0 %v4212, 125
  %v4232 = vpop.permute.xlu0 %4231
  %4233 = vrot.lane.b32.xlu0 %v4213, 125
  %v4234 = vpop.permute.xlu0 %4233
  %4235 = vrot.lane.b32.xlu0 %v4214, 125
  %v4236 = vpop.permute.xlu0 %4235
  %4237 = vrot.lane.b32.xlu0 %v4215, 125
  %v4238 = vpop.permute.xlu0 %4237
  %4239 = vrot.lane.b32.xlu0 %v4216, 125
  %v4240 = vpop.permute.xlu0 %4239
  %4241 = vrot.lane.b32.xlu0 %v4217, 125
  %v4242 = vpop.permute.xlu0 %4241
  %4243 = vrot.lane.b32.xlu0 %v4218, 125
  %v4244 = vpop.permute.xlu0 %4243
  %4245 = vrot.lane.b32.xlu0 %v4219, 125
  %v4246 = vpop.permute.xlu0 %4245
  %v4256 = vadd.f32 %v4166, %v4230
  %v4257 = vadd.f32 %v4167, %v4232
  %v4258 = vadd.f32 %v4168, %v4234
  %v4259 = vadd.f32 %v4169, %v4236
  %v4260 = vadd.f32 %v4170, %v4238
  %v4261 = vadd.f32 %v4171, %v4240
  %v4262 = vadd.f32 %v4172, %v4242
  %v4263 = vadd.f32 %v4173, %v4244
  %v4264 = vadd.f32 %v4174, %v4246
  %4265 = vset.pattern.permute.xlu0 4
  %4266 = vperm.xlu0 %4265, %v251
  %v4267 = vpop.permute.xlu0 %4266
  %4269 = vset.pattern.permute.xlu0 4
  %4270 = vperm.xlu0 %4269, %v252
  %v4271 = vpop.permute.xlu0 %4270
  %4273 = vset.pattern.permute.xlu0 4
  %4274 = vperm.xlu0 %4273, %v253
  %v4275 = vpop.permute.xlu0 %4274
  %4277 = vset.pattern.permute.xlu0 4
  %4278 = vperm.xlu0 %4277, %v254
  %v4279 = vpop.permute.xlu0 %4278
  %4281 = vset.pattern.permute.xlu0 4
  %4282 = vperm.xlu0 %4281, %v255
  %v4283 = vpop.permute.xlu0 %4282
  %4285 = vset.pattern.permute.xlu0 4
  %4286 = vperm.xlu0 %4285, %v256
  %v4287 = vpop.permute.xlu0 %4286
  %4289 = vset.pattern.permute.xlu0 4
  %4290 = vperm.xlu0 %4289, %v257
  %v4291 = vpop.permute.xlu0 %4290
  %4293 = vset.pattern.permute.xlu0 4
  %4294 = vperm.xlu0 %4293, %v258
  %v4295 = vpop.permute.xlu0 %4294
  %4297 = vset.pattern.permute.xlu0 4
  %4298 = vperm.xlu0 %4297, %v259
  %v4299 = vpop.permute.xlu0 %4298
  %v4301 = vmul.f32 %v3923, %v4267
  %v4302 = vmul.f32 %v3924, %v4271
  %v4303 = vmul.f32 %v3925, %v4275
  %v4304 = vmul.f32 %v3926, %v4279
  %v4305 = vmul.f32 %v3927, %v4283
  %v4306 = vmul.f32 %v3928, %v4287
  %v4307 = vmul.f32 %v3929, %v4291
  %v4308 = vmul.f32 %v3930, %v4295
  %v4309 = vmul.f32 %v3931, %v4299
  %4319 = vrot.lane.b32.xlu0 %v4301, 124
  %v4320 = vpop.permute.xlu0 %4319
  %4321 = vrot.lane.b32.xlu0 %v4302, 124
  %v4322 = vpop.permute.xlu0 %4321
  %4323 = vrot.lane.b32.xlu0 %v4303, 124
  %v4324 = vpop.permute.xlu0 %4323
  %4325 = vrot.lane.b32.xlu0 %v4304, 124
  %v4326 = vpop.permute.xlu0 %4325
  %4327 = vrot.lane.b32.xlu0 %v4305, 124
  %v4328 = vpop.permute.xlu0 %4327
  %4329 = vrot.lane.b32.xlu0 %v4306, 124
  %v4330 = vpop.permute.xlu0 %4329
  %4331 = vrot.lane.b32.xlu0 %v4307, 124
  %v4332 = vpop.permute.xlu0 %4331
  %4333 = vrot.lane.b32.xlu0 %v4308, 124
  %v4334 = vpop.permute.xlu0 %4333
  %4335 = vrot.lane.b32.xlu0 %v4309, 124
  %v4336 = vpop.permute.xlu0 %4335
  %v4346 = vadd.f32 %v4256, %v4320
  %v4347 = vadd.f32 %v4257, %v4322
  %v4348 = vadd.f32 %v4258, %v4324
  %v4349 = vadd.f32 %v4259, %v4326
  %v4350 = vadd.f32 %v4260, %v4328
  %v4351 = vadd.f32 %v4261, %v4330
  %v4352 = vadd.f32 %v4262, %v4332
  %v4353 = vadd.f32 %v4263, %v4334
  %v4354 = vadd.f32 %v4264, %v4336
  %4355 = vset.pattern.permute.xlu0 5
  %4356 = vperm.xlu0 %4355, %v251
  %v4357 = vpop.permute.xlu0 %4356
  %4359 = vset.pattern.permute.xlu0 5
  %4360 = vperm.xlu0 %4359, %v252
  %v4361 = vpop.permute.xlu0 %4360
  %4363 = vset.pattern.permute.xlu0 5
  %4364 = vperm.xlu0 %4363, %v253
  %v4365 = vpop.permute.xlu0 %4364
  %4367 = vset.pattern.permute.xlu0 5
  %4368 = vperm.xlu0 %4367, %v254
  %v4369 = vpop.permute.xlu0 %4368
  %4371 = vset.pattern.permute.xlu0 5
  %4372 = vperm.xlu0 %4371, %v255
  %v4373 = vpop.permute.xlu0 %4372
  %4375 = vset.pattern.permute.xlu0 5
  %4376 = vperm.xlu0 %4375, %v256
  %v4377 = vpop.permute.xlu0 %4376
  %4379 = vset.pattern.permute.xlu0 5
  %4380 = vperm.xlu0 %4379, %v257
  %v4381 = vpop.permute.xlu0 %4380
  %4383 = vset.pattern.permute.xlu0 5
  %4384 = vperm.xlu0 %4383, %v258
  %v4385 = vpop.permute.xlu0 %4384
  %4387 = vset.pattern.permute.xlu0 5
  %4388 = vperm.xlu0 %4387, %v259
  %v4389 = vpop.permute.xlu0 %4388
  %v4391 = vmul.f32 %v3923, %v4357
  %v4392 = vmul.f32 %v3924, %v4361
  %v4393 = vmul.f32 %v3925, %v4365
  %v4394 = vmul.f32 %v3926, %v4369
  %v4395 = vmul.f32 %v3927, %v4373
  %v4396 = vmul.f32 %v3928, %v4377
  %v4397 = vmul.f32 %v3929, %v4381
  %v4398 = vmul.f32 %v3930, %v4385
  %v4399 = vmul.f32 %v3931, %v4389
  %4409 = vrot.lane.b32.xlu0 %v4391, 123
  %v4410 = vpop.permute.xlu0 %4409
  %4411 = vrot.lane.b32.xlu0 %v4392, 123
  %v4412 = vpop.permute.xlu0 %4411
  %4413 = vrot.lane.b32.xlu0 %v4393, 123
  %v4414 = vpop.permute.xlu0 %4413
  %4415 = vrot.lane.b32.xlu0 %v4394, 123
  %v4416 = vpop.permute.xlu0 %4415
  %4417 = vrot.lane.b32.xlu0 %v4395, 123
  %v4418 = vpop.permute.xlu0 %4417
  %4419 = vrot.lane.b32.xlu0 %v4396, 123
  %v4420 = vpop.permute.xlu0 %4419
  %4421 = vrot.lane.b32.xlu0 %v4397, 123
  %v4422 = vpop.permute.xlu0 %4421
  %4423 = vrot.lane.b32.xlu0 %v4398, 123
  %v4424 = vpop.permute.xlu0 %4423
  %4425 = vrot.lane.b32.xlu0 %v4399, 123
  %v4426 = vpop.permute.xlu0 %4425
  %v4436 = vadd.f32 %v4346, %v4410
  %v4437 = vadd.f32 %v4347, %v4412
  %v4438 = vadd.f32 %v4348, %v4414
  %v4439 = vadd.f32 %v4349, %v4416
  %v4440 = vadd.f32 %v4350, %v4418
  %v4441 = vadd.f32 %v4351, %v4420
  %v4442 = vadd.f32 %v4352, %v4422
  %v4443 = vadd.f32 %v4353, %v4424
  %v4444 = vadd.f32 %v4354, %v4426
  %4445 = vset.pattern.permute.xlu0 6
  %4446 = vperm.xlu0 %4445, %v251
  %v4447 = vpop.permute.xlu0 %4446
  %4449 = vset.pattern.permute.xlu0 6
  %4450 = vperm.xlu0 %4449, %v252
  %v4451 = vpop.permute.xlu0 %4450
  %4453 = vset.pattern.permute.xlu0 6
  %4454 = vperm.xlu0 %4453, %v253
  %v4455 = vpop.permute.xlu0 %4454
  %4457 = vset.pattern.permute.xlu0 6
  %4458 = vperm.xlu0 %4457, %v254
  %v4459 = vpop.permute.xlu0 %4458
  %4461 = vset.pattern.permute.xlu0 6
  %4462 = vperm.xlu0 %4461, %v255
  %v4463 = vpop.permute.xlu0 %4462
  %4465 = vset.pattern.permute.xlu0 6
  %4466 = vperm.xlu0 %4465, %v256
  %v4467 = vpop.permute.xlu0 %4466
  %4469 = vset.pattern.permute.xlu0 6
  %4470 = vperm.xlu0 %4469, %v257
  %v4471 = vpop.permute.xlu0 %4470
  %4473 = vset.pattern.permute.xlu0 6
  %4474 = vperm.xlu0 %4473, %v258
  %v4475 = vpop.permute.xlu0 %4474
  %4477 = vset.pattern.permute.xlu0 6
  %4478 = vperm.xlu0 %4477, %v259
  %v4479 = vpop.permute.xlu0 %4478
  %v4481 = vmul.f32 %v3923, %v4447
  %v4482 = vmul.f32 %v3924, %v4451
  %v4483 = vmul.f32 %v3925, %v4455
  %v4484 = vmul.f32 %v3926, %v4459
  %v4485 = vmul.f32 %v3927, %v4463
  %v4486 = vmul.f32 %v3928, %v4467
  %v4487 = vmul.f32 %v3929, %v4471
  %v4488 = vmul.f32 %v3930, %v4475
  %v4489 = vmul.f32 %v3931, %v4479
  %4499 = vrot.lane.b32.xlu0 %v4481, 122
  %v4500 = vpop.permute.xlu0 %4499
  %4501 = vrot.lane.b32.xlu0 %v4482, 122
  %v4502 = vpop.permute.xlu0 %4501
  %4503 = vrot.lane.b32.xlu0 %v4483, 122
  %v4504 = vpop.permute.xlu0 %4503
  %4505 = vrot.lane.b32.xlu0 %v4484, 122
  %v4506 = vpop.permute.xlu0 %4505
  %4507 = vrot.lane.b32.xlu0 %v4485, 122
  %v4508 = vpop.permute.xlu0 %4507
  %4509 = vrot.lane.b32.xlu0 %v4486, 122
  %v4510 = vpop.permute.xlu0 %4509
  %4511 = vrot.lane.b32.xlu0 %v4487, 122
  %v4512 = vpop.permute.xlu0 %4511
  %4513 = vrot.lane.b32.xlu0 %v4488, 122
  %v4514 = vpop.permute.xlu0 %4513
  %4515 = vrot.lane.b32.xlu0 %v4489, 122
  %v4516 = vpop.permute.xlu0 %4515
  %v4526 = vadd.f32 %v4436, %v4500
  %v4527 = vadd.f32 %v4437, %v4502
  %v4528 = vadd.f32 %v4438, %v4504
  %v4529 = vadd.f32 %v4439, %v4506
  %v4530 = vadd.f32 %v4440, %v4508
  %v4531 = vadd.f32 %v4441, %v4510
  %v4532 = vadd.f32 %v4442, %v4512
  %v4533 = vadd.f32 %v4443, %v4514
  %v4534 = vadd.f32 %v4444, %v4516
  %4535 = vset.pattern.permute.xlu0 7
  %4536 = vperm.xlu0 %4535, %v251
  %v4537 = vpop.permute.xlu0 %4536
  %4539 = vset.pattern.permute.xlu0 7
  %4540 = vperm.xlu0 %4539, %v252
  %v4541 = vpop.permute.xlu0 %4540
  %4543 = vset.pattern.permute.xlu0 7
  %4544 = vperm.xlu0 %4543, %v253
  %v4545 = vpop.permute.xlu0 %4544
  %4547 = vset.pattern.permute.xlu0 7
  %4548 = vperm.xlu0 %4547, %v254
  %v4549 = vpop.permute.xlu0 %4548
  %4551 = vset.pattern.permute.xlu0 7
  %4552 = vperm.xlu0 %4551, %v255
  %v4553 = vpop.permute.xlu0 %4552
  %4555 = vset.pattern.permute.xlu0 7
  %4556 = vperm.xlu0 %4555, %v256
  %v4557 = vpop.permute.xlu0 %4556
  %4559 = vset.pattern.permute.xlu0 7
  %4560 = vperm.xlu0 %4559, %v257
  %v4561 = vpop.permute.xlu0 %4560
  %4563 = vset.pattern.permute.xlu0 7
  %4564 = vperm.xlu0 %4563, %v258
  %v4565 = vpop.permute.xlu0 %4564
  %4567 = vset.pattern.permute.xlu0 7
  %4568 = vperm.xlu0 %4567, %v259
  %v4569 = vpop.permute.xlu0 %4568
  %v4571 = vmul.f32 %v3923, %v4537
  %v4572 = vmul.f32 %v3924, %v4541
  %v4573 = vmul.f32 %v3925, %v4545
  %v4574 = vmul.f32 %v3926, %v4549
  %v4575 = vmul.f32 %v3927, %v4553
  %v4576 = vmul.f32 %v3928, %v4557
  %v4577 = vmul.f32 %v3929, %v4561
  %v4578 = vmul.f32 %v3930, %v4565
  %v4579 = vmul.f32 %v3931, %v4569
  %4589 = vrot.lane.b32.xlu0 %v4571, 121
  %v4590 = vpop.permute.xlu0 %4589
  %4591 = vrot.lane.b32.xlu0 %v4572, 121
  %v4592 = vpop.permute.xlu0 %4591
  %4593 = vrot.lane.b32.xlu0 %v4573, 121
  %v4594 = vpop.permute.xlu0 %4593
  %4595 = vrot.lane.b32.xlu0 %v4574, 121
  %v4596 = vpop.permute.xlu0 %4595
  %4597 = vrot.lane.b32.xlu0 %v4575, 121
  %v4598 = vpop.permute.xlu0 %4597
  %4599 = vrot.lane.b32.xlu0 %v4576, 121
  %v4600 = vpop.permute.xlu0 %4599
  %4601 = vrot.lane.b32.xlu0 %v4577, 121
  %v4602 = vpop.permute.xlu0 %4601
  %4603 = vrot.lane.b32.xlu0 %v4578, 121
  %v4604 = vpop.permute.xlu0 %4603
  %4605 = vrot.lane.b32.xlu0 %v4579, 121
  %v4606 = vpop.permute.xlu0 %4605
  %v4616 = vadd.f32 %v4526, %v4590
  %v4617 = vadd.f32 %v4527, %v4592
  %v4618 = vadd.f32 %v4528, %v4594
  %v4619 = vadd.f32 %v4529, %v4596
  %v4620 = vadd.f32 %v4530, %v4598
  %v4621 = vadd.f32 %v4531, %v4600
  %v4622 = vadd.f32 %v4532, %v4602
  %v4623 = vadd.f32 %v4533, %v4604
  %v4624 = vadd.f32 %v4534, %v4606
  %4625 = vset.pattern.permute.xlu0 8
  %4626 = vperm.xlu0 %4625, %v251
  %v4627 = vpop.permute.xlu0 %4626
  %4629 = vset.pattern.permute.xlu0 8
  %4630 = vperm.xlu0 %4629, %v252
  %v4631 = vpop.permute.xlu0 %4630
  %4633 = vset.pattern.permute.xlu0 8
  %4634 = vperm.xlu0 %4633, %v253
  %v4635 = vpop.permute.xlu0 %4634
  %4637 = vset.pattern.permute.xlu0 8
  %4638 = vperm.xlu0 %4637, %v254
  %v4639 = vpop.permute.xlu0 %4638
  %4641 = vset.pattern.permute.xlu0 8
  %4642 = vperm.xlu0 %4641, %v255
  %v4643 = vpop.permute.xlu0 %4642
  %4645 = vset.pattern.permute.xlu0 8
  %4646 = vperm.xlu0 %4645, %v256
  %v4647 = vpop.permute.xlu0 %4646
  %4649 = vset.pattern.permute.xlu0 8
  %4650 = vperm.xlu0 %4649, %v257
  %v4651 = vpop.permute.xlu0 %4650
  %4653 = vset.pattern.permute.xlu0 8
  %4654 = vperm.xlu0 %4653, %v258
  %v4655 = vpop.permute.xlu0 %4654
  %4657 = vset.pattern.permute.xlu0 8
  %4658 = vperm.xlu0 %4657, %v259
  %v4659 = vpop.permute.xlu0 %4658
  %v4661 = vmul.f32 %v3923, %v4627
  %v4662 = vmul.f32 %v3924, %v4631
  %v4663 = vmul.f32 %v3925, %v4635
  %v4664 = vmul.f32 %v3926, %v4639
  %v4665 = vmul.f32 %v3927, %v4643
  %v4666 = vmul.f32 %v3928, %v4647
  %v4667 = vmul.f32 %v3929, %v4651
  %v4668 = vmul.f32 %v3930, %v4655
  %v4669 = vmul.f32 %v3931, %v4659
  %4679 = vrot.lane.b32.xlu0 %v4661, 120
  %v4680 = vpop.permute.xlu0 %4679
  %4681 = vrot.lane.b32.xlu0 %v4662, 120
  %v4682 = vpop.permute.xlu0 %4681
  %4683 = vrot.lane.b32.xlu0 %v4663, 120
  %v4684 = vpop.permute.xlu0 %4683
  %4685 = vrot.lane.b32.xlu0 %v4664, 120
  %v4686 = vpop.permute.xlu0 %4685
  %4687 = vrot.lane.b32.xlu0 %v4665, 120
  %v4688 = vpop.permute.xlu0 %4687
  %4689 = vrot.lane.b32.xlu0 %v4666, 120
  %v4690 = vpop.permute.xlu0 %4689
  %4691 = vrot.lane.b32.xlu0 %v4667, 120
  %v4692 = vpop.permute.xlu0 %4691
  %4693 = vrot.lane.b32.xlu0 %v4668, 120
  %v4694 = vpop.permute.xlu0 %4693
  %4695 = vrot.lane.b32.xlu0 %v4669, 120
  %v4696 = vpop.permute.xlu0 %4695
  %v4706 = vadd.f32 %v4616, %v4680
  %v4707 = vadd.f32 %v4617, %v4682
  %v4708 = vadd.f32 %v4618, %v4684
  %v4709 = vadd.f32 %v4619, %v4686
  %v4710 = vadd.f32 %v4620, %v4688
  %v4711 = vadd.f32 %v4621, %v4690
  %v4712 = vadd.f32 %v4622, %v4692
  %v4713 = vadd.f32 %v4623, %v4694
  %v4714 = vadd.f32 %v4624, %v4696
  %4715 = vset.pattern.permute.xlu0 9
  %4716 = vperm.xlu0 %4715, %v251
  %v4717 = vpop.permute.xlu0 %4716
  %4719 = vset.pattern.permute.xlu0 9
  %4720 = vperm.xlu0 %4719, %v252
  %v4721 = vpop.permute.xlu0 %4720
  %4723 = vset.pattern.permute.xlu0 9
  %4724 = vperm.xlu0 %4723, %v253
  %v4725 = vpop.permute.xlu0 %4724
  %4727 = vset.pattern.permute.xlu0 9
  %4728 = vperm.xlu0 %4727, %v254
  %v4729 = vpop.permute.xlu0 %4728
  %4731 = vset.pattern.permute.xlu0 9
  %4732 = vperm.xlu0 %4731, %v255
  %v4733 = vpop.permute.xlu0 %4732
  %4735 = vset.pattern.permute.xlu0 9
  %4736 = vperm.xlu0 %4735, %v256
  %v4737 = vpop.permute.xlu0 %4736
  %4739 = vset.pattern.permute.xlu0 9
  %4740 = vperm.xlu0 %4739, %v257
  %v4741 = vpop.permute.xlu0 %4740
  %4743 = vset.pattern.permute.xlu0 9
  %4744 = vperm.xlu0 %4743, %v258
  %v4745 = vpop.permute.xlu0 %4744
  %4747 = vset.pattern.permute.xlu0 9
  %4748 = vperm.xlu0 %4747, %v259
  %v4749 = vpop.permute.xlu0 %4748
  %v4751 = vmul.f32 %v3923, %v4717
  %v4752 = vmul.f32 %v3924, %v4721
  %v4753 = vmul.f32 %v3925, %v4725
  %v4754 = vmul.f32 %v3926, %v4729
  %v4755 = vmul.f32 %v3927, %v4733
  %v4756 = vmul.f32 %v3928, %v4737
  %v4757 = vmul.f32 %v3929, %v4741
  %v4758 = vmul.f32 %v3930, %v4745
  %v4759 = vmul.f32 %v3931, %v4749
  %4769 = vrot.lane.b32.xlu0 %v4751, 119
  %v4770 = vpop.permute.xlu0 %4769
  %4771 = vrot.lane.b32.xlu0 %v4752, 119
  %v4772 = vpop.permute.xlu0 %4771
  %4773 = vrot.lane.b32.xlu0 %v4753, 119
  %v4774 = vpop.permute.xlu0 %4773
  %4775 = vrot.lane.b32.xlu0 %v4754, 119
  %v4776 = vpop.permute.xlu0 %4775
  %4777 = vrot.lane.b32.xlu0 %v4755, 119
  %v4778 = vpop.permute.xlu0 %4777
  %4779 = vrot.lane.b32.xlu0 %v4756, 119
  %v4780 = vpop.permute.xlu0 %4779
  %4781 = vrot.lane.b32.xlu0 %v4757, 119
  %v4782 = vpop.permute.xlu0 %4781
  %4783 = vrot.lane.b32.xlu0 %v4758, 119
  %v4784 = vpop.permute.xlu0 %4783
  %4785 = vrot.lane.b32.xlu0 %v4759, 119
  %v4786 = vpop.permute.xlu0 %4785
  %v4796 = vadd.f32 %v4706, %v4770
  %v4797 = vadd.f32 %v4707, %v4772
  %v4798 = vadd.f32 %v4708, %v4774
  %v4799 = vadd.f32 %v4709, %v4776
  %v4800 = vadd.f32 %v4710, %v4778
  %v4801 = vadd.f32 %v4711, %v4780
  %v4802 = vadd.f32 %v4712, %v4782
  %v4803 = vadd.f32 %v4713, %v4784
  %v4804 = vadd.f32 %v4714, %v4786
  %4806 = vset.pattern.permute.xlu0 0
  %4807 = vperm.xlu0 %4806, %v269
  %v4808 = vpop.permute.xlu0 %4807
  %4811 = vset.pattern.permute.xlu0 0
  %4812 = vperm.xlu0 %4811, %v270
  %v4813 = vpop.permute.xlu0 %4812
  %4816 = vset.pattern.permute.xlu0 0
  %4817 = vperm.xlu0 %4816, %v271
  %v4818 = vpop.permute.xlu0 %4817
  %4821 = vset.pattern.permute.xlu0 0
  %4822 = vperm.xlu0 %4821, %v272
  %v4823 = vpop.permute.xlu0 %4822
  %4826 = vset.pattern.permute.xlu0 0
  %4827 = vperm.xlu0 %4826, %v273
  %v4828 = vpop.permute.xlu0 %4827
  %4831 = vset.pattern.permute.xlu0 0
  %4832 = vperm.xlu0 %4831, %v274
  %v4833 = vpop.permute.xlu0 %4832
  %4836 = vset.pattern.permute.xlu0 0
  %4837 = vperm.xlu0 %4836, %v275
  %v4838 = vpop.permute.xlu0 %4837
  %4841 = vset.pattern.permute.xlu0 0
  %4842 = vperm.xlu0 %4841, %v276
  %v4843 = vpop.permute.xlu0 %4842
  %4846 = vset.pattern.permute.xlu0 0
  %4847 = vperm.xlu0 %4846, %v277
  %v4848 = vpop.permute.xlu0 %4847
  %v4850 = vadd.f32 %v4796, %v4808
  %v4851 = vadd.f32 %v4797, %v4813
  %v4852 = vadd.f32 %v4798, %v4818
  %v4853 = vadd.f32 %v4799, %v4823
  %v4854 = vadd.f32 %v4800, %v4828
  %v4855 = vadd.f32 %v4801, %v4833
  %v4856 = vadd.f32 %v4802, %v4838
  %v4857 = vadd.f32 %v4803, %v4843
  %v4858 = vadd.f32 %v4804, %v4848
  %v4859 = vmax.f32 %v4850, 0.0
  %v4860 = vmax.f32 %v4851, 0.0
  %v4861 = vmax.f32 %v4852, 0.0
  %v4862 = vmax.f32 %v4853, 0.0
  %v4863 = vmax.f32 %v4854, 0.0
  %v4864 = vmax.f32 %v4855, 0.0
  %v4865 = vmax.f32 %v4856, 0.0
  %v4866 = vmax.f32 %v4857, 0.0
  %v4867 = vmax.f32 %v4858, 0.0
  %v4868 = vpack.c.bf16 %v3870, %v3869
  %v4869 = vpack.c.bf16 %v3872, %v3871
  %v4870 = vpack.c.bf16 %v3874, %v3873
  %v4871 = vpack.c.bf16 %v3876, %v3875
  %v4872 = vpack.c.bf16 %v4859, %v3877
  %v4873 = vpack.c.bf16 %v4861, %v4860
  %v4874 = vpack.c.bf16 %v4863, %v4862
  %v4875 = vpack.c.bf16 %v4865, %v4864
  %v4876 = vpack.c.bf16 %v4867, %v4866
  %v4890 = vunpack.c.l.b16 %v284
  %v4891 = vunpack.c.l.b16 %v285
  %v4892 = vunpack.c.l.b16 %v286
  %v4893 = vunpack.c.l.b16 %v287
  %v4894 = vunpack.c.l.b16 %v288
  %v4895 = vunpack.c.l.b16 %v289
  %v4896 = vunpack.c.l.b16 %v290
  %v4897 = vunpack.c.l.b16 %v291
  %v4898 = vunpack.c.l.b16 %v292
  %v4899 = vunpack.c.l.b16 %v293
  %v4900 = vunpack.c.l.b16 %v294
  %v4901 = vunpack.c.l.b16 %v295
  %v4902 = vunpack.c.l.b16 %v296
  %v4903 = vpack.c.b16 %v4891, %v4890
  %v4904 = vpack.c.b16 %v4893, %v4892
  %v4905 = vpack.c.b16 %v4895, %v4894
  %v4906 = vpack.c.b16 %v4897, %v4896
  %v4907 = vpack.c.b16 %v4899, %v4898
  %v4908 = vpack.c.b16 %v4901, %v4900
  %v4909 = vpack.c.b16 %v4902, %v4902
  %vm4916 = vcmask 809984
  %v4918 = vsel %vm4916, %v4868, 0
  %v4921 = vsel %vm4916, %v4869, 0
  %v4924 = vsel %vm4916, %v4870, 0
  %v4927 = vsel %vm4916, %v4871, 0
  %v4930 = vsel %vm4916, %v4872, 0
  %v4933 = vsel %vm4916, %v4873, 0
  %v4936 = vsel %vm4916, %v4874, 0
  %v4939 = vsel %vm4916, %v4875, 0
  %v4942 = vsel %vm4916, %v4876, 0
  %vm4944 = vcmask 1040384
  %vm4945 = vcmask 1041408
  %v4946 = vsel %vm4944, 4294967295, 65535
  %v4947 = vsel %vm4945, %v4946, 0
  %v4949 = vand.u32 %v4909, %v4947
  %4951 = vmatpush.bf16.msra.mxu0 0
  %4952 = vmatpush.bf16.msra.mxu0 %v4949
  %4953 = vmatpush.bf16.msra.mxu0 %v4908
  %4954 = vmatpush.bf16.msra.mxu0 %v4907
  %4955 = vmatpush.bf16.msra.mxu0 %v4906
  %4956 = vmatpush.bf16.msra.mxu0 %v4905
  %4957 = vmatpush.bf16.msra.mxu0 %v4904
  %4958 = vmatpush.bf16.msra.mxu0 %v4903
  %4959 = vmatmul.bf16.gmra.mxu0 %v4918
  %v4960 = vpop.f32.mrf.mxu0
  %v4961 = vadd.f32 0.0, %v4960
  %v4962 = vpop.f32.mrf.mxu0
  %v4963 = vadd.f32 0.0, %v4962
  %4964 = vmatmul.bf16.gmra.mxu0 %v4921
  %v4965 = vpop.f32.mrf.mxu0
  %v4966 = vadd.f32 0.0, %v4965
  %v4967 = vpop.f32.mrf.mxu0
  %v4968 = vadd.f32 0.0, %v4967
  %4969 = vmatmul.bf16.gmra.mxu0 %v4924
  %v4970 = vpop.f32.mrf.mxu0
  %v4971 = vadd.f32 0.0, %v4970
  %v4972 = vpop.f32.mrf.mxu0
  %v4973 = vadd.f32 0.0, %v4972
  %4974 = vmatmul.bf16.gmra.mxu0 %v4927
  %v4975 = vpop.f32.mrf.mxu0
  %v4976 = vadd.f32 0.0, %v4975
  %v4977 = vpop.f32.mrf.mxu0
  %v4978 = vadd.f32 0.0, %v4977
  %4979 = vmatmul.bf16.gmra.mxu0 %v4930
  %v4980 = vpop.f32.mrf.mxu0
  %v4981 = vadd.f32 0.0, %v4980
  %v4982 = vpop.f32.mrf.mxu0
  %v4983 = vadd.f32 0.0, %v4982
  %4984 = vmatmul.bf16.gmra.mxu0 %v4933
  %v4985 = vpop.f32.mrf.mxu0
  %v4986 = vadd.f32 0.0, %v4985
  %v4987 = vpop.f32.mrf.mxu0
  %v4988 = vadd.f32 0.0, %v4987
  %4989 = vmatmul.bf16.gmra.mxu0 %v4936
  %v4990 = vpop.f32.mrf.mxu0
  %v4991 = vadd.f32 0.0, %v4990
  %v4992 = vpop.f32.mrf.mxu0
  %v4993 = vadd.f32 0.0, %v4992
  %4994 = vmatmul.bf16.gmra.mxu0 %v4939
  %v4995 = vpop.f32.mrf.mxu0
  %v4996 = vadd.f32 0.0, %v4995
  %v4997 = vpop.f32.mrf.mxu0
  %v4998 = vadd.f32 0.0, %v4997
  %4999 = vmatmul.bf16.gmra.mxu0 %v4942
  %v5000 = vpop.f32.mrf.mxu0
  %v5001 = vadd.f32 0.0, %v5000
  %v5002 = vpop.f32.mrf.mxu0
  %v5003 = vadd.f32 0.0, %v5002
  %5004 = vdwg.mxu0
  %v5005 = vpack.c.bf16 %v4963, %v4961
  %v5006 = vpack.c.bf16 %v4968, %v4966
  %v5007 = vpack.c.bf16 %v4973, %v4971
  %v5008 = vpack.c.bf16 %v4978, %v4976
  %v5009 = vpack.c.bf16 %v4983, %v4981
  %v5010 = vpack.c.bf16 %v4988, %v4986
  %v5011 = vpack.c.bf16 %v4993, %v4991
  %v5012 = vpack.c.bf16 %v4998, %v4996
  %v5013 = vpack.c.bf16 %v5003, %v5001
  %5015 = vset.pattern.permute.xlu0 0
  %5016 = vperm.xlu0 %5015, %v281
  %v5017 = vpop.permute.xlu0 %5016
  %5020 = vset.pattern.permute.xlu0 0
  %5021 = vperm.xlu0 %5020, %v282
  %v5022 = vpop.permute.xlu0 %5021
  %5025 = vset.pattern.permute.xlu0 0
  %5026 = vperm.xlu0 %5025, %v283
  %v5027 = vpop.permute.xlu0 %5026
  %v5032 = vunpack.c.l.b16 %v278
  %v5033 = vunpack.c.h.b16 %v278
  %v5034 = vunpack.c.l.b16 %v279
  %v5035 = vunpack.c.h.b16 %v279
  %v5036 = vunpack.c.l.b16 %v280
  %v5037 = vunpack.c.h.b16 %v280
  %v5038 = vpack.c.b16 %v5034, %v5032
  %v5039 = vpack.c.b16 %v5035, %v5033
  %v5040 = vpack.c.b16 %v5036, %v5036
  %v5041 = vpack.c.b16 %v5037, %v5037
  %vm5044 = vcmask 130048
  %v5046 = vsel %vm5044, %v5039, 0
  %v5049 = vsel %vm5044, %v5041, 0
  %5051 = vmatpush.bf16.msra.mxu0 %v5012
  %5052 = vmatpush.bf16.msra.mxu0 %v5011
  %5053 = vmatpush.bf16.msra.mxu0 %v5010
  %5054 = vmatpush.bf16.msra.mxu0 %v5009
  %5055 = vmatpush.bf16.msra.mxu0 %v5008
  %5056 = vmatpush.bf16.msra.mxu0 %v5007
  %5057 = vmatpush.bf16.msra.mxu0 %v5006
  %5058 = vmatpush.bf16.msra.mxu0 %v5005
  %5059 = vmatmul.bf16.gmra.mxu0 %v5038
  %v5060 = vpop.f32.mrf.mxu0
  %v5061 = vadd.f32 %v5017, %v5060
  %v5062 = vpop.f32.mrf.mxu0
  %v5063 = vadd.f32 %v5022, %v5062
  %5064 = vmatmul.bf16.gmra.mxu0 %v5040
  %v5065 = vpop.f32.mrf.mxu0
  %v5066 = vadd.f32 %v5027, %v5065
  %v5067 = vpop.f32.mrf.mxu0
  %5068 = vdwg.mxu0
  %5069 = vmatpush.bf16.msra.mxu0 0
  %5070 = vmatpush.bf16.msra.mxu0 0
  %5071 = vmatpush.bf16.msra.mxu0 0
  %5072 = vmatpush.bf16.msra.mxu0 0
  %5073 = vmatpush.bf16.msra.mxu0 0
  %5074 = vmatpush.bf16.msra.mxu0 0
  %5075 = vmatpush.bf16.msra.mxu0 0
  %5076 = vmatpush.bf16.msra.mxu0 %v5013
  %5077 = vmatmul.bf16.gmra.mxu0 %v5046
  %v5078 = vpop.f32.mrf.mxu0
  %v5079 = vadd.f32 %v5061, %v5078
  %v5080 = vpop.f32.mrf.mxu0
  %v5081 = vadd.f32 %v5063, %v5080
  %5082 = vmatmul.bf16.gmra.mxu0 %v5049
  %v5083 = vpop.f32.mrf.mxu0
  %v5084 = vadd.f32 %v5066, %v5083
  %v5085 = vpop.f32.mrf.mxu0
  %5086 = vdwg.mxu0
  %5088 = vset.pattern.permute.xlu0 0
  %5089 = vperm.xlu0 %5088, %v297
  %v5090 = vpop.permute.xlu0 %5089
  %5093 = vset.pattern.permute.xlu0 0
  %5094 = vperm.xlu0 %5093, %v298
  %v5095 = vpop.permute.xlu0 %5094
  %5098 = vset.pattern.permute.xlu0 0
  %5099 = vperm.xlu0 %5098, %v299
  %v5100 = vpop.permute.xlu0 %5099
  %v5102 = vmul.f32 %v5079, %v5090
  %v5103 = vmul.f32 %v5081, %v5095
  %v5104 = vmul.f32 %v5084, %v5100
  %v5105 = vadd.f32 %v5102, 0.0
  %v5106 = vadd.f32 %v5103, 0.0
  %v5107 = vadd.f32 %v5104, 0.0
  %5108 = vset.pattern.permute.xlu0 1
  %5109 = vperm.xlu0 %5108, %v297
  %v5110 = vpop.permute.xlu0 %5109
  %5112 = vset.pattern.permute.xlu0 1
  %5113 = vperm.xlu0 %5112, %v298
  %v5114 = vpop.permute.xlu0 %5113
  %5116 = vset.pattern.permute.xlu0 1
  %5117 = vperm.xlu0 %5116, %v299
  %v5118 = vpop.permute.xlu0 %5117
  %v5120 = vmul.f32 %v5079, %v5110
  %v5121 = vmul.f32 %v5081, %v5114
  %v5122 = vmul.f32 %v5084, %v5118
  %5126 = vrot.lane.b32.xlu0 %v5120, 127
  %v5127 = vpop.permute.xlu0 %5126
  %5128 = vrot.lane.b32.xlu0 %v5121, 127
  %v5129 = vpop.permute.xlu0 %5128
  %5130 = vrot.lane.b32.xlu0 %v5122, 127
  %v5131 = vpop.permute.xlu0 %5130
  %v5135 = vadd.f32 %v5105, %v5127
  %v5136 = vadd.f32 %v5106, %v5129
  %v5137 = vadd.f32 %v5107, %v5131
  %5138 = vset.pattern.permute.xlu0 2
  %5139 = vperm.xlu0 %5138, %v297
  %v5140 = vpop.permute.xlu0 %5139
  %5142 = vset.pattern.permute.xlu0 2
  %5143 = vperm.xlu0 %5142, %v298
  %v5144 = vpop.permute.xlu0 %5143
  %5146 = vset.pattern.permute.xlu0 2
  %5147 = vperm.xlu0 %5146, %v299
  %v5148 = vpop.permute.xlu0 %5147
  %v5150 = vmul.f32 %v5079, %v5140
  %v5151 = vmul.f32 %v5081, %v5144
  %v5152 = vmul.f32 %v5084, %v5148
  %5156 = vrot.lane.b32.xlu0 %v5150, 126
  %v5157 = vpop.permute.xlu0 %5156
  %5158 = vrot.lane.b32.xlu0 %v5151, 126
  %v5159 = vpop.permute.xlu0 %5158
  %5160 = vrot.lane.b32.xlu0 %v5152, 126
  %v5161 = vpop.permute.xlu0 %5160
  %v5165 = vadd.f32 %v5135, %v5157
  %v5166 = vadd.f32 %v5136, %v5159
  %v5167 = vadd.f32 %v5137, %v5161
  %5168 = vset.pattern.permute.xlu0 3
  %5169 = vperm.xlu0 %5168, %v297
  %v5170 = vpop.permute.xlu0 %5169
  %5172 = vset.pattern.permute.xlu0 3
  %5173 = vperm.xlu0 %5172, %v298
  %v5174 = vpop.permute.xlu0 %5173
  %5176 = vset.pattern.permute.xlu0 3
  %5177 = vperm.xlu0 %5176, %v299
  %v5178 = vpop.permute.xlu0 %5177
  %v5180 = vmul.f32 %v5079, %v5170
  %v5181 = vmul.f32 %v5081, %v5174
  %v5182 = vmul.f32 %v5084, %v5178
  %5186 = vrot.lane.b32.xlu0 %v5180, 125
  %v5187 = vpop.permute.xlu0 %5186
  %5188 = vrot.lane.b32.xlu0 %v5181, 125
  %v5189 = vpop.permute.xlu0 %5188
  %5190 = vrot.lane.b32.xlu0 %v5182, 125
  %v5191 = vpop.permute.xlu0 %5190
  %v5195 = vadd.f32 %v5165, %v5187
  %v5196 = vadd.f32 %v5166, %v5189
  %v5197 = vadd.f32 %v5167, %v5191
  %5198 = vset.pattern.permute.xlu0 4
  %5199 = vperm.xlu0 %5198, %v297
  %v5200 = vpop.permute.xlu0 %5199
  %5202 = vset.pattern.permute.xlu0 4
  %5203 = vperm.xlu0 %5202, %v298
  %v5204 = vpop.permute.xlu0 %5203
  %5206 = vset.pattern.permute.xlu0 4
  %5207 = vperm.xlu0 %5206, %v299
  %v5208 = vpop.permute.xlu0 %5207
  %v5210 = vmul.f32 %v5079, %v5200
  %v5211 = vmul.f32 %v5081, %v5204
  %v5212 = vmul.f32 %v5084, %v5208
  %5216 = vrot.lane.b32.xlu0 %v5210, 124
  %v5217 = vpop.permute.xlu0 %5216
  %5218 = vrot.lane.b32.xlu0 %v5211, 124
  %v5219 = vpop.permute.xlu0 %5218
  %5220 = vrot.lane.b32.xlu0 %v5212, 124
  %v5221 = vpop.permute.xlu0 %5220
  %v5225 = vadd.f32 %v5195, %v5217
  %v5226 = vadd.f32 %v5196, %v5219
  %v5227 = vadd.f32 %v5197, %v5221
  %5228 = vset.pattern.permute.xlu0 5
  %5229 = vperm.xlu0 %5228, %v297
  %v5230 = vpop.permute.xlu0 %5229
  %5232 = vset.pattern.permute.xlu0 5
  %5233 = vperm.xlu0 %5232, %v298
  %v5234 = vpop.permute.xlu0 %5233
  %5236 = vset.pattern.permute.xlu0 5
  %5237 = vperm.xlu0 %5236, %v299
  %v5238 = vpop.permute.xlu0 %5237
  %v5240 = vmul.f32 %v5079, %v5230
  %v5241 = vmul.f32 %v5081, %v5234
  %v5242 = vmul.f32 %v5084, %v5238
  %5246 = vrot.lane.b32.xlu0 %v5240, 123
  %v5247 = vpop.permute.xlu0 %5246
  %5248 = vrot.lane.b32.xlu0 %v5241, 123
  %v5249 = vpop.permute.xlu0 %5248
  %5250 = vrot.lane.b32.xlu0 %v5242, 123
  %v5251 = vpop.permute.xlu0 %5250
  %v5255 = vadd.f32 %v5225, %v5247
  %v5256 = vadd.f32 %v5226, %v5249
  %v5257 = vadd.f32 %v5227, %v5251
  %5258 = vset.pattern.permute.xlu0 6
  %5259 = vperm.xlu0 %5258, %v297
  %v5260 = vpop.permute.xlu0 %5259
  %5262 = vset.pattern.permute.xlu0 6
  %5263 = vperm.xlu0 %5262, %v298
  %v5264 = vpop.permute.xlu0 %5263
  %5266 = vset.pattern.permute.xlu0 6
  %5267 = vperm.xlu0 %5266, %v299
  %v5268 = vpop.permute.xlu0 %5267
  %v5270 = vmul.f32 %v5079, %v5260
  %v5271 = vmul.f32 %v5081, %v5264
  %v5272 = vmul.f32 %v5084, %v5268
  %5276 = vrot.lane.b32.xlu0 %v5270, 122
  %v5277 = vpop.permute.xlu0 %5276
  %5278 = vrot.lane.b32.xlu0 %v5271, 122
  %v5279 = vpop.permute.xlu0 %5278
  %5280 = vrot.lane.b32.xlu0 %v5272, 122
  %v5281 = vpop.permute.xlu0 %5280
  %v5285 = vadd.f32 %v5255, %v5277
  %v5286 = vadd.f32 %v5256, %v5279
  %v5287 = vadd.f32 %v5257, %v5281
  %5288 = vset.pattern.permute.xlu0 7
  %5289 = vperm.xlu0 %5288, %v297
  %v5290 = vpop.permute.xlu0 %5289
  %5292 = vset.pattern.permute.xlu0 7
  %5293 = vperm.xlu0 %5292, %v298
  %v5294 = vpop.permute.xlu0 %5293
  %5296 = vset.pattern.permute.xlu0 7
  %5297 = vperm.xlu0 %5296, %v299
  %v5298 = vpop.permute.xlu0 %5297
  %v5300 = vmul.f32 %v5079, %v5290
  %v5301 = vmul.f32 %v5081, %v5294
  %v5302 = vmul.f32 %v5084, %v5298
  %5306 = vrot.lane.b32.xlu0 %v5300, 121
  %v5307 = vpop.permute.xlu0 %5306
  %5308 = vrot.lane.b32.xlu0 %v5301, 121
  %v5309 = vpop.permute.xlu0 %5308
  %5310 = vrot.lane.b32.xlu0 %v5302, 121
  %v5311 = vpop.permute.xlu0 %5310
  %v5315 = vadd.f32 %v5285, %v5307
  %v5316 = vadd.f32 %v5286, %v5309
  %v5317 = vadd.f32 %v5287, %v5311
  %5318 = vset.pattern.permute.xlu0 8
  %5319 = vperm.xlu0 %5318, %v297
  %v5320 = vpop.permute.xlu0 %5319
  %5322 = vset.pattern.permute.xlu0 8
  %5323 = vperm.xlu0 %5322, %v298
  %v5324 = vpop.permute.xlu0 %5323
  %5326 = vset.pattern.permute.xlu0 8
  %5327 = vperm.xlu0 %5326, %v299
  %v5328 = vpop.permute.xlu0 %5327
  %v5330 = vmul.f32 %v5079, %v5320
  %v5331 = vmul.f32 %v5081, %v5324
  %v5332 = vmul.f32 %v5084, %v5328
  %5336 = vrot.lane.b32.xlu0 %v5330, 120
  %v5337 = vpop.permute.xlu0 %5336
  %5338 = vrot.lane.b32.xlu0 %v5331, 120
  %v5339 = vpop.permute.xlu0 %5338
  %5340 = vrot.lane.b32.xlu0 %v5332, 120
  %v5341 = vpop.permute.xlu0 %5340
  %v5345 = vadd.f32 %v5315, %v5337
  %v5346 = vadd.f32 %v5316, %v5339
  %v5347 = vadd.f32 %v5317, %v5341
  %5348 = vset.pattern.permute.xlu0 9
  %5349 = vperm.xlu0 %5348, %v297
  %v5350 = vpop.permute.xlu0 %5349
  %5352 = vset.pattern.permute.xlu0 9
  %5353 = vperm.xlu0 %5352, %v298
  %v5354 = vpop.permute.xlu0 %5353
  %5356 = vset.pattern.permute.xlu0 9
  %5357 = vperm.xlu0 %5356, %v299
  %v5358 = vpop.permute.xlu0 %5357
  %v5360 = vmul.f32 %v5079, %v5350
  %v5361 = vmul.f32 %v5081, %v5354
  %v5362 = vmul.f32 %v5084, %v5358
  %5366 = vrot.lane.b32.xlu0 %v5360, 119
  %v5367 = vpop.permute.xlu0 %5366
  %5368 = vrot.lane.b32.xlu0 %v5361, 119
  %v5369 = vpop.permute.xlu0 %5368
  %5370 = vrot.lane.b32.xlu0 %v5362, 119
  %v5371 = vpop.permute.xlu0 %5370
  %v5375 = vadd.f32 %v5345, %v5367
  %v5376 = vadd.f32 %v5346, %v5369
  %v5377 = vadd.f32 %v5347, %v5371
  %v5378 = vpack.c.bf16 %v5376, %v5375
  %v5379 = vpack.c.bf16 %v5377, %v5377
  %5381 = vset.pattern.permute.xlu0 0
  %5382 = vperm.xlu0 %5381, %v303
  %v5383 = vpop.permute.xlu0 %5382
  %5386 = vset.pattern.permute.xlu0 0
  %5387 = vperm.xlu0 %5386, %v304
  %v5388 = vpop.permute.xlu0 %5387
  %5391 = vset.pattern.permute.xlu0 0
  %5392 = vperm.xlu0 %5391, %v305
  %v5393 = vpop.permute.xlu0 %5392
  %v5398 = vunpack.c.l.b16 %v300
  %v5399 = vunpack.c.l.b16 %v301
  %v5400 = vunpack.c.l.b16 %v302
  %v5401 = vpack.c.b16 %v5399, %v5398
  %v5402 = vpack.c.b16 %v5400, %v5400
  %v5404 = vsel %vm2784, %v5401, 0
  %v5407 = vsel %vm2784, %v5402, 0
  %v5410 = vsel %vm437, %v5379, 0
  %5412 = vmatpush.bf16.msra.mxu0 0
  %5413 = vmatpush.bf16.msra.mxu0 0
  %5414 = vmatpush.bf16.msra.mxu0 0
  %5415 = vmatpush.bf16.msra.mxu0 0
  %5416 = vmatpush.bf16.msra.mxu0 0
  %5417 = vmatpush.bf16.msra.mxu0 0
  %5418 = vmatpush.bf16.msra.mxu0 %v5410
  %5419 = vmatpush.bf16.msra.mxu0 %v5378
  %5420 = vmatmul.bf16.gmra.mxu0 %v5404
  %v5421 = vpop.f32.mrf.mxu0
  %v5422 = vadd.f32 %v5383, %v5421
  %v5423 = vpop.f32.mrf.mxu0
  %v5424 = vadd.f32 %v5388, %v5423
  %5425 = vmatmul.bf16.gmra.mxu0 %v5407
  %v5426 = vpop.f32.mrf.mxu0
  %v5427 = vadd.f32 %v5393, %v5426
  %v5428 = vpop.f32.mrf.mxu0
  %5429 = vdwg.mxu0
  %vm5430 = vcmask 80896
  %v5431 = vsel %vm5430, %v5422, -inf
  %5432 = vmax.xlane.f32.xlu0 %v5431
  %v5433 = vpop.xlane.xlu0 %5432
  %v5434 = vsel %vm5430, %v5424, -inf
  %5435 = vmax.xlane.f32.xlu0 %v5434
  %v5436 = vpop.xlane.xlu0 %5435
  %v5437 = vsel %vm5430, %v5427, -inf
  %5438 = vmax.xlane.f32.xlu0 %v5437
  %v5439 = vpop.xlane.xlu0 %5438
  %vm5440 = vcmask 154696
  %v5441 = vsel %vm5440, %v5422, -inf
  %5442 = vmax.xlane.f32.xlu0 %v5441
  %v5443 = vpop.xlane.xlu0 %5442
  %v5444 = vsel %vm5440, %v5424, -inf
  %5445 = vmax.xlane.f32.xlu0 %v5444
  %v5446 = vpop.xlane.xlu0 %5445
  %v5447 = vsel %vm5440, %v5427, -inf
  %5448 = vmax.xlane.f32.xlu0 %v5447
  %v5449 = vpop.xlane.xlu0 %5448
  %vm5450 = vcmask 228496
  %v5451 = vsel %vm5450, %v5422, -inf
  %5452 = vmax.xlane.f32.xlu0 %v5451
  %v5453 = vpop.xlane.xlu0 %5452
  %v5454 = vsel %vm5450, %v5424, -inf
  %5455 = vmax.xlane.f32.xlu0 %v5454
  %v5456 = vpop.xlane.xlu0 %5455
  %v5457 = vsel %vm5450, %v5427, -inf
  %5458 = vmax.xlane.f32.xlu0 %v5457
  %v5459 = vpop.xlane.xlu0 %5458
  %vm5460 = vcmask 302296
  %v5461 = vsel %vm5460, %v5422, -inf
  %5462 = vmax.xlane.f32.xlu0 %v5461
  %v5463 = vpop.xlane.xlu0 %5462
  %v5464 = vsel %vm5460, %v5424, -inf
  %5465 = vmax.xlane.f32.xlu0 %v5464
  %v5466 = vpop.xlane.xlu0 %5465
  %v5467 = vsel %vm5460, %v5427, -inf
  %5468 = vmax.xlane.f32.xlu0 %v5467
  %v5469 = vpop.xlane.xlu0 %5468
  %s5470 = scalar_lea.vmem %s1, 16
  %v5471 = vld [vmem:[%s5470] sm:$0xff]
  %v5472 = vld [vmem:[%s5470 + $0x8] sm:$0xff]
  %5475 = vrot.lane.b32.xlu0 %v5471, 127
  %v5476 = vpop.permute.xlu0 %5475
  %5477 = vrot.lane.b32.xlu0 %v5472, 127
  %v5478 = vpop.permute.xlu0 %5477
  %v5479 = vsel %vm348, %v5476, %v5478
  %5482 = vrot.lane.b32.xlu0 %v5471, 126
  %v5483 = vpop.permute.xlu0 %5482
  %5484 = vrot.lane.b32.xlu0 %v5472, 126
  %v5485 = vpop.permute.xlu0 %5484
  %v5486 = vsel %vm356, %v5483, %v5485
  %5489 = vrot.lane.b32.xlu0 %v5471, 125
  %v5490 = vpop.permute.xlu0 %5489
  %5491 = vrot.lane.b32.xlu0 %v5472, 125
  %v5492 = vpop.permute.xlu0 %5491
  %v5493 = vsel %vm364, %v5490, %v5492
  %5496 = vrot.lane.b32.xlu0 %v5471, 124
  %v5497 = vpop.permute.xlu0 %5496
  %5498 = vrot.lane.b32.xlu0 %v5472, 124
  %v5499 = vpop.permute.xlu0 %5498
  %v5500 = vsel %vm372, %v5497, %v5499
  %5503 = vrot.lane.b32.xlu0 %v5471, 123
  %v5504 = vpop.permute.xlu0 %5503
  %5505 = vrot.lane.b32.xlu0 %v5472, 123
  %v5506 = vpop.permute.xlu0 %5505
  %v5507 = vsel %vm380, %v5504, %v5506
  %5510 = vrot.lane.b32.xlu0 %v5471, 122
  %v5511 = vpop.permute.xlu0 %5510
  %5512 = vrot.lane.b32.xlu0 %v5472, 122
  %v5513 = vpop.permute.xlu0 %5512
  %v5514 = vsel %vm388, %v5511, %v5513
  %5517 = vrot.lane.b32.xlu0 %v5471, 121
  %v5518 = vpop.permute.xlu0 %5517
  %5519 = vrot.lane.b32.xlu0 %v5472, 121
  %v5520 = vpop.permute.xlu0 %5519
  %v5521 = vsel %vm396, %v5518, %v5520
  %5524 = vrot.lane.b32.xlu0 %v5471, 120
  %v5525 = vpop.permute.xlu0 %5524
  %5526 = vrot.lane.b32.xlu0 %v5472, 120
  %v5527 = vpop.permute.xlu0 %5526
  %v5528 = vsel %vm404, %v5525, %v5527
  %v5531 = vpack.c.bf16 %v5479, %v5471
  %v5532 = vpack.c.bf16 %v5478, %v5472
  %v5533 = vpack.c.bf16 %v5493, %v5486
  %v5534 = vpack.c.bf16 %v5492, %v5485
  %v5535 = vpack.c.bf16 %v5507, %v5500
  %v5536 = vpack.c.bf16 %v5506, %v5499
  %v5537 = vpack.c.bf16 %v5521, %v5514
  %v5538 = vpack.c.bf16 %v5520, %v5513
  %v5539 = vpack.c.bf16 %v5528, %v5528
  %v5540 = vpack.c.bf16 %v5527, %v5527
  %v5542 = vsel %vm437, %v5539, 0
  %v5545 = vsel %vm437, %v5540, 0
  %5547 = vmatpush.bf16.msra.mxu0 0
  %5548 = vmatpush.bf16.msra.mxu0 0
  %5549 = vmatpush.bf16.msra.mxu0 0
  %5550 = vmatpush.bf16.msra.mxu0 %v5542
  %5551 = vmatpush.bf16.msra.mxu0 %v5537
  %5552 = vmatpush.bf16.msra.mxu0 %v5535
  %5553 = vmatpush.bf16.msra.mxu0 %v5533
  %5554 = vmatpush.bf16.msra.mxu0 %v5531
  %5555 = vmatmul.bf16.gmra.mxu0 %v435
  %v5556 = vpop.f32.mrf.mxu0
  %v5557 = vadd.f32 %v421, %v5556
  %v5558 = vpop.f32.mrf.mxu0
  %v5559 = vadd.f32 %v426, %v5558
  %5560 = vdwg.mxu0
  %5561 = vmatpush.bf16.msra.mxu0 0
  %5562 = vmatpush.bf16.msra.mxu0 0
  %5563 = vmatpush.bf16.msra.mxu0 0
  %5564 = vmatpush.bf16.msra.mxu0 %v5545
  %5565 = vmatpush.bf16.msra.mxu0 %v5538
  %5566 = vmatpush.bf16.msra.mxu0 %v5536
  %5567 = vmatpush.bf16.msra.mxu0 %v5534
  %5568 = vmatpush.bf16.msra.mxu0 %v5532
  %5569 = vmatmul.bf16.gmra.mxu0 %v435
  %v5570 = vpop.f32.mrf.mxu0
  %v5571 = vadd.f32 %v421, %v5570
  %v5572 = vpop.f32.mrf.mxu0
  %v5573 = vadd.f32 %v426, %v5572
  %5574 = vdwg.mxu0
  %v5575 = vmax.f32 %v5557, 0.0
  %v5576 = vmax.f32 %v5571, 0.0
  %v5577 = vmax.f32 %v5559, 0.0
  %v5578 = vmax.f32 %v5573, 0.0
  %v5579 = vpack.c.bf16 %v5577, %v5575
  %v5580 = vpack.c.bf16 %v5578, %v5576
  %v5582 = vsel %vm497, %v5579, 0
  %v5585 = vsel %vm497, %v5580, 0
  %5587 = vmatpush.bf16.msra.mxu0 0
  %5588 = vmatpush.bf16.msra.mxu0 0
  %5589 = vmatpush.bf16.msra.mxu0 0
  %5590 = vmatpush.bf16.msra.mxu0 0
  %5591 = vmatpush.bf16.msra.mxu0 0
  %5592 = vmatpush.bf16.msra.mxu0 0
  %5593 = vmatpush.bf16.msra.mxu0 0
  %5594 = vmatpush.bf16.msra.mxu0 %v5582
  %5595 = vmatmul.bf16.gmra.mxu0 %v495
  %v5596 = vpop.f32.mrf.mxu0
  %v5597 = vadd.f32 %v481, %v5596
  %v5598 = vpop.f32.mrf.mxu0
  %v5599 = vadd.f32 %v486, %v5598
  %5600 = vdwg.mxu0
  %5601 = vmatpush.bf16.msra.mxu0 0
  %5602 = vmatpush.bf16.msra.mxu0 0
  %5603 = vmatpush.bf16.msra.mxu0 0
  %5604 = vmatpush.bf16.msra.mxu0 0
  %5605 = vmatpush.bf16.msra.mxu0 0
  %5606 = vmatpush.bf16.msra.mxu0 0
  %5607 = vmatpush.bf16.msra.mxu0 0
  %5608 = vmatpush.bf16.msra.mxu0 %v5585
  %5609 = vmatmul.bf16.gmra.mxu0 %v495
  %v5610 = vpop.f32.mrf.mxu0
  %v5611 = vadd.f32 %v481, %v5610
  %v5612 = vpop.f32.mrf.mxu0
  %v5613 = vadd.f32 %v486, %v5612
  %5614 = vdwg.mxu0
  %v5615 = vpack.c.bf16 %v5471, %v5471
  %v5616 = vpack.c.bf16 %v5472, %v5472
  %5619 = vrot.lane.b32.xlu0 %v5615, 124
  %v5620 = vpop.permute.xlu0 %5619
  %5621 = vrot.lane.b32.xlu0 %v5616, 124
  %v5622 = vpop.permute.xlu0 %5621
  %v5623 = vsel %vm545, %v5620, %v5622
  %v5625 = vsel %vm437, %v5623, 0
  %v5628 = vsel %vm437, %v5622, 0
  %5630 = vmatpush.bf16.msra.mxu0 0
  %5631 = vmatpush.bf16.msra.mxu0 0
  %5632 = vmatpush.bf16.msra.mxu0 0
  %5633 = vmatpush.bf16.msra.mxu0 0
  %5634 = vmatpush.bf16.msra.mxu0 0
  %5635 = vmatpush.bf16.msra.mxu0 0
  %5636 = vmatpush.bf16.msra.mxu0 0
  %5637 = vmatpush.bf16.msra.mxu0 %v5625
  %5638 = vmatmul.bf16.gmra.mxu0 %v549
  %v5639 = vpop.f32.mrf.mxu0
  %v5640 = vadd.f32 0.0, %v5639
  %v5641 = vpop.f32.mrf.mxu0
  %v5642 = vadd.f32 0.0, %v5641
  %5643 = vdwg.mxu0
  %5644 = vmatpush.bf16.msra.mxu0 0
  %5645 = vmatpush.bf16.msra.mxu0 0
  %5646 = vmatpush.bf16.msra.mxu0 0
  %5647 = vmatpush.bf16.msra.mxu0 0
  %5648 = vmatpush.bf16.msra.mxu0 0
  %5649 = vmatpush.bf16.msra.mxu0 0
  %5650 = vmatpush.bf16.msra.mxu0 0
  %5651 = vmatpush.bf16.msra.mxu0 %v5628
  %5652 = vmatmul.bf16.gmra.mxu0 %v549
  %v5653 = vpop.f32.mrf.mxu0
  %v5654 = vadd.f32 0.0, %v5653
  %v5655 = vpop.f32.mrf.mxu0
  %v5656 = vadd.f32 0.0, %v5655
  %5657 = vdwg.mxu0
  %v5658 = vadd.f32 %v5597, %v5640
  %v5659 = vadd.f32 %v5611, %v5654
  %v5660 = vadd.f32 %v5599, %v5642
  %v5661 = vadd.f32 %v5613, %v5656
  %v5662 = vadd.f32 %v5658, %v592
  %v5663 = vadd.f32 %v5659, %v592
  %v5664 = vadd.f32 %v5660, %v597
  %v5665 = vadd.f32 %v5661, %v597
  %v5666 = vpack.c.bf16 %v5664, %v5662
  %v5667 = vpack.c.bf16 %v5665, %v5663
  %v5669 = vsel %vm497, %v5666, 0
  %v5672 = vsel %vm497, %v5667, 0
  %5674 = vmatpush.bf16.msra.mxu0 0
  %5675 = vmatpush.bf16.msra.mxu0 0
  %5676 = vmatpush.bf16.msra.mxu0 0
  %5677 = vmatpush.bf16.msra.mxu0 0
  %5678 = vmatpush.bf16.msra.mxu0 0
  %5679 = vmatpush.bf16.msra.mxu0 0
  %5680 = vmatpush.bf16.msra.mxu0 0
  %5681 = vmatpush.bf16.msra.mxu0 %v5669
  %5682 = vmatmul.bf16.gmra.mxu0 %v674
  %v5683 = vpop.f32.mrf.mxu0
  %v5684 = vadd.f32 %v608, %v5683
  %v5685 = vpop.f32.mrf.mxu0
  %v5686 = vadd.f32 %v613, %v5685
  %5687 = vmatmul.bf16.gmra.mxu0 %v677
  %v5688 = vpop.f32.mrf.mxu0
  %v5689 = vadd.f32 %v618, %v5688
  %v5690 = vpop.f32.mrf.mxu0
  %v5691 = vadd.f32 %v623, %v5690
  %5692 = vmatmul.bf16.gmra.mxu0 %v680
  %v5693 = vpop.f32.mrf.mxu0
  %v5694 = vadd.f32 %v628, %v5693
  %v5695 = vpop.f32.mrf.mxu0
  %v5696 = vadd.f32 %v633, %v5695
  %5697 = vmatmul.bf16.gmra.mxu0 %v683
  %v5698 = vpop.f32.mrf.mxu0
  %v5699 = vadd.f32 %v638, %v5698
  %v5700 = vpop.f32.mrf.mxu0
  %v5701 = vadd.f32 %v643, %v5700
  %5702 = vmatmul.bf16.gmra.mxu0 %v686
  %v5703 = vpop.f32.mrf.mxu0
  %v5704 = vadd.f32 %v648, %v5703
  %v5705 = vpop.f32.mrf.mxu0
  %5706 = vdwg.mxu0
  %5707 = vmatpush.bf16.msra.mxu0 0
  %5708 = vmatpush.bf16.msra.mxu0 0
  %5709 = vmatpush.bf16.msra.mxu0 0
  %5710 = vmatpush.bf16.msra.mxu0 0
  %5711 = vmatpush.bf16.msra.mxu0 0
  %5712 = vmatpush.bf16.msra.mxu0 0
  %5713 = vmatpush.bf16.msra.mxu0 0
  %5714 = vmatpush.bf16.msra.mxu0 %v5672
  %5715 = vmatmul.bf16.gmra.mxu0 %v674
  %v5716 = vpop.f32.mrf.mxu0
  %v5717 = vadd.f32 %v608, %v5716
  %v5718 = vpop.f32.mrf.mxu0
  %v5719 = vadd.f32 %v613, %v5718
  %5720 = vmatmul.bf16.gmra.mxu0 %v677
  %v5721 = vpop.f32.mrf.mxu0
  %v5722 = vadd.f32 %v618, %v5721
  %v5723 = vpop.f32.mrf.mxu0
  %v5724 = vadd.f32 %v623, %v5723
  %5725 = vmatmul.bf16.gmra.mxu0 %v680
  %v5726 = vpop.f32.mrf.mxu0
  %v5727 = vadd.f32 %v628, %v5726
  %v5728 = vpop.f32.mrf.mxu0
  %v5729 = vadd.f32 %v633, %v5728
  %5730 = vmatmul.bf16.gmra.mxu0 %v683
  %v5731 = vpop.f32.mrf.mxu0
  %v5732 = vadd.f32 %v638, %v5731
  %v5733 = vpop.f32.mrf.mxu0
  %v5734 = vadd.f32 %v643, %v5733
  %5735 = vmatmul.bf16.gmra.mxu0 %v686
  %v5736 = vpop.f32.mrf.mxu0
  %v5737 = vadd.f32 %v648, %v5736
  %v5738 = vpop.f32.mrf.mxu0
  %5739 = vdwg.mxu0
  %v5740 = vmax.f32 %v5684, 0.0
  %v5741 = vmax.f32 %v5717, 0.0
  %v5742 = vmax.f32 %v5686, 0.0
  %v5743 = vmax.f32 %v5719, 0.0
  %v5744 = vmax.f32 %v5689, 0.0
  %v5745 = vmax.f32 %v5722, 0.0
  %v5746 = vmax.f32 %v5691, 0.0
  %v5747 = vmax.f32 %v5724, 0.0
  %v5748 = vmax.f32 %v5694, 0.0
  %v5749 = vmax.f32 %v5727, 0.0
  %v5750 = vmax.f32 %v5696, 0.0
  %v5751 = vmax.f32 %v5729, 0.0
  %v5752 = vmax.f32 %v5699, 0.0
  %v5753 = vmax.f32 %v5732, 0.0
  %v5754 = vmax.f32 %v5701, 0.0
  %v5755 = vmax.f32 %v5734, 0.0
  %v5756 = vmax.f32 %v5704, 0.0
  %v5757 = vmax.f32 %v5737, 0.0
  %5776 = vrot.lane.b32.xlu0 %v5740, 4
  %v5777 = vpop.permute.xlu0 %5776
  %5778 = vrot.lane.b32.xlu0 %v5741, 4
  %v5779 = vpop.permute.xlu0 %5778
  %5780 = vrot.lane.b32.xlu0 %v5742, 4
  %v5781 = vpop.permute.xlu0 %5780
  %5782 = vrot.lane.b32.xlu0 %v5743, 4
  %v5783 = vpop.permute.xlu0 %5782
  %5784 = vrot.lane.b32.xlu0 %v5744, 4
  %v5785 = vpop.permute.xlu0 %5784
  %5786 = vrot.lane.b32.xlu0 %v5745, 4
  %v5787 = vpop.permute.xlu0 %5786
  %5788 = vrot.lane.b32.xlu0 %v5746, 4
  %v5789 = vpop.permute.xlu0 %5788
  %5790 = vrot.lane.b32.xlu0 %v5747, 4
  %v5791 = vpop.permute.xlu0 %5790
  %5792 = vrot.lane.b32.xlu0 %v5748, 4
  %v5793 = vpop.permute.xlu0 %5792
  %5794 = vrot.lane.b32.xlu0 %v5749, 4
  %v5795 = vpop.permute.xlu0 %5794
  %5796 = vrot.lane.b32.xlu0 %v5750, 4
  %v5797 = vpop.permute.xlu0 %5796
  %5798 = vrot.lane.b32.xlu0 %v5751, 4
  %v5799 = vpop.permute.xlu0 %5798
  %5800 = vrot.lane.b32.xlu0 %v5752, 4
  %v5801 = vpop.permute.xlu0 %5800
  %5802 = vrot.lane.b32.xlu0 %v5753, 4
  %v5803 = vpop.permute.xlu0 %5802
  %5804 = vrot.lane.b32.xlu0 %v5754, 4
  %v5805 = vpop.permute.xlu0 %5804
  %5806 = vrot.lane.b32.xlu0 %v5755, 4
  %v5807 = vpop.permute.xlu0 %5806
  %5808 = vrot.lane.b32.xlu0 %v5756, 4
  %v5809 = vpop.permute.xlu0 %5808
  %5810 = vrot.lane.b32.xlu0 %v5757, 4
  %v5811 = vpop.permute.xlu0 %5810
  %v5812 = vsel %vm832, %v5777, %v5779
  %v5813 = vsel %vm832, %v5781, %v5783
  %v5814 = vsel %vm832, %v5785, %v5787
  %v5815 = vsel %vm832, %v5789, %v5791
  %v5816 = vsel %vm832, %v5793, %v5795
  %v5817 = vsel %vm832, %v5797, %v5799
  %v5818 = vsel %vm832, %v5801, %v5803
  %v5819 = vsel %vm832, %v5805, %v5807
  %v5820 = vsel %vm832, %v5809, %v5811
  %v5839 = vsel %vm832, 0.0, %v5777
  %v5840 = vsel %vm832, 0.0, %v5781
  %v5841 = vsel %vm832, 0.0, %v5785
  %v5842 = vsel %vm832, 0.0, %v5789
  %v5843 = vsel %vm832, 0.0, %v5793
  %v5844 = vsel %vm832, 0.0, %v5797
  %v5845 = vsel %vm832, 0.0, %v5801
  %v5846 = vsel %vm832, 0.0, %v5805
  %v5847 = vsel %vm832, 0.0, %v5809
  %v5848 = vsel %vm869, %v5812, 0.0
  %v5849 = vsel %vm869, %v5813, 0.0
  %v5850 = vsel %vm869, %v5814, 0.0
  %v5851 = vsel %vm869, %v5815, 0.0
  %v5852 = vsel %vm869, %v5816, 0.0
  %v5853 = vsel %vm869, %v5817, 0.0
  %v5854 = vsel %vm869, %v5818, 0.0
  %v5855 = vsel %vm869, %v5819, 0.0
  %v5856 = vsel %vm869, %v5820, 0.0
  %v5857 = vmul.f32 %v5839, %v882
  %v5858 = vmul.f32 %v5848, %v882
  %v5859 = vmul.f32 %v5840, %v887
  %v5860 = vmul.f32 %v5849, %v887
  %v5861 = vmul.f32 %v5841, %v892
  %v5862 = vmul.f32 %v5850, %v892
  %v5863 = vmul.f32 %v5842, %v897
  %v5864 = vmul.f32 %v5851, %v897
  %v5865 = vmul.f32 %v5843, %v902
  %v5866 = vmul.f32 %v5852, %v902
  %v5867 = vmul.f32 %v5844, %v907
  %v5868 = vmul.f32 %v5853, %v907
  %v5869 = vmul.f32 %v5845, %v912
  %v5870 = vmul.f32 %v5854, %v912
  %v5871 = vmul.f32 %v5846, %v917
  %v5872 = vmul.f32 %v5855, %v917
  %v5873 = vmul.f32 %v5847, %v922
  %v5874 = vmul.f32 %v5856, %v922
  %v5875 = vadd.f32 %v5857, 0.0
  %v5876 = vadd.f32 %v5858, 0.0
  %v5877 = vadd.f32 %v5859, 0.0
  %v5878 = vadd.f32 %v5860, 0.0
  %v5879 = vadd.f32 %v5861, 0.0
  %v5880 = vadd.f32 %v5862, 0.0
  %v5881 = vadd.f32 %v5863, 0.0
  %v5882 = vadd.f32 %v5864, 0.0
  %v5883 = vadd.f32 %v5865, 0.0
  %v5884 = vadd.f32 %v5866, 0.0
  %v5885 = vadd.f32 %v5867, 0.0
  %v5886 = vadd.f32 %v5868, 0.0
  %v5887 = vadd.f32 %v5869, 0.0
  %v5888 = vadd.f32 %v5870, 0.0
  %v5889 = vadd.f32 %v5871, 0.0
  %v5890 = vadd.f32 %v5872, 0.0
  %v5891 = vadd.f32 %v5873, 0.0
  %v5892 = vadd.f32 %v5874, 0.0
  %v5893 = vmul.f32 %v5839, %v962
  %v5894 = vmul.f32 %v5848, %v962
  %v5895 = vmul.f32 %v5840, %v966
  %v5896 = vmul.f32 %v5849, %v966
  %v5897 = vmul.f32 %v5841, %v970
  %v5898 = vmul.f32 %v5850, %v970
  %v5899 = vmul.f32 %v5842, %v974
  %v5900 = vmul.f32 %v5851, %v974
  %v5901 = vmul.f32 %v5843, %v978
  %v5902 = vmul.f32 %v5852, %v978
  %v5903 = vmul.f32 %v5844, %v982
  %v5904 = vmul.f32 %v5853, %v982
  %v5905 = vmul.f32 %v5845, %v986
  %v5906 = vmul.f32 %v5854, %v986
  %v5907 = vmul.f32 %v5846, %v990
  %v5908 = vmul.f32 %v5855, %v990
  %v5909 = vmul.f32 %v5847, %v994
  %v5910 = vmul.f32 %v5856, %v994
  %5929 = vrot.lane.b32.xlu0 %v5893, 127
  %v5930 = vpop.permute.xlu0 %5929
  %5931 = vrot.lane.b32.xlu0 %v5894, 127
  %v5932 = vpop.permute.xlu0 %5931
  %5933 = vrot.lane.b32.xlu0 %v5895, 127
  %v5934 = vpop.permute.xlu0 %5933
  %5935 = vrot.lane.b32.xlu0 %v5896, 127
  %v5936 = vpop.permute.xlu0 %5935
  %5937 = vrot.lane.b32.xlu0 %v5897, 127
  %v5938 = vpop.permute.xlu0 %5937
  %5939 = vrot.lane.b32.xlu0 %v5898, 127
  %v5940 = vpop.permute.xlu0 %5939
  %5941 = vrot.lane.b32.xlu0 %v5899, 127
  %v5942 = vpop.permute.xlu0 %5941
  %5943 = vrot.lane.b32.xlu0 %v5900, 127
  %v5944 = vpop.permute.xlu0 %5943
  %5945 = vrot.lane.b32.xlu0 %v5901, 127
  %v5946 = vpop.permute.xlu0 %5945
  %5947 = vrot.lane.b32.xlu0 %v5902, 127
  %v5948 = vpop.permute.xlu0 %5947
  %5949 = vrot.lane.b32.xlu0 %v5903, 127
  %v5950 = vpop.permute.xlu0 %5949
  %5951 = vrot.lane.b32.xlu0 %v5904, 127
  %v5952 = vpop.permute.xlu0 %5951
  %5953 = vrot.lane.b32.xlu0 %v5905, 127
  %v5954 = vpop.permute.xlu0 %5953
  %5955 = vrot.lane.b32.xlu0 %v5906, 127
  %v5956 = vpop.permute.xlu0 %5955
  %5957 = vrot.lane.b32.xlu0 %v5907, 127
  %v5958 = vpop.permute.xlu0 %5957
  %5959 = vrot.lane.b32.xlu0 %v5908, 127
  %v5960 = vpop.permute.xlu0 %5959
  %5961 = vrot.lane.b32.xlu0 %v5909, 127
  %v5962 = vpop.permute.xlu0 %5961
  %5963 = vrot.lane.b32.xlu0 %v5910, 127
  %v5964 = vpop.permute.xlu0 %5963
  %v5965 = vsel %vm348, %v5930, %v5932
  %v5966 = vsel %vm348, %v5934, %v5936
  %v5967 = vsel %vm348, %v5938, %v5940
  %v5968 = vsel %vm348, %v5942, %v5944
  %v5969 = vsel %vm348, %v5946, %v5948
  %v5970 = vsel %vm348, %v5950, %v5952
  %v5971 = vsel %vm348, %v5954, %v5956
  %v5972 = vsel %vm348, %v5958, %v5960
  %v5973 = vsel %vm348, %v5962, %v5964
  %v5992 = vadd.f32 %v5875, %v5965
  %v5993 = vadd.f32 %v5876, %v5932
  %v5994 = vadd.f32 %v5877, %v5966
  %v5995 = vadd.f32 %v5878, %v5936
  %v5996 = vadd.f32 %v5879, %v5967
  %v5997 = vadd.f32 %v5880, %v5940
  %v5998 = vadd.f32 %v5881, %v5968
  %v5999 = vadd.f32 %v5882, %v5944
  %v6000 = vadd.f32 %v5883, %v5969
  %v6001 = vadd.f32 %v5884, %v5948
  %v6002 = vadd.f32 %v5885, %v5970
  %v6003 = vadd.f32 %v5886, %v5952
  %v6004 = vadd.f32 %v5887, %v5971
  %v6005 = vadd.f32 %v5888, %v5956
  %v6006 = vadd.f32 %v5889, %v5972
  %v6007 = vadd.f32 %v5890, %v5960
  %v6008 = vadd.f32 %v5891, %v5973
  %v6009 = vadd.f32 %v5892, %v5964
  %v6010 = vmul.f32 %v5839, %v1115
  %v6011 = vmul.f32 %v5848, %v1115
  %v6012 = vmul.f32 %v5840, %v1119
  %v6013 = vmul.f32 %v5849, %v1119
  %v6014 = vmul.f32 %v5841, %v1123
  %v6015 = vmul.f32 %v5850, %v1123
  %v6016 = vmul.f32 %v5842, %v1127
  %v6017 = vmul.f32 %v5851, %v1127
  %v6018 = vmul.f32 %v5843, %v1131
  %v6019 = vmul.f32 %v5852, %v1131
  %v6020 = vmul.f32 %v5844, %v1135
  %v6021 = vmul.f32 %v5853, %v1135
  %v6022 = vmul.f32 %v5845, %v1139
  %v6023 = vmul.f32 %v5854, %v1139
  %v6024 = vmul.f32 %v5846, %v1143
  %v6025 = vmul.f32 %v5855, %v1143
  %v6026 = vmul.f32 %v5847, %v1147
  %v6027 = vmul.f32 %v5856, %v1147
  %6046 = vrot.lane.b32.xlu0 %v6010, 126
  %v6047 = vpop.permute.xlu0 %6046
  %6048 = vrot.lane.b32.xlu0 %v6011, 126
  %v6049 = vpop.permute.xlu0 %6048
  %6050 = vrot.lane.b32.xlu0 %v6012, 126
  %v6051 = vpop.permute.xlu0 %6050
  %6052 = vrot.lane.b32.xlu0 %v6013, 126
  %v6053 = vpop.permute.xlu0 %6052
  %6054 = vrot.lane.b32.xlu0 %v6014, 126
  %v6055 = vpop.permute.xlu0 %6054
  %6056 = vrot.lane.b32.xlu0 %v6015, 126
  %v6057 = vpop.permute.xlu0 %6056
  %6058 = vrot.lane.b32.xlu0 %v6016, 126
  %v6059 = vpop.permute.xlu0 %6058
  %6060 = vrot.lane.b32.xlu0 %v6017, 126
  %v6061 = vpop.permute.xlu0 %6060
  %6062 = vrot.lane.b32.xlu0 %v6018, 126
  %v6063 = vpop.permute.xlu0 %6062
  %6064 = vrot.lane.b32.xlu0 %v6019, 126
  %v6065 = vpop.permute.xlu0 %6064
  %6066 = vrot.lane.b32.xlu0 %v6020, 126
  %v6067 = vpop.permute.xlu0 %6066
  %6068 = vrot.lane.b32.xlu0 %v6021, 126
  %v6069 = vpop.permute.xlu0 %6068
  %6070 = vrot.lane.b32.xlu0 %v6022, 126
  %v6071 = vpop.permute.xlu0 %6070
  %6072 = vrot.lane.b32.xlu0 %v6023, 126
  %v6073 = vpop.permute.xlu0 %6072
  %6074 = vrot.lane.b32.xlu0 %v6024, 126
  %v6075 = vpop.permute.xlu0 %6074
  %6076 = vrot.lane.b32.xlu0 %v6025, 126
  %v6077 = vpop.permute.xlu0 %6076
  %6078 = vrot.lane.b32.xlu0 %v6026, 126
  %v6079 = vpop.permute.xlu0 %6078
  %6080 = vrot.lane.b32.xlu0 %v6027, 126
  %v6081 = vpop.permute.xlu0 %6080
  %v6082 = vsel %vm356, %v6047, %v6049
  %v6083 = vsel %vm356, %v6051, %v6053
  %v6084 = vsel %vm356, %v6055, %v6057
  %v6085 = vsel %vm356, %v6059, %v6061
  %v6086 = vsel %vm356, %v6063, %v6065
  %v6087 = vsel %vm356, %v6067, %v6069
  %v6088 = vsel %vm356, %v6071, %v6073
  %v6089 = vsel %vm356, %v6075, %v6077
  %v6090 = vsel %vm356, %v6079, %v6081
  %v6109 = vadd.f32 %v5992, %v6082
  %v6110 = vadd.f32 %v5993, %v6049
  %v6111 = vadd.f32 %v5994, %v6083
  %v6112 = vadd.f32 %v5995, %v6053
  %v6113 = vadd.f32 %v5996, %v6084
  %v6114 = vadd.f32 %v5997, %v6057
  %v6115 = vadd.f32 %v5998, %v6085
  %v6116 = vadd.f32 %v5999, %v6061
  %v6117 = vadd.f32 %v6000, %v6086
  %v6118 = vadd.f32 %v6001, %v6065
  %v6119 = vadd.f32 %v6002, %v6087
  %v6120 = vadd.f32 %v6003, %v6069
  %v6121 = vadd.f32 %v6004, %v6088
  %v6122 = vadd.f32 %v6005, %v6073
  %v6123 = vadd.f32 %v6006, %v6089
  %v6124 = vadd.f32 %v6007, %v6077
  %v6125 = vadd.f32 %v6008, %v6090
  %v6126 = vadd.f32 %v6009, %v6081
  %v6127 = vmul.f32 %v5839, %v1268
  %v6128 = vmul.f32 %v5848, %v1268
  %v6129 = vmul.f32 %v5840, %v1272
  %v6130 = vmul.f32 %v5849, %v1272
  %v6131 = vmul.f32 %v5841, %v1276
  %v6132 = vmul.f32 %v5850, %v1276
  %v6133 = vmul.f32 %v5842, %v1280
  %v6134 = vmul.f32 %v5851, %v1280
  %v6135 = vmul.f32 %v5843, %v1284
  %v6136 = vmul.f32 %v5852, %v1284
  %v6137 = vmul.f32 %v5844, %v1288
  %v6138 = vmul.f32 %v5853, %v1288
  %v6139 = vmul.f32 %v5845, %v1292
  %v6140 = vmul.f32 %v5854, %v1292
  %v6141 = vmul.f32 %v5846, %v1296
  %v6142 = vmul.f32 %v5855, %v1296
  %v6143 = vmul.f32 %v5847, %v1300
  %v6144 = vmul.f32 %v5856, %v1300
  %6163 = vrot.lane.b32.xlu0 %v6127, 125
  %v6164 = vpop.permute.xlu0 %6163
  %6165 = vrot.lane.b32.xlu0 %v6128, 125
  %v6166 = vpop.permute.xlu0 %6165
  %6167 = vrot.lane.b32.xlu0 %v6129, 125
  %v6168 = vpop.permute.xlu0 %6167
  %6169 = vrot.lane.b32.xlu0 %v6130, 125
  %v6170 = vpop.permute.xlu0 %6169
  %6171 = vrot.lane.b32.xlu0 %v6131, 125
  %v6172 = vpop.permute.xlu0 %6171
  %6173 = vrot.lane.b32.xlu0 %v6132, 125
  %v6174 = vpop.permute.xlu0 %6173
  %6175 = vrot.lane.b32.xlu0 %v6133, 125
  %v6176 = vpop.permute.xlu0 %6175
  %6177 = vrot.lane.b32.xlu0 %v6134, 125
  %v6178 = vpop.permute.xlu0 %6177
  %6179 = vrot.lane.b32.xlu0 %v6135, 125
  %v6180 = vpop.permute.xlu0 %6179
  %6181 = vrot.lane.b32.xlu0 %v6136, 125
  %v6182 = vpop.permute.xlu0 %6181
  %6183 = vrot.lane.b32.xlu0 %v6137, 125
  %v6184 = vpop.permute.xlu0 %6183
  %6185 = vrot.lane.b32.xlu0 %v6138, 125
  %v6186 = vpop.permute.xlu0 %6185
  %6187 = vrot.lane.b32.xlu0 %v6139, 125
  %v6188 = vpop.permute.xlu0 %6187
  %6189 = vrot.lane.b32.xlu0 %v6140, 125
  %v6190 = vpop.permute.xlu0 %6189
  %6191 = vrot.lane.b32.xlu0 %v6141, 125
  %v6192 = vpop.permute.xlu0 %6191
  %6193 = vrot.lane.b32.xlu0 %v6142, 125
  %v6194 = vpop.permute.xlu0 %6193
  %6195 = vrot.lane.b32.xlu0 %v6143, 125
  %v6196 = vpop.permute.xlu0 %6195
  %6197 = vrot.lane.b32.xlu0 %v6144, 125
  %v6198 = vpop.permute.xlu0 %6197
  %v6199 = vsel %vm364, %v6164, %v6166
  %v6200 = vsel %vm364, %v6168, %v6170
  %v6201 = vsel %vm364, %v6172, %v6174
  %v6202 = vsel %vm364, %v6176, %v6178
  %v6203 = vsel %vm364, %v6180, %v6182
  %v6204 = vsel %vm364, %v6184, %v6186
  %v6205 = vsel %vm364, %v6188, %v6190
  %v6206 = vsel %vm364, %v6192, %v6194
  %v6207 = vsel %vm364, %v6196, %v6198
  %v6226 = vadd.f32 %v6109, %v6199
  %v6227 = vadd.f32 %v6110, %v6166
  %v6228 = vadd.f32 %v6111, %v6200
  %v6229 = vadd.f32 %v6112, %v6170
  %v6230 = vadd.f32 %v6113, %v6201
  %v6231 = vadd.f32 %v6114, %v6174
  %v6232 = vadd.f32 %v6115, %v6202
  %v6233 = vadd.f32 %v6116, %v6178
  %v6234 = vadd.f32 %v6117, %v6203
  %v6235 = vadd.f32 %v6118, %v6182
  %v6236 = vadd.f32 %v6119, %v6204
  %v6237 = vadd.f32 %v6120, %v6186
  %v6238 = vadd.f32 %v6121, %v6205
  %v6239 = vadd.f32 %v6122, %v6190
  %v6240 = vadd.f32 %v6123, %v6206
  %v6241 = vadd.f32 %v6124, %v6194
  %v6242 = vadd.f32 %v6125, %v6207
  %v6243 = vadd.f32 %v6126, %v6198
  %v6244 = vmul.f32 %v5839, %v1421
  %v6245 = vmul.f32 %v5848, %v1421
  %v6246 = vmul.f32 %v5840, %v1425
  %v6247 = vmul.f32 %v5849, %v1425
  %v6248 = vmul.f32 %v5841, %v1429
  %v6249 = vmul.f32 %v5850, %v1429
  %v6250 = vmul.f32 %v5842, %v1433
  %v6251 = vmul.f32 %v5851, %v1433
  %v6252 = vmul.f32 %v5843, %v1437
  %v6253 = vmul.f32 %v5852, %v1437
  %v6254 = vmul.f32 %v5844, %v1441
  %v6255 = vmul.f32 %v5853, %v1441
  %v6256 = vmul.f32 %v5845, %v1445
  %v6257 = vmul.f32 %v5854, %v1445
  %v6258 = vmul.f32 %v5846, %v1449
  %v6259 = vmul.f32 %v5855, %v1449
  %v6260 = vmul.f32 %v5847, %v1453
  %v6261 = vmul.f32 %v5856, %v1453
  %6280 = vrot.lane.b32.xlu0 %v6244, 124
  %v6281 = vpop.permute.xlu0 %6280
  %6282 = vrot.lane.b32.xlu0 %v6245, 124
  %v6283 = vpop.permute.xlu0 %6282
  %6284 = vrot.lane.b32.xlu0 %v6246, 124
  %v6285 = vpop.permute.xlu0 %6284
  %6286 = vrot.lane.b32.xlu0 %v6247, 124
  %v6287 = vpop.permute.xlu0 %6286
  %6288 = vrot.lane.b32.xlu0 %v6248, 124
  %v6289 = vpop.permute.xlu0 %6288
  %6290 = vrot.lane.b32.xlu0 %v6249, 124
  %v6291 = vpop.permute.xlu0 %6290
  %6292 = vrot.lane.b32.xlu0 %v6250, 124
  %v6293 = vpop.permute.xlu0 %6292
  %6294 = vrot.lane.b32.xlu0 %v6251, 124
  %v6295 = vpop.permute.xlu0 %6294
  %6296 = vrot.lane.b32.xlu0 %v6252, 124
  %v6297 = vpop.permute.xlu0 %6296
  %6298 = vrot.lane.b32.xlu0 %v6253, 124
  %v6299 = vpop.permute.xlu0 %6298
  %6300 = vrot.lane.b32.xlu0 %v6254, 124
  %v6301 = vpop.permute.xlu0 %6300
  %6302 = vrot.lane.b32.xlu0 %v6255, 124
  %v6303 = vpop.permute.xlu0 %6302
  %6304 = vrot.lane.b32.xlu0 %v6256, 124
  %v6305 = vpop.permute.xlu0 %6304
  %6306 = vrot.lane.b32.xlu0 %v6257, 124
  %v6307 = vpop.permute.xlu0 %6306
  %6308 = vrot.lane.b32.xlu0 %v6258, 124
  %v6309 = vpop.permute.xlu0 %6308
  %6310 = vrot.lane.b32.xlu0 %v6259, 124
  %v6311 = vpop.permute.xlu0 %6310
  %6312 = vrot.lane.b32.xlu0 %v6260, 124
  %v6313 = vpop.permute.xlu0 %6312
  %6314 = vrot.lane.b32.xlu0 %v6261, 124
  %v6315 = vpop.permute.xlu0 %6314
  %v6316 = vsel %vm372, %v6281, %v6283
  %v6317 = vsel %vm372, %v6285, %v6287
  %v6318 = vsel %vm372, %v6289, %v6291
  %v6319 = vsel %vm372, %v6293, %v6295
  %v6320 = vsel %vm372, %v6297, %v6299
  %v6321 = vsel %vm372, %v6301, %v6303
  %v6322 = vsel %vm372, %v6305, %v6307
  %v6323 = vsel %vm372, %v6309, %v6311
  %v6324 = vsel %vm372, %v6313, %v6315
  %v6343 = vadd.f32 %v6226, %v6316
  %v6344 = vadd.f32 %v6227, %v6283
  %v6345 = vadd.f32 %v6228, %v6317
  %v6346 = vadd.f32 %v6229, %v6287
  %v6347 = vadd.f32 %v6230, %v6318
  %v6348 = vadd.f32 %v6231, %v6291
  %v6349 = vadd.f32 %v6232, %v6319
  %v6350 = vadd.f32 %v6233, %v6295
  %v6351 = vadd.f32 %v6234, %v6320
  %v6352 = vadd.f32 %v6235, %v6299
  %v6353 = vadd.f32 %v6236, %v6321
  %v6354 = vadd.f32 %v6237, %v6303
  %v6355 = vadd.f32 %v6238, %v6322
  %v6356 = vadd.f32 %v6239, %v6307
  %v6357 = vadd.f32 %v6240, %v6323
  %v6358 = vadd.f32 %v6241, %v6311
  %v6359 = vadd.f32 %v6242, %v6324
  %v6360 = vadd.f32 %v6243, %v6315
  %v6361 = vmul.f32 %v5839, %v1574
  %v6362 = vmul.f32 %v5848, %v1574
  %v6363 = vmul.f32 %v5840, %v1578
  %v6364 = vmul.f32 %v5849, %v1578
  %v6365 = vmul.f32 %v5841, %v1582
  %v6366 = vmul.f32 %v5850, %v1582
  %v6367 = vmul.f32 %v5842, %v1586
  %v6368 = vmul.f32 %v5851, %v1586
  %v6369 = vmul.f32 %v5843, %v1590
  %v6370 = vmul.f32 %v5852, %v1590
  %v6371 = vmul.f32 %v5844, %v1594
  %v6372 = vmul.f32 %v5853, %v1594
  %v6373 = vmul.f32 %v5845, %v1598
  %v6374 = vmul.f32 %v5854, %v1598
  %v6375 = vmul.f32 %v5846, %v1602
  %v6376 = vmul.f32 %v5855, %v1602
  %v6377 = vmul.f32 %v5847, %v1606
  %v6378 = vmul.f32 %v5856, %v1606
  %6397 = vrot.lane.b32.xlu0 %v6361, 123
  %v6398 = vpop.permute.xlu0 %6397
  %6399 = vrot.lane.b32.xlu0 %v6362, 123
  %v6400 = vpop.permute.xlu0 %6399
  %6401 = vrot.lane.b32.xlu0 %v6363, 123
  %v6402 = vpop.permute.xlu0 %6401
  %6403 = vrot.lane.b32.xlu0 %v6364, 123
  %v6404 = vpop.permute.xlu0 %6403
  %6405 = vrot.lane.b32.xlu0 %v6365, 123
  %v6406 = vpop.permute.xlu0 %6405
  %6407 = vrot.lane.b32.xlu0 %v6366, 123
  %v6408 = vpop.permute.xlu0 %6407
  %6409 = vrot.lane.b32.xlu0 %v6367, 123
  %v6410 = vpop.permute.xlu0 %6409
  %6411 = vrot.lane.b32.xlu0 %v6368, 123
  %v6412 = vpop.permute.xlu0 %6411
  %6413 = vrot.lane.b32.xlu0 %v6369, 123
  %v6414 = vpop.permute.xlu0 %6413
  %6415 = vrot.lane.b32.xlu0 %v6370, 123
  %v6416 = vpop.permute.xlu0 %6415
  %6417 = vrot.lane.b32.xlu0 %v6371, 123
  %v6418 = vpop.permute.xlu0 %6417
  %6419 = vrot.lane.b32.xlu0 %v6372, 123
  %v6420 = vpop.permute.xlu0 %6419
  %6421 = vrot.lane.b32.xlu0 %v6373, 123
  %v6422 = vpop.permute.xlu0 %6421
  %6423 = vrot.lane.b32.xlu0 %v6374, 123
  %v6424 = vpop.permute.xlu0 %6423
  %6425 = vrot.lane.b32.xlu0 %v6375, 123
  %v6426 = vpop.permute.xlu0 %6425
  %6427 = vrot.lane.b32.xlu0 %v6376, 123
  %v6428 = vpop.permute.xlu0 %6427
  %6429 = vrot.lane.b32.xlu0 %v6377, 123
  %v6430 = vpop.permute.xlu0 %6429
  %6431 = vrot.lane.b32.xlu0 %v6378, 123
  %v6432 = vpop.permute.xlu0 %6431
  %v6433 = vsel %vm380, %v6398, %v6400
  %v6434 = vsel %vm380, %v6402, %v6404
  %v6435 = vsel %vm380, %v6406, %v6408
  %v6436 = vsel %vm380, %v6410, %v6412
  %v6437 = vsel %vm380, %v6414, %v6416
  %v6438 = vsel %vm380, %v6418, %v6420
  %v6439 = vsel %vm380, %v6422, %v6424
  %v6440 = vsel %vm380, %v6426, %v6428
  %v6441 = vsel %vm380, %v6430, %v6432
  %v6460 = vadd.f32 %v6343, %v6433
  %v6461 = vadd.f32 %v6344, %v6400
  %v6462 = vadd.f32 %v6345, %v6434
  %v6463 = vadd.f32 %v6346, %v6404
  %v6464 = vadd.f32 %v6347, %v6435
  %v6465 = vadd.f32 %v6348, %v6408
  %v6466 = vadd.f32 %v6349, %v6436
  %v6467 = vadd.f32 %v6350, %v6412
  %v6468 = vadd.f32 %v6351, %v6437
  %v6469 = vadd.f32 %v6352, %v6416
  %v6470 = vadd.f32 %v6353, %v6438
  %v6471 = vadd.f32 %v6354, %v6420
  %v6472 = vadd.f32 %v6355, %v6439
  %v6473 = vadd.f32 %v6356, %v6424
  %v6474 = vadd.f32 %v6357, %v6440
  %v6475 = vadd.f32 %v6358, %v6428
  %v6476 = vadd.f32 %v6359, %v6441
  %v6477 = vadd.f32 %v6360, %v6432
  %v6478 = vmul.f32 %v5839, %v1727
  %v6479 = vmul.f32 %v5848, %v1727
  %v6480 = vmul.f32 %v5840, %v1731
  %v6481 = vmul.f32 %v5849, %v1731
  %v6482 = vmul.f32 %v5841, %v1735
  %v6483 = vmul.f32 %v5850, %v1735
  %v6484 = vmul.f32 %v5842, %v1739
  %v6485 = vmul.f32 %v5851, %v1739
  %v6486 = vmul.f32 %v5843, %v1743
  %v6487 = vmul.f32 %v5852, %v1743
  %v6488 = vmul.f32 %v5844, %v1747
  %v6489 = vmul.f32 %v5853, %v1747
  %v6490 = vmul.f32 %v5845, %v1751
  %v6491 = vmul.f32 %v5854, %v1751
  %v6492 = vmul.f32 %v5846, %v1755
  %v6493 = vmul.f32 %v5855, %v1755
  %v6494 = vmul.f32 %v5847, %v1759
  %v6495 = vmul.f32 %v5856, %v1759
  %6514 = vrot.lane.b32.xlu0 %v6478, 122
  %v6515 = vpop.permute.xlu0 %6514
  %6516 = vrot.lane.b32.xlu0 %v6479, 122
  %v6517 = vpop.permute.xlu0 %6516
  %6518 = vrot.lane.b32.xlu0 %v6480, 122
  %v6519 = vpop.permute.xlu0 %6518
  %6520 = vrot.lane.b32.xlu0 %v6481, 122
  %v6521 = vpop.permute.xlu0 %6520
  %6522 = vrot.lane.b32.xlu0 %v6482, 122
  %v6523 = vpop.permute.xlu0 %6522
  %6524 = vrot.lane.b32.xlu0 %v6483, 122
  %v6525 = vpop.permute.xlu0 %6524
  %6526 = vrot.lane.b32.xlu0 %v6484, 122
  %v6527 = vpop.permute.xlu0 %6526
  %6528 = vrot.lane.b32.xlu0 %v6485, 122
  %v6529 = vpop.permute.xlu0 %6528
  %6530 = vrot.lane.b32.xlu0 %v6486, 122
  %v6531 = vpop.permute.xlu0 %6530
  %6532 = vrot.lane.b32.xlu0 %v6487, 122
  %v6533 = vpop.permute.xlu0 %6532
  %6534 = vrot.lane.b32.xlu0 %v6488, 122
  %v6535 = vpop.permute.xlu0 %6534
  %6536 = vrot.lane.b32.xlu0 %v6489, 122
  %v6537 = vpop.permute.xlu0 %6536
  %6538 = vrot.lane.b32.xlu0 %v6490, 122
  %v6539 = vpop.permute.xlu0 %6538
  %6540 = vrot.lane.b32.xlu0 %v6491, 122
  %v6541 = vpop.permute.xlu0 %6540
  %6542 = vrot.lane.b32.xlu0 %v6492, 122
  %v6543 = vpop.permute.xlu0 %6542
  %6544 = vrot.lane.b32.xlu0 %v6493, 122
  %v6545 = vpop.permute.xlu0 %6544
  %6546 = vrot.lane.b32.xlu0 %v6494, 122
  %v6547 = vpop.permute.xlu0 %6546
  %6548 = vrot.lane.b32.xlu0 %v6495, 122
  %v6549 = vpop.permute.xlu0 %6548
  %v6550 = vsel %vm388, %v6515, %v6517
  %v6551 = vsel %vm388, %v6519, %v6521
  %v6552 = vsel %vm388, %v6523, %v6525
  %v6553 = vsel %vm388, %v6527, %v6529
  %v6554 = vsel %vm388, %v6531, %v6533
  %v6555 = vsel %vm388, %v6535, %v6537
  %v6556 = vsel %vm388, %v6539, %v6541
  %v6557 = vsel %vm388, %v6543, %v6545
  %v6558 = vsel %vm388, %v6547, %v6549
  %v6577 = vadd.f32 %v6460, %v6550
  %v6578 = vadd.f32 %v6461, %v6517
  %v6579 = vadd.f32 %v6462, %v6551
  %v6580 = vadd.f32 %v6463, %v6521
  %v6581 = vadd.f32 %v6464, %v6552
  %v6582 = vadd.f32 %v6465, %v6525
  %v6583 = vadd.f32 %v6466, %v6553
  %v6584 = vadd.f32 %v6467, %v6529
  %v6585 = vadd.f32 %v6468, %v6554
  %v6586 = vadd.f32 %v6469, %v6533
  %v6587 = vadd.f32 %v6470, %v6555
  %v6588 = vadd.f32 %v6471, %v6537
  %v6589 = vadd.f32 %v6472, %v6556
  %v6590 = vadd.f32 %v6473, %v6541
  %v6591 = vadd.f32 %v6474, %v6557
  %v6592 = vadd.f32 %v6475, %v6545
  %v6593 = vadd.f32 %v6476, %v6558
  %v6594 = vadd.f32 %v6477, %v6549
  %v6595 = vmul.f32 %v5839, %v1880
  %v6596 = vmul.f32 %v5848, %v1880
  %v6597 = vmul.f32 %v5840, %v1884
  %v6598 = vmul.f32 %v5849, %v1884
  %v6599 = vmul.f32 %v5841, %v1888
  %v6600 = vmul.f32 %v5850, %v1888
  %v6601 = vmul.f32 %v5842, %v1892
  %v6602 = vmul.f32 %v5851, %v1892
  %v6603 = vmul.f32 %v5843, %v1896
  %v6604 = vmul.f32 %v5852, %v1896
  %v6605 = vmul.f32 %v5844, %v1900
  %v6606 = vmul.f32 %v5853, %v1900
  %v6607 = vmul.f32 %v5845, %v1904
  %v6608 = vmul.f32 %v5854, %v1904
  %v6609 = vmul.f32 %v5846, %v1908
  %v6610 = vmul.f32 %v5855, %v1908
  %v6611 = vmul.f32 %v5847, %v1912
  %v6612 = vmul.f32 %v5856, %v1912
  %6631 = vrot.lane.b32.xlu0 %v6595, 121
  %v6632 = vpop.permute.xlu0 %6631
  %6633 = vrot.lane.b32.xlu0 %v6596, 121
  %v6634 = vpop.permute.xlu0 %6633
  %6635 = vrot.lane.b32.xlu0 %v6597, 121
  %v6636 = vpop.permute.xlu0 %6635
  %6637 = vrot.lane.b32.xlu0 %v6598, 121
  %v6638 = vpop.permute.xlu0 %6637
  %6639 = vrot.lane.b32.xlu0 %v6599, 121
  %v6640 = vpop.permute.xlu0 %6639
  %6641 = vrot.lane.b32.xlu0 %v6600, 121
  %v6642 = vpop.permute.xlu0 %6641
  %6643 = vrot.lane.b32.xlu0 %v6601, 121
  %v6644 = vpop.permute.xlu0 %6643
  %6645 = vrot.lane.b32.xlu0 %v6602, 121
  %v6646 = vpop.permute.xlu0 %6645
  %6647 = vrot.lane.b32.xlu0 %v6603, 121
  %v6648 = vpop.permute.xlu0 %6647
  %6649 = vrot.lane.b32.xlu0 %v6604, 121
  %v6650 = vpop.permute.xlu0 %6649
  %6651 = vrot.lane.b32.xlu0 %v6605, 121
  %v6652 = vpop.permute.xlu0 %6651
  %6653 = vrot.lane.b32.xlu0 %v6606, 121
  %v6654 = vpop.permute.xlu0 %6653
  %6655 = vrot.lane.b32.xlu0 %v6607, 121
  %v6656 = vpop.permute.xlu0 %6655
  %6657 = vrot.lane.b32.xlu0 %v6608, 121
  %v6658 = vpop.permute.xlu0 %6657
  %6659 = vrot.lane.b32.xlu0 %v6609, 121
  %v6660 = vpop.permute.xlu0 %6659
  %6661 = vrot.lane.b32.xlu0 %v6610, 121
  %v6662 = vpop.permute.xlu0 %6661
  %6663 = vrot.lane.b32.xlu0 %v6611, 121
  %v6664 = vpop.permute.xlu0 %6663
  %6665 = vrot.lane.b32.xlu0 %v6612, 121
  %v6666 = vpop.permute.xlu0 %6665
  %v6667 = vsel %vm396, %v6632, %v6634
  %v6668 = vsel %vm396, %v6636, %v6638
  %v6669 = vsel %vm396, %v6640, %v6642
  %v6670 = vsel %vm396, %v6644, %v6646
  %v6671 = vsel %vm396, %v6648, %v6650
  %v6672 = vsel %vm396, %v6652, %v6654
  %v6673 = vsel %vm396, %v6656, %v6658
  %v6674 = vsel %vm396, %v6660, %v6662
  %v6675 = vsel %vm396, %v6664, %v6666
  %v6694 = vadd.f32 %v6577, %v6667
  %v6695 = vadd.f32 %v6578, %v6634
  %v6696 = vadd.f32 %v6579, %v6668
  %v6697 = vadd.f32 %v6580, %v6638
  %v6698 = vadd.f32 %v6581, %v6669
  %v6699 = vadd.f32 %v6582, %v6642
  %v6700 = vadd.f32 %v6583, %v6670
  %v6701 = vadd.f32 %v6584, %v6646
  %v6702 = vadd.f32 %v6585, %v6671
  %v6703 = vadd.f32 %v6586, %v6650
  %v6704 = vadd.f32 %v6587, %v6672
  %v6705 = vadd.f32 %v6588, %v6654
  %v6706 = vadd.f32 %v6589, %v6673
  %v6707 = vadd.f32 %v6590, %v6658
  %v6708 = vadd.f32 %v6591, %v6674
  %v6709 = vadd.f32 %v6592, %v6662
  %v6710 = vadd.f32 %v6593, %v6675
  %v6711 = vadd.f32 %v6594, %v6666
  %v6712 = vmul.f32 %v5839, %v2033
  %v6713 = vmul.f32 %v5848, %v2033
  %v6714 = vmul.f32 %v5840, %v2037
  %v6715 = vmul.f32 %v5849, %v2037
  %v6716 = vmul.f32 %v5841, %v2041
  %v6717 = vmul.f32 %v5850, %v2041
  %v6718 = vmul.f32 %v5842, %v2045
  %v6719 = vmul.f32 %v5851, %v2045
  %v6720 = vmul.f32 %v5843, %v2049
  %v6721 = vmul.f32 %v5852, %v2049
  %v6722 = vmul.f32 %v5844, %v2053
  %v6723 = vmul.f32 %v5853, %v2053
  %v6724 = vmul.f32 %v5845, %v2057
  %v6725 = vmul.f32 %v5854, %v2057
  %v6726 = vmul.f32 %v5846, %v2061
  %v6727 = vmul.f32 %v5855, %v2061
  %v6728 = vmul.f32 %v5847, %v2065
  %v6729 = vmul.f32 %v5856, %v2065
  %6748 = vrot.lane.b32.xlu0 %v6712, 120
  %v6749 = vpop.permute.xlu0 %6748
  %6750 = vrot.lane.b32.xlu0 %v6713, 120
  %v6751 = vpop.permute.xlu0 %6750
  %6752 = vrot.lane.b32.xlu0 %v6714, 120
  %v6753 = vpop.permute.xlu0 %6752
  %6754 = vrot.lane.b32.xlu0 %v6715, 120
  %v6755 = vpop.permute.xlu0 %6754
  %6756 = vrot.lane.b32.xlu0 %v6716, 120
  %v6757 = vpop.permute.xlu0 %6756
  %6758 = vrot.lane.b32.xlu0 %v6717, 120
  %v6759 = vpop.permute.xlu0 %6758
  %6760 = vrot.lane.b32.xlu0 %v6718, 120
  %v6761 = vpop.permute.xlu0 %6760
  %6762 = vrot.lane.b32.xlu0 %v6719, 120
  %v6763 = vpop.permute.xlu0 %6762
  %6764 = vrot.lane.b32.xlu0 %v6720, 120
  %v6765 = vpop.permute.xlu0 %6764
  %6766 = vrot.lane.b32.xlu0 %v6721, 120
  %v6767 = vpop.permute.xlu0 %6766
  %6768 = vrot.lane.b32.xlu0 %v6722, 120
  %v6769 = vpop.permute.xlu0 %6768
  %6770 = vrot.lane.b32.xlu0 %v6723, 120
  %v6771 = vpop.permute.xlu0 %6770
  %6772 = vrot.lane.b32.xlu0 %v6724, 120
  %v6773 = vpop.permute.xlu0 %6772
  %6774 = vrot.lane.b32.xlu0 %v6725, 120
  %v6775 = vpop.permute.xlu0 %6774
  %6776 = vrot.lane.b32.xlu0 %v6726, 120
  %v6777 = vpop.permute.xlu0 %6776
  %6778 = vrot.lane.b32.xlu0 %v6727, 120
  %v6779 = vpop.permute.xlu0 %6778
  %6780 = vrot.lane.b32.xlu0 %v6728, 120
  %v6781 = vpop.permute.xlu0 %6780
  %6782 = vrot.lane.b32.xlu0 %v6729, 120
  %v6783 = vpop.permute.xlu0 %6782
  %v6784 = vsel %vm404, %v6749, %v6751
  %v6785 = vsel %vm404, %v6753, %v6755
  %v6786 = vsel %vm404, %v6757, %v6759
  %v6787 = vsel %vm404, %v6761, %v6763
  %v6788 = vsel %vm404, %v6765, %v6767
  %v6789 = vsel %vm404, %v6769, %v6771
  %v6790 = vsel %vm404, %v6773, %v6775
  %v6791 = vsel %vm404, %v6777, %v6779
  %v6792 = vsel %vm404, %v6781, %v6783
  %v6811 = vadd.f32 %v6694, %v6784
  %v6812 = vadd.f32 %v6695, %v6751
  %v6813 = vadd.f32 %v6696, %v6785
  %v6814 = vadd.f32 %v6697, %v6755
  %v6815 = vadd.f32 %v6698, %v6786
  %v6816 = vadd.f32 %v6699, %v6759
  %v6817 = vadd.f32 %v6700, %v6787
  %v6818 = vadd.f32 %v6701, %v6763
  %v6819 = vadd.f32 %v6702, %v6788
  %v6820 = vadd.f32 %v6703, %v6767
  %v6821 = vadd.f32 %v6704, %v6789
  %v6822 = vadd.f32 %v6705, %v6771
  %v6823 = vadd.f32 %v6706, %v6790
  %v6824 = vadd.f32 %v6707, %v6775
  %v6825 = vadd.f32 %v6708, %v6791
  %v6826 = vadd.f32 %v6709, %v6779
  %v6827 = vadd.f32 %v6710, %v6792
  %v6828 = vadd.f32 %v6711, %v6783
  %v6829 = vmul.f32 %v5839, %v2186
  %v6830 = vmul.f32 %v5848, %v2186
  %v6831 = vmul.f32 %v5840, %v2190
  %v6832 = vmul.f32 %v5849, %v2190
  %v6833 = vmul.f32 %v5841, %v2194
  %v6834 = vmul.f32 %v5850, %v2194
  %v6835 = vmul.f32 %v5842, %v2198
  %v6836 = vmul.f32 %v5851, %v2198
  %v6837 = vmul.f32 %v5843, %v2202
  %v6838 = vmul.f32 %v5852, %v2202
  %v6839 = vmul.f32 %v5844, %v2206
  %v6840 = vmul.f32 %v5853, %v2206
  %v6841 = vmul.f32 %v5845, %v2210
  %v6842 = vmul.f32 %v5854, %v2210
  %v6843 = vmul.f32 %v5846, %v2214
  %v6844 = vmul.f32 %v5855, %v2214
  %v6845 = vmul.f32 %v5847, %v2218
  %v6846 = vmul.f32 %v5856, %v2218
  %6865 = vrot.lane.b32.xlu0 %v6829, 119
  %v6866 = vpop.permute.xlu0 %6865
  %6867 = vrot.lane.b32.xlu0 %v6830, 119
  %v6868 = vpop.permute.xlu0 %6867
  %6869 = vrot.lane.b32.xlu0 %v6831, 119
  %v6870 = vpop.permute.xlu0 %6869
  %6871 = vrot.lane.b32.xlu0 %v6832, 119
  %v6872 = vpop.permute.xlu0 %6871
  %6873 = vrot.lane.b32.xlu0 %v6833, 119
  %v6874 = vpop.permute.xlu0 %6873
  %6875 = vrot.lane.b32.xlu0 %v6834, 119
  %v6876 = vpop.permute.xlu0 %6875
  %6877 = vrot.lane.b32.xlu0 %v6835, 119
  %v6878 = vpop.permute.xlu0 %6877
  %6879 = vrot.lane.b32.xlu0 %v6836, 119
  %v6880 = vpop.permute.xlu0 %6879
  %6881 = vrot.lane.b32.xlu0 %v6837, 119
  %v6882 = vpop.permute.xlu0 %6881
  %6883 = vrot.lane.b32.xlu0 %v6838, 119
  %v6884 = vpop.permute.xlu0 %6883
  %6885 = vrot.lane.b32.xlu0 %v6839, 119
  %v6886 = vpop.permute.xlu0 %6885
  %6887 = vrot.lane.b32.xlu0 %v6840, 119
  %v6888 = vpop.permute.xlu0 %6887
  %6889 = vrot.lane.b32.xlu0 %v6841, 119
  %v6890 = vpop.permute.xlu0 %6889
  %6891 = vrot.lane.b32.xlu0 %v6842, 119
  %v6892 = vpop.permute.xlu0 %6891
  %6893 = vrot.lane.b32.xlu0 %v6843, 119
  %v6894 = vpop.permute.xlu0 %6893
  %6895 = vrot.lane.b32.xlu0 %v6844, 119
  %v6896 = vpop.permute.xlu0 %6895
  %6897 = vrot.lane.b32.xlu0 %v6845, 119
  %v6898 = vpop.permute.xlu0 %6897
  %6899 = vrot.lane.b32.xlu0 %v6846, 119
  %v6900 = vpop.permute.xlu0 %6899
  %v6901 = vsel %vm2292, %v6866, %v6868
  %v6902 = vsel %vm2292, %v6870, %v6872
  %v6903 = vsel %vm2292, %v6874, %v6876
  %v6904 = vsel %vm2292, %v6878, %v6880
  %v6905 = vsel %vm2292, %v6882, %v6884
  %v6906 = vsel %vm2292, %v6886, %v6888
  %v6907 = vsel %vm2292, %v6890, %v6892
  %v6908 = vsel %vm2292, %v6894, %v6896
  %v6909 = vsel %vm2292, %v6898, %v6900
  %v6928 = vadd.f32 %v6811, %v6901
  %v6929 = vadd.f32 %v6812, %v6868
  %v6930 = vadd.f32 %v6813, %v6902
  %v6931 = vadd.f32 %v6814, %v6872
  %v6932 = vadd.f32 %v6815, %v6903
  %v6933 = vadd.f32 %v6816, %v6876
  %v6934 = vadd.f32 %v6817, %v6904
  %v6935 = vadd.f32 %v6818, %v6880
  %v6936 = vadd.f32 %v6819, %v6905
  %v6937 = vadd.f32 %v6820, %v6884
  %v6938 = vadd.f32 %v6821, %v6906
  %v6939 = vadd.f32 %v6822, %v6888
  %v6940 = vadd.f32 %v6823, %v6907
  %v6941 = vadd.f32 %v6824, %v6892
  %v6942 = vadd.f32 %v6825, %v6908
  %v6943 = vadd.f32 %v6826, %v6896
  %v6944 = vadd.f32 %v6827, %v6909
  %v6945 = vadd.f32 %v6828, %v6900
  %v6946 = vadd.f32 %v6928, %v2341
  %v6947 = vadd.f32 %v6929, %v2341
  %v6948 = vadd.f32 %v6930, %v2346
  %v6949 = vadd.f32 %v6931, %v2346
  %v6950 = vadd.f32 %v6932, %v2351
  %v6951 = vadd.f32 %v6933, %v2351
  %v6952 = vadd.f32 %v6934, %v2356
  %v6953 = vadd.f32 %v6935, %v2356
  %v6954 = vadd.f32 %v6936, %v2361
  %v6955 = vadd.f32 %v6937, %v2361
  %v6956 = vadd.f32 %v6938, %v2366
  %v6957 = vadd.f32 %v6939, %v2366
  %v6958 = vadd.f32 %v6940, %v2371
  %v6959 = vadd.f32 %v6941, %v2371
  %v6960 = vadd.f32 %v6942, %v2376
  %v6961 = vadd.f32 %v6943, %v2376
  %v6962 = vadd.f32 %v6944, %v2381
  %v6963 = vadd.f32 %v6945, %v2381
  %v6964 = vmax.f32 %v6946, 0.0
  %v6965 = vmax.f32 %v6947, 0.0
  %v6966 = vmax.f32 %v6948, 0.0
  %v6967 = vmax.f32 %v6949, 0.0
  %v6968 = vmax.f32 %v6950, 0.0
  %v6969 = vmax.f32 %v6951, 0.0
  %v6970 = vmax.f32 %v6952, 0.0
  %v6971 = vmax.f32 %v6953, 0.0
  %v6972 = vmax.f32 %v6954, 0.0
  %v6973 = vmax.f32 %v6955, 0.0
  %v6974 = vmax.f32 %v6956, 0.0
  %v6975 = vmax.f32 %v6957, 0.0
  %v6976 = vmax.f32 %v6958, 0.0
  %v6977 = vmax.f32 %v6959, 0.0
  %v6978 = vmax.f32 %v6960, 0.0
  %v6979 = vmax.f32 %v6961, 0.0
  %v6980 = vmax.f32 %v6962, 0.0
  %v6981 = vmax.f32 %v6963, 0.0
  %v6982 = vpack.c.bf16 %v6966, %v6964
  %v6983 = vpack.c.bf16 %v6967, %v6965
  %v6984 = vpack.c.bf16 %v6970, %v6968
  %v6985 = vpack.c.bf16 %v6971, %v6969
  %v6986 = vpack.c.bf16 %v6974, %v6972
  %v6987 = vpack.c.bf16 %v6975, %v6973
  %v6988 = vpack.c.bf16 %v6978, %v6976
  %v6989 = vpack.c.bf16 %v6979, %v6977
  %v6990 = vpack.c.bf16 %v6980, %v6980
  %v6991 = vpack.c.bf16 %v6981, %v6981
  %v6993 = vsel %vm2504, %v6983, 0
  %v6996 = vsel %vm2504, %v6985, 0
  %v6999 = vsel %vm2504, %v6987, 0
  %v7002 = vsel %vm2504, %v6989, 0
  %v7005 = vsel %vm2504, %v6991, 0
  %7007 = vmatpush.bf16.msra.mxu0 %v2486
  %7008 = vmatpush.bf16.msra.mxu0 %v2485
  %7009 = vmatpush.bf16.msra.mxu0 %v2484
  %7010 = vmatpush.bf16.msra.mxu0 %v2483
  %7011 = vmatpush.bf16.msra.mxu0 %v2482
  %7012 = vmatpush.bf16.msra.mxu0 %v2481
  %7013 = vmatpush.bf16.msra.mxu0 %v2480
  %7014 = vmatpush.bf16.msra.mxu0 %v2479
  %7015 = vmatmul.bf16.gmra.mxu0 %v6982
  %v7016 = vpop.f32.mrf.mxu0
  %v7017 = vadd.f32 0.0, %v7016
  %v7018 = vpop.f32.mrf.mxu0
  %v7019 = vadd.f32 0.0, %v7018
  %7020 = vmatmul.bf16.gmra.mxu0 %v6984
  %v7021 = vpop.f32.mrf.mxu0
  %v7022 = vadd.f32 0.0, %v7021
  %v7023 = vpop.f32.mrf.mxu0
  %v7024 = vadd.f32 0.0, %v7023
  %7025 = vmatmul.bf16.gmra.mxu0 %v6986
  %v7026 = vpop.f32.mrf.mxu0
  %v7027 = vadd.f32 0.0, %v7026
  %v7028 = vpop.f32.mrf.mxu0
  %v7029 = vadd.f32 0.0, %v7028
  %7030 = vmatmul.bf16.gmra.mxu0 %v6988
  %v7031 = vpop.f32.mrf.mxu0
  %v7032 = vadd.f32 0.0, %v7031
  %v7033 = vpop.f32.mrf.mxu0
  %v7034 = vadd.f32 0.0, %v7033
  %7035 = vmatmul.bf16.gmra.mxu0 %v6990
  %v7036 = vpop.f32.mrf.mxu0
  %v7037 = vadd.f32 0.0, %v7036
  %v7038 = vpop.f32.mrf.mxu0
  %7039 = vdwg.mxu0
  %7040 = vmatpush.bf16.msra.mxu0 0
  %7041 = vmatpush.bf16.msra.mxu0 0
  %7042 = vmatpush.bf16.msra.mxu0 0
  %7043 = vmatpush.bf16.msra.mxu0 %v2524
  %7044 = vmatpush.bf16.msra.mxu0 %v2490
  %7045 = vmatpush.bf16.msra.mxu0 %v2489
  %7046 = vmatpush.bf16.msra.mxu0 %v2488
  %7047 = vmatpush.bf16.msra.mxu0 %v2487
  %7048 = vmatmul.bf16.gmra.mxu0 %v6993
  %v7049 = vpop.f32.mrf.mxu0
  %v7050 = vadd.f32 %v7017, %v7049
  %v7051 = vpop.f32.mrf.mxu0
  %v7052 = vadd.f32 %v7019, %v7051
  %7053 = vmatmul.bf16.gmra.mxu0 %v6996
  %v7054 = vpop.f32.mrf.mxu0
  %v7055 = vadd.f32 %v7022, %v7054
  %v7056 = vpop.f32.mrf.mxu0
  %v7057 = vadd.f32 %v7024, %v7056
  %7058 = vmatmul.bf16.gmra.mxu0 %v6999
  %v7059 = vpop.f32.mrf.mxu0
  %v7060 = vadd.f32 %v7027, %v7059
  %v7061 = vpop.f32.mrf.mxu0
  %v7062 = vadd.f32 %v7029, %v7061
  %7063 = vmatmul.bf16.gmra.mxu0 %v7002
  %v7064 = vpop.f32.mrf.mxu0
  %v7065 = vadd.f32 %v7032, %v7064
  %v7066 = vpop.f32.mrf.mxu0
  %v7067 = vadd.f32 %v7034, %v7066
  %7068 = vmatmul.bf16.gmra.mxu0 %v7005
  %v7069 = vpop.f32.mrf.mxu0
  %v7070 = vadd.f32 %v7037, %v7069
  %v7071 = vpop.f32.mrf.mxu0
  %7072 = vdwg.mxu0
  %v7073 = vpack.c.bf16 %v7052, %v7050
  %v7074 = vpack.c.bf16 %v7057, %v7055
  %v7075 = vpack.c.bf16 %v7062, %v7060
  %v7076 = vpack.c.bf16 %v7067, %v7065
  %v7077 = vpack.c.bf16 %v7070, %v7070
  %v7079 = vsel %vm437, %v7077, 0
  %7081 = vmatpush.bf16.msra.mxu0 0
  %7082 = vmatpush.bf16.msra.mxu0 0
  %7083 = vmatpush.bf16.msra.mxu0 0
  %7084 = vmatpush.bf16.msra.mxu0 %v7079
  %7085 = vmatpush.bf16.msra.mxu0 %v7076
  %7086 = vmatpush.bf16.msra.mxu0 %v7075
  %7087 = vmatpush.bf16.msra.mxu0 %v7074
  %7088 = vmatpush.bf16.msra.mxu0 %v7073
  %7089 = vmatmul.bf16.gmra.mxu0 %v2621
  %v7090 = vpop.f32.mrf.mxu0
  %v7091 = vadd.f32 %v2600, %v7090
  %v7092 = vpop.f32.mrf.mxu0
  %v7093 = vadd.f32 %v2605, %v7092
  %7094 = vmatmul.bf16.gmra.mxu0 %v2624
  %v7095 = vpop.f32.mrf.mxu0
  %v7096 = vadd.f32 %v2610, %v7095
  %v7097 = vpop.f32.mrf.mxu0
  %7098 = vdwg.mxu0
  %v7099 = vpack.c.bf16 %v7093, %v7091
  %v7100 = vpack.c.bf16 %v7096, %v7096
  %v7102 = vsel %vm437, %v7100, 0
  %7104 = vmatpush.bf16.msra.mxu0 0
  %7105 = vmatpush.bf16.msra.mxu0 0
  %7106 = vmatpush.bf16.msra.mxu0 0
  %7107 = vmatpush.bf16.msra.mxu0 0
  %7108 = vmatpush.bf16.msra.mxu0 0
  %7109 = vmatpush.bf16.msra.mxu0 0
  %7110 = vmatpush.bf16.msra.mxu0 %v7102
  %7111 = vmatpush.bf16.msra.mxu0 %v7099
  %7112 = vmatmul.bf16.gmra.mxu0 %v2786
  %v7113 = vpop.f32.mrf.mxu0
  %v7114 = vadd.f32 %v2652, %v7113
  %v7115 = vpop.f32.mrf.mxu0
  %v7116 = vadd.f32 %v2657, %v7115
  %7117 = vmatmul.bf16.gmra.mxu0 %v2789
  %v7118 = vpop.f32.mrf.mxu0
  %v7119 = vadd.f32 %v2662, %v7118
  %v7120 = vpop.f32.mrf.mxu0
  %v7121 = vadd.f32 %v2667, %v7120
  %7122 = vmatmul.bf16.gmra.mxu0 %v2792
  %v7123 = vpop.f32.mrf.mxu0
  %v7124 = vadd.f32 %v2672, %v7123
  %v7125 = vpop.f32.mrf.mxu0
  %v7126 = vadd.f32 %v2677, %v7125
  %7127 = vmatmul.bf16.gmra.mxu0 %v2795
  %v7128 = vpop.f32.mrf.mxu0
  %v7129 = vadd.f32 %v2682, %v7128
  %v7130 = vpop.f32.mrf.mxu0
  %v7131 = vadd.f32 %v2687, %v7130
  %7132 = vmatmul.bf16.gmra.mxu0 %v2798
  %v7133 = vpop.f32.mrf.mxu0
  %v7134 = vadd.f32 %v2692, %v7133
  %v7135 = vpop.f32.mrf.mxu0
  %v7136 = vadd.f32 %v2697, %v7135
  %7137 = vmatmul.bf16.gmra.mxu0 %v2801
  %v7138 = vpop.f32.mrf.mxu0
  %v7139 = vadd.f32 %v2702, %v7138
  %v7140 = vpop.f32.mrf.mxu0
  %v7141 = vadd.f32 %v2707, %v7140
  %7142 = vmatmul.bf16.gmra.mxu0 %v2804
  %v7143 = vpop.f32.mrf.mxu0
  %v7144 = vadd.f32 %v2712, %v7143
  %v7145 = vpop.f32.mrf.mxu0
  %v7146 = vadd.f32 %v2717, %v7145
  %7147 = vmatmul.bf16.gmra.mxu0 %v2807
  %v7148 = vpop.f32.mrf.mxu0
  %v7149 = vadd.f32 %v2722, %v7148
  %v7150 = vpop.f32.mrf.mxu0
  %v7151 = vadd.f32 %v2727, %v7150
  %7152 = vmatmul.bf16.gmra.mxu0 %v2810
  %v7153 = vpop.f32.mrf.mxu0
  %v7154 = vadd.f32 %v2732, %v7153
  %v7155 = vpop.f32.mrf.mxu0
  %v7156 = vadd.f32 %v2737, %v7155
  %7157 = vdwg.mxu0
  %v7158 = vmax.f32 %v7114, 0.0
  %v7159 = vmax.f32 %v7116, 0.0
  %v7160 = vmax.f32 %v7119, 0.0
  %v7161 = vmax.f32 %v7121, 0.0
  %v7162 = vmax.f32 %v7124, 0.0
  %v7163 = vmax.f32 %v7126, 0.0
  %v7164 = vmax.f32 %v7129, 0.0
  %v7165 = vmax.f32 %v7131, 0.0
  %v7166 = vmax.f32 %v7134, 0.0
  %v7167 = vmax.f32 %v7136, 0.0
  %v7168 = vmax.f32 %v7139, 0.0
  %v7169 = vmax.f32 %v7141, 0.0
  %v7170 = vmax.f32 %v7144, 0.0
  %v7171 = vmax.f32 %v7146, 0.0
  %v7172 = vmax.f32 %v7149, 0.0
  %v7173 = vmax.f32 %v7151, 0.0
  %v7174 = vmax.f32 %v7154, 0.0
  %v7175 = vmax.f32 %v7156, 0.0
  %7185 = vrot.lane.b32.xlu0 %v7158, 4
  %v7186 = vpop.permute.xlu0 %7185
  %7187 = vrot.lane.b32.xlu0 %v7159, 4
  %v7188 = vpop.permute.xlu0 %7187
  %7189 = vrot.lane.b32.xlu0 %v7160, 4
  %v7190 = vpop.permute.xlu0 %7189
  %7191 = vrot.lane.b32.xlu0 %v7161, 4
  %v7192 = vpop.permute.xlu0 %7191
  %7193 = vrot.lane.b32.xlu0 %v7162, 4
  %v7194 = vpop.permute.xlu0 %7193
  %7195 = vrot.lane.b32.xlu0 %v7163, 4
  %v7196 = vpop.permute.xlu0 %7195
  %7197 = vrot.lane.b32.xlu0 %v7164, 4
  %v7198 = vpop.permute.xlu0 %7197
  %7199 = vrot.lane.b32.xlu0 %v7165, 4
  %v7200 = vpop.permute.xlu0 %7199
  %7201 = vrot.lane.b32.xlu0 %v7166, 4
  %v7202 = vpop.permute.xlu0 %7201
  %v7212 = vsel %vm832, 0.0, %v7186
  %v7213 = vsel %vm832, 0.0, %v7188
  %v7214 = vsel %vm832, 0.0, %v7190
  %v7215 = vsel %vm832, 0.0, %v7192
  %v7216 = vsel %vm832, 0.0, %v7194
  %v7217 = vsel %vm832, 0.0, %v7196
  %v7218 = vsel %vm832, 0.0, %v7198
  %v7219 = vsel %vm832, 0.0, %v7200
  %v7220 = vsel %vm832, 0.0, %v7202
  %v7221 = vsel %vm2932, %v7212, 0.0
  %v7222 = vsel %vm2932, %v7213, 0.0
  %v7223 = vsel %vm2932, %v7214, 0.0
  %v7224 = vsel %vm2932, %v7215, 0.0
  %v7225 = vsel %vm2932, %v7216, 0.0
  %v7226 = vsel %vm2932, %v7217, 0.0
  %v7227 = vsel %vm2932, %v7218, 0.0
  %v7228 = vsel %vm2932, %v7219, 0.0
  %v7229 = vsel %vm2932, %v7220, 0.0
  %v7230 = vmul.f32 %v7221, %v2945
  %v7231 = vmul.f32 %v7222, %v2950
  %v7232 = vmul.f32 %v7223, %v2955
  %v7233 = vmul.f32 %v7224, %v2960
  %v7234 = vmul.f32 %v7225, %v2965
  %v7235 = vmul.f32 %v7226, %v2970
  %v7236 = vmul.f32 %v7227, %v2975
  %v7237 = vmul.f32 %v7228, %v2980
  %v7238 = vmul.f32 %v7229, %v2985
  %v7239 = vadd.f32 %v7230, 0.0
  %v7240 = vadd.f32 %v7231, 0.0
  %v7241 = vadd.f32 %v7232, 0.0
  %v7242 = vadd.f32 %v7233, 0.0
  %v7243 = vadd.f32 %v7234, 0.0
  %v7244 = vadd.f32 %v7235, 0.0
  %v7245 = vadd.f32 %v7236, 0.0
  %v7246 = vadd.f32 %v7237, 0.0
  %v7247 = vadd.f32 %v7238, 0.0
  %v7248 = vmul.f32 %v7221, %v3007
  %v7249 = vmul.f32 %v7222, %v3011
  %v7250 = vmul.f32 %v7223, %v3015
  %v7251 = vmul.f32 %v7224, %v3019
  %v7252 = vmul.f32 %v7225, %v3023
  %v7253 = vmul.f32 %v7226, %v3027
  %v7254 = vmul.f32 %v7227, %v3031
  %v7255 = vmul.f32 %v7228, %v3035
  %v7256 = vmul.f32 %v7229, %v3039
  %7266 = vrot.lane.b32.xlu0 %v7248, 127
  %v7267 = vpop.permute.xlu0 %7266
  %7268 = vrot.lane.b32.xlu0 %v7249, 127
  %v7269 = vpop.permute.xlu0 %7268
  %7270 = vrot.lane.b32.xlu0 %v7250, 127
  %v7271 = vpop.permute.xlu0 %7270
  %7272 = vrot.lane.b32.xlu0 %v7251, 127
  %v7273 = vpop.permute.xlu0 %7272
  %7274 = vrot.lane.b32.xlu0 %v7252, 127
  %v7275 = vpop.permute.xlu0 %7274
  %7276 = vrot.lane.b32.xlu0 %v7253, 127
  %v7277 = vpop.permute.xlu0 %7276
  %7278 = vrot.lane.b32.xlu0 %v7254, 127
  %v7279 = vpop.permute.xlu0 %7278
  %7280 = vrot.lane.b32.xlu0 %v7255, 127
  %v7281 = vpop.permute.xlu0 %7280
  %7282 = vrot.lane.b32.xlu0 %v7256, 127
  %v7283 = vpop.permute.xlu0 %7282
  %v7293 = vadd.f32 %v7239, %v7267
  %v7294 = vadd.f32 %v7240, %v7269
  %v7295 = vadd.f32 %v7241, %v7271
  %v7296 = vadd.f32 %v7242, %v7273
  %v7297 = vadd.f32 %v7243, %v7275
  %v7298 = vadd.f32 %v7244, %v7277
  %v7299 = vadd.f32 %v7245, %v7279
  %v7300 = vadd.f32 %v7246, %v7281
  %v7301 = vadd.f32 %v7247, %v7283
  %v7302 = vmul.f32 %v7221, %v3097
  %v7303 = vmul.f32 %v7222, %v3101
  %v7304 = vmul.f32 %v7223, %v3105
  %v7305 = vmul.f32 %v7224, %v3109
  %v7306 = vmul.f32 %v7225, %v3113
  %v7307 = vmul.f32 %v7226, %v3117
  %v7308 = vmul.f32 %v7227, %v3121
  %v7309 = vmul.f32 %v7228, %v3125
  %v7310 = vmul.f32 %v7229, %v3129
  %7320 = vrot.lane.b32.xlu0 %v7302, 126
  %v7321 = vpop.permute.xlu0 %7320
  %7322 = vrot.lane.b32.xlu0 %v7303, 126
  %v7323 = vpop.permute.xlu0 %7322
  %7324 = vrot.lane.b32.xlu0 %v7304, 126
  %v7325 = vpop.permute.xlu0 %7324
  %7326 = vrot.lane.b32.xlu0 %v7305, 126
  %v7327 = vpop.permute.xlu0 %7326
  %7328 = vrot.lane.b32.xlu0 %v7306, 126
  %v7329 = vpop.permute.xlu0 %7328
  %7330 = vrot.lane.b32.xlu0 %v7307, 126
  %v7331 = vpop.permute.xlu0 %7330
  %7332 = vrot.lane.b32.xlu0 %v7308, 126
  %v7333 = vpop.permute.xlu0 %7332
  %7334 = vrot.lane.b32.xlu0 %v7309, 126
  %v7335 = vpop.permute.xlu0 %7334
  %7336 = vrot.lane.b32.xlu0 %v7310, 126
  %v7337 = vpop.permute.xlu0 %7336
  %v7347 = vadd.f32 %v7293, %v7321
  %v7348 = vadd.f32 %v7294, %v7323
  %v7349 = vadd.f32 %v7295, %v7325
  %v7350 = vadd.f32 %v7296, %v7327
  %v7351 = vadd.f32 %v7297, %v7329
  %v7352 = vadd.f32 %v7298, %v7331
  %v7353 = vadd.f32 %v7299, %v7333
  %v7354 = vadd.f32 %v7300, %v7335
  %v7355 = vadd.f32 %v7301, %v7337
  %v7356 = vmul.f32 %v7221, %v3187
  %v7357 = vmul.f32 %v7222, %v3191
  %v7358 = vmul.f32 %v7223, %v3195
  %v7359 = vmul.f32 %v7224, %v3199
  %v7360 = vmul.f32 %v7225, %v3203
  %v7361 = vmul.f32 %v7226, %v3207
  %v7362 = vmul.f32 %v7227, %v3211
  %v7363 = vmul.f32 %v7228, %v3215
  %v7364 = vmul.f32 %v7229, %v3219
  %7374 = vrot.lane.b32.xlu0 %v7356, 125
  %v7375 = vpop.permute.xlu0 %7374
  %7376 = vrot.lane.b32.xlu0 %v7357, 125
  %v7377 = vpop.permute.xlu0 %7376
  %7378 = vrot.lane.b32.xlu0 %v7358, 125
  %v7379 = vpop.permute.xlu0 %7378
  %7380 = vrot.lane.b32.xlu0 %v7359, 125
  %v7381 = vpop.permute.xlu0 %7380
  %7382 = vrot.lane.b32.xlu0 %v7360, 125
  %v7383 = vpop.permute.xlu0 %7382
  %7384 = vrot.lane.b32.xlu0 %v7361, 125
  %v7385 = vpop.permute.xlu0 %7384
  %7386 = vrot.lane.b32.xlu0 %v7362, 125
  %v7387 = vpop.permute.xlu0 %7386
  %7388 = vrot.lane.b32.xlu0 %v7363, 125
  %v7389 = vpop.permute.xlu0 %7388
  %7390 = vrot.lane.b32.xlu0 %v7364, 125
  %v7391 = vpop.permute.xlu0 %7390
  %v7401 = vadd.f32 %v7347, %v7375
  %v7402 = vadd.f32 %v7348, %v7377
  %v7403 = vadd.f32 %v7349, %v7379
  %v7404 = vadd.f32 %v7350, %v7381
  %v7405 = vadd.f32 %v7351, %v7383
  %v7406 = vadd.f32 %v7352, %v7385
  %v7407 = vadd.f32 %v7353, %v7387
  %v7408 = vadd.f32 %v7354, %v7389
  %v7409 = vadd.f32 %v7355, %v7391
  %v7410 = vmul.f32 %v7221, %v3277
  %v7411 = vmul.f32 %v7222, %v3281
  %v7412 = vmul.f32 %v7223, %v3285
  %v7413 = vmul.f32 %v7224, %v3289
  %v7414 = vmul.f32 %v7225, %v3293
  %v7415 = vmul.f32 %v7226, %v3297
  %v7416 = vmul.f32 %v7227, %v3301
  %v7417 = vmul.f32 %v7228, %v3305
  %v7418 = vmul.f32 %v7229, %v3309
  %7428 = vrot.lane.b32.xlu0 %v7410, 124
  %v7429 = vpop.permute.xlu0 %7428
  %7430 = vrot.lane.b32.xlu0 %v7411, 124
  %v7431 = vpop.permute.xlu0 %7430
  %7432 = vrot.lane.b32.xlu0 %v7412, 124
  %v7433 = vpop.permute.xlu0 %7432
  %7434 = vrot.lane.b32.xlu0 %v7413, 124
  %v7435 = vpop.permute.xlu0 %7434
  %7436 = vrot.lane.b32.xlu0 %v7414, 124
  %v7437 = vpop.permute.xlu0 %7436
  %7438 = vrot.lane.b32.xlu0 %v7415, 124
  %v7439 = vpop.permute.xlu0 %7438
  %7440 = vrot.lane.b32.xlu0 %v7416, 124
  %v7441 = vpop.permute.xlu0 %7440
  %7442 = vrot.lane.b32.xlu0 %v7417, 124
  %v7443 = vpop.permute.xlu0 %7442
  %7444 = vrot.lane.b32.xlu0 %v7418, 124
  %v7445 = vpop.permute.xlu0 %7444
  %v7455 = vadd.f32 %v7401, %v7429
  %v7456 = vadd.f32 %v7402, %v7431
  %v7457 = vadd.f32 %v7403, %v7433
  %v7458 = vadd.f32 %v7404, %v7435
  %v7459 = vadd.f32 %v7405, %v7437
  %v7460 = vadd.f32 %v7406, %v7439
  %v7461 = vadd.f32 %v7407, %v7441
  %v7462 = vadd.f32 %v7408, %v7443
  %v7463 = vadd.f32 %v7409, %v7445
  %v7464 = vmul.f32 %v7221, %v3367
  %v7465 = vmul.f32 %v7222, %v3371
  %v7466 = vmul.f32 %v7223, %v3375
  %v7467 = vmul.f32 %v7224, %v3379
  %v7468 = vmul.f32 %v7225, %v3383
  %v7469 = vmul.f32 %v7226, %v3387
  %v7470 = vmul.f32 %v7227, %v3391
  %v7471 = vmul.f32 %v7228, %v3395
  %v7472 = vmul.f32 %v7229, %v3399
  %7482 = vrot.lane.b32.xlu0 %v7464, 123
  %v7483 = vpop.permute.xlu0 %7482
  %7484 = vrot.lane.b32.xlu0 %v7465, 123
  %v7485 = vpop.permute.xlu0 %7484
  %7486 = vrot.lane.b32.xlu0 %v7466, 123
  %v7487 = vpop.permute.xlu0 %7486
  %7488 = vrot.lane.b32.xlu0 %v7467, 123
  %v7489 = vpop.permute.xlu0 %7488
  %7490 = vrot.lane.b32.xlu0 %v7468, 123
  %v7491 = vpop.permute.xlu0 %7490
  %7492 = vrot.lane.b32.xlu0 %v7469, 123
  %v7493 = vpop.permute.xlu0 %7492
  %7494 = vrot.lane.b32.xlu0 %v7470, 123
  %v7495 = vpop.permute.xlu0 %7494
  %7496 = vrot.lane.b32.xlu0 %v7471, 123
  %v7497 = vpop.permute.xlu0 %7496
  %7498 = vrot.lane.b32.xlu0 %v7472, 123
  %v7499 = vpop.permute.xlu0 %7498
  %v7509 = vadd.f32 %v7455, %v7483
  %v7510 = vadd.f32 %v7456, %v7485
  %v7511 = vadd.f32 %v7457, %v7487
  %v7512 = vadd.f32 %v7458, %v7489
  %v7513 = vadd.f32 %v7459, %v7491
  %v7514 = vadd.f32 %v7460, %v7493
  %v7515 = vadd.f32 %v7461, %v7495
  %v7516 = vadd.f32 %v7462, %v7497
  %v7517 = vadd.f32 %v7463, %v7499
  %v7518 = vmul.f32 %v7221, %v3457
  %v7519 = vmul.f32 %v7222, %v3461
  %v7520 = vmul.f32 %v7223, %v3465
  %v7521 = vmul.f32 %v7224, %v3469
  %v7522 = vmul.f32 %v7225, %v3473
  %v7523 = vmul.f32 %v7226, %v3477
  %v7524 = vmul.f32 %v7227, %v3481
  %v7525 = vmul.f32 %v7228, %v3485
  %v7526 = vmul.f32 %v7229, %v3489
  %7536 = vrot.lane.b32.xlu0 %v7518, 122
  %v7537 = vpop.permute.xlu0 %7536
  %7538 = vrot.lane.b32.xlu0 %v7519, 122
  %v7539 = vpop.permute.xlu0 %7538
  %7540 = vrot.lane.b32.xlu0 %v7520, 122
  %v7541 = vpop.permute.xlu0 %7540
  %7542 = vrot.lane.b32.xlu0 %v7521, 122
  %v7543 = vpop.permute.xlu0 %7542
  %7544 = vrot.lane.b32.xlu0 %v7522, 122
  %v7545 = vpop.permute.xlu0 %7544
  %7546 = vrot.lane.b32.xlu0 %v7523, 122
  %v7547 = vpop.permute.xlu0 %7546
  %7548 = vrot.lane.b32.xlu0 %v7524, 122
  %v7549 = vpop.permute.xlu0 %7548
  %7550 = vrot.lane.b32.xlu0 %v7525, 122
  %v7551 = vpop.permute.xlu0 %7550
  %7552 = vrot.lane.b32.xlu0 %v7526, 122
  %v7553 = vpop.permute.xlu0 %7552
  %v7563 = vadd.f32 %v7509, %v7537
  %v7564 = vadd.f32 %v7510, %v7539
  %v7565 = vadd.f32 %v7511, %v7541
  %v7566 = vadd.f32 %v7512, %v7543
  %v7567 = vadd.f32 %v7513, %v7545
  %v7568 = vadd.f32 %v7514, %v7547
  %v7569 = vadd.f32 %v7515, %v7549
  %v7570 = vadd.f32 %v7516, %v7551
  %v7571 = vadd.f32 %v7517, %v7553
  %v7572 = vmul.f32 %v7221, %v3547
  %v7573 = vmul.f32 %v7222, %v3551
  %v7574 = vmul.f32 %v7223, %v3555
  %v7575 = vmul.f32 %v7224, %v3559
  %v7576 = vmul.f32 %v7225, %v3563
  %v7577 = vmul.f32 %v7226, %v3567
  %v7578 = vmul.f32 %v7227, %v3571
  %v7579 = vmul.f32 %v7228, %v3575
  %v7580 = vmul.f32 %v7229, %v3579
  %7590 = vrot.lane.b32.xlu0 %v7572, 121
  %v7591 = vpop.permute.xlu0 %7590
  %7592 = vrot.lane.b32.xlu0 %v7573, 121
  %v7593 = vpop.permute.xlu0 %7592
  %7594 = vrot.lane.b32.xlu0 %v7574, 121
  %v7595 = vpop.permute.xlu0 %7594
  %7596 = vrot.lane.b32.xlu0 %v7575, 121
  %v7597 = vpop.permute.xlu0 %7596
  %7598 = vrot.lane.b32.xlu0 %v7576, 121
  %v7599 = vpop.permute.xlu0 %7598
  %7600 = vrot.lane.b32.xlu0 %v7577, 121
  %v7601 = vpop.permute.xlu0 %7600
  %7602 = vrot.lane.b32.xlu0 %v7578, 121
  %v7603 = vpop.permute.xlu0 %7602
  %7604 = vrot.lane.b32.xlu0 %v7579, 121
  %v7605 = vpop.permute.xlu0 %7604
  %7606 = vrot.lane.b32.xlu0 %v7580, 121
  %v7607 = vpop.permute.xlu0 %7606
  %v7617 = vadd.f32 %v7563, %v7591
  %v7618 = vadd.f32 %v7564, %v7593
  %v7619 = vadd.f32 %v7565, %v7595
  %v7620 = vadd.f32 %v7566, %v7597
  %v7621 = vadd.f32 %v7567, %v7599
  %v7622 = vadd.f32 %v7568, %v7601
  %v7623 = vadd.f32 %v7569, %v7603
  %v7624 = vadd.f32 %v7570, %v7605
  %v7625 = vadd.f32 %v7571, %v7607
  %v7626 = vmul.f32 %v7221, %v3637
  %v7627 = vmul.f32 %v7222, %v3641
  %v7628 = vmul.f32 %v7223, %v3645
  %v7629 = vmul.f32 %v7224, %v3649
  %v7630 = vmul.f32 %v7225, %v3653
  %v7631 = vmul.f32 %v7226, %v3657
  %v7632 = vmul.f32 %v7227, %v3661
  %v7633 = vmul.f32 %v7228, %v3665
  %v7634 = vmul.f32 %v7229, %v3669
  %7644 = vrot.lane.b32.xlu0 %v7626, 120
  %v7645 = vpop.permute.xlu0 %7644
  %7646 = vrot.lane.b32.xlu0 %v7627, 120
  %v7647 = vpop.permute.xlu0 %7646
  %7648 = vrot.lane.b32.xlu0 %v7628, 120
  %v7649 = vpop.permute.xlu0 %7648
  %7650 = vrot.lane.b32.xlu0 %v7629, 120
  %v7651 = vpop.permute.xlu0 %7650
  %7652 = vrot.lane.b32.xlu0 %v7630, 120
  %v7653 = vpop.permute.xlu0 %7652
  %7654 = vrot.lane.b32.xlu0 %v7631, 120
  %v7655 = vpop.permute.xlu0 %7654
  %7656 = vrot.lane.b32.xlu0 %v7632, 120
  %v7657 = vpop.permute.xlu0 %7656
  %7658 = vrot.lane.b32.xlu0 %v7633, 120
  %v7659 = vpop.permute.xlu0 %7658
  %7660 = vrot.lane.b32.xlu0 %v7634, 120
  %v7661 = vpop.permute.xlu0 %7660
  %v7671 = vadd.f32 %v7617, %v7645
  %v7672 = vadd.f32 %v7618, %v7647
  %v7673 = vadd.f32 %v7619, %v7649
  %v7674 = vadd.f32 %v7620, %v7651
  %v7675 = vadd.f32 %v7621, %v7653
  %v7676 = vadd.f32 %v7622, %v7655
  %v7677 = vadd.f32 %v7623, %v7657
  %v7678 = vadd.f32 %v7624, %v7659
  %v7679 = vadd.f32 %v7625, %v7661
  %v7680 = vmul.f32 %v7221, %v3727
  %v7681 = vmul.f32 %v7222, %v3731
  %v7682 = vmul.f32 %v7223, %v3735
  %v7683 = vmul.f32 %v7224, %v3739
  %v7684 = vmul.f32 %v7225, %v3743
  %v7685 = vmul.f32 %v7226, %v3747
  %v7686 = vmul.f32 %v7227, %v3751
  %v7687 = vmul.f32 %v7228, %v3755
  %v7688 = vmul.f32 %v7229, %v3759
  %7698 = vrot.lane.b32.xlu0 %v7680, 119
  %v7699 = vpop.permute.xlu0 %7698
  %7700 = vrot.lane.b32.xlu0 %v7681, 119
  %v7701 = vpop.permute.xlu0 %7700
  %7702 = vrot.lane.b32.xlu0 %v7682, 119
  %v7703 = vpop.permute.xlu0 %7702
  %7704 = vrot.lane.b32.xlu0 %v7683, 119
  %v7705 = vpop.permute.xlu0 %7704
  %7706 = vrot.lane.b32.xlu0 %v7684, 119
  %v7707 = vpop.permute.xlu0 %7706
  %7708 = vrot.lane.b32.xlu0 %v7685, 119
  %v7709 = vpop.permute.xlu0 %7708
  %7710 = vrot.lane.b32.xlu0 %v7686, 119
  %v7711 = vpop.permute.xlu0 %7710
  %7712 = vrot.lane.b32.xlu0 %v7687, 119
  %v7713 = vpop.permute.xlu0 %7712
  %7714 = vrot.lane.b32.xlu0 %v7688, 119
  %v7715 = vpop.permute.xlu0 %7714
  %v7725 = vadd.f32 %v7671, %v7699
  %v7726 = vadd.f32 %v7672, %v7701
  %v7727 = vadd.f32 %v7673, %v7703
  %v7728 = vadd.f32 %v7674, %v7705
  %v7729 = vadd.f32 %v7675, %v7707
  %v7730 = vadd.f32 %v7676, %v7709
  %v7731 = vadd.f32 %v7677, %v7711
  %v7732 = vadd.f32 %v7678, %v7713
  %v7733 = vadd.f32 %v7679, %v7715
  %v7734 = vadd.f32 %v7725, %v3818
  %v7735 = vadd.f32 %v7726, %v3823
  %v7736 = vadd.f32 %v7727, %v3828
  %v7737 = vadd.f32 %v7728, %v3833
  %v7738 = vadd.f32 %v7729, %v3838
  %v7739 = vadd.f32 %v7730, %v3843
  %v7740 = vadd.f32 %v7731, %v3848
  %v7741 = vadd.f32 %v7732, %v3853
  %v7742 = vadd.f32 %v7733, %v3858
  %v7743 = vmax.f32 %v7734, 0.0
  %v7744 = vmax.f32 %v7735, 0.0
  %v7745 = vmax.f32 %v7736, 0.0
  %v7746 = vmax.f32 %v7737, 0.0
  %v7747 = vmax.f32 %v7738, 0.0
  %v7748 = vmax.f32 %v7739, 0.0
  %v7749 = vmax.f32 %v7740, 0.0
  %v7750 = vmax.f32 %v7741, 0.0
  %v7751 = vmax.f32 %v7742, 0.0
  %7761 = vrot.lane.b32.xlu0 %v7167, 4
  %v7762 = vpop.permute.xlu0 %7761
  %7763 = vrot.lane.b32.xlu0 %v7168, 4
  %v7764 = vpop.permute.xlu0 %7763
  %7765 = vrot.lane.b32.xlu0 %v7169, 4
  %v7766 = vpop.permute.xlu0 %7765
  %7767 = vrot.lane.b32.xlu0 %v7170, 4
  %v7768 = vpop.permute.xlu0 %7767
  %7769 = vrot.lane.b32.xlu0 %v7171, 4
  %v7770 = vpop.permute.xlu0 %7769
  %7771 = vrot.lane.b32.xlu0 %v7172, 4
  %v7772 = vpop.permute.xlu0 %7771
  %7773 = vrot.lane.b32.xlu0 %v7173, 4
  %v7774 = vpop.permute.xlu0 %7773
  %7775 = vrot.lane.b32.xlu0 %v7174, 4
  %v7776 = vpop.permute.xlu0 %7775
  %7777 = vrot.lane.b32.xlu0 %v7175, 4
  %v7778 = vpop.permute.xlu0 %7777
  %v7788 = vsel %vm832, 0.0, %v7762
  %v7789 = vsel %vm832, 0.0, %v7764
  %v7790 = vsel %vm832, 0.0, %v7766
  %v7791 = vsel %vm832, 0.0, %v7768
  %v7792 = vsel %vm832, 0.0, %v7770
  %v7793 = vsel %vm832, 0.0, %v7772
  %v7794 = vsel %vm832, 0.0, %v7774
  %v7795 = vsel %vm832, 0.0, %v7776
  %v7796 = vsel %vm832, 0.0, %v7778
  %v7797 = vsel %vm2932, %v7788, 0.0
  %v7798 = vsel %vm2932, %v7789, 0.0
  %v7799 = vsel %vm2932, %v7790, 0.0
  %v7800 = vsel %vm2932, %v7791, 0.0
  %v7801 = vsel %vm2932, %v7792, 0.0
  %v7802 = vsel %vm2932, %v7793, 0.0
  %v7803 = vsel %vm2932, %v7794, 0.0
  %v7804 = vsel %vm2932, %v7795, 0.0
  %v7805 = vsel %vm2932, %v7796, 0.0
  %v7806 = vmul.f32 %v7797, %v3935
  %v7807 = vmul.f32 %v7798, %v3940
  %v7808 = vmul.f32 %v7799, %v3945
  %v7809 = vmul.f32 %v7800, %v3950
  %v7810 = vmul.f32 %v7801, %v3955
  %v7811 = vmul.f32 %v7802, %v3960
  %v7812 = vmul.f32 %v7803, %v3965
  %v7813 = vmul.f32 %v7804, %v3970
  %v7814 = vmul.f32 %v7805, %v3975
  %v7815 = vadd.f32 %v7806, 0.0
  %v7816 = vadd.f32 %v7807, 0.0
  %v7817 = vadd.f32 %v7808, 0.0
  %v7818 = vadd.f32 %v7809, 0.0
  %v7819 = vadd.f32 %v7810, 0.0
  %v7820 = vadd.f32 %v7811, 0.0
  %v7821 = vadd.f32 %v7812, 0.0
  %v7822 = vadd.f32 %v7813, 0.0
  %v7823 = vadd.f32 %v7814, 0.0
  %v7824 = vmul.f32 %v7797, %v3997
  %v7825 = vmul.f32 %v7798, %v4001
  %v7826 = vmul.f32 %v7799, %v4005
  %v7827 = vmul.f32 %v7800, %v4009
  %v7828 = vmul.f32 %v7801, %v4013
  %v7829 = vmul.f32 %v7802, %v4017
  %v7830 = vmul.f32 %v7803, %v4021
  %v7831 = vmul.f32 %v7804, %v4025
  %v7832 = vmul.f32 %v7805, %v4029
  %7842 = vrot.lane.b32.xlu0 %v7824, 127
  %v7843 = vpop.permute.xlu0 %7842
  %7844 = vrot.lane.b32.xlu0 %v7825, 127
  %v7845 = vpop.permute.xlu0 %7844
  %7846 = vrot.lane.b32.xlu0 %v7826, 127
  %v7847 = vpop.permute.xlu0 %7846
  %7848 = vrot.lane.b32.xlu0 %v7827, 127
  %v7849 = vpop.permute.xlu0 %7848
  %7850 = vrot.lane.b32.xlu0 %v7828, 127
  %v7851 = vpop.permute.xlu0 %7850
  %7852 = vrot.lane.b32.xlu0 %v7829, 127
  %v7853 = vpop.permute.xlu0 %7852
  %7854 = vrot.lane.b32.xlu0 %v7830, 127
  %v7855 = vpop.permute.xlu0 %7854
  %7856 = vrot.lane.b32.xlu0 %v7831, 127
  %v7857 = vpop.permute.xlu0 %7856
  %7858 = vrot.lane.b32.xlu0 %v7832, 127
  %v7859 = vpop.permute.xlu0 %7858
  %v7869 = vadd.f32 %v7815, %v7843
  %v7870 = vadd.f32 %v7816, %v7845
  %v7871 = vadd.f32 %v7817, %v7847
  %v7872 = vadd.f32 %v7818, %v7849
  %v7873 = vadd.f32 %v7819, %v7851
  %v7874 = vadd.f32 %v7820, %v7853
  %v7875 = vadd.f32 %v7821, %v7855
  %v7876 = vadd.f32 %v7822, %v7857
  %v7877 = vadd.f32 %v7823, %v7859
  %v7878 = vmul.f32 %v7797, %v4087
  %v7879 = vmul.f32 %v7798, %v4091
  %v7880 = vmul.f32 %v7799, %v4095
  %v7881 = vmul.f32 %v7800, %v4099
  %v7882 = vmul.f32 %v7801, %v4103
  %v7883 = vmul.f32 %v7802, %v4107
  %v7884 = vmul.f32 %v7803, %v4111
  %v7885 = vmul.f32 %v7804, %v4115
  %v7886 = vmul.f32 %v7805, %v4119
  %7896 = vrot.lane.b32.xlu0 %v7878, 126
  %v7897 = vpop.permute.xlu0 %7896
  %7898 = vrot.lane.b32.xlu0 %v7879, 126
  %v7899 = vpop.permute.xlu0 %7898
  %7900 = vrot.lane.b32.xlu0 %v7880, 126
  %v7901 = vpop.permute.xlu0 %7900
  %7902 = vrot.lane.b32.xlu0 %v7881, 126
  %v7903 = vpop.permute.xlu0 %7902
  %7904 = vrot.lane.b32.xlu0 %v7882, 126
  %v7905 = vpop.permute.xlu0 %7904
  %7906 = vrot.lane.b32.xlu0 %v7883, 126
  %v7907 = vpop.permute.xlu0 %7906
  %7908 = vrot.lane.b32.xlu0 %v7884, 126
  %v7909 = vpop.permute.xlu0 %7908
  %7910 = vrot.lane.b32.xlu0 %v7885, 126
  %v7911 = vpop.permute.xlu0 %7910
  %7912 = vrot.lane.b32.xlu0 %v7886, 126
  %v7913 = vpop.permute.xlu0 %7912
  %v7923 = vadd.f32 %v7869, %v7897
  %v7924 = vadd.f32 %v7870, %v7899
  %v7925 = vadd.f32 %v7871, %v7901
  %v7926 = vadd.f32 %v7872, %v7903
  %v7927 = vadd.f32 %v7873, %v7905
  %v7928 = vadd.f32 %v7874, %v7907
  %v7929 = vadd.f32 %v7875, %v7909
  %v7930 = vadd.f32 %v7876, %v7911
  %v7931 = vadd.f32 %v7877, %v7913
  %v7932 = vmul.f32 %v7797, %v4177
  %v7933 = vmul.f32 %v7798, %v4181
  %v7934 = vmul.f32 %v7799, %v4185
  %v7935 = vmul.f32 %v7800, %v4189
  %v7936 = vmul.f32 %v7801, %v4193
  %v7937 = vmul.f32 %v7802, %v4197
  %v7938 = vmul.f32 %v7803, %v4201
  %v7939 = vmul.f32 %v7804, %v4205
  %v7940 = vmul.f32 %v7805, %v4209
  %7950 = vrot.lane.b32.xlu0 %v7932, 125
  %v7951 = vpop.permute.xlu0 %7950
  %7952 = vrot.lane.b32.xlu0 %v7933, 125
  %v7953 = vpop.permute.xlu0 %7952
  %7954 = vrot.lane.b32.xlu0 %v7934, 125
  %v7955 = vpop.permute.xlu0 %7954
  %7956 = vrot.lane.b32.xlu0 %v7935, 125
  %v7957 = vpop.permute.xlu0 %7956
  %7958 = vrot.lane.b32.xlu0 %v7936, 125
  %v7959 = vpop.permute.xlu0 %7958
  %7960 = vrot.lane.b32.xlu0 %v7937, 125
  %v7961 = vpop.permute.xlu0 %7960
  %7962 = vrot.lane.b32.xlu0 %v7938, 125
  %v7963 = vpop.permute.xlu0 %7962
  %7964 = vrot.lane.b32.xlu0 %v7939, 125
  %v7965 = vpop.permute.xlu0 %7964
  %7966 = vrot.lane.b32.xlu0 %v7940, 125
  %v7967 = vpop.permute.xlu0 %7966
  %v7977 = vadd.f32 %v7923, %v7951
  %v7978 = vadd.f32 %v7924, %v7953
  %v7979 = vadd.f32 %v7925, %v7955
  %v7980 = vadd.f32 %v7926, %v7957
  %v7981 = vadd.f32 %v7927, %v7959
  %v7982 = vadd.f32 %v7928, %v7961
  %v7983 = vadd.f32 %v7929, %v7963
  %v7984 = vadd.f32 %v7930, %v7965
  %v7985 = vadd.f32 %v7931, %v7967
  %v7986 = vmul.f32 %v7797, %v4267
  %v7987 = vmul.f32 %v7798, %v4271
  %v7988 = vmul.f32 %v7799, %v4275
  %v7989 = vmul.f32 %v7800, %v4279
  %v7990 = vmul.f32 %v7801, %v4283
  %v7991 = vmul.f32 %v7802, %v4287
  %v7992 = vmul.f32 %v7803, %v4291
  %v7993 = vmul.f32 %v7804, %v4295
  %v7994 = vmul.f32 %v7805, %v4299
  %8004 = vrot.lane.b32.xlu0 %v7986, 124
  %v8005 = vpop.permute.xlu0 %8004
  %8006 = vrot.lane.b32.xlu0 %v7987, 124
  %v8007 = vpop.permute.xlu0 %8006
  %8008 = vrot.lane.b32.xlu0 %v7988, 124
  %v8009 = vpop.permute.xlu0 %8008
  %8010 = vrot.lane.b32.xlu0 %v7989, 124
  %v8011 = vpop.permute.xlu0 %8010
  %8012 = vrot.lane.b32.xlu0 %v7990, 124
  %v8013 = vpop.permute.xlu0 %8012
  %8014 = vrot.lane.b32.xlu0 %v7991, 124
  %v8015 = vpop.permute.xlu0 %8014
  %8016 = vrot.lane.b32.xlu0 %v7992, 124
  %v8017 = vpop.permute.xlu0 %8016
  %8018 = vrot.lane.b32.xlu0 %v7993, 124
  %v8019 = vpop.permute.xlu0 %8018
  %8020 = vrot.lane.b32.xlu0 %v7994, 124
  %v8021 = vpop.permute.xlu0 %8020
  %v8031 = vadd.f32 %v7977, %v8005
  %v8032 = vadd.f32 %v7978, %v8007
  %v8033 = vadd.f32 %v7979, %v8009
  %v8034 = vadd.f32 %v7980, %v8011
  %v8035 = vadd.f32 %v7981, %v8013
  %v8036 = vadd.f32 %v7982, %v8015
  %v8037 = vadd.f32 %v7983, %v8017
  %v8038 = vadd.f32 %v7984, %v8019
  %v8039 = vadd.f32 %v7985, %v8021
  %v8040 = vmul.f32 %v7797, %v4357
  %v8041 = vmul.f32 %v7798, %v4361
  %v8042 = vmul.f32 %v7799, %v4365
  %v8043 = vmul.f32 %v7800, %v4369
  %v8044 = vmul.f32 %v7801, %v4373
  %v8045 = vmul.f32 %v7802, %v4377
  %v8046 = vmul.f32 %v7803, %v4381
  %v8047 = vmul.f32 %v7804, %v4385
  %v8048 = vmul.f32 %v7805, %v4389
  %8058 = vrot.lane.b32.xlu0 %v8040, 123
  %v8059 = vpop.permute.xlu0 %8058
  %8060 = vrot.lane.b32.xlu0 %v8041, 123
  %v8061 = vpop.permute.xlu0 %8060
  %8062 = vrot.lane.b32.xlu0 %v8042, 123
  %v8063 = vpop.permute.xlu0 %8062
  %8064 = vrot.lane.b32.xlu0 %v8043, 123
  %v8065 = vpop.permute.xlu0 %8064
  %8066 = vrot.lane.b32.xlu0 %v8044, 123
  %v8067 = vpop.permute.xlu0 %8066
  %8068 = vrot.lane.b32.xlu0 %v8045, 123
  %v8069 = vpop.permute.xlu0 %8068
  %8070 = vrot.lane.b32.xlu0 %v8046, 123
  %v8071 = vpop.permute.xlu0 %8070
  %8072 = vrot.lane.b32.xlu0 %v8047, 123
  %v8073 = vpop.permute.xlu0 %8072
  %8074 = vrot.lane.b32.xlu0 %v8048, 123
  %v8075 = vpop.permute.xlu0 %8074
  %v8085 = vadd.f32 %v8031, %v8059
  %v8086 = vadd.f32 %v8032, %v8061
  %v8087 = vadd.f32 %v8033, %v8063
  %v8088 = vadd.f32 %v8034, %v8065
  %v8089 = vadd.f32 %v8035, %v8067
  %v8090 = vadd.f32 %v8036, %v8069
  %v8091 = vadd.f32 %v8037, %v8071
  %v8092 = vadd.f32 %v8038, %v8073
  %v8093 = vadd.f32 %v8039, %v8075
  %v8094 = vmul.f32 %v7797, %v4447
  %v8095 = vmul.f32 %v7798, %v4451
  %v8096 = vmul.f32 %v7799, %v4455
  %v8097 = vmul.f32 %v7800, %v4459
  %v8098 = vmul.f32 %v7801, %v4463
  %v8099 = vmul.f32 %v7802, %v4467
  %v8100 = vmul.f32 %v7803, %v4471
  %v8101 = vmul.f32 %v7804, %v4475
  %v8102 = vmul.f32 %v7805, %v4479
  %8112 = vrot.lane.b32.xlu0 %v8094, 122
  %v8113 = vpop.permute.xlu0 %8112
  %8114 = vrot.lane.b32.xlu0 %v8095, 122
  %v8115 = vpop.permute.xlu0 %8114
  %8116 = vrot.lane.b32.xlu0 %v8096, 122
  %v8117 = vpop.permute.xlu0 %8116
  %8118 = vrot.lane.b32.xlu0 %v8097, 122
  %v8119 = vpop.permute.xlu0 %8118
  %8120 = vrot.lane.b32.xlu0 %v8098, 122
  %v8121 = vpop.permute.xlu0 %8120
  %8122 = vrot.lane.b32.xlu0 %v8099, 122
  %v8123 = vpop.permute.xlu0 %8122
  %8124 = vrot.lane.b32.xlu0 %v8100, 122
  %v8125 = vpop.permute.xlu0 %8124
  %8126 = vrot.lane.b32.xlu0 %v8101, 122
  %v8127 = vpop.permute.xlu0 %8126
  %8128 = vrot.lane.b32.xlu0 %v8102, 122
  %v8129 = vpop.permute.xlu0 %8128
  %v8139 = vadd.f32 %v8085, %v8113
  %v8140 = vadd.f32 %v8086, %v8115
  %v8141 = vadd.f32 %v8087, %v8117
  %v8142 = vadd.f32 %v8088, %v8119
  %v8143 = vadd.f32 %v8089, %v8121
  %v8144 = vadd.f32 %v8090, %v8123
  %v8145 = vadd.f32 %v8091, %v8125
  %v8146 = vadd.f32 %v8092, %v8127
  %v8147 = vadd.f32 %v8093, %v8129
  %v8148 = vmul.f32 %v7797, %v4537
  %v8149 = vmul.f32 %v7798, %v4541
  %v8150 = vmul.f32 %v7799, %v4545
  %v8151 = vmul.f32 %v7800, %v4549
  %v8152 = vmul.f32 %v7801, %v4553
  %v8153 = vmul.f32 %v7802, %v4557
  %v8154 = vmul.f32 %v7803, %v4561
  %v8155 = vmul.f32 %v7804, %v4565
  %v8156 = vmul.f32 %v7805, %v4569
  %8166 = vrot.lane.b32.xlu0 %v8148, 121
  %v8167 = vpop.permute.xlu0 %8166
  %8168 = vrot.lane.b32.xlu0 %v8149, 121
  %v8169 = vpop.permute.xlu0 %8168
  %8170 = vrot.lane.b32.xlu0 %v8150, 121
  %v8171 = vpop.permute.xlu0 %8170
  %8172 = vrot.lane.b32.xlu0 %v8151, 121
  %v8173 = vpop.permute.xlu0 %8172
  %8174 = vrot.lane.b32.xlu0 %v8152, 121
  %v8175 = vpop.permute.xlu0 %8174
  %8176 = vrot.lane.b32.xlu0 %v8153, 121
  %v8177 = vpop.permute.xlu0 %8176
  %8178 = vrot.lane.b32.xlu0 %v8154, 121
  %v8179 = vpop.permute.xlu0 %8178
  %8180 = vrot.lane.b32.xlu0 %v8155, 121
  %v8181 = vpop.permute.xlu0 %8180
  %8182 = vrot.lane.b32.xlu0 %v8156, 121
  %v8183 = vpop.permute.xlu0 %8182
  %v8193 = vadd.f32 %v8139, %v8167
  %v8194 = vadd.f32 %v8140, %v8169
  %v8195 = vadd.f32 %v8141, %v8171
  %v8196 = vadd.f32 %v8142, %v8173
  %v8197 = vadd.f32 %v8143, %v8175
  %v8198 = vadd.f32 %v8144, %v8177
  %v8199 = vadd.f32 %v8145, %v8179
  %v8200 = vadd.f32 %v8146, %v8181
  %v8201 = vadd.f32 %v8147, %v8183
  %v8202 = vmul.f32 %v7797, %v4627
  %v8203 = vmul.f32 %v7798, %v4631
  %v8204 = vmul.f32 %v7799, %v4635
  %v8205 = vmul.f32 %v7800, %v4639
  %v8206 = vmul.f32 %v7801, %v4643
  %v8207 = vmul.f32 %v7802, %v4647
  %v8208 = vmul.f32 %v7803, %v4651
  %v8209 = vmul.f32 %v7804, %v4655
  %v8210 = vmul.f32 %v7805, %v4659
  %8220 = vrot.lane.b32.xlu0 %v8202, 120
  %v8221 = vpop.permute.xlu0 %8220
  %8222 = vrot.lane.b32.xlu0 %v8203, 120
  %v8223 = vpop.permute.xlu0 %8222
  %8224 = vrot.lane.b32.xlu0 %v8204, 120
  %v8225 = vpop.permute.xlu0 %8224
  %8226 = vrot.lane.b32.xlu0 %v8205, 120
  %v8227 = vpop.permute.xlu0 %8226
  %8228 = vrot.lane.b32.xlu0 %v8206, 120
  %v8229 = vpop.permute.xlu0 %8228
  %8230 = vrot.lane.b32.xlu0 %v8207, 120
  %v8231 = vpop.permute.xlu0 %8230
  %8232 = vrot.lane.b32.xlu0 %v8208, 120
  %v8233 = vpop.permute.xlu0 %8232
  %8234 = vrot.lane.b32.xlu0 %v8209, 120
  %v8235 = vpop.permute.xlu0 %8234
  %8236 = vrot.lane.b32.xlu0 %v8210, 120
  %v8237 = vpop.permute.xlu0 %8236
  %v8247 = vadd.f32 %v8193, %v8221
  %v8248 = vadd.f32 %v8194, %v8223
  %v8249 = vadd.f32 %v8195, %v8225
  %v8250 = vadd.f32 %v8196, %v8227
  %v8251 = vadd.f32 %v8197, %v8229
  %v8252 = vadd.f32 %v8198, %v8231
  %v8253 = vadd.f32 %v8199, %v8233
  %v8254 = vadd.f32 %v8200, %v8235
  %v8255 = vadd.f32 %v8201, %v8237
  %v8256 = vmul.f32 %v7797, %v4717
  %v8257 = vmul.f32 %v7798, %v4721
  %v8258 = vmul.f32 %v7799, %v4725
  %v8259 = vmul.f32 %v7800, %v4729
  %v8260 = vmul.f32 %v7801, %v4733
  %v8261 = vmul.f32 %v7802, %v4737
  %v8262 = vmul.f32 %v7803, %v4741
  %v8263 = vmul.f32 %v7804, %v4745
  %v8264 = vmul.f32 %v7805, %v4749
  %8274 = vrot.lane.b32.xlu0 %v8256, 119
  %v8275 = vpop.permute.xlu0 %8274
  %8276 = vrot.lane.b32.xlu0 %v8257, 119
  %v8277 = vpop.permute.xlu0 %8276
  %8278 = vrot.lane.b32.xlu0 %v8258, 119
  %v8279 = vpop.permute.xlu0 %8278
  %8280 = vrot.lane.b32.xlu0 %v8259, 119
  %v8281 = vpop.permute.xlu0 %8280
  %8282 = vrot.lane.b32.xlu0 %v8260, 119
  %v8283 = vpop.permute.xlu0 %8282
  %8284 = vrot.lane.b32.xlu0 %v8261, 119
  %v8285 = vpop.permute.xlu0 %8284
  %8286 = vrot.lane.b32.xlu0 %v8262, 119
  %v8287 = vpop.permute.xlu0 %8286
  %8288 = vrot.lane.b32.xlu0 %v8263, 119
  %v8289 = vpop.permute.xlu0 %8288
  %8290 = vrot.lane.b32.xlu0 %v8264, 119
  %v8291 = vpop.permute.xlu0 %8290
  %v8301 = vadd.f32 %v8247, %v8275
  %v8302 = vadd.f32 %v8248, %v8277
  %v8303 = vadd.f32 %v8249, %v8279
  %v8304 = vadd.f32 %v8250, %v8281
  %v8305 = vadd.f32 %v8251, %v8283
  %v8306 = vadd.f32 %v8252, %v8285
  %v8307 = vadd.f32 %v8253, %v8287
  %v8308 = vadd.f32 %v8254, %v8289
  %v8309 = vadd.f32 %v8255, %v8291
  %v8310 = vadd.f32 %v8301, %v4808
  %v8311 = vadd.f32 %v8302, %v4813
  %v8312 = vadd.f32 %v8303, %v4818
  %v8313 = vadd.f32 %v8304, %v4823
  %v8314 = vadd.f32 %v8305, %v4828
  %v8315 = vadd.f32 %v8306, %v4833
  %v8316 = vadd.f32 %v8307, %v4838
  %v8317 = vadd.f32 %v8308, %v4843
  %v8318 = vadd.f32 %v8309, %v4848
  %v8319 = vmax.f32 %v8310, 0.0
  %v8320 = vmax.f32 %v8311, 0.0
  %v8321 = vmax.f32 %v8312, 0.0
  %v8322 = vmax.f32 %v8313, 0.0
  %v8323 = vmax.f32 %v8314, 0.0
  %v8324 = vmax.f32 %v8315, 0.0
  %v8325 = vmax.f32 %v8316, 0.0
  %v8326 = vmax.f32 %v8317, 0.0
  %v8327 = vmax.f32 %v8318, 0.0
  %v8328 = vpack.c.bf16 %v7744, %v7743
  %v8329 = vpack.c.bf16 %v7746, %v7745
  %v8330 = vpack.c.bf16 %v7748, %v7747
  %v8331 = vpack.c.bf16 %v7750, %v7749
  %v8332 = vpack.c.bf16 %v8319, %v7751
  %v8333 = vpack.c.bf16 %v8321, %v8320
  %v8334 = vpack.c.bf16 %v8323, %v8322
  %v8335 = vpack.c.bf16 %v8325, %v8324
  %v8336 = vpack.c.bf16 %v8327, %v8326
  %v8338 = vsel %vm4916, %v8328, 0
  %v8341 = vsel %vm4916, %v8329, 0
  %v8344 = vsel %vm4916, %v8330, 0
  %v8347 = vsel %vm4916, %v8331, 0
  %v8350 = vsel %vm4916, %v8332, 0
  %v8353 = vsel %vm4916, %v8333, 0
  %v8356 = vsel %vm4916, %v8334, 0
  %v8359 = vsel %vm4916, %v8335, 0
  %v8362 = vsel %vm4916, %v8336, 0
  %8364 = vmatpush.bf16.msra.mxu0 0
  %8365 = vmatpush.bf16.msra.mxu0 %v4949
  %8366 = vmatpush.bf16.msra.mxu0 %v4908
  %8367 = vmatpush.bf16.msra.mxu0 %v4907
  %8368 = vmatpush.bf16.msra.mxu0 %v4906
  %8369 = vmatpush.bf16.msra.mxu0 %v4905
  %8370 = vmatpush.bf16.msra.mxu0 %v4904
  %8371 = vmatpush.bf16.msra.mxu0 %v4903
  %8372 = vmatmul.bf16.gmra.mxu0 %v8338
  %v8373 = vpop.f32.mrf.mxu0
  %v8374 = vadd.f32 0.0, %v8373
  %v8375 = vpop.f32.mrf.mxu0
  %v8376 = vadd.f32 0.0, %v8375
  %8377 = vmatmul.bf16.gmra.mxu0 %v8341
  %v8378 = vpop.f32.mrf.mxu0
  %v8379 = vadd.f32 0.0, %v8378
  %v8380 = vpop.f32.mrf.mxu0
  %v8381 = vadd.f32 0.0, %v8380
  %8382 = vmatmul.bf16.gmra.mxu0 %v8344
  %v8383 = vpop.f32.mrf.mxu0
  %v8384 = vadd.f32 0.0, %v8383
  %v8385 = vpop.f32.mrf.mxu0
  %v8386 = vadd.f32 0.0, %v8385
  %8387 = vmatmul.bf16.gmra.mxu0 %v8347
  %v8388 = vpop.f32.mrf.mxu0
  %v8389 = vadd.f32 0.0, %v8388
  %v8390 = vpop.f32.mrf.mxu0
  %v8391 = vadd.f32 0.0, %v8390
  %8392 = vmatmul.bf16.gmra.mxu0 %v8350
  %v8393 = vpop.f32.mrf.mxu0
  %v8394 = vadd.f32 0.0, %v8393
  %v8395 = vpop.f32.mrf.mxu0
  %v8396 = vadd.f32 0.0, %v8395
  %8397 = vmatmul.bf16.gmra.mxu0 %v8353
  %v8398 = vpop.f32.mrf.mxu0
  %v8399 = vadd.f32 0.0, %v8398
  %v8400 = vpop.f32.mrf.mxu0
  %v8401 = vadd.f32 0.0, %v8400
  %8402 = vmatmul.bf16.gmra.mxu0 %v8356
  %v8403 = vpop.f32.mrf.mxu0
  %v8404 = vadd.f32 0.0, %v8403
  %v8405 = vpop.f32.mrf.mxu0
  %v8406 = vadd.f32 0.0, %v8405
  %8407 = vmatmul.bf16.gmra.mxu0 %v8359
  %v8408 = vpop.f32.mrf.mxu0
  %v8409 = vadd.f32 0.0, %v8408
  %v8410 = vpop.f32.mrf.mxu0
  %v8411 = vadd.f32 0.0, %v8410
  %8412 = vmatmul.bf16.gmra.mxu0 %v8362
  %v8413 = vpop.f32.mrf.mxu0
  %v8414 = vadd.f32 0.0, %v8413
  %v8415 = vpop.f32.mrf.mxu0
  %v8416 = vadd.f32 0.0, %v8415
  %8417 = vdwg.mxu0
  %v8418 = vpack.c.bf16 %v8376, %v8374
  %v8419 = vpack.c.bf16 %v8381, %v8379
  %v8420 = vpack.c.bf16 %v8386, %v8384
  %v8421 = vpack.c.bf16 %v8391, %v8389
  %v8422 = vpack.c.bf16 %v8396, %v8394
  %v8423 = vpack.c.bf16 %v8401, %v8399
  %v8424 = vpack.c.bf16 %v8406, %v8404
  %v8425 = vpack.c.bf16 %v8411, %v8409
  %v8426 = vpack.c.bf16 %v8416, %v8414
  %8427 = vmatpush.bf16.msra.mxu0 %v8425
  %8428 = vmatpush.bf16.msra.mxu0 %v8424
  %8429 = vmatpush.bf16.msra.mxu0 %v8423
  %8430 = vmatpush.bf16.msra.mxu0 %v8422
  %8431 = vmatpush.bf16.msra.mxu0 %v8421
  %8432 = vmatpush.bf16.msra.mxu0 %v8420
  %8433 = vmatpush.bf16.msra.mxu0 %v8419
  %8434 = vmatpush.bf16.msra.mxu0 %v8418
  %8435 = vmatmul.bf16.gmra.mxu0 %v5038
  %v8436 = vpop.f32.mrf.mxu0
  %v8437 = vadd.f32 %v5017, %v8436
  %v8438 = vpop.f32.mrf.mxu0
  %v8439 = vadd.f32 %v5022, %v8438
  %8440 = vmatmul.bf16.gmra.mxu0 %v5040
  %v8441 = vpop.f32.mrf.mxu0
  %v8442 = vadd.f32 %v5027, %v8441
  %v8443 = vpop.f32.mrf.mxu0
  %8444 = vdwg.mxu0
  %8445 = vmatpush.bf16.msra.mxu0 0
  %8446 = vmatpush.bf16.msra.mxu0 0
  %8447 = vmatpush.bf16.msra.mxu0 0
  %8448 = vmatpush.bf16.msra.mxu0 0
  %8449 = vmatpush.bf16.msra.mxu0 0
  %8450 = vmatpush.bf16.msra.mxu0 0
  %8451 = vmatpush.bf16.msra.mxu0 0
  %8452 = vmatpush.bf16.msra.mxu0 %v8426
  %8453 = vmatmul.bf16.gmra.mxu0 %v5046
  %v8454 = vpop.f32.mrf.mxu0
  %v8455 = vadd.f32 %v8437, %v8454
  %v8456 = vpop.f32.mrf.mxu0
  %v8457 = vadd.f32 %v8439, %v8456
  %8458 = vmatmul.bf16.gmra.mxu0 %v5049
  %v8459 = vpop.f32.mrf.mxu0
  %v8460 = vadd.f32 %v8442, %v8459
  %v8461 = vpop.f32.mrf.mxu0
  %8462 = vdwg.mxu0
  %v8463 = vmul.f32 %v8455, %v5090
  %v8464 = vmul.f32 %v8457, %v5095
  %v8465 = vmul.f32 %v8460, %v5100
  %v8466 = vadd.f32 %v8463, 0.0
  %v8467 = vadd.f32 %v8464, 0.0
  %v8468 = vadd.f32 %v8465, 0.0
  %v8469 = vmul.f32 %v8455, %v5110
  %v8470 = vmul.f32 %v8457, %v5114
  %v8471 = vmul.f32 %v8460, %v5118
  %8475 = vrot.lane.b32.xlu0 %v8469, 127
  %v8476 = vpop.permute.xlu0 %8475
  %8477 = vrot.lane.b32.xlu0 %v8470, 127
  %v8478 = vpop.permute.xlu0 %8477
  %8479 = vrot.lane.b32.xlu0 %v8471, 127
  %v8480 = vpop.permute.xlu0 %8479
  %v8484 = vadd.f32 %v8466, %v8476
  %v8485 = vadd.f32 %v8467, %v8478
  %v8486 = vadd.f32 %v8468, %v8480
  %v8487 = vmul.f32 %v8455, %v5140
  %v8488 = vmul.f32 %v8457, %v5144
  %v8489 = vmul.f32 %v8460, %v5148
  %8493 = vrot.lane.b32.xlu0 %v8487, 126
  %v8494 = vpop.permute.xlu0 %8493
  %8495 = vrot.lane.b32.xlu0 %v8488, 126
  %v8496 = vpop.permute.xlu0 %8495
  %8497 = vrot.lane.b32.xlu0 %v8489, 126
  %v8498 = vpop.permute.xlu0 %8497
  %v8502 = vadd.f32 %v8484, %v8494
  %v8503 = vadd.f32 %v8485, %v8496
  %v8504 = vadd.f32 %v8486, %v8498
  %v8505 = vmul.f32 %v8455, %v5170
  %v8506 = vmul.f32 %v8457, %v5174
  %v8507 = vmul.f32 %v8460, %v5178
  %8511 = vrot.lane.b32.xlu0 %v8505, 125
  %v8512 = vpop.permute.xlu0 %8511
  %8513 = vrot.lane.b32.xlu0 %v8506, 125
  %v8514 = vpop.permute.xlu0 %8513
  %8515 = vrot.lane.b32.xlu0 %v8507, 125
  %v8516 = vpop.permute.xlu0 %8515
  %v8520 = vadd.f32 %v8502, %v8512
  %v8521 = vadd.f32 %v8503, %v8514
  %v8522 = vadd.f32 %v8504, %v8516
  %v8523 = vmul.f32 %v8455, %v5200
  %v8524 = vmul.f32 %v8457, %v5204
  %v8525 = vmul.f32 %v8460, %v5208
  %8529 = vrot.lane.b32.xlu0 %v8523, 124
  %v8530 = vpop.permute.xlu0 %8529
  %8531 = vrot.lane.b32.xlu0 %v8524, 124
  %v8532 = vpop.permute.xlu0 %8531
  %8533 = vrot.lane.b32.xlu0 %v8525, 124
  %v8534 = vpop.permute.xlu0 %8533
  %v8538 = vadd.f32 %v8520, %v8530
  %v8539 = vadd.f32 %v8521, %v8532
  %v8540 = vadd.f32 %v8522, %v8534
  %v8541 = vmul.f32 %v8455, %v5230
  %v8542 = vmul.f32 %v8457, %v5234
  %v8543 = vmul.f32 %v8460, %v5238
  %8547 = vrot.lane.b32.xlu0 %v8541, 123
  %v8548 = vpop.permute.xlu0 %8547
  %8549 = vrot.lane.b32.xlu0 %v8542, 123
  %v8550 = vpop.permute.xlu0 %8549
  %8551 = vrot.lane.b32.xlu0 %v8543, 123
  %v8552 = vpop.permute.xlu0 %8551
  %v8556 = vadd.f32 %v8538, %v8548
  %v8557 = vadd.f32 %v8539, %v8550
  %v8558 = vadd.f32 %v8540, %v8552
  %v8559 = vmul.f32 %v8455, %v5260
  %v8560 = vmul.f32 %v8457, %v5264
  %v8561 = vmul.f32 %v8460, %v5268
  %8565 = vrot.lane.b32.xlu0 %v8559, 122
  %v8566 = vpop.permute.xlu0 %8565
  %8567 = vrot.lane.b32.xlu0 %v8560, 122
  %v8568 = vpop.permute.xlu0 %8567
  %8569 = vrot.lane.b32.xlu0 %v8561, 122
  %v8570 = vpop.permute.xlu0 %8569
  %v8574 = vadd.f32 %v8556, %v8566
  %v8575 = vadd.f32 %v8557, %v8568
  %v8576 = vadd.f32 %v8558, %v8570
  %v8577 = vmul.f32 %v8455, %v5290
  %v8578 = vmul.f32 %v8457, %v5294
  %v8579 = vmul.f32 %v8460, %v5298
  %8583 = vrot.lane.b32.xlu0 %v8577, 121
  %v8584 = vpop.permute.xlu0 %8583
  %8585 = vrot.lane.b32.xlu0 %v8578, 121
  %v8586 = vpop.permute.xlu0 %8585
  %8587 = vrot.lane.b32.xlu0 %v8579, 121
  %v8588 = vpop.permute.xlu0 %8587
  %v8592 = vadd.f32 %v8574, %v8584
  %v8593 = vadd.f32 %v8575, %v8586
  %v8594 = vadd.f32 %v8576, %v8588
  %v8595 = vmul.f32 %v8455, %v5320
  %v8596 = vmul.f32 %v8457, %v5324
  %v8597 = vmul.f32 %v8460, %v5328
  %8601 = vrot.lane.b32.xlu0 %v8595, 120
  %v8602 = vpop.permute.xlu0 %8601
  %8603 = vrot.lane.b32.xlu0 %v8596, 120
  %v8604 = vpop.permute.xlu0 %8603
  %8605 = vrot.lane.b32.xlu0 %v8597, 120
  %v8606 = vpop.permute.xlu0 %8605
  %v8610 = vadd.f32 %v8592, %v8602
  %v8611 = vadd.f32 %v8593, %v8604
  %v8612 = vadd.f32 %v8594, %v8606
  %v8613 = vmul.f32 %v8455, %v5350
  %v8614 = vmul.f32 %v8457, %v5354
  %v8615 = vmul.f32 %v8460, %v5358
  %8619 = vrot.lane.b32.xlu0 %v8613, 119
  %v8620 = vpop.permute.xlu0 %8619
  %8621 = vrot.lane.b32.xlu0 %v8614, 119
  %v8622 = vpop.permute.xlu0 %8621
  %8623 = vrot.lane.b32.xlu0 %v8615, 119
  %v8624 = vpop.permute.xlu0 %8623
  %v8628 = vadd.f32 %v8610, %v8620
  %v8629 = vadd.f32 %v8611, %v8622
  %v8630 = vadd.f32 %v8612, %v8624
  %v8631 = vpack.c.bf16 %v8629, %v8628
  %v8632 = vpack.c.bf16 %v8630, %v8630
  %v8634 = vsel %vm437, %v8632, 0
  %8636 = vmatpush.bf16.msra.mxu0 0
  %8637 = vmatpush.bf16.msra.mxu0 0
  %8638 = vmatpush.bf16.msra.mxu0 0
  %8639 = vmatpush.bf16.msra.mxu0 0
  %8640 = vmatpush.bf16.msra.mxu0 0
  %8641 = vmatpush.bf16.msra.mxu0 0
  %8642 = vmatpush.bf16.msra.mxu0 %v8634
  %8643 = vmatpush.bf16.msra.mxu0 %v8631
  %8644 = vmatmul.bf16.gmra.mxu0 %v5404
  %v8645 = vpop.f32.mrf.mxu0
  %v8646 = vadd.f32 %v5383, %v8645
  %v8647 = vpop.f32.mrf.mxu0
  %v8648 = vadd.f32 %v5388, %v8647
  %8649 = vmatmul.bf16.gmra.mxu0 %v5407
  %v8650 = vpop.f32.mrf.mxu0
  %v8651 = vadd.f32 %v5393, %v8650
  %v8652 = vpop.f32.mrf.mxu0
  %8653 = vdwg.mxu0
  %v8654 = vsel %vm5430, %v8646, -inf
  %8655 = vmax.xlane.f32.xlu0 %v8654
  %v8656 = vpop.xlane.xlu0 %8655
  %v8657 = vsel %vm5430, %v8648, -inf
  %8658 = vmax.xlane.f32.xlu0 %v8657
  %v8659 = vpop.xlane.xlu0 %8658
  %v8660 = vsel %vm5430, %v8651, -inf
  %8661 = vmax.xlane.f32.xlu0 %v8660
  %v8662 = vpop.xlane.xlu0 %8661
  %v8663 = vsel %vm5440, %v8646, -inf
  %8664 = vmax.xlane.f32.xlu0 %v8663
  %v8665 = vpop.xlane.xlu0 %8664
  %v8666 = vsel %vm5440, %v8648, -inf
  %8667 = vmax.xlane.f32.xlu0 %v8666
  %v8668 = vpop.xlane.xlu0 %8667
  %v8669 = vsel %vm5440, %v8651, -inf
  %8670 = vmax.xlane.f32.xlu0 %v8669
  %v8671 = vpop.xlane.xlu0 %8670
  %v8672 = vsel %vm5450, %v8646, -inf
  %8673 = vmax.xlane.f32.xlu0 %v8672
  %v8674 = vpop.xlane.xlu0 %8673
  %v8675 = vsel %vm5450, %v8648, -inf
  %8676 = vmax.xlane.f32.xlu0 %v8675
  %v8677 = vpop.xlane.xlu0 %8676
  %v8678 = vsel %vm5450, %v8651, -inf
  %8679 = vmax.xlane.f32.xlu0 %v8678
  %v8680 = vpop.xlane.xlu0 %8679
  %v8681 = vsel %vm5460, %v8646, -inf
  %8682 = vmax.xlane.f32.xlu0 %v8681
  %v8683 = vpop.xlane.xlu0 %8682
  %v8684 = vsel %vm5460, %v8648, -inf
  %8685 = vmax.xlane.f32.xlu0 %v8684
  %v8686 = vpop.xlane.xlu0 %8685
  %v8687 = vsel %vm5460, %v8651, -inf
  %8688 = vmax.xlane.f32.xlu0 %v8687
  %v8689 = vpop.xlane.xlu0 %8688
  %8702 = vrot.lane.b32.xlu0 %v8656, 1
  %v8703 = vpop.permute.xlu0 %8702
  %8704 = vrot.lane.b32.xlu0 %v8659, 1
  %v8705 = vpop.permute.xlu0 %8704
  %8706 = vrot.lane.b32.xlu0 %v8662, 1
  %v8707 = vpop.permute.xlu0 %8706
  %8708 = vrot.lane.b32.xlu0 %v8665, 1
  %v8709 = vpop.permute.xlu0 %8708
  %8710 = vrot.lane.b32.xlu0 %v8668, 1
  %v8711 = vpop.permute.xlu0 %8710
  %8712 = vrot.lane.b32.xlu0 %v8671, 1
  %v8713 = vpop.permute.xlu0 %8712
  %8714 = vrot.lane.b32.xlu0 %v8674, 1
  %v8715 = vpop.permute.xlu0 %8714
  %8716 = vrot.lane.b32.xlu0 %v8677, 1
  %v8717 = vpop.permute.xlu0 %8716
  %8718 = vrot.lane.b32.xlu0 %v8680, 1
  %v8719 = vpop.permute.xlu0 %8718
  %8720 = vrot.lane.b32.xlu0 %v8683, 1
  %v8721 = vpop.permute.xlu0 %8720
  %8722 = vrot.lane.b32.xlu0 %v8686, 1
  %v8723 = vpop.permute.xlu0 %8722
  %8724 = vrot.lane.b32.xlu0 %v8689, 1
  %v8725 = vpop.permute.xlu0 %8724
  %vm8738 = vcmask 7168
  %v8739 = vsel %vm8738, %v5433, %v8703
  %v8740 = vsel %vm8738, %v5436, %v8705
  %v8741 = vsel %vm8738, %v5439, %v8707
  %v8742 = vsel %vm8738, %v5443, %v8709
  %v8743 = vsel %vm8738, %v5446, %v8711
  %v8744 = vsel %vm8738, %v5449, %v8713
  %v8745 = vsel %vm8738, %v5453, %v8715
  %v8746 = vsel %vm8738, %v5456, %v8717
  %v8747 = vsel %vm8738, %v5459, %v8719
  %v8748 = vsel %vm8738, %v5463, %v8721
  %v8749 = vsel %vm8738, %v5466, %v8723
  %v8750 = vsel %vm8738, %v5469, %v8725
  %v8751 = vpack.c.bf16 %v8740, %v8739
  %v8752 = vpack.c.bf16 %v8742, %v8741
  %v8753 = vpack.c.bf16 %v8744, %v8743
  %v8754 = vpack.c.bf16 %v8746, %v8745
  %v8755 = vpack.c.bf16 %v8748, %v8747
  %v8756 = vpack.c.bf16 %v8750, %v8749
  %8758 = vset.pattern.permute.xlu0 0
  %8759 = vperm.xlu0 %8758, %v316
  %v8760 = vpop.permute.xlu0 %8759
  %8763 = vset.pattern.permute.xlu0 0
  %8764 = vperm.xlu0 %8763, %v317
  %v8765 = vpop.permute.xlu0 %8764
  %8768 = vset.pattern.permute.xlu0 0
  %8769 = vperm.xlu0 %8768, %v318
  %v8770 = vpop.permute.xlu0 %8769
  %8773 = vset.pattern.permute.xlu0 0
  %8774 = vperm.xlu0 %8773, %v319
  %v8775 = vpop.permute.xlu0 %8774
  %8778 = vset.pattern.permute.xlu0 0
  %8779 = vperm.xlu0 %8778, %v320
  %v8780 = vpop.permute.xlu0 %8779
  %8783 = vset.pattern.permute.xlu0 0
  %8784 = vperm.xlu0 %8783, %v321
  %v8785 = vpop.permute.xlu0 %8784
  %8788 = vset.pattern.permute.xlu0 0
  %8789 = vperm.xlu0 %8788, %v322
  %v8790 = vpop.permute.xlu0 %8789
  %8793 = vset.pattern.permute.xlu0 0
  %8794 = vperm.xlu0 %8793, %v323
  %v8795 = vpop.permute.xlu0 %8794
  %8798 = vset.pattern.permute.xlu0 0
  %8799 = vperm.xlu0 %8798, %v324
  %v8800 = vpop.permute.xlu0 %8799
  %8803 = vset.pattern.permute.xlu0 0
  %8804 = vperm.xlu0 %8803, %v325
  %v8805 = vpop.permute.xlu0 %8804
  %v8817 = vunpack.c.l.b16 %v306
  %v8818 = vunpack.c.l.b16 %v307
  %v8819 = vunpack.c.l.b16 %v308
  %v8820 = vunpack.c.l.b16 %v309
  %v8821 = vunpack.c.l.b16 %v310
  %v8822 = vunpack.c.l.b16 %v311
  %v8823 = vunpack.c.l.b16 %v312
  %v8824 = vunpack.c.l.b16 %v313
  %v8825 = vunpack.c.l.b16 %v314
  %v8826 = vunpack.c.l.b16 %v315
  %v8827 = vpack.c.b16 %v8818, %v8817
  %v8828 = vpack.c.b16 %v8820, %v8819
  %v8829 = vpack.c.b16 %v8822, %v8821
  %v8830 = vpack.c.b16 %v8824, %v8823
  %v8831 = vpack.c.b16 %v8826, %v8825
  %vm8832 = vcmask 785408
  %v8834 = vsel %vm8832, %v8827, 0
  %v8837 = vsel %vm8832, %v8828, 0
  %v8840 = vsel %vm8832, %v8829, 0
  %v8843 = vsel %vm8832, %v8830, 0
  %v8846 = vsel %vm8832, %v8831, 0
  %8848 = vmatpush.bf16.msra.mxu0 0
  %8849 = vmatpush.bf16.msra.mxu0 0
  %8850 = vmatpush.bf16.msra.mxu0 %v8756
  %8851 = vmatpush.bf16.msra.mxu0 %v8755
  %8852 = vmatpush.bf16.msra.mxu0 %v8754
  %8853 = vmatpush.bf16.msra.mxu0 %v8753
  %8854 = vmatpush.bf16.msra.mxu0 %v8752
  %8855 = vmatpush.bf16.msra.mxu0 %v8751
  %8856 = vmatmul.bf16.gmra.mxu0 %v8834
  %v8857 = vpop.f32.mrf.mxu0
  %v8858 = vadd.f32 %v8760, %v8857
  %v8859 = vpop.f32.mrf.mxu0
  %v8860 = vadd.f32 %v8765, %v8859
  %8861 = vmatmul.bf16.gmra.mxu0 %v8837
  %v8862 = vpop.f32.mrf.mxu0
  %v8863 = vadd.f32 %v8770, %v8862
  %v8864 = vpop.f32.mrf.mxu0
  %v8865 = vadd.f32 %v8775, %v8864
  %8866 = vmatmul.bf16.gmra.mxu0 %v8840
  %v8867 = vpop.f32.mrf.mxu0
  %v8868 = vadd.f32 %v8780, %v8867
  %v8869 = vpop.f32.mrf.mxu0
  %v8870 = vadd.f32 %v8785, %v8869
  %8871 = vmatmul.bf16.gmra.mxu0 %v8843
  %v8872 = vpop.f32.mrf.mxu0
  %v8873 = vadd.f32 %v8790, %v8872
  %v8874 = vpop.f32.mrf.mxu0
  %v8875 = vadd.f32 %v8795, %v8874
  %8876 = vmatmul.bf16.gmra.mxu0 %v8846
  %v8877 = vpop.f32.mrf.mxu0
  %v8878 = vadd.f32 %v8800, %v8877
  %v8879 = vpop.f32.mrf.mxu0
  %v8880 = vadd.f32 %v8805, %v8879
  %8881 = vdwg.mxu0
  %v8882 = vmax.f32 %v8858, 0.0
  %v8883 = vmax.f32 %v8860, 0.0
  %v8884 = vmax.f32 %v8863, 0.0
  %v8885 = vmax.f32 %v8865, 0.0
  %v8886 = vmax.f32 %v8868, 0.0
  %v8887 = vmax.f32 %v8870, 0.0
  %v8888 = vmax.f32 %v8873, 0.0
  %v8889 = vmax.f32 %v8875, 0.0
  %v8890 = vmax.f32 %v8878, 0.0
  %v8891 = vmax.f32 %v8880, 0.0
  %v8892 = vpack.c.bf16 %v8883, %v8882
  %v8893 = vpack.c.bf16 %v8885, %v8884
  %v8894 = vpack.c.bf16 %v8887, %v8886
  %v8895 = vpack.c.bf16 %v8889, %v8888
  %v8896 = vpack.c.bf16 %v8891, %v8890
  %8898 = vset.pattern.permute.xlu0 0
  %8899 = vperm.xlu0 %8898, %v331
  %v8900 = vpop.permute.xlu0 %8899
  %8903 = vset.pattern.permute.xlu0 0
  %8904 = vperm.xlu0 %8903, %v332
  %v8905 = vpop.permute.xlu0 %8904
  %8908 = vset.pattern.permute.xlu0 0
  %8909 = vperm.xlu0 %8908, %v333
  %v8910 = vpop.permute.xlu0 %8909
  %8913 = vset.pattern.permute.xlu0 0
  %8914 = vperm.xlu0 %8913, %v334
  %v8915 = vpop.permute.xlu0 %8914
  %8918 = vset.pattern.permute.xlu0 0
  %8919 = vperm.xlu0 %8918, %v335
  %v8920 = vpop.permute.xlu0 %8919
  %v8927 = vunpack.c.l.b16 %v326
  %v8928 = vunpack.c.l.b16 %v327
  %v8929 = vunpack.c.l.b16 %v328
  %v8930 = vunpack.c.l.b16 %v329
  %v8931 = vunpack.c.l.b16 %v330
  %v8932 = vpack.c.b16 %v8928, %v8927
  %v8933 = vpack.c.b16 %v8930, %v8929
  %v8934 = vpack.c.b16 %v8931, %v8931
  %vm8935 = vcmask 654336
  %v8937 = vsel %vm8935, %v8932, 0
  %v8940 = vsel %vm8935, %v8933, 0
  %v8943 = vsel %vm8935, %v8934, 0
  %8945 = vmatpush.bf16.msra.mxu0 0
  %8946 = vmatpush.bf16.msra.mxu0 0
  %8947 = vmatpush.bf16.msra.mxu0 0
  %8948 = vmatpush.bf16.msra.mxu0 %v8896
  %8949 = vmatpush.bf16.msra.mxu0 %v8895
  %8950 = vmatpush.bf16.msra.mxu0 %v8894
  %8951 = vmatpush.bf16.msra.mxu0 %v8893
  %8952 = vmatpush.bf16.msra.mxu0 %v8892
  %8953 = vmatmul.bf16.gmra.mxu0 %v8937
  %v8954 = vpop.f32.mrf.mxu0
  %v8955 = vadd.f32 %v8900, %v8954
  %v8956 = vpop.f32.mrf.mxu0
  %v8957 = vadd.f32 %v8905, %v8956
  %8958 = vmatmul.bf16.gmra.mxu0 %v8940
  %v8959 = vpop.f32.mrf.mxu0
  %v8960 = vadd.f32 %v8910, %v8959
  %v8961 = vpop.f32.mrf.mxu0
  %v8962 = vadd.f32 %v8915, %v8961
  %8963 = vmatmul.bf16.gmra.mxu0 %v8943
  %v8964 = vpop.f32.mrf.mxu0
  %v8965 = vadd.f32 %v8920, %v8964
  %v8966 = vpop.f32.mrf.mxu0
  %8967 = vdwg.mxu0
  %v8968 = vmax.f32 %v8955, 0.0
  %v8969 = vmax.f32 %v8957, 0.0
  %v8970 = vmax.f32 %v8960, 0.0
  %v8971 = vmax.f32 %v8962, 0.0
  %v8972 = vmax.f32 %v8965, 0.0
  %v8973 = vpack.c.bf16 %v8969, %v8968
  %v8974 = vpack.c.bf16 %v8971, %v8970
  %v8975 = vpack.c.bf16 %v8972, %v8972
  %8977 = vset.pattern.permute.xlu0 0
  %8978 = vperm.xlu0 %8977, %v338
  %v8979 = vpop.permute.xlu0 %8978
  %8982 = vset.pattern.permute.xlu0 0
  %8983 = vperm.xlu0 %8982, %v339
  %v8984 = vpop.permute.xlu0 %8983
  %v8988 = vunpack.c.l.b16 %v336
  %v8989 = vunpack.c.l.b16 %v337
  %v8990 = vpack.c.b16 %v8989, %v8988
  %vm8991 = vcmask 326656
  %v8993 = vsel %vm8991, %v8990, 0
  %v8996 = vsel %vm437, %v8975, 0
  %8998 = vmatpush.bf16.msra.mxu0 0
  %8999 = vmatpush.bf16.msra.mxu0 0
  %9000 = vmatpush.bf16.msra.mxu0 0
  %9001 = vmatpush.bf16.msra.mxu0 0
  %9002 = vmatpush.bf16.msra.mxu0 0
  %9003 = vmatpush.bf16.msra.mxu0 %v8996
  %9004 = vmatpush.bf16.msra.mxu0 %v8974
  %9005 = vmatpush.bf16.msra.mxu0 %v8973
  %9006 = vmatmul.bf16.gmra.mxu0 %v8993
  %v9007 = vpop.f32.mrf.mxu0
  %v9008 = vadd.f32 %v8979, %v9007
  %v9009 = vpop.f32.mrf.mxu0
  %v9010 = vadd.f32 %v8984, %v9009
  %9011 = vdwg.mxu0
  %vm9012 = vcmask 15360
  %9013 = vst.msk [vmem:[%s61] sm:$0xff] %vm9012, %v9008
  %vm9014 = vcmask 9216
  %9015 = vst.msk [vmem:[%s61 + $0x8] sm:$0x3] %vm9014, %v9010
  // Predicated region
  $region122: #{gesture_net_forward.1} parent=0 // pred_check
    _
  $region123: #{gesture_net_forward.1} parent=0 // pred_check_branch
    %9017 = sbr.rel (0) target = $region125
  $region124: #{gesture_net_forward.1} parent=0 // pred_region
    _
  $region125: #{gesture_net_forward.1} parent=0 // pred_fallthru
    _
  // Predicated region
  $region126: #{gesture_net_forward.1} parent=0 // pred_check
    _
  $region127: #{gesture_net_forward.1} parent=0 // pred_check_branch
    %9019 = sbr.rel (0) target = $region129
  $region128: #{gesture_net_forward.1} parent=0 // pred_region
    _
  $region129: #{gesture_net_forward.1} parent=0 // pred_fallthru
    _

</llo_original>
